<compile_context>
chip_gen: v5e
topology: v5e:2x2
jax: 0.10.0
libtpu: 0.0.40
codegen_flags: <defaults>
</compile_context>

<pallas_src>
import functools
import math

import jax
import jax.numpy as jnp
from jax.experimental import pallas as pl
from jax.experimental.pallas import tpu as pltpu

BN_EPS = 1e-5
TK_MAX = 4096        # largest single K tile (bf16) -> A blocks stay small in VMEM
TM_DEFAULT = 256     # M (= rows of output positions) tile; raise for large images

# (cin, cout, kh, kw, has_bn, relu)
LAYERS = [
    (5, 128, 5, 5, True, True),    # conv1 + bn1 + relu
    (128, 64, 5, 5, True, True),   # conv2 + bn2 + relu
    (64, 64, 3, 3, True, True),    # conv3 + bn3 + relu
    (64, 64, 3, 3, True, True),    # conv4 + bn4 + relu
    (64, 8, 3, 70, True, True),    # conv5 + bn5 + relu
    (8, 1, 1, 1, False, False),    # conv6 (no bn, no relu)
]


def _round_up(x, m):
    return ((x + m - 1) // m) * m


def _k_padded(k):
    kp = _round_up(k, 128)
    if kp > TK_MAX:
        kp = _round_up(kp, TK_MAX)
    return kp


# --------------------------------------------------------------------------
# Pallas kernel: (M, K)-tiled GEMM + fused per-channel affine (+ReLU)
#                (+ optional fused 1x1-conv epilogue)
# --------------------------------------------------------------------------
def _gemm_bn_act_kernel(*refs, apply_relu, fuse_1x1):
    if fuse_1x1:
        a_ref, b_ref, scale_ref, bias_ref, w6_ref, b6_ref, o_ref, acc_ref = refs
    else:
        a_ref, b_ref, scale_ref, bias_ref, o_ref, acc_ref = refs
        w6_ref = b6_ref = None

    k = pl.program_id(1)
    nk = pl.num_programs(1)

    prod = jnp.dot(a_ref[...], b_ref[...], preferred_element_type=jnp.float32)

    @pl.when(k == 0)
    def _():
        acc_ref[...] = prod          # first K step: write, don't zero+add

    @pl.when(k > 0)
    def _():
        acc_ref[...] += prod

    @pl.when(k == nk - 1)
    def _():
        y = acc_ref[...] * scale_ref[...] + bias_ref[...]
        if apply_relu:
            y = jnp.maximum(y, 0.0)
        if fuse_1x1:
            # fused 1x1-conv epilogue: small (tm, N) @ (N, n_out) on the MXU
            y = jnp.dot(y.astype(jnp.bfloat16), w6_ref[...],
                        preferred_element_type=jnp.float32) + b6_ref[...]
        o_ref[...] = y.astype(o_ref.dtype)


def fused_gemm_bn_act(a, b, scale, bias, *, apply_relu, out_dtype,
                      fuse_w=None, fuse_b=None, tm=TM_DEFAULT):
    """y = [relu]((a @ b) * scale + bias) [ @ fuse_w + fuse_b ], one pallas_call.

    a      : (M, KP) patches, KP pre-padded (multiple of 128, or of TK_MAX).
    b      : (K, N) weights with K <= KP (padded/cast internally - small).
    scale/bias : (N,) per-channel affine (BatchNorm folded).
    fuse_w/fuse_b : optional (N, n_out)/(n_out,) fused 1x1-conv epilogue.
    """
    M, KP = a.shape
    K, N = b.shape
    assert K <= KP
    NP = _round_up(N, 128)

    tm_eff = tm if M >= tm else _round_up(M, 8)
    Mp = _round_up(M, tm_eff)
    tk = KP if KP <= TK_MAX else TK_MAX
    nm, nk = Mp // tm_eff, KP // tk

    a_p = a.astype(jnp.bfloat16)
    if Mp != M:
        a_p = jnp.pad(a_p, ((0, Mp - M), (0, 0)))
    b_p = jnp.pad(b.astype(jnp.bfloat16), ((0, KP - K), (0, NP - N)))
    scale_p = jnp.pad(scale.astype(jnp.float32).reshape(1, -1),
                      ((0, 0), (0, NP - N)))
    bias_p = jnp.pad(bias.astype(jnp.float32).reshape(1, -1),
                     ((0, 0), (0, NP - N)))

    operands = [a_p, b_p, scale_p, bias_p]
    in_specs = [
        pl.BlockSpec((tm_eff, tk), lambda m, k: (m, k)),
        pl.BlockSpec((tk, NP), lambda m, k: (k, 0)),
        pl.BlockSpec((1, NP), lambda m, k: (0, 0)),
        pl.BlockSpec((1, NP), lambda m, k: (0, 0)),
    ]

    fuse = fuse_w is not None
    if fuse:
        n_out = fuse_w.shape[1]
        NOP = _round_up(n_out, 128)
        fw = jnp.pad(fuse_w.astype(jnp.bfloat16),
                     ((0, NP - fuse_w.shape[0]), (0, NOP - n_out)))
        fb = jnp.pad(fuse_b.astype(jnp.float32).reshape(1, -1),
                     ((0, 0), (0, NOP - n_out)))
        operands += [fw, fb]
        in_specs += [pl.BlockSpec((NP, NOP), lambda m, k: (0, 0)),
                     pl.BlockSpec((1, NOP), lambda m, k: (0, 0))]
        out_cols, out_valid = NOP, n_out
    else:
        out_cols, out_valid = NP, N

    kernel = functools.partial(_gemm_bn_act_kernel,
                               apply_relu=apply_relu, fuse_1x1=fuse)

    out = pl.pallas_call(
        kernel,
        out_shape=jax.ShapeDtypeStruct((Mp, out_cols), out_dtype),
        grid_spec=pltpu.PrefetchScalarGridSpec(
            num_scalar_prefetch=0,
            grid=(nm, nk),
            in_specs=in_specs,
            out_specs=pl.BlockSpec((tm_eff, out_cols), lambda m, k: (m, 0)),
            scratch_shapes=[pltpu.VMEM((tm_eff, NP), jnp.float32)],
        ),
        compiler_params=pltpu.CompilerParams(
            dimension_semantics=("parallel", "arbitrary")),
    )(*operands)

    return out[:M, :out_valid]


# --------------------------------------------------------------------------
# Glue: PyTorch-compatible 'same' padding + patch extraction (slices/concat)
# --------------------------------------------------------------------------
def same_pads(k):
    total = k - 1
    left = total // 2
    return left, total - left


def im2col_same(x_nhwc, kh, kw, kp):
    """(N,H,W,C) -> (N*H*W, kp), column order (kh, kw, C), zero-padded to kp."""
    N, H, W, C = x_nhwc.shape
    ph_l, ph_r = same_pads(kh)
    pw_l, pw_r = same_pads(kw)
    xp = jnp.pad(x_nhwc, ((0, 0), (ph_l, ph_r), (pw_l, pw_r), (0, 0)))
    patches = [xp[:, i:i + H, j:j + W, :] for i in range(kh) for j in range(kw)]
    k_log = kh * kw * C
    if kp > k_log:
        patches.append(jnp.zeros((N, H, W, kp - k_log), x_nhwc.dtype))
    cols = jnp.concatenate(patches, axis=-1)
    return cols.reshape(N * H * W, kp)


def im2col_rowfold(x_nhwc, kh, kp):
    """Row-folded patches (kw folded into the weight): (N,H,W,C) -> (N*H, kp)
    with column order (kh, W, C)."""
    N, H, W, C = x_nhwc.shape
    ph_l, ph_r = same_pads(kh)
    xp = jnp.pad(x_nhwc, ((0, 0), (ph_l, ph_r), (0, 0), (0, 0)))
    parts = [xp[:, i:i + H].reshape(N, H, W * C) for i in range(kh)]
    k_log = kh * W * C
    if kp > k_log:
        parts.append(jnp.zeros((N, H, kp - k_log), x_nhwc.dtype))
    cols = jnp.concatenate(parts, axis=-1)
    return cols.reshape(N * H, kp)


def fold_weight_over_width(w_oihw, W):
    """Fold the kw taps of an OIHW kernel into a dense per-output-column weight:
    returns (kh*W*cin, W*cout), rows ordered (kh, w_in, cin), cols (w_out, cout)."""
    cout, cin, kh, kw = w_oihw.shape
    pw_l, _ = same_pads(kw)
    w_in = jnp.arange(W)[:, None]
    w_out = jnp.arange(W)[None, :]
    j = w_in - w_out + pw_l                      # tap index, shape (W_in, W_out)
    valid = (j >= 0) & (j < kw)
    jc = jnp.clip(j, 0, kw - 1)
    w_g = w_oihw[:, :, :, jc]                    # (cout, cin, kh, W_in, W_out)
    w_g = jnp.where(valid[None, None, None], w_g, 0.0)
    w_eff = jnp.transpose(w_g, (2, 3, 1, 4, 0))  # (kh, W_in, cin, W_out, cout)
    return w_eff.reshape(kh * W * cin, W * cout)


def fused_1x1_weight(w6_oihw, b6, W):
    """Block-diagonal (W*cin6, W*cout6) matrix applying a 1x1 conv per output
    column of a row-folded layer, plus its bias vector."""
    cout6, cin6 = w6_oihw.shape[0], w6_oihw.shape[1]
    w6 = w6_oihw.reshape(cout6, cin6)
    eye = jnp.eye(W, dtype=w6.dtype)
    m = jnp.einsum('wv,oc->wcvo', eye, w6).reshape(W * cin6, W * cout6)
    b_vec = jnp.tile(b6, W)
    return m, b_vec


def fold_bn(p, has_bn):
    if has_bn:
        scale = p["gamma"] / jnp.sqrt(p["var"] + BN_EPS)
        bias = p["beta"] + scale * (p["b"] - p["mean"])
    else:
        scale = jnp.ones_like(p["b"])
        bias = p["b"]
    return scale, bias


# --------------------------------------------------------------------------
# Parameter init (deterministic, synthetic)
# --------------------------------------------------------------------------
def init_params(key):
    params = []
    for (cin, cout, kh, kw, has_bn, _) in LAYERS:
        key, k1, k2, k3, k4, k5, k6 = jax.random.split(key, 7)
        fan_in = cin * kh * kw
        w = jax.random.normal(k1, (cout, cin, kh, kw), jnp.float32) / math.sqrt(fan_in)
        b = 0.01 * jax.random.normal(k2, (cout,), jnp.float32)
        p = {"w": w, "b": b}
        if has_bn:
            p["gamma"] = 1.0 + 0.1 * jax.random.normal(k3, (cout,), jnp.float32)
            p["beta"] = 0.1 * jax.random.normal(k4, (cout,), jnp.float32)
            p["mean"] = 0.1 * jax.random.normal(k5, (cout,), jnp.float32)
            p["var"] = 1.0 + 0.1 * jnp.abs(
                jax.random.normal(k6, (cout,), jnp.float32))
        params.append(p)
    return params


# --------------------------------------------------------------------------
# Forward pass (Pallas) and a precision-matched XLA reference
# --------------------------------------------------------------------------
def salience_forward(x_nchw, params, *, tm=TM_DEFAULT):
    x = jnp.transpose(x_nchw, (0, 2, 3, 1)).astype(jnp.bfloat16)  # NCHW -> NHWC bf16
    N, H, W, _ = x.shape

    def std_layer(act, idx, out_dtype):
        cin, cout, kh, kw, has_bn, relu = LAYERS[idx]
        p = params[idx]
        kp = _k_padded(kh * kw * cin)
        cols = im2col_same(act, kh, kw, kp)                       # (N*H*W, kp)
        w2d = jnp.transpose(p["w"], (2, 3, 1, 0)).reshape(kh * kw * cin, cout)
        scale, bias = fold_bn(p, has_bn)
        y = fused_gemm_bn_act(cols, w2d, scale, bias,
                              apply_relu=relu, out_dtype=out_dtype, tm=tm)
        return y.reshape(N, H, W, cout)

    for idx in range(4):                                          # conv1..conv4
        x = std_layer(x, idx, jnp.bfloat16)

    cin5, cout5, kh5, kw5, _, _ = LAYERS[4]
    if kw5 > W:
        # conv5 row-folded over the width, conv6 fused into the epilogue.
        p5, p6 = params[4], params[5]
        kp = _k_padded(kh5 * W * cin5)
        cols = im2col_rowfold(x, kh5, kp)                         # (N*H, kp)
        w_eff = fold_weight_over_width(p5["w"], W)                # (kh5*W*cin5, W*cout5)
        scale5, bias5 = fold_bn(p5, True)
        scale5, bias5 = jnp.tile(scale5, W), jnp.tile(bias5, W)
        w6_mat, b6_vec = fused_1x1_weight(p6["w"], p6["b"], W)
        y = fused_gemm_bn_act(cols, w_eff, scale5, bias5,
                              apply_relu=True, out_dtype=jnp.float32,
                              fuse_w=w6_mat, fuse_b=b6_vec, tm=tm)
        x = y.reshape(N, H, W, 1)
    else:
        # TODO(synk): for W >= kw5 the row-fold gives no benefit; use the
        # generic path (conv5 and conv6 as separate im2col GEMMs).
        x = std_layer(x, 4, jnp.bfloat16)
        x = std_layer(x, 5, jnp.float32)
    return x                                                      # (N, H, W, 1)


def salience_forward_ref(x_nchw, params):
    """Reference with matched precision: lax convs on bf16 inputs/weights with
    f32 accumulation, the same folded BN affine, bf16 inter-layer activations."""
    x = x_nchw.astype(jnp.bfloat16)
    for cfg, p in zip(LAYERS, params):
        cin, cout, kh, kw, has_bn, relu = cfg
        pads = [same_pads(kh), same_pads(kw)]
        y = jax.lax.conv_general_dilated(
            x.astype(jnp.bfloat16), p["w"].astype(jnp.bfloat16),
            window_strides=(1, 1), padding=pads,
            dimension_numbers=("NCHW", "OIHW", "NCHW"),
            preferred_element_type=jnp.float32)
        scale, bias = fold_bn(p, has_bn)
        y = y * scale[None, :, None, None] + bias[None, :, None, None]
        if relu:
            y = jnp.maximum(y, 0.0)
            x = y.astype(jnp.bfloat16)
        else:
            x = y
    return jnp.transpose(x, (0, 2, 3, 1)).astype(jnp.float32)     # (N, H, W, 1)


if __name__ == "__main__":
    x = jax.random.normal(jax.random.PRNGKey(0), (2, 5, 16, 16), jnp.float32)  # NCHW
    params = init_params(jax.random.PRNGKey(42))

    y = jax.block_until_ready(jax.jit(salience_forward)(x, params))
    assert y.shape == (2, 16, 16, 1), y.shape

    y_ref = jax.block_until_ready(jax.jit(salience_forward_ref)(x, params))
    err = float(jnp.max(jnp.abs(y - y_ref)))
    assert err < 1e-2, err

    print("KERNEL_OK")
</pallas_src>

<mosaic_0001>
module attributes {stable_mosaic.version = 11 : i64} {
  func.func @_gemm_bn_act_kernel(%arg0: i32, %arg1: i32, %arg2: memref<256x128xbf16, #tpu.memory_space<vmem>>, %arg3: memref<128x128xbf16, #tpu.memory_space<vmem>>, %arg4: memref<1x128xf32, #tpu.memory_space<vmem>>, %arg5: memref<1x128xf32, #tpu.memory_space<vmem>>, %arg6: memref<256x128xbf16, #tpu.memory_space<vmem>>, %arg7: memref<256x128xf32, #tpu.memory_space<vmem>>) attributes {dimension_semantics = [#tpu.dimension_semantics<parallel>, #tpu.dimension_semantics<arbitrary>], iteration_bounds = array<i64: 2, 1>, scalar_prefetch = 0 : i64, scratch_operands = 1 : i64, tpu.core_type = #tpu.core_type<tc>, window_params = [{transform_indices = @transform_0, window_bounds = array<i64: 256, 128>}, {transform_indices = @transform_1, window_bounds = array<i64: 128, 128>}, {pipeline_mode = #tpu.pipeline_mode<synchronous>, transform_indices = @transform_2, window_bounds = array<i64: 1, 128>}, {pipeline_mode = #tpu.pipeline_mode<synchronous>, transform_indices = @transform_3, window_bounds = array<i64: 1, 128>}, {transform_indices = @transform_4, window_bounds = array<i64: 256, 128>}]} {
    %c0 = arith.constant 0 : index
    %c0_0 = arith.constant 0 : index
    %0 = vector.load %arg2[%c0, %c0_0] : memref<256x128xbf16, #tpu.memory_space<vmem>>, vector<256x128xbf16>
    %c0_1 = arith.constant 0 : index
    %c0_2 = arith.constant 0 : index
    %1 = vector.load %arg3[%c0_1, %c0_2] : memref<128x128xbf16, #tpu.memory_space<vmem>>, vector<128x128xbf16>
    %cst = arith.constant dense<0.000000e+00> : vector<256x128xf32>
    %2 = tpu.matmul %0, %1, %cst {dimension_numbers = #tpu.dot_dimension_numbers<[1], [0], [0], [1], [0, 0, 1, 1], [], []>} : vector<256x128xbf16>, vector<128x128xbf16>, vector<256x128xf32> -> vector<256x128xf32>
    %c0_i32 = arith.constant 0 : i32
    %3 = arith.cmpi eq, %arg1, %c0_i32 : i32
    %4 = arith.extui %3 : i1 to i32
    %c0_i32_3 = arith.constant 0 : i32
    %5 = arith.cmpi ne, %4, %c0_i32_3 : i32
    scf.if %5 {
      %c0_8 = arith.constant 0 : index
      %c0_9 = arith.constant 0 : index
      %12 = vector.load %arg7[%c0_8, %c0_9] : memref<256x128xf32, #tpu.memory_space<vmem>>, vector<256x128xf32>
      tpu.vector_store %arg7[%c0_8, %c0_9], %2 {strides = array<i32>} : memref<256x128xf32, #tpu.memory_space<vmem>>, vector<256x128xf32>,
    } else {
    }
    %c0_i32_4 = arith.constant 0 : i32
    %6 = arith.cmpi sgt, %arg1, %c0_i32_4 : i32
    %7 = arith.extui %6 : i1 to i32
    %c0_i32_5 = arith.constant 0 : i32
    %8 = arith.cmpi ne, %7, %c0_i32_5 : i32
    scf.if %8 {
      %c0_8 = arith.constant 0 : index
      %c0_9 = arith.constant 0 : index
      %12 = vector.load %arg7[%c0_8, %c0_9] : memref<256x128xf32, #tpu.memory_space<vmem>>, vector<256x128xf32>
      %13 = arith.addf %12, %2 : vector<256x128xf32>
      %c0_10 = arith.constant 0 : index
      %c0_11 = arith.constant 0 : index
      %14 = vector.load %arg7[%c0_10, %c0_11] : memref<256x128xf32, #tpu.memory_space<vmem>>, vector<256x128xf32>
      tpu.vector_store %arg7[%c0_10, %c0_11], %13 {strides = array<i32>} : memref<256x128xf32, #tpu.memory_space<vmem>>, vector<256x128xf32>,
    } else {
    }
    %c0_i32_6 = arith.constant 0 : i32
    %9 = arith.cmpi eq, %arg1, %c0_i32_6 : i32
    %10 = arith.extui %9 : i1 to i32
    %c0_i32_7 = arith.constant 0 : i32
    %11 = arith.cmpi ne, %10, %c0_i32_7 : i32
    scf.if %11 {
      %c0_8 = arith.constant 0 : index
      %c0_9 = arith.constant 0 : index
      %12 = vector.load %arg7[%c0_8, %c0_9] : memref<256x128xf32, #tpu.memory_space<vmem>>, vector<256x128xf32>
      %c0_10 = arith.constant 0 : index
      %c0_11 = arith.constant 0 : index
      %13 = vector.load %arg4[%c0_10, %c0_11] : memref<1x128xf32, #tpu.memory_space<vmem>>, vector<1x128xf32>
      %14 = vector.broadcast %13 : vector<1x128xf32> to vector<256x128xf32>
      %15 = arith.mulf %12, %14 : vector<256x128xf32>
      %c0_12 = arith.constant 0 : index
      %c0_13 = arith.constant 0 : index
      %16 = vector.load %arg5[%c0_12, %c0_13] : memref<1x128xf32, #tpu.memory_space<vmem>>, vector<1x128xf32>
      %17 = vector.broadcast %16 : vector<1x128xf32> to vector<256x128xf32>
      %18 = arith.addf %15, %17 : vector<256x128xf32>
      %cst_14 = arith.constant 0.000000e+00 : f32
      %19 = vector.broadcast %cst_14 : f32 to vector<256x128xf32>
      %20 = arith.maximumf %18, %19 : vector<256x128xf32>
      %21 = arith.truncf %20 : vector<256x128xf32> to vector<256x128xbf16>
      %c0_15 = arith.constant 0 : index
      %c0_16 = arith.constant 0 : index
      %22 = vector.load %arg6[%c0_15, %c0_16] : memref<256x128xbf16, #tpu.memory_space<vmem>>, vector<256x128xbf16>
      tpu.vector_store %arg6[%c0_15, %c0_16], %21 {strides = array<i32>} : memref<256x128xbf16, #tpu.memory_space<vmem>>, vector<256x128xbf16>,
    } else {
    }
    return
  }
  func.func @transform_0(%arg0: i32, %arg1: i32) -> (i32, i32) {
    %c0_i32 = arith.constant 0 : i32
    return %arg0, %arg1 : i32, i32
  }
  func.func @transform_1(%arg0: i32, %arg1: i32) -> (i32, i32) {
    %c0_i32 = arith.constant 0 : i32
    %c0_i32_0 = arith.constant 0 : i32
    return %arg1, %c0_i32 : i32, i32
  }
  func.func @transform_2(%arg0: i32, %arg1: i32) -> (i32, i32) {
    %c0_i32 = arith.constant 0 : i32
    %c0_i32_0 = arith.constant 0 : i32
    %c0_i32_1 = arith.constant 0 : i32
    return %c0_i32, %c0_i32_0 : i32, i32
  }
  func.func @transform_3(%arg0: i32, %arg1: i32) -> (i32, i32) {
    %c0_i32 = arith.constant 0 : i32
    %c0_i32_0 = arith.constant 0 : i32
    %c0_i32_1 = arith.constant 0 : i32
    return %c0_i32, %c0_i32_0 : i32, i32
  }
  func.func @transform_4(%arg0: i32, %arg1: i32) -> (i32, i32) {
    %c0_i32 = arith.constant 0 : i32
    %c0_i32_0 = arith.constant 0 : i32
    return %arg0, %c0_i32 : i32, i32
  }
}

module attributes {stable_mosaic.version = 11 : i64} {
  func.func @_gemm_bn_act_kernel(%arg0: i32, %arg1: i32, %arg2: memref<256x3200xbf16, #tpu.memory_space<vmem>>, %arg3: memref<3200x128xbf16, #tpu.memory_space<vmem>>, %arg4: memref<1x128xf32, #tpu.memory_space<vmem>>, %arg5: memref<1x128xf32, #tpu.memory_space<vmem>>, %arg6: memref<256x128xbf16, #tpu.memory_space<vmem>>, %arg7: memref<256x128xf32, #tpu.memory_space<vmem>>) attributes {dimension_semantics = [#tpu.dimension_semantics<parallel>, #tpu.dimension_semantics<arbitrary>], iteration_bounds = array<i64: 2, 1>, scalar_prefetch = 0 : i64, scratch_operands = 1 : i64, tpu.core_type = #tpu.core_type<tc>, window_params = [{transform_indices = @transform_0, window_bounds = array<i64: 256, 3200>}, {transform_indices = @transform_1, window_bounds = array<i64: 3200, 128>}, {pipeline_mode = #tpu.pipeline_mode<synchronous>, transform_indices = @transform_2, window_bounds = array<i64: 1, 128>}, {pipeline_mode = #tpu.pipeline_mode<synchronous>, transform_indices = @transform_3, window_bounds = array<i64: 1, 128>}, {transform_indices = @transform_4, window_bounds = array<i64: 256, 128>}]} {
    %c0 = arith.constant 0 : index
    %c0_0 = arith.constant 0 : index
    %0 = vector.load %arg2[%c0, %c0_0] : memref<256x3200xbf16, #tpu.memory_space<vmem>>, vector<256x3200xbf16>
    %c0_1 = arith.constant 0 : index
    %c0_2 = arith.constant 0 : index
    %1 = vector.load %arg3[%c0_1, %c0_2] : memref<3200x128xbf16, #tpu.memory_space<vmem>>, vector<3200x128xbf16>
    %cst = arith.constant dense<0.000000e+00> : vector<256x128xf32>
    %2 = tpu.matmul %0, %1, %cst {dimension_numbers = #tpu.dot_dimension_numbers<[1], [0], [0], [1], [0, 0, 1, 1], [], []>} : vector<256x3200xbf16>, vector<3200x128xbf16>, vector<256x128xf32> -> vector<256x128xf32>
    %c0_i32 = arith.constant 0 : i32
    %3 = arith.cmpi eq, %arg1, %c0_i32 : i32
    %4 = arith.extui %3 : i1 to i32
    %c0_i32_3 = arith.constant 0 : i32
    %5 = arith.cmpi ne, %4, %c0_i32_3 : i32
    scf.if %5 {
      %c0_8 = arith.constant 0 : index
      %c0_9 = arith.constant 0 : index
      %12 = vector.load %arg7[%c0_8, %c0_9] : memref<256x128xf32, #tpu.memory_space<vmem>>, vector<256x128xf32>
      tpu.vector_store %arg7[%c0_8, %c0_9], %2 {strides = array<i32>} : memref<256x128xf32, #tpu.memory_space<vmem>>, vector<256x128xf32>,
    } else {
    }
    %c0_i32_4 = arith.constant 0 : i32
    %6 = arith.cmpi sgt, %arg1, %c0_i32_4 : i32
    %7 = arith.extui %6 : i1 to i32
    %c0_i32_5 = arith.constant 0 : i32
    %8 = arith.cmpi ne, %7, %c0_i32_5 : i32
    scf.if %8 {
      %c0_8 = arith.constant 0 : index
      %c0_9 = arith.constant 0 : index
      %12 = vector.load %arg7[%c0_8, %c0_9] : memref<256x128xf32, #tpu.memory_space<vmem>>, vector<256x128xf32>
      %13 = arith.addf %12, %2 : vector<256x128xf32>
      %c0_10 = arith.constant 0 : index
      %c0_11 = arith.constant 0 : index
      %14 = vector.load %arg7[%c0_10, %c0_11] : memref<256x128xf32, #tpu.memory_space<vmem>>, vector<256x128xf32>
      tpu.vector_store %arg7[%c0_10, %c0_11], %13 {strides = array<i32>} : memref<256x128xf32, #tpu.memory_space<vmem>>, vector<256x128xf32>,
    } else {
    }
    %c0_i32_6 = arith.constant 0 : i32
    %9 = arith.cmpi eq, %arg1, %c0_i32_6 : i32
    %10 = arith.extui %9 : i1 to i32
    %c0_i32_7 = arith.constant 0 : i32
    %11 = arith.cmpi ne, %10, %c0_i32_7 : i32
    scf.if %11 {
      %c0_8 = arith.constant 0 : index
      %c0_9 = arith.constant 0 : index
      %12 = vector.load %arg7[%c0_8, %c0_9] : memref<256x128xf32, #tpu.memory_space<vmem>>, vector<256x128xf32>
      %c0_10 = arith.constant 0 : index
      %c0_11 = arith.constant 0 : index
      %13 = vector.load %arg4[%c0_10, %c0_11] : memref<1x128xf32, #tpu.memory_space<vmem>>, vector<1x128xf32>
      %14 = vector.broadcast %13 : vector<1x128xf32> to vector<256x128xf32>
      %15 = arith.mulf %12, %14 : vector<256x128xf32>
      %c0_12 = arith.constant 0 : index
      %c0_13 = arith.constant 0 : index
      %16 = vector.load %arg5[%c0_12, %c0_13] : memref<1x128xf32, #tpu.memory_space<vmem>>, vector<1x128xf32>
      %17 = vector.broadcast %16 : vector<1x128xf32> to vector<256x128xf32>
      %18 = arith.addf %15, %17 : vector<256x128xf32>
      %cst_14 = arith.constant 0.000000e+00 : f32
      %19 = vector.broadcast %cst_14 : f32 to vector<256x128xf32>
      %20 = arith.maximumf %18, %19 : vector<256x128xf32>
      %21 = arith.truncf %20 : vector<256x128xf32> to vector<256x128xbf16>
      %c0_15 = arith.constant 0 : index
      %c0_16 = arith.constant 0 : index
      %22 = vector.load %arg6[%c0_15, %c0_16] : memref<256x128xbf16, #tpu.memory_space<vmem>>, vector<256x128xbf16>
      tpu.vector_store %arg6[%c0_15, %c0_16], %21 {strides = array<i32>} : memref<256x128xbf16, #tpu.memory_space<vmem>>, vector<256x128xbf16>,
    } else {
    }
    return
  }
  func.func @transform_0(%arg0: i32, %arg1: i32) -> (i32, i32) {
    %c0_i32 = arith.constant 0 : i32
    return %arg0, %arg1 : i32, i32
  }
  func.func @transform_1(%arg0: i32, %arg1: i32) -> (i32, i32) {
    %c0_i32 = arith.constant 0 : i32
    %c0_i32_0 = arith.constant 0 : i32
    return %arg1, %c0_i32 : i32, i32
  }
  func.func @transform_2(%arg0: i32, %arg1: i32) -> (i32, i32) {
    %c0_i32 = arith.constant 0 : i32
    %c0_i32_0 = arith.constant 0 : i32
    %c0_i32_1 = arith.constant 0 : i32
    return %c0_i32, %c0_i32_0 : i32, i32
  }
  func.func @transform_3(%arg0: i32, %arg1: i32) -> (i32, i32) {
    %c0_i32 = arith.constant 0 : i32
    %c0_i32_0 = arith.constant 0 : i32
    %c0_i32_1 = arith.constant 0 : i32
    return %c0_i32, %c0_i32_0 : i32, i32
  }
  func.func @transform_4(%arg0: i32, %arg1: i32) -> (i32, i32) {
    %c0_i32 = arith.constant 0 : i32
    %c0_i32_0 = arith.constant 0 : i32
    return %arg0, %c0_i32 : i32, i32
  }
}

module attributes {stable_mosaic.version = 11 : i64} {
  func.func @_gemm_bn_act_kernel(%arg0: i32, %arg1: i32, %arg2: memref<256x640xbf16, #tpu.memory_space<vmem>>, %arg3: memref<640x128xbf16, #tpu.memory_space<vmem>>, %arg4: memref<1x128xf32, #tpu.memory_space<vmem>>, %arg5: memref<1x128xf32, #tpu.memory_space<vmem>>, %arg6: memref<256x128xbf16, #tpu.memory_space<vmem>>, %arg7: memref<256x128xf32, #tpu.memory_space<vmem>>) attributes {dimension_semantics = [#tpu.dimension_semantics<parallel>, #tpu.dimension_semantics<arbitrary>], iteration_bounds = array<i64: 2, 1>, scalar_prefetch = 0 : i64, scratch_operands = 1 : i64, tpu.core_type = #tpu.core_type<tc>, window_params = [{transform_indices = @transform_0, window_bounds = array<i64: 256, 640>}, {transform_indices = @transform_1, window_bounds = array<i64: 640, 128>}, {pipeline_mode = #tpu.pipeline_mode<synchronous>, transform_indices = @transform_2, window_bounds = array<i64: 1, 128>}, {pipeline_mode = #tpu.pipeline_mode<synchronous>, transform_indices = @transform_3, window_bounds = array<i64: 1, 128>}, {transform_indices = @transform_4, window_bounds = array<i64: 256, 128>}]} {
    %c0 = arith.constant 0 : index
    %c0_0 = arith.constant 0 : index
    %0 = vector.load %arg2[%c0, %c0_0] : memref<256x640xbf16, #tpu.memory_space<vmem>>, vector<256x640xbf16>
    %c0_1 = arith.constant 0 : index
    %c0_2 = arith.constant 0 : index
    %1 = vector.load %arg3[%c0_1, %c0_2] : memref<640x128xbf16, #tpu.memory_space<vmem>>, vector<640x128xbf16>
    %cst = arith.constant dense<0.000000e+00> : vector<256x128xf32>
    %2 = tpu.matmul %0, %1, %cst {dimension_numbers = #tpu.dot_dimension_numbers<[1], [0], [0], [1], [0, 0, 1, 1], [], []>} : vector<256x640xbf16>, vector<640x128xbf16>, vector<256x128xf32> -> vector<256x128xf32>
    %c0_i32 = arith.constant 0 : i32
    %3 = arith.cmpi eq, %arg1, %c0_i32 : i32
    %4 = arith.extui %3 : i1 to i32
    %c0_i32_3 = arith.constant 0 : i32
    %5 = arith.cmpi ne, %4, %c0_i32_3 : i32
    scf.if %5 {
      %c0_8 = arith.constant 0 : index
      %c0_9 = arith.constant 0 : index
      %12 = vector.load %arg7[%c0_8, %c0_9] : memref<256x128xf32, #tpu.memory_space<vmem>>, vector<256x128xf32>
      tpu.vector_store %arg7[%c0_8, %c0_9], %2 {strides = array<i32>} : memref<256x128xf32, #tpu.memory_space<vmem>>, vector<256x128xf32>,
    } else {
    }
    %c0_i32_4 = arith.constant 0 : i32
    %6 = arith.cmpi sgt, %arg1, %c0_i32_4 : i32
    %7 = arith.extui %6 : i1 to i32
    %c0_i32_5 = arith.constant 0 : i32
    %8 = arith.cmpi ne, %7, %c0_i32_5 : i32
    scf.if %8 {
      %c0_8 = arith.constant 0 : index
      %c0_9 = arith.constant 0 : index
      %12 = vector.load %arg7[%c0_8, %c0_9] : memref<256x128xf32, #tpu.memory_space<vmem>>, vector<256x128xf32>
      %13 = arith.addf %12, %2 : vector<256x128xf32>
      %c0_10 = arith.constant 0 : index
      %c0_11 = arith.constant 0 : index
      %14 = vector.load %arg7[%c0_10, %c0_11] : memref<256x128xf32, #tpu.memory_space<vmem>>, vector<256x128xf32>
      tpu.vector_store %arg7[%c0_10, %c0_11], %13 {strides = array<i32>} : memref<256x128xf32, #tpu.memory_space<vmem>>, vector<256x128xf32>,
    } else {
    }
    %c0_i32_6 = arith.constant 0 : i32
    %9 = arith.cmpi eq, %arg1, %c0_i32_6 : i32
    %10 = arith.extui %9 : i1 to i32
    %c0_i32_7 = arith.constant 0 : i32
    %11 = arith.cmpi ne, %10, %c0_i32_7 : i32
    scf.if %11 {
      %c0_8 = arith.constant 0 : index
      %c0_9 = arith.constant 0 : index
      %12 = vector.load %arg7[%c0_8, %c0_9] : memref<256x128xf32, #tpu.memory_space<vmem>>, vector<256x128xf32>
      %c0_10 = arith.constant 0 : index
      %c0_11 = arith.constant 0 : index
      %13 = vector.load %arg4[%c0_10, %c0_11] : memref<1x128xf32, #tpu.memory_space<vmem>>, vector<1x128xf32>
      %14 = vector.broadcast %13 : vector<1x128xf32> to vector<256x128xf32>
      %15 = arith.mulf %12, %14 : vector<256x128xf32>
      %c0_12 = arith.constant 0 : index
      %c0_13 = arith.constant 0 : index
      %16 = vector.load %arg5[%c0_12, %c0_13] : memref<1x128xf32, #tpu.memory_space<vmem>>, vector<1x128xf32>
      %17 = vector.broadcast %16 : vector<1x128xf32> to vector<256x128xf32>
      %18 = arith.addf %15, %17 : vector<256x128xf32>
      %cst_14 = arith.constant 0.000000e+00 : f32
      %19 = vector.broadcast %cst_14 : f32 to vector<256x128xf32>
      %20 = arith.maximumf %18, %19 : vector<256x128xf32>
      %21 = arith.truncf %20 : vector<256x128xf32> to vector<256x128xbf16>
      %c0_15 = arith.constant 0 : index
      %c0_16 = arith.constant 0 : index
      %22 = vector.load %arg6[%c0_15, %c0_16] : memref<256x128xbf16, #tpu.memory_space<vmem>>, vector<256x128xbf16>
      tpu.vector_store %arg6[%c0_15, %c0_16], %21 {strides = array<i32>} : memref<256x128xbf16, #tpu.memory_space<vmem>>, vector<256x128xbf16>,
    } else {
    }
    return
  }
  func.func @transform_0(%arg0: i32, %arg1: i32) -> (i32, i32) {
    %c0_i32 = arith.constant 0 : i32
    return %arg0, %arg1 : i32, i32
  }
  func.func @transform_1(%arg0: i32, %arg1: i32) -> (i32, i32) {
    %c0_i32 = arith.constant 0 : i32
    %c0_i32_0 = arith.constant 0 : i32
    return %arg1, %c0_i32 : i32, i32
  }
  func.func @transform_2(%arg0: i32, %arg1: i32) -> (i32, i32) {
    %c0_i32 = arith.constant 0 : i32
    %c0_i32_0 = arith.constant 0 : i32
    %c0_i32_1 = arith.constant 0 : i32
    return %c0_i32, %c0_i32_0 : i32, i32
  }
  func.func @transform_3(%arg0: i32, %arg1: i32) -> (i32, i32) {
    %c0_i32 = arith.constant 0 : i32
    %c0_i32_0 = arith.constant 0 : i32
    %c0_i32_1 = arith.constant 0 : i32
    return %c0_i32, %c0_i32_0 : i32, i32
  }
  func.func @transform_4(%arg0: i32, %arg1: i32) -> (i32, i32) {
    %c0_i32 = arith.constant 0 : i32
    %c0_i32_0 = arith.constant 0 : i32
    return %arg0, %c0_i32 : i32, i32
  }
}

module attributes {stable_mosaic.version = 11 : i64} {
  func.func @_gemm_bn_act_kernel(%arg0: i32, %arg1: i32, %arg2: memref<32x3072xbf16, #tpu.memory_space<vmem>>, %arg3: memref<3072x128xbf16, #tpu.memory_space<vmem>>, %arg4: memref<1x128xf32, #tpu.memory_space<vmem>>, %arg5: memref<1x128xf32, #tpu.memory_space<vmem>>, %arg6: memref<128x128xbf16, #tpu.memory_space<vmem>>, %arg7: memref<1x128xf32, #tpu.memory_space<vmem>>, %arg8: memref<32x128xf32, #tpu.memory_space<vmem>>, %arg9: memref<32x128xf32, #tpu.memory_space<vmem>>) attributes {dimension_semantics = [#tpu.dimension_semantics<parallel>, #tpu.dimension_semantics<arbitrary>], iteration_bounds = array<i64: 1, 1>, scalar_prefetch = 0 : i64, scratch_operands = 1 : i64, tpu.core_type = #tpu.core_type<tc>, window_params = [{transform_indices = @transform_0, window_bounds = array<i64: 32, 3072>}, {transform_indices = @transform_1, window_bounds = array<i64: 3072, 128>}, {pipeline_mode = #tpu.pipeline_mode<synchronous>, transform_indices = @transform_2, window_bounds = array<i64: 1, 128>}, {pipeline_mode = #tpu.pipeline_mode<synchronous>, transform_indices = @transform_3, window_bounds = array<i64: 1, 128>}, {pipeline_mode = #tpu.pipeline_mode<synchronous>, transform_indices = @transform_4, window_bounds = array<i64: 128, 128>}, {pipeline_mode = #tpu.pipeline_mode<synchronous>, transform_indices = @transform_5, window_bounds = array<i64: 1, 128>}, {transform_indices = @transform_6, window_bounds = array<i64: 32, 128>}]} {
    %c0 = arith.constant 0 : index
    %c0_0 = arith.constant 0 : index
    %0 = vector.load %arg2[%c0, %c0_0] : memref<32x3072xbf16, #tpu.memory_space<vmem>>, vector<32x3072xbf16>
    %c0_1 = arith.constant 0 : index
    %c0_2 = arith.constant 0 : index
    %1 = vector.load %arg3[%c0_1, %c0_2] : memref<3072x128xbf16, #tpu.memory_space<vmem>>, vector<3072x128xbf16>
    %cst = arith.constant dense<0.000000e+00> : vector<32x128xf32>
    %2 = tpu.matmul %0, %1, %cst {dimension_numbers = #tpu.dot_dimension_numbers<[1], [0], [0], [1], [0, 0, 1, 1], [], []>} : vector<32x3072xbf16>, vector<3072x128xbf16>, vector<32x128xf32> -> vector<32x128xf32>
    %c0_i32 = arith.constant 0 : i32
    %3 = arith.cmpi eq, %arg1, %c0_i32 : i32
    %4 = arith.extui %3 : i1 to i32
    %c0_i32_3 = arith.constant 0 : i32
    %5 = arith.cmpi ne, %4, %c0_i32_3 : i32
    scf.if %5 {
      %c0_8 = arith.constant 0 : index
      %c0_9 = arith.constant 0 : index
      %12 = vector.load %arg9[%c0_8, %c0_9] : memref<32x128xf32, #tpu.memory_space<vmem>>, vector<32x128xf32>
      tpu.vector_store %arg9[%c0_8, %c0_9], %2 {strides = array<i32>} : memref<32x128xf32, #tpu.memory_space<vmem>>, vector<32x128xf32>,
    } else {
    }
    %c0_i32_4 = arith.constant 0 : i32
    %6 = arith.cmpi sgt, %arg1, %c0_i32_4 : i32
    %7 = arith.extui %6 : i1 to i32
    %c0_i32_5 = arith.constant 0 : i32
    %8 = arith.cmpi ne, %7, %c0_i32_5 : i32
    scf.if %8 {
      %c0_8 = arith.constant 0 : index
      %c0_9 = arith.constant 0 : index
      %12 = vector.load %arg9[%c0_8, %c0_9] : memref<32x128xf32, #tpu.memory_space<vmem>>, vector<32x128xf32>
      %13 = arith.addf %12, %2 : vector<32x128xf32>
      %c0_10 = arith.constant 0 : index
      %c0_11 = arith.constant 0 : index
      %14 = vector.load %arg9[%c0_10, %c0_11] : memref<32x128xf32, #tpu.memory_space<vmem>>, vector<32x128xf32>
      tpu.vector_store %arg9[%c0_10, %c0_11], %13 {strides = array<i32>} : memref<32x128xf32, #tpu.memory_space<vmem>>, vector<32x128xf32>,
    } else {
    }
    %c0_i32_6 = arith.constant 0 : i32
    %9 = arith.cmpi eq, %arg1, %c0_i32_6 : i32
    %10 = arith.extui %9 : i1 to i32
    %c0_i32_7 = arith.constant 0 : i32
    %11 = arith.cmpi ne, %10, %c0_i32_7 : i32
    scf.if %11 {
      %c0_8 = arith.constant 0 : index
      %c0_9 = arith.constant 0 : index
      %12 = vector.load %arg9[%c0_8, %c0_9] : memref<32x128xf32, #tpu.memory_space<vmem>>, vector<32x128xf32>
      %c0_10 = arith.constant 0 : index
      %c0_11 = arith.constant 0 : index
      %13 = vector.load %arg4[%c0_10, %c0_11] : memref<1x128xf32, #tpu.memory_space<vmem>>, vector<1x128xf32>
      %14 = vector.broadcast %13 : vector<1x128xf32> to vector<32x128xf32>
      %15 = arith.mulf %12, %14 : vector<32x128xf32>
      %c0_12 = arith.constant 0 : index
      %c0_13 = arith.constant 0 : index
      %16 = vector.load %arg5[%c0_12, %c0_13] : memref<1x128xf32, #tpu.memory_space<vmem>>, vector<1x128xf32>
      %17 = vector.broadcast %16 : vector<1x128xf32> to vector<32x128xf32>
      %18 = arith.addf %15, %17 : vector<32x128xf32>
      %cst_14 = arith.constant 0.000000e+00 : f32
      %19 = vector.broadcast %cst_14 : f32 to vector<32x128xf32>
      %20 = arith.maximumf %18, %19 : vector<32x128xf32>
      %21 = arith.truncf %20 : vector<32x128xf32> to vector<32x128xbf16>
      %c0_15 = arith.constant 0 : index
      %c0_16 = arith.constant 0 : index
      %22 = vector.load %arg6[%c0_15, %c0_16] : memref<128x128xbf16, #tpu.memory_space<vmem>>, vector<128x128xbf16>
      %cst_17 = arith.constant dense<0.000000e+00> : vector<32x128xf32>
      %23 = tpu.matmul %21, %22, %cst_17 {dimension_numbers = #tpu.dot_dimension_numbers<[1], [0], [0], [1], [0, 0, 1, 1], [], []>} : vector<32x128xbf16>, vector<128x128xbf16>, vector<32x128xf32> -> vector<32x128xf32>
      %c0_18 = arith.constant 0 : index
      %c0_19 = arith.constant 0 : index
      %24 = vector.load %arg7[%c0_18, %c0_19] : memref<1x128xf32, #tpu.memory_space<vmem>>, vector<1x128xf32>
      %25 = vector.broadcast %24 : vector<1x128xf32> to vector<32x128xf32>
      %26 = arith.addf %23, %25 : vector<32x128xf32>
      %c0_20 = arith.constant 0 : index
      %c0_21 = arith.constant 0 : index
      %27 = vector.load %arg8[%c0_20, %c0_21] : memref<32x128xf32, #tpu.memory_space<vmem>>, vector<32x128xf32>
      tpu.vector_store %arg8[%c0_20, %c0_21], %26 {strides = array<i32>} : memref<32x128xf32, #tpu.memory_space<vmem>>, vector<32x128xf32>,
    } else {
    }
    return
  }
  func.func @transform_0(%arg0: i32, %arg1: i32) -> (i32, i32) {
    %c0_i32 = arith.constant 0 : i32
    return %arg0, %arg1 : i32, i32
  }
  func.func @transform_1(%arg0: i32, %arg1: i32) -> (i32, i32) {
    %c0_i32 = arith.constant 0 : i32
    %c0_i32_0 = arith.constant 0 : i32
    return %arg1, %c0_i32 : i32, i32
  }
  func.func @transform_2(%arg0: i32, %arg1: i32) -> (i32, i32) {
    %c0_i32 = arith.constant 0 : i32
    %c0_i32_0 = arith.constant 0 : i32
    %c0_i32_1 = arith.constant 0 : i32
    return %c0_i32, %c0_i32_0 : i32, i32
  }
  func.func @transform_3(%arg0: i32, %arg1: i32) -> (i32, i32) {
    %c0_i32 = arith.constant 0 : i32
    %c0_i32_0 = arith.constant 0 : i32
    %c0_i32_1 = arith.constant 0 : i32
    return %c0_i32, %c0_i32_0 : i32, i32
  }
  func.func @transform_4(%arg0: i32, %arg1: i32) -> (i32, i32) {
    %c0_i32 = arith.constant 0 : i32
    %c0_i32_0 = arith.constant 0 : i32
    %c0_i32_1 = arith.constant 0 : i32
    return %c0_i32, %c0_i32_0 : i32, i32
  }
  func.func @transform_5(%arg0: i32, %arg1: i32) -> (i32, i32) {
    %c0_i32 = arith.constant 0 : i32
    %c0_i32_0 = arith.constant 0 : i32
    %c0_i32_1 = arith.constant 0 : i32
    return %c0_i32, %c0_i32_0 : i32, i32
  }
  func.func @transform_6(%arg0: i32, %arg1: i32) -> (i32, i32) {
    %c0_i32 = arith.constant 0 : i32
    %c0_i32_0 = arith.constant 0 : i32
    return %arg0, %c0_i32 : i32, i32
  }
}

</mosaic_0001>

<llo_original>
// kernel: salience_forward.5
$region0: #{salience_forward.5}
  #allocation0 [shape = 'u32[]', space=smem, size = 0x4, offset = 0x4, fixed_abs, tag = 'smem constant byte address 0x4 - core index']
  #allocation1 [shape = 'u32[72,128]{1,0:T(1,128)}', space=vmem, size = 0x9000, scoped, tag = 'internal scratch']
  #allocation2 [shape = 'f32[256,128]{1,0:T(8,128)}', space=vmem, size = 0x20000, scoped, tag = 'scratch operand']
  %s0 = inlined_call_operand.vmem [shape: bf16[512,128], index: 0, kind: input, shape index: {}]
  %s1 = inlined_call_operand.vmem [shape: bf16[128,128], index: 1, kind: input, shape index: {}]
  %s2 = inlined_call_operand.vmem [shape: f32[1,128], index: 2, kind: input, shape index: {}]
  %s3 = inlined_call_operand.vmem [shape: f32[1,128], index: 3, kind: input, shape index: {}]
  %s4 = inlined_call_operand.vmem [shape: bf16[512,128], index: 4, kind: output, shape index: {}]
  %s5 = sld [smem:[#allocation0]]
  $region61: #{salience_forward.5} parent=0
    _
  %s7 = ssub.s32 1, %s5
  %s8 = scalar_select 0, %s7, %s5
  loop: start=0, step=1, limit=4
  $region2: #{salience_forward.5} parent=0 // loop_pre_header
    _
  $region3: #{salience_forward.5} parent=0 // loop_header
    %s10 = sphi 0, %s14
    %p11 = scmp.ge.s32.totalorder %s10, 4
    %s17 = sphi 0, %s29
    %s18 = sphi 0, %s25
    %s19 = sphi 0, %s17
    %s20 = sphi 0, %s18
    %s21 = sphi 0, %s19
    %s22 = sphi 0, %s20
    %s34 = sphi 0, %s36
    %s37 = sphi 0, %s34
    %s38 = sphi 0, %s37
    %s54 = sphi 0, %s38
    %s60 = sphi 0, %s62
    %s63 = sphi 0, %s60
    %s64 = sphi 0, %s63
    %s80 = sphi 0, %s64
    %s84 = sphi 0, %s84
    %s86 = sphi 0, %s84
    %s87 = sphi 0, %s86
    %s101 = sphi 0, %s87
    %s105 = sphi 0, %s105
    %s107 = sphi 0, %s105
    %s108 = sphi 0, %s107
    %s122 = sphi 0, %s108
    %s128 = sphi 0, %s130
    %s131 = sphi 0, %s128
    %s132 = sphi 0, %s131
    %s148 = sphi 0, %s132
  $region4: #{salience_forward.5} parent=0 // loop_header_branch
    %13 = sbr.rel (%p11) target = $region8
  $region5: #{salience_forward.5} parent=0 // loop_body
    %s15 = ssub.s32 %s10, 1
    %s16 = ssub.s32 %s10, 2
    %s23 = sadd.s32 1, %s18
    %p24 = scmp.ge.s32.totalorder %s23, 1
    %s25 = scalar_select %p24, 0, %s23
    %s26 = sadd.s32 1, %s17
    %s27 = scalar_select %p24, %s26, %s17
    %p28 = scmp.ge.s32.totalorder %s27, 2
    %s29 = scalar_select %p28, 0, %s27
    %s30 = ssub.s32 %s17, %s29
    %s31 = ssub.s32 %s18, %s25
    %s32 = sor.u32 %s30, %s31
    %p33 = scmp.eq.s32.totalorder %s32, 0
    %s35 = sadd.s32 %s34, 1
    %s36 = scalar_select %p33, %s34, %s35
    %p39 = pneg %p33
    %p40 = scmp.eq.s32.totalorder %s10, 1
    %p41 = por %p39, %p40
    %p42 = scmp.ne.s32.totalorder %s34, %s37
    %p43 = scmp.eq.s32.totalorder %s10, 0
    %p44 = por %p42, %p43
    %p45 = scmp.ne.s32.totalorder %s34, %s37
    %p46 = scmp.eq.s32.totalorder %s15, 1
    %p47 = por %p45, %p46
    %p48 = scmp.ne.s32.totalorder %s37, %s38
    %p49 = scmp.eq.s32.totalorder %s15, 0
    %p50 = por %p48, %p49
    %p51 = scmp.ne.s32.totalorder %s37, %s38
    %p52 = scmp.eq.s32.totalorder %s16, 1
    %p53 = por %p51, %p52
    %p55 = scmp.ne.s32.totalorder %s38, %s54
    %p56 = scmp.eq.s32.totalorder %s16, 0
    %p57 = por %p55, %p56
    %s58 = ssub.s32 %s18, %s25
    %p59 = scmp.eq.s32.totalorder %s58, 0
    %s61 = sadd.s32 %s60, 1
    %s62 = scalar_select %p59, %s60, %s61
    %p65 = pneg %p59
    %p66 = scmp.eq.s32.totalorder %s10, 1
    %p67 = por %p65, %p66
    %p68 = scmp.ne.s32.totalorder %s60, %s63
    %p69 = scmp.eq.s32.totalorder %s10, 0
    %p70 = por %p68, %p69
    %p71 = scmp.ne.s32.totalorder %s60, %s63
    %p72 = scmp.eq.s32.totalorder %s15, 1
    %p73 = por %p71, %p72
    %p74 = scmp.ne.s32.totalorder %s63, %s64
    %p75 = scmp.eq.s32.totalorder %s15, 0
    %p76 = por %p74, %p75
    %p77 = scmp.ne.s32.totalorder %s63, %s64
    %p78 = scmp.eq.s32.totalorder %s16, 1
    %p79 = por %p77, %p78
    %p81 = scmp.ne.s32.totalorder %s64, %s80
    %p82 = scmp.eq.s32.totalorder %s16, 0
    %p83 = por %p81, %p82
    %s85 = sadd.s32 %s84, 1
    %p88 = scmp.eq.s32.totalorder %s10, 1
    %p89 = scmp.ne.s32.totalorder %s84, %s86
    %p90 = scmp.eq.s32.totalorder %s10, 0
    %p91 = por %p89, %p90
    %p92 = scmp.ne.s32.totalorder %s84, %s86
    %p93 = scmp.eq.s32.totalorder %s15, 1
    %p94 = por %p92, %p93
    %p95 = scmp.ne.s32.totalorder %s86, %s87
    %p96 = scmp.eq.s32.totalorder %s15, 0
    %p97 = por %p95, %p96
    %p98 = scmp.ne.s32.totalorder %s86, %s87
    %p99 = scmp.eq.s32.totalorder %s16, 1
    %p100 = por %p98, %p99
    %p102 = scmp.ne.s32.totalorder %s87, %s101
    %p103 = scmp.eq.s32.totalorder %s16, 0
    %p104 = por %p102, %p103
    %s106 = sadd.s32 %s105, 1
    %p109 = scmp.eq.s32.totalorder %s10, 1
    %p110 = scmp.ne.s32.totalorder %s105, %s107
    %p111 = scmp.eq.s32.totalorder %s10, 0
    %p112 = por %p110, %p111
    %p113 = scmp.ne.s32.totalorder %s105, %s107
    %p114 = scmp.eq.s32.totalorder %s15, 1
    %p115 = por %p113, %p114
    %p116 = scmp.ne.s32.totalorder %s107, %s108
    %p117 = scmp.eq.s32.totalorder %s15, 0
    %p118 = por %p116, %p117
    %p119 = scmp.ne.s32.totalorder %s107, %s108
    %p120 = scmp.eq.s32.totalorder %s16, 1
    %p121 = por %p119, %p120
    %p123 = scmp.ne.s32.totalorder %s108, %s122
    %p124 = scmp.eq.s32.totalorder %s16, 0
    %p125 = por %p123, %p124
    %s126 = ssub.s32 %s17, %s29
    %p127 = scmp.eq.s32.totalorder %s126, 0
    %s129 = sadd.s32 %s128, 1
    %s130 = scalar_select %p127, %s128, %s129
    %p133 = pneg %p127
    %p134 = scmp.eq.s32.totalorder %s10, 1
    %p135 = por %p133, %p134
    %p136 = scmp.ne.s32.totalorder %s128, %s131
    %p137 = scmp.eq.s32.totalorder %s10, 0
    %p138 = por %p136, %p137
    %p139 = scmp.ne.s32.totalorder %s128, %s131
    %p140 = scmp.eq.s32.totalorder %s15, 1
    %p141 = por %p139, %p140
    %p142 = scmp.ne.s32.totalorder %s131, %s132
    %p143 = scmp.eq.s32.totalorder %s15, 0
    %p144 = por %p142, %p143
    %p145 = scmp.ne.s32.totalorder %s131, %s132
    %p146 = scmp.eq.s32.totalorder %s16, 1
    %p147 = por %p145, %p146
    %p149 = scmp.ne.s32.totalorder %s132, %s148
    %p150 = scmp.eq.s32.totalorder %s16, 0
    %p151 = por %p149, %p150
    %p152 = scmp.le.s32.totalorder 1, %s10
    %p153 = scmp.lt.s32.totalorder %s10, 3
    %p154 = pnand %p152, %p153
    %p155 = pneg %p154
    // Predicated region
    $region9: #{salience_forward.5} parent=5 // pred_check
      _
    $region10: #{salience_forward.5} parent=5 // pred_check_branch
      %157 = sbr.rel (%p154) target = $region12
    $region11: #{salience_forward.5} parent=5 // pred_region
      %s158 = ssub.s32 %s10, 1
      // Predicated region
      $region13: #{salience_forward.5} parent=11 // pred_check
        %p159 = pneg %p76
      $region14: #{salience_forward.5} parent=11 // pred_check_branch
        %161 = sbr.rel (%p159) target = $region16
      $region15: #{salience_forward.5} parent=11 // pred_region
        %s162 = smul.u32 16, %s20
        %p163 = scmp.lt.s32.totalorder %s162, 15
        %s164 = scalar_select %p163, %s162, 15
        %s165 = smul.addr %s164, 4
        %s166 = scalar_lea.vmem %s1, %s165
        %s167 = smul.u32 16, %s20
      $region16: #{salience_forward.5} parent=11 // pred_fallthru
        _
      // Predicated region
      $region17: #{salience_forward.5} parent=11 // pred_check
        %p168 = pneg %p97
      $region18: #{salience_forward.5} parent=11 // pred_check_branch
        %170 = sbr.rel (%p168) target = $region20
      $region19: #{salience_forward.5} parent=11 // pred_region
        _
      $region20: #{salience_forward.5} parent=11 // pred_fallthru
        _
      // Predicated region
      $region21: #{salience_forward.5} parent=11 // pred_check
        %p171 = pneg %p118
      $region22: #{salience_forward.5} parent=11 // pred_check_branch
        %173 = sbr.rel (%p171) target = $region24
      $region23: #{salience_forward.5} parent=11 // pred_region
        _
      $region24: #{salience_forward.5} parent=11 // pred_fallthru
        _
    $region12: #{salience_forward.5} parent=5 // pred_fallthru
      _
    %p174 = scmp.lt.s32.totalorder %s10, 2
    // Predicated region
    $region25: #{salience_forward.5} parent=5 // pred_check
      %p175 = pneg %p174
    $region26: #{salience_forward.5} parent=5 // pred_check_branch
      %177 = sbr.rel (%p175) target = $region28
    $region27: #{salience_forward.5} parent=5 // pred_region
      // Predicated region
      $region29: #{salience_forward.5} parent=27 // pred_check
        %p178 = pneg %p44
      $region30: #{salience_forward.5} parent=27 // pred_check_branch
        %180 = sbr.rel (%p178) target = $region32
      $region31: #{salience_forward.5} parent=27 // pred_region
        %s181 = smul.u32 32, %s17
        %p182 = scmp.lt.s32.totalorder %s181, 63
        %s183 = scalar_select %p182, %s181, 63
        %p184 = scmp.lt.s32.totalorder %s18, 0
        %s185 = scalar_select %p184, %s18, 0
        %s186 = sadd.s32 %s185, %s183
        %s187 = smul.addr %s186, 4
        %s188 = scalar_lea.vmem %s0, %s187
        %s189 = smul.u32 32, %s17
      $region32: #{salience_forward.5} parent=27 // pred_fallthru
        _
    $region28: #{salience_forward.5} parent=5 // pred_fallthru
      _
    %p190 = scmp.le.s32.totalorder 1, %s10
    %p191 = scmp.lt.s32.totalorder %s10, 3
    %p192 = pnand %p190, %p191
    %p193 = pneg %p192
    // Predicated region
    $region33: #{salience_forward.5} parent=5 // pred_check
      _
    $region34: #{salience_forward.5} parent=5 // pred_check_branch
      %195 = sbr.rel (%p192) target = $region36
    $region35: #{salience_forward.5} parent=5 // pred_region
      %s196 = ssub.s32 %s10, 1
      %s197 = smul.u32 32, %s19
      %p198 = scmp.lt.s32.totalorder %s197, 63
      %s199 = scalar_select %p198, %s197, 63
      %p200 = scmp.lt.s32.totalorder %s20, 0
      %s201 = scalar_select %p200, %s20, 0
      %s202 = sadd.s32 %s201, %s199
      %s203 = smul.addr %s202, 4
      %s204 = scalar_lea.vmem %s0, %s203
      %p205 = pneg %p50
      %p206 = pneg %p47
      %s207 = smul.u32 16, %s20
      %p208 = scmp.lt.s32.totalorder %s207, 15
      %s209 = scalar_select %p208, %s207, 15
      %s210 = smul.addr %s209, 4
      %s211 = scalar_lea.vmem %s1, %s210
      %p212 = pneg %p76
      %p213 = pneg %p73
      %p214 = pneg %p97
      %p215 = pneg %p94
      %p216 = pneg %p118
      %p217 = pneg %p115
      %p218 = pneg %p144
      %p219 = pneg %p141
      %s220 = smul.u32 32, %s19
      %p221 = scmp.lt.s32.totalorder %s220, 63
      %s222 = scalar_select %p221, %s220, 63
      %s223 = smul.addr %s222, 4
      %s224 = scalar_lea.vmem %s4, %s223
      %s225 = smul.u32 32, %s19
      %p226 = scmp.lt.s32.totalorder %s225, 63
      %s227 = scalar_select %p226, %s225, 63
      %p228 = scmp.lt.s32.totalorder %s20, 0
      %s229 = scalar_select %p228, %s20, 0
      %s230 = sadd.s32 %s229, %s227
      %s231 = smul.addr %s230, 4
      %s232 = scalar_lea.vmem %s0, %s231
      %s233 = smul.u32 32, %s19
      %s234 = smul.u32 16, %s20
      %p235 = scmp.lt.s32.totalorder %s234, 15
      %s236 = scalar_select %p235, %s234, 15
      %s237 = smul.addr %s236, 4
      %s238 = scalar_lea.vmem %s1, %s237
      %s239 = smul.u32 16, %s20
      %s240 = smul.u32 32, %s19
      %p241 = scmp.lt.s32.totalorder %s240, 63
      %s242 = scalar_select %p241, %s240, 63
      %s243 = smul.addr %s242, 4
      %s244 = scalar_lea.vmem %s4, %s243
      %s245 = smul.u32 32, %s19
      %v246 = vld [vmem:[%s232] sm:$0xf]
      %v247 = vld [vmem:[%s232 + $0x4] sm:$0xf]
      %v248 = vld [vmem:[%s232 + $0x8] sm:$0xf]
      %v249 = vld [vmem:[%s232 + $0xc] sm:$0xf]
      %v250 = vld [vmem:[%s232 + $0x10] sm:$0xf]
      %v251 = vld [vmem:[%s232 + $0x14] sm:$0xf]
      %v252 = vld [vmem:[%s232 + $0x18] sm:$0xf]
      %v253 = vld [vmem:[%s232 + $0x1c] sm:$0xf]
      %v254 = vld [vmem:[%s232 + $0x20] sm:$0xf]
      %v255 = vld [vmem:[%s232 + $0x24] sm:$0xf]
      %v256 = vld [vmem:[%s232 + $0x28] sm:$0xf]
      %v257 = vld [vmem:[%s232 + $0x2c] sm:$0xf]
      %v258 = vld [vmem:[%s232 + $0x30] sm:$0xf]
      %v259 = vld [vmem:[%s232 + $0x34] sm:$0xf]
      %v260 = vld [vmem:[%s232 + $0x38] sm:$0xf]
      %v261 = vld [vmem:[%s232 + $0x3c] sm:$0xf]
      %v262 = vld [vmem:[%s232 + $0x40] sm:$0xf]
      %v263 = vld [vmem:[%s232 + $0x44] sm:$0xf]
      %v264 = vld [vmem:[%s232 + $0x48] sm:$0xf]
      %v265 = vld [vmem:[%s232 + $0x4c] sm:$0xf]
      %v266 = vld [vmem:[%s232 + $0x50] sm:$0xf]
      %v267 = vld [vmem:[%s232 + $0x54] sm:$0xf]
      %v268 = vld [vmem:[%s232 + $0x58] sm:$0xf]
      %v269 = vld [vmem:[%s232 + $0x5c] sm:$0xf]
      %v270 = vld [vmem:[%s232 + $0x60] sm:$0xf]
      %v271 = vld [vmem:[%s232 + $0x64] sm:$0xf]
      %v272 = vld [vmem:[%s232 + $0x68] sm:$0xf]
      %v273 = vld [vmem:[%s232 + $0x6c] sm:$0xf]
      %v274 = vld [vmem:[%s232 + $0x70] sm:$0xf]
      %v275 = vld [vmem:[%s232 + $0x74] sm:$0xf]
      %v276 = vld [vmem:[%s232 + $0x78] sm:$0xf]
      %v277 = vld [vmem:[%s232 + $0x7c] sm:$0xf]
      %v278 = vld [vmem:[%s238] sm:$0xf]
      %v279 = vld [vmem:[%s238 + $0x4] sm:$0xf]
      %v280 = vld [vmem:[%s238 + $0x8] sm:$0xf]
      %v281 = vld [vmem:[%s238 + $0xc] sm:$0xf]
      %v282 = vld [vmem:[%s238 + $0x10] sm:$0xf]
      %v283 = vld [vmem:[%s238 + $0x14] sm:$0xf]
      %v284 = vld [vmem:[%s238 + $0x18] sm:$0xf]
      %v285 = vld [vmem:[%s238 + $0x1c] sm:$0xf]
      %v286 = vld [vmem:[%s238 + $0x20] sm:$0xf]
      %v287 = vld [vmem:[%s238 + $0x24] sm:$0xf]
      %v288 = vld [vmem:[%s238 + $0x28] sm:$0xf]
      %v289 = vld [vmem:[%s238 + $0x2c] sm:$0xf]
      %v290 = vld [vmem:[%s238 + $0x30] sm:$0xf]
      %v291 = vld [vmem:[%s238 + $0x34] sm:$0xf]
      %v292 = vld [vmem:[%s238 + $0x38] sm:$0xf]
      %v293 = vld [vmem:[%s238 + $0x3c] sm:$0xf]
      %v326 = vunpack.c.l.b16 %v246
      %v327 = vunpack.c.l.b16 %v247
      %v328 = vunpack.c.l.b16 %v248
      %v329 = vunpack.c.l.b16 %v249
      %v330 = vunpack.c.l.b16 %v250
      %v331 = vunpack.c.l.b16 %v251
      %v332 = vunpack.c.l.b16 %v252
      %v333 = vunpack.c.l.b16 %v253
      %v334 = vunpack.c.l.b16 %v254
      %v335 = vunpack.c.l.b16 %v255
      %v336 = vunpack.c.l.b16 %v256
      %v337 = vunpack.c.l.b16 %v257
      %v338 = vunpack.c.l.b16 %v258
      %v339 = vunpack.c.l.b16 %v259
      %v340 = vunpack.c.l.b16 %v260
      %v341 = vunpack.c.l.b16 %v261
      %v342 = vunpack.c.l.b16 %v262
      %v343 = vunpack.c.l.b16 %v263
      %v344 = vunpack.c.l.b16 %v264
      %v345 = vunpack.c.l.b16 %v265
      %v346 = vunpack.c.l.b16 %v266
      %v347 = vunpack.c.l.b16 %v267
      %v348 = vunpack.c.l.b16 %v268
      %v349 = vunpack.c.l.b16 %v269
      %v350 = vunpack.c.l.b16 %v270
      %v351 = vunpack.c.l.b16 %v271
      %v352 = vunpack.c.l.b16 %v272
      %v353 = vunpack.c.l.b16 %v273
      %v354 = vunpack.c.l.b16 %v274
      %v355 = vunpack.c.l.b16 %v275
      %v356 = vunpack.c.l.b16 %v276
      %v357 = vunpack.c.l.b16 %v277
      %v358 = vpack.c.b16 %v327, %v326
      %v359 = vpack.c.b16 %v329, %v328
      %v360 = vpack.c.b16 %v331, %v330
      %v361 = vpack.c.b16 %v333, %v332
      %v362 = vpack.c.b16 %v335, %v334
      %v363 = vpack.c.b16 %v337, %v336
      %v364 = vpack.c.b16 %v339, %v338
      %v365 = vpack.c.b16 %v341, %v340
      %v366 = vpack.c.b16 %v343, %v342
      %v367 = vpack.c.b16 %v345, %v344
      %v368 = vpack.c.b16 %v347, %v346
      %v369 = vpack.c.b16 %v349, %v348
      %v370 = vpack.c.b16 %v351, %v350
      %v371 = vpack.c.b16 %v353, %v352
      %v372 = vpack.c.b16 %v355, %v354
      %v373 = vpack.c.b16 %v357, %v356
      %v406 = vunpack.c.l.b16 %v278
      %v407 = vunpack.c.l.b16 %v279
      %v408 = vunpack.c.l.b16 %v280
      %v409 = vunpack.c.l.b16 %v281
      %v410 = vunpack.c.l.b16 %v282
      %v411 = vunpack.c.l.b16 %v283
      %v412 = vunpack.c.l.b16 %v284
      %v413 = vunpack.c.l.b16 %v285
      %v414 = vunpack.c.l.b16 %v286
      %v415 = vunpack.c.l.b16 %v287
      %v416 = vunpack.c.l.b16 %v288
      %v417 = vunpack.c.l.b16 %v289
      %v418 = vunpack.c.l.b16 %v290
      %v419 = vunpack.c.l.b16 %v291
      %v420 = vunpack.c.l.b16 %v292
      %v421 = vunpack.c.l.b16 %v293
      %v422 = vpack.c.b16 %v407, %v406
      %v423 = vpack.c.b16 %v409, %v408
      %v424 = vpack.c.b16 %v411, %v410
      %v425 = vpack.c.b16 %v413, %v412
      %v426 = vpack.c.b16 %v415, %v414
      %v427 = vpack.c.b16 %v417, %v416
      %v428 = vpack.c.b16 %v419, %v418
      %v429 = vpack.c.b16 %v421, %v420
      %438 = vmatpush.bf16.msra.mxu0 %v429
      %439 = vmatpush.bf16.msra.mxu0 %v428
      %440 = vmatpush.bf16.msra.mxu0 %v427
      %441 = vmatpush.bf16.msra.mxu0 %v426
      %442 = vmatpush.bf16.msra.mxu0 %v425
      %443 = vmatpush.bf16.msra.mxu0 %v424
      %444 = vmatpush.bf16.msra.mxu0 %v423
      %445 = vmatpush.bf16.msra.mxu0 %v422
      %446 = vmatmul.bf16.gmra.mxu0 %v358
      %v447 = vpop.f32.mrf.mxu0
      %v448 = vadd.f32 0.0, %v447
      %v449 = vpop.f32.mrf.mxu0
      %v450 = vadd.f32 0.0, %v449
      %451 = vmatmul.bf16.gmra.mxu0 %v359
      %v452 = vpop.f32.mrf.mxu0
      %v453 = vadd.f32 0.0, %v452
      %v454 = vpop.f32.mrf.mxu0
      %v455 = vadd.f32 0.0, %v454
      %456 = vmatmul.bf16.gmra.mxu0 %v360
      %v457 = vpop.f32.mrf.mxu0
      %v458 = vadd.f32 0.0, %v457
      %v459 = vpop.f32.mrf.mxu0
      %v460 = vadd.f32 0.0, %v459
      %461 = vmatmul.bf16.gmra.mxu0 %v361
      %v462 = vpop.f32.mrf.mxu0
      %v463 = vadd.f32 0.0, %v462
      %v464 = vpop.f32.mrf.mxu0
      %v465 = vadd.f32 0.0, %v464
      %466 = vmatmul.bf16.gmra.mxu0 %v362
      %v467 = vpop.f32.mrf.mxu0
      %v468 = vadd.f32 0.0, %v467
      %v469 = vpop.f32.mrf.mxu0
      %v470 = vadd.f32 0.0, %v469
      %471 = vmatmul.bf16.gmra.mxu0 %v363
      %v472 = vpop.f32.mrf.mxu0
      %v473 = vadd.f32 0.0, %v472
      %v474 = vpop.f32.mrf.mxu0
      %v475 = vadd.f32 0.0, %v474
      %476 = vmatmul.bf16.gmra.mxu0 %v364
      %v477 = vpop.f32.mrf.mxu0
      %v478 = vadd.f32 0.0, %v477
      %v479 = vpop.f32.mrf.mxu0
      %v480 = vadd.f32 0.0, %v479
      %481 = vmatmul.bf16.gmra.mxu0 %v365
      %v482 = vpop.f32.mrf.mxu0
      %v483 = vadd.f32 0.0, %v482
      %v484 = vpop.f32.mrf.mxu0
      %v485 = vadd.f32 0.0, %v484
      %486 = vmatmul.bf16.gmra.mxu0 %v366
      %v487 = vpop.f32.mrf.mxu0
      %v488 = vadd.f32 0.0, %v487
      %v489 = vpop.f32.mrf.mxu0
      %v490 = vadd.f32 0.0, %v489
      %491 = vmatmul.bf16.gmra.mxu0 %v367
      %v492 = vpop.f32.mrf.mxu0
      %v493 = vadd.f32 0.0, %v492
      %v494 = vpop.f32.mrf.mxu0
      %v495 = vadd.f32 0.0, %v494
      %496 = vmatmul.bf16.gmra.mxu0 %v368
      %v497 = vpop.f32.mrf.mxu0
      %v498 = vadd.f32 0.0, %v497
      %v499 = vpop.f32.mrf.mxu0
      %v500 = vadd.f32 0.0, %v499
      %501 = vmatmul.bf16.gmra.mxu0 %v369
      %v502 = vpop.f32.mrf.mxu0
      %v503 = vadd.f32 0.0, %v502
      %v504 = vpop.f32.mrf.mxu0
      %v505 = vadd.f32 0.0, %v504
      %506 = vmatmul.bf16.gmra.mxu0 %v370
      %v507 = vpop.f32.mrf.mxu0
      %v508 = vadd.f32 0.0, %v507
      %v509 = vpop.f32.mrf.mxu0
      %v510 = vadd.f32 0.0, %v509
      %511 = vmatmul.bf16.gmra.mxu0 %v371
      %v512 = vpop.f32.mrf.mxu0
      %v513 = vadd.f32 0.0, %v512
      %v514 = vpop.f32.mrf.mxu0
      %v515 = vadd.f32 0.0, %v514
      %516 = vmatmul.bf16.gmra.mxu0 %v372
      %v517 = vpop.f32.mrf.mxu0
      %v518 = vadd.f32 0.0, %v517
      %v519 = vpop.f32.mrf.mxu0
      %v520 = vadd.f32 0.0, %v519
      %521 = vmatmul.bf16.gmra.mxu0 %v373
      %v522 = vpop.f32.mrf.mxu0
      %v523 = vadd.f32 0.0, %v522
      %v524 = vpop.f32.mrf.mxu0
      %v525 = vadd.f32 0.0, %v524
      %526 = vdwg.mxu0
      %p527 = scmp.eq.s32.totalorder %s20, 0
      // Predicated region
      $region37: #{salience_forward.5} parent=35 // pred_check
        %p528 = pneg %p527
      $region38: #{salience_forward.5} parent=35 // pred_check_branch
        %530 = sbr.rel (%p528) target = $region40
      $region39: #{salience_forward.5} parent=35 // pred_region
        %531 = vst [vmem:[#allocation2] sm:$0xff] %v448
        %532 = vst [vmem:[#allocation2 + $0x8] sm:$0xff] %v450
        %533 = vst [vmem:[#allocation2 + $0x10] sm:$0xff] %v453
        %534 = vst [vmem:[#allocation2 + $0x18] sm:$0xff] %v455
        %535 = vst [vmem:[#allocation2 + $0x20] sm:$0xff] %v458
        %536 = vst [vmem:[#allocation2 + $0x28] sm:$0xff] %v460
        %537 = vst [vmem:[#allocation2 + $0x30] sm:$0xff] %v463
        %538 = vst [vmem:[#allocation2 + $0x38] sm:$0xff] %v465
        %539 = vst [vmem:[#allocation2 + $0x40] sm:$0xff] %v468
        %540 = vst [vmem:[#allocation2 + $0x48] sm:$0xff] %v470
        %541 = vst [vmem:[#allocation2 + $0x50] sm:$0xff] %v473
        %542 = vst [vmem:[#allocation2 + $0x58] sm:$0xff] %v475
        %543 = vst [vmem:[#allocation2 + $0x60] sm:$0xff] %v478
        %544 = vst [vmem:[#allocation2 + $0x68] sm:$0xff] %v480
        %545 = vst [vmem:[#allocation2 + $0x70] sm:$0xff] %v483
        %546 = vst [vmem:[#allocation2 + $0x78] sm:$0xff] %v485
        %547 = vst [vmem:[#allocation2 + $0x80] sm:$0xff] %v488
        %548 = vst [vmem:[#allocation2 + $0x88] sm:$0xff] %v490
        %549 = vst [vmem:[#allocation2 + $0x90] sm:$0xff] %v493
        %550 = vst [vmem:[#allocation2 + $0x98] sm:$0xff] %v495
        %551 = vst [vmem:[#allocation2 + $0xa0] sm:$0xff] %v498
        %552 = vst [vmem:[#allocation2 + $0xa8] sm:$0xff] %v500
        %553 = vst [vmem:[#allocation2 + $0xb0] sm:$0xff] %v503
        %554 = vst [vmem:[#allocation2 + $0xb8] sm:$0xff] %v505
        %555 = vst [vmem:[#allocation2 + $0xc0] sm:$0xff] %v508
        %556 = vst [vmem:[#allocation2 + $0xc8] sm:$0xff] %v510
        %557 = vst [vmem:[#allocation2 + $0xd0] sm:$0xff] %v513
        %558 = vst [vmem:[#allocation2 + $0xd8] sm:$0xff] %v515
        %559 = vst [vmem:[#allocation2 + $0xe0] sm:$0xff] %v518
        %560 = vst [vmem:[#allocation2 + $0xe8] sm:$0xff] %v520
        %561 = vst [vmem:[#allocation2 + $0xf0] sm:$0xff] %v523
        %562 = vst [vmem:[#allocation2 + $0xf8] sm:$0xff] %v525
      $region40: #{salience_forward.5} parent=35 // pred_fallthru
        _
      %p563 = scmp.gt.s32.totalorder %s20, 0
      // Predicated region
      $region41: #{salience_forward.5} parent=35 // pred_check
        %p564 = pneg %p563
      $region42: #{salience_forward.5} parent=35 // pred_check_branch
        %566 = sbr.rel (%p564) target = $region44
      $region43: #{salience_forward.5} parent=35 // pred_region
        %v567 = vld [vmem:[#allocation2] sm:$0xff]
        %v568 = vld [vmem:[#allocation2 + $0x8] sm:$0xff]
        %v569 = vld [vmem:[#allocation2 + $0x10] sm:$0xff]
        %v570 = vld [vmem:[#allocation2 + $0x18] sm:$0xff]
        %v571 = vld [vmem:[#allocation2 + $0x20] sm:$0xff]
        %v572 = vld [vmem:[#allocation2 + $0x28] sm:$0xff]
        %v573 = vld [vmem:[#allocation2 + $0x30] sm:$0xff]
        %v574 = vld [vmem:[#allocation2 + $0x38] sm:$0xff]
        %v575 = vld [vmem:[#allocation2 + $0x40] sm:$0xff]
        %v576 = vld [vmem:[#allocation2 + $0x48] sm:$0xff]
        %v577 = vld [vmem:[#allocation2 + $0x50] sm:$0xff]
        %v578 = vld [vmem:[#allocation2 + $0x58] sm:$0xff]
        %v579 = vld [vmem:[#allocation2 + $0x60] sm:$0xff]
        %v580 = vld [vmem:[#allocation2 + $0x68] sm:$0xff]
        %v581 = vld [vmem:[#allocation2 + $0x70] sm:$0xff]
        %v582 = vld [vmem:[#allocation2 + $0x78] sm:$0xff]
        %v583 = vld [vmem:[#allocation2 + $0x80] sm:$0xff]
        %v584 = vld [vmem:[#allocation2 + $0x88] sm:$0xff]
        %v585 = vld [vmem:[#allocation2 + $0x90] sm:$0xff]
        %v586 = vld [vmem:[#allocation2 + $0x98] sm:$0xff]
        %v587 = vld [vmem:[#allocation2 + $0xa0] sm:$0xff]
        %v588 = vld [vmem:[#allocation2 + $0xa8] sm:$0xff]
        %v589 = vld [vmem:[#allocation2 + $0xb0] sm:$0xff]
        %v590 = vld [vmem:[#allocation2 + $0xb8] sm:$0xff]
        %v591 = vld [vmem:[#allocation2 + $0xc0] sm:$0xff]
        %v592 = vld [vmem:[#allocation2 + $0xc8] sm:$0xff]
        %v593 = vld [vmem:[#allocation2 + $0xd0] sm:$0xff]
        %v594 = vld [vmem:[#allocation2 + $0xd8] sm:$0xff]
        %v595 = vld [vmem:[#allocation2 + $0xe0] sm:$0xff]
        %v596 = vld [vmem:[#allocation2 + $0xe8] sm:$0xff]
        %v597 = vld [vmem:[#allocation2 + $0xf0] sm:$0xff]
        %v598 = vld [vmem:[#allocation2 + $0xf8] sm:$0xff]
        %v599 = vadd.f32 %v567, %v448
        %v600 = vadd.f32 %v568, %v450
        %v601 = vadd.f32 %v569, %v453
        %v602 = vadd.f32 %v570, %v455
        %v603 = vadd.f32 %v571, %v458
        %v604 = vadd.f32 %v572, %v460
        %v605 = vadd.f32 %v573, %v463
        %v606 = vadd.f32 %v574, %v465
        %v607 = vadd.f32 %v575, %v468
        %v608 = vadd.f32 %v576, %v470
        %v609 = vadd.f32 %v577, %v473
        %v610 = vadd.f32 %v578, %v475
        %v611 = vadd.f32 %v579, %v478
        %v612 = vadd.f32 %v580, %v480
        %v613 = vadd.f32 %v581, %v483
        %v614 = vadd.f32 %v582, %v485
        %v615 = vadd.f32 %v583, %v488
        %v616 = vadd.f32 %v584, %v490
        %v617 = vadd.f32 %v585, %v493
        %v618 = vadd.f32 %v586, %v495
        %v619 = vadd.f32 %v587, %v498
        %v620 = vadd.f32 %v588, %v500
        %v621 = vadd.f32 %v589, %v503
        %v622 = vadd.f32 %v590, %v505
        %v623 = vadd.f32 %v591, %v508
        %v624 = vadd.f32 %v592, %v510
        %v625 = vadd.f32 %v593, %v513
        %v626 = vadd.f32 %v594, %v515
        %v627 = vadd.f32 %v595, %v518
        %v628 = vadd.f32 %v596, %v520
        %v629 = vadd.f32 %v597, %v523
        %v630 = vadd.f32 %v598, %v525
        %631 = vst [vmem:[#allocation2] sm:$0xff] %v599
        %632 = vst [vmem:[#allocation2 + $0x8] sm:$0xff] %v600
        %633 = vst [vmem:[#allocation2 + $0x10] sm:$0xff] %v601
        %634 = vst [vmem:[#allocation2 + $0x18] sm:$0xff] %v602
        %635 = vst [vmem:[#allocation2 + $0x20] sm:$0xff] %v603
        %636 = vst [vmem:[#allocation2 + $0x28] sm:$0xff] %v604
        %637 = vst [vmem:[#allocation2 + $0x30] sm:$0xff] %v605
        %638 = vst [vmem:[#allocation2 + $0x38] sm:$0xff] %v606
        %639 = vst [vmem:[#allocation2 + $0x40] sm:$0xff] %v607
        %640 = vst [vmem:[#allocation2 + $0x48] sm:$0xff] %v608
        %641 = vst [vmem:[#allocation2 + $0x50] sm:$0xff] %v609
        %642 = vst [vmem:[#allocation2 + $0x58] sm:$0xff] %v610
        %643 = vst [vmem:[#allocation2 + $0x60] sm:$0xff] %v611
        %644 = vst [vmem:[#allocation2 + $0x68] sm:$0xff] %v612
        %645 = vst [vmem:[#allocation2 + $0x70] sm:$0xff] %v613
        %646 = vst [vmem:[#allocation2 + $0x78] sm:$0xff] %v614
        %647 = vst [vmem:[#allocation2 + $0x80] sm:$0xff] %v615
        %648 = vst [vmem:[#allocation2 + $0x88] sm:$0xff] %v616
        %649 = vst [vmem:[#allocation2 + $0x90] sm:$0xff] %v617
        %650 = vst [vmem:[#allocation2 + $0x98] sm:$0xff] %v618
        %651 = vst [vmem:[#allocation2 + $0xa0] sm:$0xff] %v619
        %652 = vst [vmem:[#allocation2 + $0xa8] sm:$0xff] %v620
        %653 = vst [vmem:[#allocation2 + $0xb0] sm:$0xff] %v621
        %654 = vst [vmem:[#allocation2 + $0xb8] sm:$0xff] %v622
        %655 = vst [vmem:[#allocation2 + $0xc0] sm:$0xff] %v623
        %656 = vst [vmem:[#allocation2 + $0xc8] sm:$0xff] %v624
        %657 = vst [vmem:[#allocation2 + $0xd0] sm:$0xff] %v625
        %658 = vst [vmem:[#allocation2 + $0xd8] sm:$0xff] %v626
        %659 = vst [vmem:[#allocation2 + $0xe0] sm:$0xff] %v627
        %660 = vst [vmem:[#allocation2 + $0xe8] sm:$0xff] %v628
        %661 = vst [vmem:[#allocation2 + $0xf0] sm:$0xff] %v629
        %662 = vst [vmem:[#allocation2 + $0xf8] sm:$0xff] %v630
      $region44: #{salience_forward.5} parent=35 // pred_fallthru
        _
      // Predicated region
      $region45: #{salience_forward.5} parent=35 // pred_check
        %p663 = pneg %p527
      $region46: #{salience_forward.5} parent=35 // pred_check_branch
        %665 = sbr.rel (%p663) target = $region48
      $region47: #{salience_forward.5} parent=35 // pred_region
        %v666 = vld [vmem:[#allocation2] sm:$0xff]
        %v667 = vld [vmem:[#allocation2 + $0x8] sm:$0xff]
        %v668 = vld [vmem:[#allocation2 + $0x10] sm:$0xff]
        %v669 = vld [vmem:[#allocation2 + $0x18] sm:$0xff]
        %v670 = vld [vmem:[#allocation2 + $0x20] sm:$0xff]
        %v671 = vld [vmem:[#allocation2 + $0x28] sm:$0xff]
        %v672 = vld [vmem:[#allocation2 + $0x30] sm:$0xff]
        %v673 = vld [vmem:[#allocation2 + $0x38] sm:$0xff]
        %v674 = vld [vmem:[#allocation2 + $0x40] sm:$0xff]
        %v675 = vld [vmem:[#allocation2 + $0x48] sm:$0xff]
        %v676 = vld [vmem:[#allocation2 + $0x50] sm:$0xff]
        %v677 = vld [vmem:[#allocation2 + $0x58] sm:$0xff]
        %v678 = vld [vmem:[#allocation2 + $0x60] sm:$0xff]
        %v679 = vld [vmem:[#allocation2 + $0x68] sm:$0xff]
        %v680 = vld [vmem:[#allocation2 + $0x70] sm:$0xff]
        %v681 = vld [vmem:[#allocation2 + $0x78] sm:$0xff]
        %v682 = vld [vmem:[#allocation2 + $0x80] sm:$0xff]
        %v683 = vld [vmem:[#allocation2 + $0x88] sm:$0xff]
        %v684 = vld [vmem:[#allocation2 + $0x90] sm:$0xff]
        %v685 = vld [vmem:[#allocation2 + $0x98] sm:$0xff]
        %v686 = vld [vmem:[#allocation2 + $0xa0] sm:$0xff]
        %v687 = vld [vmem:[#allocation2 + $0xa8] sm:$0xff]
        %v688 = vld [vmem:[#allocation2 + $0xb0] sm:$0xff]
        %v689 = vld [vmem:[#allocation2 + $0xb8] sm:$0xff]
        %v690 = vld [vmem:[#allocation2 + $0xc0] sm:$0xff]
        %v691 = vld [vmem:[#allocation2 + $0xc8] sm:$0xff]
        %v692 = vld [vmem:[#allocation2 + $0xd0] sm:$0xff]
        %v693 = vld [vmem:[#allocation2 + $0xd8] sm:$0xff]
        %v694 = vld [vmem:[#allocation2 + $0xe0] sm:$0xff]
        %v695 = vld [vmem:[#allocation2 + $0xe8] sm:$0xff]
        %v696 = vld [vmem:[#allocation2 + $0xf0] sm:$0xff]
        %v697 = vld [vmem:[#allocation2 + $0xf8] sm:$0xff]
        %v698 = vld [vmem:[%s2] sm:$0x1]
        %v700 = vperm.slane %v698, 0
        %v702 = vmul.f32 %v666, %v700
        %v703 = vmul.f32 %v667, %v700
        %v704 = vmul.f32 %v668, %v700
        %v705 = vmul.f32 %v669, %v700
        %v706 = vmul.f32 %v670, %v700
        %v707 = vmul.f32 %v671, %v700
        %v708 = vmul.f32 %v672, %v700
        %v709 = vmul.f32 %v673, %v700
        %v710 = vmul.f32 %v674, %v700
        %v711 = vmul.f32 %v675, %v700
        %v712 = vmul.f32 %v676, %v700
        %v713 = vmul.f32 %v677, %v700
        %v714 = vmul.f32 %v678, %v700
        %v715 = vmul.f32 %v679, %v700
        %v716 = vmul.f32 %v680, %v700
        %v717 = vmul.f32 %v681, %v700
        %v718 = vmul.f32 %v682, %v700
        %v719 = vmul.f32 %v683, %v700
        %v720 = vmul.f32 %v684, %v700
        %v721 = vmul.f32 %v685, %v700
        %v722 = vmul.f32 %v686, %v700
        %v723 = vmul.f32 %v687, %v700
        %v724 = vmul.f32 %v688, %v700
        %v725 = vmul.f32 %v689, %v700
        %v726 = vmul.f32 %v690, %v700
        %v727 = vmul.f32 %v691, %v700
        %v728 = vmul.f32 %v692, %v700
        %v729 = vmul.f32 %v693, %v700
        %v730 = vmul.f32 %v694, %v700
        %v731 = vmul.f32 %v695, %v700
        %v732 = vmul.f32 %v696, %v700
        %v733 = vmul.f32 %v697, %v700
        %v734 = vld [vmem:[%s3] sm:$0x1]
        %v736 = vperm.slane %v734, 0
        %v738 = vadd.f32 %v702, %v736
        %v739 = vadd.f32 %v703, %v736
        %v740 = vadd.f32 %v704, %v736
        %v741 = vadd.f32 %v705, %v736
        %v742 = vadd.f32 %v706, %v736
        %v743 = vadd.f32 %v707, %v736
        %v744 = vadd.f32 %v708, %v736
        %v745 = vadd.f32 %v709, %v736
        %v746 = vadd.f32 %v710, %v736
        %v747 = vadd.f32 %v711, %v736
        %v748 = vadd.f32 %v712, %v736
        %v749 = vadd.f32 %v713, %v736
        %v750 = vadd.f32 %v714, %v736
        %v751 = vadd.f32 %v715, %v736
        %v752 = vadd.f32 %v716, %v736
        %v753 = vadd.f32 %v717, %v736
        %v754 = vadd.f32 %v718, %v736
        %v755 = vadd.f32 %v719, %v736
        %v756 = vadd.f32 %v720, %v736
        %v757 = vadd.f32 %v721, %v736
        %v758 = vadd.f32 %v722, %v736
        %v759 = vadd.f32 %v723, %v736
        %v760 = vadd.f32 %v724, %v736
        %v761 = vadd.f32 %v725, %v736
        %v762 = vadd.f32 %v726, %v736
        %v763 = vadd.f32 %v727, %v736
        %v764 = vadd.f32 %v728, %v736
        %v765 = vadd.f32 %v729, %v736
        %v766 = vadd.f32 %v730, %v736
        %v767 = vadd.f32 %v731, %v736
        %v768 = vadd.f32 %v732, %v736
        %v769 = vadd.f32 %v733, %v736
        %v770 = vmax.f32 %v738, 0.0
        %v771 = vmax.f32 %v739, 0.0
        %v772 = vmax.f32 %v740, 0.0
        %v773 = vmax.f32 %v741, 0.0
        %v774 = vmax.f32 %v742, 0.0
        %v775 = vmax.f32 %v743, 0.0
        %v776 = vmax.f32 %v744, 0.0
        %v777 = vmax.f32 %v745, 0.0
        %v778 = vmax.f32 %v746, 0.0
        %v779 = vmax.f32 %v747, 0.0
        %v780 = vmax.f32 %v748, 0.0
        %v781 = vmax.f32 %v749, 0.0
        %v782 = vmax.f32 %v750, 0.0
        %v783 = vmax.f32 %v751, 0.0
        %v784 = vmax.f32 %v752, 0.0
        %v785 = vmax.f32 %v753, 0.0
        %v786 = vmax.f32 %v754, 0.0
        %v787 = vmax.f32 %v755, 0.0
        %v788 = vmax.f32 %v756, 0.0
        %v789 = vmax.f32 %v757, 0.0
        %v790 = vmax.f32 %v758, 0.0
        %v791 = vmax.f32 %v759, 0.0
        %v792 = vmax.f32 %v760, 0.0
        %v793 = vmax.f32 %v761, 0.0
        %v794 = vmax.f32 %v762, 0.0
        %v795 = vmax.f32 %v763, 0.0
        %v796 = vmax.f32 %v764, 0.0
        %v797 = vmax.f32 %v765, 0.0
        %v798 = vmax.f32 %v766, 0.0
        %v799 = vmax.f32 %v767, 0.0
        %v800 = vmax.f32 %v768, 0.0
        %v801 = vmax.f32 %v769, 0.0
        %v802 = vpack.c.bf16 %v770, %v770
        %v803 = vpack.c.bf16 %v771, %v771
        %v804 = vpack.c.bf16 %v772, %v772
        %v805 = vpack.c.bf16 %v773, %v773
        %v806 = vpack.c.bf16 %v774, %v774
        %v807 = vpack.c.bf16 %v775, %v775
        %v808 = vpack.c.bf16 %v776, %v776
        %v809 = vpack.c.bf16 %v777, %v777
        %v810 = vpack.c.bf16 %v778, %v778
        %v811 = vpack.c.bf16 %v779, %v779
        %v812 = vpack.c.bf16 %v780, %v780
        %v813 = vpack.c.bf16 %v781, %v781
        %v814 = vpack.c.bf16 %v782, %v782
        %v815 = vpack.c.bf16 %v783, %v783
        %v816 = vpack.c.bf16 %v784, %v784
        %v817 = vpack.c.bf16 %v785, %v785
        %v818 = vpack.c.bf16 %v786, %v786
        %v819 = vpack.c.bf16 %v787, %v787
        %v820 = vpack.c.bf16 %v788, %v788
        %v821 = vpack.c.bf16 %v789, %v789
        %v822 = vpack.c.bf16 %v790, %v790
        %v823 = vpack.c.bf16 %v791, %v791
        %v824 = vpack.c.bf16 %v792, %v792
        %v825 = vpack.c.bf16 %v793, %v793
        %v826 = vpack.c.bf16 %v794, %v794
        %v827 = vpack.c.bf16 %v795, %v795
        %v828 = vpack.c.bf16 %v796, %v796
        %v829 = vpack.c.bf16 %v797, %v797
        %v830 = vpack.c.bf16 %v798, %v798
        %v831 = vpack.c.bf16 %v799, %v799
        %v832 = vpack.c.bf16 %v800, %v800
        %v833 = vpack.c.bf16 %v801, %v801
        %834 = vst [vmem:[%s244] sm:$0xf] %v802
        %835 = vst [vmem:[%s244 + $0x4] sm:$0xf] %v803
        %836 = vst [vmem:[%s244 + $0x8] sm:$0xf] %v804
        %837 = vst [vmem:[%s244 + $0xc] sm:$0xf] %v805
        %838 = vst [vmem:[%s244 + $0x10] sm:$0xf] %v806
        %839 = vst [vmem:[%s244 + $0x14] sm:$0xf] %v807
        %840 = vst [vmem:[%s244 + $0x18] sm:$0xf] %v808
        %841 = vst [vmem:[%s244 + $0x1c] sm:$0xf] %v809
        %842 = vst [vmem:[%s244 + $0x20] sm:$0xf] %v810
        %843 = vst [vmem:[%s244 + $0x24] sm:$0xf] %v811
        %844 = vst [vmem:[%s244 + $0x28] sm:$0xf] %v812
        %845 = vst [vmem:[%s244 + $0x2c] sm:$0xf] %v813
        %846 = vst [vmem:[%s244 + $0x30] sm:$0xf] %v814
        %847 = vst [vmem:[%s244 + $0x34] sm:$0xf] %v815
        %848 = vst [vmem:[%s244 + $0x38] sm:$0xf] %v816
        %849 = vst [vmem:[%s244 + $0x3c] sm:$0xf] %v817
        %850 = vst [vmem:[%s244 + $0x40] sm:$0xf] %v818
        %851 = vst [vmem:[%s244 + $0x44] sm:$0xf] %v819
        %852 = vst [vmem:[%s244 + $0x48] sm:$0xf] %v820
        %853 = vst [vmem:[%s244 + $0x4c] sm:$0xf] %v821
        %854 = vst [vmem:[%s244 + $0x50] sm:$0xf] %v822
        %855 = vst [vmem:[%s244 + $0x54] sm:$0xf] %v823
        %856 = vst [vmem:[%s244 + $0x58] sm:$0xf] %v824
        %857 = vst [vmem:[%s244 + $0x5c] sm:$0xf] %v825
        %858 = vst [vmem:[%s244 + $0x60] sm:$0xf] %v826
        %859 = vst [vmem:[%s244 + $0x64] sm:$0xf] %v827
        %860 = vst [vmem:[%s244 + $0x68] sm:$0xf] %v828
        %861 = vst [vmem:[%s244 + $0x6c] sm:$0xf] %v829
        %862 = vst [vmem:[%s244 + $0x70] sm:$0xf] %v830
        %863 = vst [vmem:[%s244 + $0x74] sm:$0xf] %v831
        %864 = vst [vmem:[%s244 + $0x78] sm:$0xf] %v832
        %865 = vst [vmem:[%s244 + $0x7c] sm:$0xf] %v833
      $region48: #{salience_forward.5} parent=35 // pred_fallthru
        _
      %s866 = smul.u32 32, %s19
      %p867 = scmp.lt.s32.totalorder %s866, 63
      %s868 = scalar_select %p867, %s866, 63
      %s869 = smul.addr %s868, 4
      %s870 = scalar_lea.vmem %s4, %s869
      // Predicated region
      $region49: #{salience_forward.5} parent=35 // pred_check
        %p871 = pneg %p141
      $region50: #{salience_forward.5} parent=35 // pred_check_branch
        %873 = sbr.rel (%p871) target = $region52
      $region51: #{salience_forward.5} parent=35 // pred_region
        %s874 = smul.u32 32, %s19
      $region52: #{salience_forward.5} parent=35 // pred_fallthru
        _
    $region36: #{salience_forward.5} parent=5 // pred_fallthru
      _
    %p875 = scmp.le.s32.totalorder 2, %s10
    // Predicated region
    $region53: #{salience_forward.5} parent=5 // pred_check
      %p876 = pneg %p875
    $region54: #{salience_forward.5} parent=5 // pred_check_branch
      %878 = sbr.rel (%p876) target = $region56
    $region55: #{salience_forward.5} parent=5 // pred_region
      %s879 = ssub.s32 %s10, 2
      // Predicated region
      $region57: #{salience_forward.5} parent=55 // pred_check
        %p880 = pneg %p147
      $region58: #{salience_forward.5} parent=55 // pred_check_branch
        %882 = sbr.rel (%p880) target = $region60
      $region59: #{salience_forward.5} parent=55 // pred_region
        %s883 = smul.u32 32, %s21
        %p884 = scmp.lt.s32.totalorder %s883, 63
        %s885 = scalar_select %p884, %s883, 63
        %s886 = smul.addr %s885, 4
        %s887 = scalar_lea.vmem %s4, %s886
      $region60: #{salience_forward.5} parent=55 // pred_fallthru
        _
    $region56: #{salience_forward.5} parent=5 // pred_fallthru
      _
  $region6: #{salience_forward.5} parent=0 // loop_footer
    %s14 = sadd.s32 1, %s10
  $region7: #{salience_forward.5} parent=0 // loop_footer_branch
    %9 = sbr.rel target = $region3
  $region8: #{salience_forward.5} parent=0 // loop_exit
    _

// kernel: tile.18
$region0: #{tile.18}
  #allocation0 [shape = 's32[1]{0}', space=sflag, size = 0x4, scoped, tag = 'scoped memory for tile.18']
  %s0 = inlined_call_operand.vmem [shape: f32[8], index: 0, kind: input, shape index: {}]
  %s1 = inlined_call_operand.vmem [shape: f32[16,8], index: 1, kind: output, shape index: {}]
  // Predicated region
  $region2: #{tile.18} parent=0 // pred_check
    _
  $region3: #{tile.18} parent=0 // pred_check_branch
    %3 = sbr.rel (0) target = $region5
  $region4: #{tile.18} parent=0 // pred_region
    _
  $region5: #{tile.18} parent=0 // pred_fallthru
    _
  %v4 = vld [vmem:[%s0] ss:$0 sm:$0xff]
  %5 = vst [vmem:[%s1] sm:$0xff] %v4
  %s6 = scalar_lea.vmem %s1, 8
  %7 = vst [vmem:[%s6] sm:$0xff] %v4

// kernel: tile.27
$region0: #{tile.27}
  %s0 = inlined_call_operand.vmem [shape: f32[16,8], index: 0, kind: input, shape index: {}]
  %s1 = inlined_call_operand.vmem [shape: f32[1,128], index: 1, kind: output, shape index: {}]
  $region1: #{tile.27} parent=0
    #allocation0 [shape = 'u8[4096]{0}', space=vmem, size = 0x1000, scoped, tag = 'scoped mem for output reshape']
    %v2 = vld [vmem:[%s0] sm:$0x1]
    %vm3 = vcmask 64512
    %4 = vst.msk [vmem:[#allocation0] sm:$0x1] %vm3, %v2
    %s5 = scalar_lea.vmem %s0, 15
    %v6 = vld [vmem:[%s5] sm:$0x1]
    %7 = vrot.lane.b32.xlu0 %v6, 120
    %v8 = vpop.permute.xlu0 %7
    %vm9 = vcmask 1048512
    %10 = vst.msk [vmem:[#allocation0] sm:$0x1] %vm9, %v8
    %s11 = scalar_lea.vmem %s0, 14
    %v12 = vld [vmem:[%s11] sm:$0x1]
    %13 = vrot.lane.b32.xlu0 %v12, 112
    %v14 = vpop.permute.xlu0 %13
    %vm15 = vcmask 982912
    %16 = vst.msk [vmem:[#allocation0] sm:$0x1] %vm15, %v14
    %s17 = scalar_lea.vmem %s0, 13
    %v18 = vld [vmem:[%s17] sm:$0x1]
    %19 = vrot.lane.b32.xlu0 %v18, 104
    %v20 = vpop.permute.xlu0 %19
    %vm21 = vcmask 917312
    %22 = vst.msk [vmem:[#allocation0] sm:$0x1] %vm21, %v20
    %s23 = scalar_lea.vmem %s0, 12
    %v24 = vld [vmem:[%s23] sm:$0x1]
    %25 = vrot.lane.b32.xlu0 %v24, 96
    %v26 = vpop.permute.xlu0 %25
    %vm27 = vcmask 851712
    %28 = vst.msk [vmem:[#allocation0] sm:$0x1] %vm27, %v26
    %s29 = scalar_lea.vmem %s0, 11
    %v30 = vld [vmem:[%s29] sm:$0x1]
    %31 = vrot.lane.b32.xlu0 %v30, 88
    %v32 = vpop.permute.xlu0 %31
    %vm33 = vcmask 786112
    %34 = vst.msk [vmem:[#allocation0] sm:$0x1] %vm33, %v32
    %s35 = scalar_lea.vmem %s0, 10
    %v36 = vld [vmem:[%s35] sm:$0x1]
    %37 = vrot.lane.b32.xlu0 %v36, 80
    %v38 = vpop.permute.xlu0 %37
    %vm39 = vcmask 720512
    %40 = vst.msk [vmem:[#allocation0] sm:$0x1] %vm39, %v38
    %s41 = scalar_lea.vmem %s0, 9
    %v42 = vld [vmem:[%s41] sm:$0x1]
    %43 = vrot.lane.b32.xlu0 %v42, 72
    %v44 = vpop.permute.xlu0 %43
    %vm45 = vcmask 654912
    %46 = vst.msk [vmem:[#allocation0] sm:$0x1] %vm45, %v44
    %s47 = scalar_lea.vmem %s0, 8
    %v48 = vld [vmem:[%s47] sm:$0x1]
    %49 = vrot.lane.b32.xlu0 %v48, 64
    %v50 = vpop.permute.xlu0 %49
    %vm51 = vcmask 589312
    %52 = vst.msk [vmem:[#allocation0] sm:$0x1] %vm51, %v50
    %s53 = scalar_lea.vmem %s0, 7
    %v54 = vld [vmem:[%s53] sm:$0x1]
    %55 = vrot.lane.b32.xlu0 %v54, 56
    %v56 = vpop.permute.xlu0 %55
    %vm57 = vcmask 523712
    %58 = vst.msk [vmem:[#allocation0] sm:$0x1] %vm57, %v56
    %s59 = scalar_lea.vmem %s0, 6
    %v60 = vld [vmem:[%s59] sm:$0x1]
    %61 = vrot.lane.b32.xlu0 %v60, 48
    %v62 = vpop.permute.xlu0 %61
    %vm63 = vcmask 458112
    %64 = vst.msk [vmem:[#allocation0] sm:$0x1] %vm63, %v62
    %s65 = scalar_lea.vmem %s0, 5
    %v66 = vld [vmem:[%s65] sm:$0x1]
    %67 = vrot.lane.b32.xlu0 %v66, 40
    %v68 = vpop.permute.xlu0 %67
    %vm69 = vcmask 392512
    %70 = vst.msk [vmem:[#allocation0] sm:$0x1] %vm69, %v68
    %s71 = scalar_lea.vmem %s0, 4
    %v72 = vld [vmem:[%s71] sm:$0x1]
    %73 = vrot.lane.b32.xlu0 %v72, 32
    %v74 = vpop.permute.xlu0 %73
    %vm75 = vcmask 326912
    %76 = vst.msk [vmem:[#allocation0] sm:$0x1] %vm75, %v74
    %s77 = scalar_lea.vmem %s0, 3
    %v78 = vld [vmem:[%s77] sm:$0x1]
    %79 = vrot.lane.b32.xlu0 %v78, 24
    %v80 = vpop.permute.xlu0 %79
    %vm81 = vcmask 261312
    %82 = vst.msk [vmem:[#allocation0] sm:$0x1] %vm81, %v80
    %s83 = scalar_lea.vmem %s0, 2
    %v84 = vld [vmem:[%s83] sm:$0x1]
    %85 = vrot.lane.b32.xlu0 %v84, 16
    %v86 = vpop.permute.xlu0 %85
    %vm87 = vcmask 195712
    %88 = vst.msk [vmem:[#allocation0] sm:$0x1] %vm87, %v86
    %s89 = scalar_lea.vmem %s0, 1
    %v90 = vld [vmem:[%s89] sm:$0x1]
    %91 = vrot.lane.b32.xlu0 %v90, 8
    %v92 = vpop.permute.xlu0 %91
    %vm93 = vcmask 130112
    %94 = vst.msk [vmem:[#allocation0] sm:$0x1] %vm93, %v92
    %s96 = ssub.s32 2, 1
    %v97 = vld [vmem:[#allocation0] sm:%s96]
    %s99 = ssub.s32 2, 1
    %100 = vst [vmem:[%s1] sm:%s99] %v97

// kernel: salience_forward.7
$region0: #{salience_forward.7}
  #allocation0 [shape = 'u32[]', space=smem, size = 0x4, offset = 0x4, fixed_abs, tag = 'smem constant byte address 0x4 - core index']
  #allocation1 [shape = 'u32[72,128]{1,0:T(1,128)}', space=vmem, size = 0x9000, scoped, tag = 'internal scratch']
  #allocation2 [shape = 'f32[256,128]{1,0:T(8,128)}', space=vmem, size = 0x20000, scoped, tag = 'scratch operand']
  %s0 = inlined_call_operand.vmem [shape: bf16[512,640], index: 0, kind: input, shape index: {}]
  %s1 = inlined_call_operand.vmem [shape: bf16[640,128], index: 1, kind: input, shape index: {}]
  %s2 = inlined_call_operand.vmem [shape: f32[1,128], index: 2, kind: input, shape index: {}]
  %s3 = inlined_call_operand.vmem [shape: f32[1,128], index: 3, kind: input, shape index: {}]
  %s4 = inlined_call_operand.vmem [shape: bf16[512,128], index: 4, kind: output, shape index: {}]
  %s5 = sld [smem:[#allocation0]]
  $region61: #{salience_forward.7} parent=0
    _
  %s7 = ssub.s32 1, %s5
  %s8 = scalar_select 0, %s7, %s5
  loop: start=0, step=1, limit=4
  $region2: #{salience_forward.7} parent=0 // loop_pre_header
    _
  $region3: #{salience_forward.7} parent=0 // loop_header
    %s10 = sphi 0, %s14
    %p11 = scmp.ge.s32.totalorder %s10, 4
    %s17 = sphi 0, %s29
    %s18 = sphi 0, %s25
    %s19 = sphi 0, %s17
    %s20 = sphi 0, %s18
    %s21 = sphi 0, %s19
    %s22 = sphi 0, %s20
    %s34 = sphi 0, %s36
    %s37 = sphi 0, %s34
    %s38 = sphi 0, %s37
    %s54 = sphi 0, %s38
    %s60 = sphi 0, %s62
    %s63 = sphi 0, %s60
    %s64 = sphi 0, %s63
    %s80 = sphi 0, %s64
    %s84 = sphi 0, %s84
    %s86 = sphi 0, %s84
    %s87 = sphi 0, %s86
    %s101 = sphi 0, %s87
    %s105 = sphi 0, %s105
    %s107 = sphi 0, %s105
    %s108 = sphi 0, %s107
    %s122 = sphi 0, %s108
    %s128 = sphi 0, %s130
    %s131 = sphi 0, %s128
    %s132 = sphi 0, %s131
    %s148 = sphi 0, %s132
  $region4: #{salience_forward.7} parent=0 // loop_header_branch
    %13 = sbr.rel (%p11) target = $region8
  $region5: #{salience_forward.7} parent=0 // loop_body
    %s15 = ssub.s32 %s10, 1
    %s16 = ssub.s32 %s10, 2
    %s23 = sadd.s32 1, %s18
    %p24 = scmp.ge.s32.totalorder %s23, 1
    %s25 = scalar_select %p24, 0, %s23
    %s26 = sadd.s32 1, %s17
    %s27 = scalar_select %p24, %s26, %s17
    %p28 = scmp.ge.s32.totalorder %s27, 2
    %s29 = scalar_select %p28, 0, %s27
    %s30 = ssub.s32 %s17, %s29
    %s31 = ssub.s32 %s18, %s25
    %s32 = sor.u32 %s30, %s31
    %p33 = scmp.eq.s32.totalorder %s32, 0
    %s35 = sadd.s32 %s34, 1
    %s36 = scalar_select %p33, %s34, %s35
    %p39 = pneg %p33
    %p40 = scmp.eq.s32.totalorder %s10, 1
    %p41 = por %p39, %p40
    %p42 = scmp.ne.s32.totalorder %s34, %s37
    %p43 = scmp.eq.s32.totalorder %s10, 0
    %p44 = por %p42, %p43
    %p45 = scmp.ne.s32.totalorder %s34, %s37
    %p46 = scmp.eq.s32.totalorder %s15, 1
    %p47 = por %p45, %p46
    %p48 = scmp.ne.s32.totalorder %s37, %s38
    %p49 = scmp.eq.s32.totalorder %s15, 0
    %p50 = por %p48, %p49
    %p51 = scmp.ne.s32.totalorder %s37, %s38
    %p52 = scmp.eq.s32.totalorder %s16, 1
    %p53 = por %p51, %p52
    %p55 = scmp.ne.s32.totalorder %s38, %s54
    %p56 = scmp.eq.s32.totalorder %s16, 0
    %p57 = por %p55, %p56
    %s58 = ssub.s32 %s18, %s25
    %p59 = scmp.eq.s32.totalorder %s58, 0
    %s61 = sadd.s32 %s60, 1
    %s62 = scalar_select %p59, %s60, %s61
    %p65 = pneg %p59
    %p66 = scmp.eq.s32.totalorder %s10, 1
    %p67 = por %p65, %p66
    %p68 = scmp.ne.s32.totalorder %s60, %s63
    %p69 = scmp.eq.s32.totalorder %s10, 0
    %p70 = por %p68, %p69
    %p71 = scmp.ne.s32.totalorder %s60, %s63
    %p72 = scmp.eq.s32.totalorder %s15, 1
    %p73 = por %p71, %p72
    %p74 = scmp.ne.s32.totalorder %s63, %s64
    %p75 = scmp.eq.s32.totalorder %s15, 0
    %p76 = por %p74, %p75
    %p77 = scmp.ne.s32.totalorder %s63, %s64
    %p78 = scmp.eq.s32.totalorder %s16, 1
    %p79 = por %p77, %p78
    %p81 = scmp.ne.s32.totalorder %s64, %s80
    %p82 = scmp.eq.s32.totalorder %s16, 0
    %p83 = por %p81, %p82
    %s85 = sadd.s32 %s84, 1
    %p88 = scmp.eq.s32.totalorder %s10, 1
    %p89 = scmp.ne.s32.totalorder %s84, %s86
    %p90 = scmp.eq.s32.totalorder %s10, 0
    %p91 = por %p89, %p90
    %p92 = scmp.ne.s32.totalorder %s84, %s86
    %p93 = scmp.eq.s32.totalorder %s15, 1
    %p94 = por %p92, %p93
    %p95 = scmp.ne.s32.totalorder %s86, %s87
    %p96 = scmp.eq.s32.totalorder %s15, 0
    %p97 = por %p95, %p96
    %p98 = scmp.ne.s32.totalorder %s86, %s87
    %p99 = scmp.eq.s32.totalorder %s16, 1
    %p100 = por %p98, %p99
    %p102 = scmp.ne.s32.totalorder %s87, %s101
    %p103 = scmp.eq.s32.totalorder %s16, 0
    %p104 = por %p102, %p103
    %s106 = sadd.s32 %s105, 1
    %p109 = scmp.eq.s32.totalorder %s10, 1
    %p110 = scmp.ne.s32.totalorder %s105, %s107
    %p111 = scmp.eq.s32.totalorder %s10, 0
    %p112 = por %p110, %p111
    %p113 = scmp.ne.s32.totalorder %s105, %s107
    %p114 = scmp.eq.s32.totalorder %s15, 1
    %p115 = por %p113, %p114
    %p116 = scmp.ne.s32.totalorder %s107, %s108
    %p117 = scmp.eq.s32.totalorder %s15, 0
    %p118 = por %p116, %p117
    %p119 = scmp.ne.s32.totalorder %s107, %s108
    %p120 = scmp.eq.s32.totalorder %s16, 1
    %p121 = por %p119, %p120
    %p123 = scmp.ne.s32.totalorder %s108, %s122
    %p124 = scmp.eq.s32.totalorder %s16, 0
    %p125 = por %p123, %p124
    %s126 = ssub.s32 %s17, %s29
    %p127 = scmp.eq.s32.totalorder %s126, 0
    %s129 = sadd.s32 %s128, 1
    %s130 = scalar_select %p127, %s128, %s129
    %p133 = pneg %p127
    %p134 = scmp.eq.s32.totalorder %s10, 1
    %p135 = por %p133, %p134
    %p136 = scmp.ne.s32.totalorder %s128, %s131
    %p137 = scmp.eq.s32.totalorder %s10, 0
    %p138 = por %p136, %p137
    %p139 = scmp.ne.s32.totalorder %s128, %s131
    %p140 = scmp.eq.s32.totalorder %s15, 1
    %p141 = por %p139, %p140
    %p142 = scmp.ne.s32.totalorder %s131, %s132
    %p143 = scmp.eq.s32.totalorder %s15, 0
    %p144 = por %p142, %p143
    %p145 = scmp.ne.s32.totalorder %s131, %s132
    %p146 = scmp.eq.s32.totalorder %s16, 1
    %p147 = por %p145, %p146
    %p149 = scmp.ne.s32.totalorder %s132, %s148
    %p150 = scmp.eq.s32.totalorder %s16, 0
    %p151 = por %p149, %p150
    %p152 = scmp.le.s32.totalorder 1, %s10
    %p153 = scmp.lt.s32.totalorder %s10, 3
    %p154 = pnand %p152, %p153
    %p155 = pneg %p154
    // Predicated region
    $region9: #{salience_forward.7} parent=5 // pred_check
      _
    $region10: #{salience_forward.7} parent=5 // pred_check_branch
      %157 = sbr.rel (%p154) target = $region12
    $region11: #{salience_forward.7} parent=5 // pred_region
      %s158 = ssub.s32 %s10, 1
      // Predicated region
      $region13: #{salience_forward.7} parent=11 // pred_check
        %p159 = pneg %p76
      $region14: #{salience_forward.7} parent=11 // pred_check_branch
        %161 = sbr.rel (%p159) target = $region16
      $region15: #{salience_forward.7} parent=11 // pred_region
        %s162 = smul.u32 80, %s20
        %p163 = scmp.lt.s32.totalorder %s162, 79
        %s164 = scalar_select %p163, %s162, 79
        %s165 = smul.addr %s164, 4
        %s166 = scalar_lea.vmem %s1, %s165
        %s167 = smul.u32 80, %s20
      $region16: #{salience_forward.7} parent=11 // pred_fallthru
        _
      // Predicated region
      $region17: #{salience_forward.7} parent=11 // pred_check
        %p168 = pneg %p97
      $region18: #{salience_forward.7} parent=11 // pred_check_branch
        %170 = sbr.rel (%p168) target = $region20
      $region19: #{salience_forward.7} parent=11 // pred_region
        _
      $region20: #{salience_forward.7} parent=11 // pred_fallthru
        _
      // Predicated region
      $region21: #{salience_forward.7} parent=11 // pred_check
        %p171 = pneg %p118
      $region22: #{salience_forward.7} parent=11 // pred_check_branch
        %173 = sbr.rel (%p171) target = $region24
      $region23: #{salience_forward.7} parent=11 // pred_region
        _
      $region24: #{salience_forward.7} parent=11 // pred_fallthru
        _
    $region12: #{salience_forward.7} parent=5 // pred_fallthru
      _
    %p174 = scmp.lt.s32.totalorder %s10, 2
    // Predicated region
    $region25: #{salience_forward.7} parent=5 // pred_check
      %p175 = pneg %p174
    $region26: #{salience_forward.7} parent=5 // pred_check_branch
      %177 = sbr.rel (%p175) target = $region28
    $region27: #{salience_forward.7} parent=5 // pred_region
      // Predicated region
      $region29: #{salience_forward.7} parent=27 // pred_check
        %p178 = pneg %p44
      $region30: #{salience_forward.7} parent=27 // pred_check_branch
        %180 = sbr.rel (%p178) target = $region32
      $region31: #{salience_forward.7} parent=27 // pred_region
        %s181 = smul.u32 32, %s17
        %s182 = smul.u32 5, %s18
        %p183 = scmp.lt.s32.totalorder %s181, 63
        %s184 = scalar_select %p183, %s181, 63
        %p185 = scmp.lt.s32.totalorder %s182, 4
        %s186 = scalar_select %p185, %s182, 4
        %s187 = smul.addr %s184, 5
        %s188 = sadd.s32 %s186, %s187
        %s189 = smul.addr %s188, 4
        %s190 = scalar_lea.vmem %s0, %s189
        %s191 = smul.u32 32, %s17
        %s192 = smul.u32 5, %s18
      $region32: #{salience_forward.7} parent=27 // pred_fallthru
        _
    $region28: #{salience_forward.7} parent=5 // pred_fallthru
      _
    %p193 = scmp.le.s32.totalorder 1, %s10
    %p194 = scmp.lt.s32.totalorder %s10, 3
    %p195 = pnand %p193, %p194
    %p196 = pneg %p195
    // Predicated region
    $region33: #{salience_forward.7} parent=5 // pred_check
      _
    $region34: #{salience_forward.7} parent=5 // pred_check_branch
      %198 = sbr.rel (%p195) target = $region36
    $region35: #{salience_forward.7} parent=5 // pred_region
      %s199 = ssub.s32 %s10, 1
      %s200 = smul.u32 32, %s19
      %s201 = smul.u32 5, %s20
      %p202 = scmp.lt.s32.totalorder %s200, 63
      %s203 = scalar_select %p202, %s200, 63
      %p204 = scmp.lt.s32.totalorder %s201, 4
      %s205 = scalar_select %p204, %s201, 4
      %s206 = smul.addr %s203, 5
      %s207 = sadd.s32 %s205, %s206
      %s208 = smul.addr %s207, 4
      %s209 = scalar_lea.vmem %s0, %s208
      %p210 = pneg %p50
      %p211 = pneg %p47
      %s212 = smul.u32 80, %s20
      %p213 = scmp.lt.s32.totalorder %s212, 79
      %s214 = scalar_select %p213, %s212, 79
      %s215 = smul.addr %s214, 4
      %s216 = scalar_lea.vmem %s1, %s215
      %p217 = pneg %p76
      %p218 = pneg %p73
      %p219 = pneg %p97
      %p220 = pneg %p94
      %p221 = pneg %p118
      %p222 = pneg %p115
      %p223 = pneg %p144
      %p224 = pneg %p141
      %s225 = smul.u32 32, %s19
      %p226 = scmp.lt.s32.totalorder %s225, 63
      %s227 = scalar_select %p226, %s225, 63
      %s228 = smul.addr %s227, 4
      %s229 = scalar_lea.vmem %s4, %s228
      %s230 = smul.u32 32, %s19
      %s231 = smul.u32 5, %s20
      %p232 = scmp.lt.s32.totalorder %s230, 63
      %s233 = scalar_select %p232, %s230, 63
      %p234 = scmp.lt.s32.totalorder %s231, 4
      %s235 = scalar_select %p234, %s231, 4
      %s236 = smul.addr %s233, 5
      %s237 = sadd.s32 %s235, %s236
      %s238 = smul.addr %s237, 4
      %s239 = scalar_lea.vmem %s0, %s238
      %s240 = smul.u32 32, %s19
      %s241 = smul.u32 5, %s20
      %s242 = smul.u32 80, %s20
      %p243 = scmp.lt.s32.totalorder %s242, 79
      %s244 = scalar_select %p243, %s242, 79
      %s245 = smul.addr %s244, 4
      %s246 = scalar_lea.vmem %s1, %s245
      %s247 = smul.u32 80, %s20
      %s248 = smul.u32 32, %s19
      %p249 = scmp.lt.s32.totalorder %s248, 63
      %s250 = scalar_select %p249, %s248, 63
      %s251 = smul.addr %s250, 4
      %s252 = scalar_lea.vmem %s4, %s251
      %s253 = smul.u32 32, %s19
      %v254 = vld [vmem:[%s239] sm:$0xff]
      %v255 = vld [vmem:[%s239 + $0x8] sm:$0xff]
      %v256 = vld [vmem:[%s239 + $0x10] sm:$0xf]
      %v257 = vld [vmem:[%s239 + $0x14] sm:$0xff]
      %v258 = vld [vmem:[%s239 + $0x1c] sm:$0xff]
      %v259 = vld [vmem:[%s239 + $0x24] sm:$0xf]
      %v260 = vld [vmem:[%s239 + $0x28] sm:$0xff]
      %v261 = vld [vmem:[%s239 + $0x30] sm:$0xff]
      %v262 = vld [vmem:[%s239 + $0x38] sm:$0xf]
      %v263 = vld [vmem:[%s239 + $0x3c] sm:$0xff]
      %v264 = vld [vmem:[%s239 + $0x44] sm:$0xff]
      %v265 = vld [vmem:[%s239 + $0x4c] sm:$0xf]
      %v266 = vld [vmem:[%s239 + $0x50] sm:$0xff]
      %v267 = vld [vmem:[%s239 + $0x58] sm:$0xff]
      %v268 = vld [vmem:[%s239 + $0x60] sm:$0xf]
      %v269 = vld [vmem:[%s239 + $0x64] sm:$0xff]
      %v270 = vld [vmem:[%s239 + $0x6c] sm:$0xff]
      %v271 = vld [vmem:[%s239 + $0x74] sm:$0xf]
      %v272 = vld [vmem:[%s239 + $0x78] sm:$0xff]
      %v273 = vld [vmem:[%s239 + $0x80] sm:$0xff]
      %v274 = vld [vmem:[%s239 + $0x88] sm:$0xf]
      %v275 = vld [vmem:[%s239 + $0x8c] sm:$0xff]
      %v276 = vld [vmem:[%s239 + $0x94] sm:$0xff]
      %v277 = vld [vmem:[%s239 + $0x9c] sm:$0xf]
      %v278 = vld [vmem:[%s239 + $0xa0] sm:$0xff]
      %v279 = vld [vmem:[%s239 + $0xa8] sm:$0xff]
      %v280 = vld [vmem:[%s239 + $0xb0] sm:$0xf]
      %v281 = vld [vmem:[%s239 + $0xb4] sm:$0xff]
      %v282 = vld [vmem:[%s239 + $0xbc] sm:$0xff]
      %v283 = vld [vmem:[%s239 + $0xc4] sm:$0xf]
      %v284 = vld [vmem:[%s239 + $0xc8] sm:$0xff]
      %v285 = vld [vmem:[%s239 + $0xd0] sm:$0xff]
      %v286 = vld [vmem:[%s239 + $0xd8] sm:$0xf]
      %v287 = vld [vmem:[%s239 + $0xdc] sm:$0xff]
      %v288 = vld [vmem:[%s239 + $0xe4] sm:$0xff]
      %v289 = vld [vmem:[%s239 + $0xec] sm:$0xf]
      %v290 = vld [vmem:[%s239 + $0xf0] sm:$0xff]
      %v291 = vld [vmem:[%s239 + $0xf8] sm:$0xff]
      %v292 = vld [vmem:[%s239 + $0x100] sm:$0xf]
      %v293 = vld [vmem:[%s239 + $0x104] sm:$0xff]
      %v294 = vld [vmem:[%s239 + $0x10c] sm:$0xff]
      %v295 = vld [vmem:[%s239 + $0x114] sm:$0xf]
      %v296 = vld [vmem:[%s239 + $0x118] sm:$0xff]
      %v297 = vld [vmem:[%s239 + $0x120] sm:$0xff]
      %v298 = vld [vmem:[%s239 + $0x128] sm:$0xf]
      %v299 = vld [vmem:[%s239 + $0x12c] sm:$0xff]
      %v300 = vld [vmem:[%s239 + $0x134] sm:$0xff]
      %v301 = vld [vmem:[%s239 + $0x13c] sm:$0xf]
      %v302 = vld [vmem:[%s239 + $0x140] sm:$0xff]
      %v303 = vld [vmem:[%s239 + $0x148] sm:$0xff]
      %v304 = vld [vmem:[%s239 + $0x150] sm:$0xf]
      %v305 = vld [vmem:[%s239 + $0x154] sm:$0xff]
      %v306 = vld [vmem:[%s239 + $0x15c] sm:$0xff]
      %v307 = vld [vmem:[%s239 + $0x164] sm:$0xf]
      %v308 = vld [vmem:[%s239 + $0x168] sm:$0xff]
      %v309 = vld [vmem:[%s239 + $0x170] sm:$0xff]
      %v310 = vld [vmem:[%s239 + $0x178] sm:$0xf]
      %v311 = vld [vmem:[%s239 + $0x17c] sm:$0xff]
      %v312 = vld [vmem:[%s239 + $0x184] sm:$0xff]
      %v313 = vld [vmem:[%s239 + $0x18c] sm:$0xf]
      %v314 = vld [vmem:[%s239 + $0x190] sm:$0xff]
      %v315 = vld [vmem:[%s239 + $0x198] sm:$0xff]
      %v316 = vld [vmem:[%s239 + $0x1a0] sm:$0xf]
      %v317 = vld [vmem:[%s239 + $0x1a4] sm:$0xff]
      %v318 = vld [vmem:[%s239 + $0x1ac] sm:$0xff]
      %v319 = vld [vmem:[%s239 + $0x1b4] sm:$0xf]
      %v320 = vld [vmem:[%s239 + $0x1b8] sm:$0xff]
      %v321 = vld [vmem:[%s239 + $0x1c0] sm:$0xff]
      %v322 = vld [vmem:[%s239 + $0x1c8] sm:$0xf]
      %v323 = vld [vmem:[%s239 + $0x1cc] sm:$0xff]
      %v324 = vld [vmem:[%s239 + $0x1d4] sm:$0xff]
      %v325 = vld [vmem:[%s239 + $0x1dc] sm:$0xf]
      %v326 = vld [vmem:[%s239 + $0x1e0] sm:$0xff]
      %v327 = vld [vmem:[%s239 + $0x1e8] sm:$0xff]
      %v328 = vld [vmem:[%s239 + $0x1f0] sm:$0xf]
      %v329 = vld [vmem:[%s239 + $0x1f4] sm:$0xff]
      %v330 = vld [vmem:[%s239 + $0x1fc] sm:$0xff]
      %v331 = vld [vmem:[%s239 + $0x204] sm:$0xf]
      %v332 = vld [vmem:[%s239 + $0x208] sm:$0xff]
      %v333 = vld [vmem:[%s239 + $0x210] sm:$0xff]
      %v334 = vld [vmem:[%s239 + $0x218] sm:$0xf]
      %v335 = vld [vmem:[%s239 + $0x21c] sm:$0xff]
      %v336 = vld [vmem:[%s239 + $0x224] sm:$0xff]
      %v337 = vld [vmem:[%s239 + $0x22c] sm:$0xf]
      %v338 = vld [vmem:[%s239 + $0x230] sm:$0xff]
      %v339 = vld [vmem:[%s239 + $0x238] sm:$0xff]
      %v340 = vld [vmem:[%s239 + $0x240] sm:$0xf]
      %v341 = vld [vmem:[%s239 + $0x244] sm:$0xff]
      %v342 = vld [vmem:[%s239 + $0x24c] sm:$0xff]
      %v343 = vld [vmem:[%s239 + $0x254] sm:$0xf]
      %v344 = vld [vmem:[%s239 + $0x258] sm:$0xff]
      %v345 = vld [vmem:[%s239 + $0x260] sm:$0xff]
      %v346 = vld [vmem:[%s239 + $0x268] sm:$0xf]
      %v347 = vld [vmem:[%s239 + $0x26c] sm:$0xff]
      %v348 = vld [vmem:[%s239 + $0x274] sm:$0xff]
      %v349 = vld [vmem:[%s239 + $0x27c] sm:$0xf]
      %v350 = vld [vmem:[%s246] sm:$0xf]
      %v351 = vld [vmem:[%s246 + $0x4] sm:$0xf]
      %v352 = vld [vmem:[%s246 + $0x8] sm:$0xf]
      %v353 = vld [vmem:[%s246 + $0xc] sm:$0xf]
      %v354 = vld [vmem:[%s246 + $0x10] sm:$0xf]
      %v355 = vld [vmem:[%s246 + $0x14] sm:$0xf]
      %v356 = vld [vmem:[%s246 + $0x18] sm:$0xf]
      %v357 = vld [vmem:[%s246 + $0x1c] sm:$0xf]
      %v358 = vld [vmem:[%s246 + $0x20] sm:$0xf]
      %v359 = vld [vmem:[%s246 + $0x24] sm:$0xf]
      %v360 = vld [vmem:[%s246 + $0x28] sm:$0xf]
      %v361 = vld [vmem:[%s246 + $0x2c] sm:$0xf]
      %v362 = vld [vmem:[%s246 + $0x30] sm:$0xf]
      %v363 = vld [vmem:[%s246 + $0x34] sm:$0xf]
      %v364 = vld [vmem:[%s246 + $0x38] sm:$0xf]
      %v365 = vld [vmem:[%s246 + $0x3c] sm:$0xf]
      %v366 = vld [vmem:[%s246 + $0x40] sm:$0xf]
      %v367 = vld [vmem:[%s246 + $0x44] sm:$0xf]
      %v368 = vld [vmem:[%s246 + $0x48] sm:$0xf]
      %v369 = vld [vmem:[%s246 + $0x4c] sm:$0xf]
      %v370 = vld [vmem:[%s246 + $0x50] sm:$0xf]
      %v371 = vld [vmem:[%s246 + $0x54] sm:$0xf]
      %v372 = vld [vmem:[%s246 + $0x58] sm:$0xf]
      %v373 = vld [vmem:[%s246 + $0x5c] sm:$0xf]
      %v374 = vld [vmem:[%s246 + $0x60] sm:$0xf]
      %v375 = vld [vmem:[%s246 + $0x64] sm:$0xf]
      %v376 = vld [vmem:[%s246 + $0x68] sm:$0xf]
      %v377 = vld [vmem:[%s246 + $0x6c] sm:$0xf]
      %v378 = vld [vmem:[%s246 + $0x70] sm:$0xf]
      %v379 = vld [vmem:[%s246 + $0x74] sm:$0xf]
      %v380 = vld [vmem:[%s246 + $0x78] sm:$0xf]
      %v381 = vld [vmem:[%s246 + $0x7c] sm:$0xf]
      %v382 = vld [vmem:[%s246 + $0x80] sm:$0xf]
      %v383 = vld [vmem:[%s246 + $0x84] sm:$0xf]
      %v384 = vld [vmem:[%s246 + $0x88] sm:$0xf]
      %v385 = vld [vmem:[%s246 + $0x8c] sm:$0xf]
      %v386 = vld [vmem:[%s246 + $0x90] sm:$0xf]
      %v387 = vld [vmem:[%s246 + $0x94] sm:$0xf]
      %v388 = vld [vmem:[%s246 + $0x98] sm:$0xf]
      %v389 = vld [vmem:[%s246 + $0x9c] sm:$0xf]
      %v390 = vld [vmem:[%s246 + $0xa0] sm:$0xf]
      %v391 = vld [vmem:[%s246 + $0xa4] sm:$0xf]
      %v392 = vld [vmem:[%s246 + $0xa8] sm:$0xf]
      %v393 = vld [vmem:[%s246 + $0xac] sm:$0xf]
      %v394 = vld [vmem:[%s246 + $0xb0] sm:$0xf]
      %v395 = vld [vmem:[%s246 + $0xb4] sm:$0xf]
      %v396 = vld [vmem:[%s246 + $0xb8] sm:$0xf]
      %v397 = vld [vmem:[%s246 + $0xbc] sm:$0xf]
      %v398 = vld [vmem:[%s246 + $0xc0] sm:$0xf]
      %v399 = vld [vmem:[%s246 + $0xc4] sm:$0xf]
      %v400 = vld [vmem:[%s246 + $0xc8] sm:$0xf]
      %v401 = vld [vmem:[%s246 + $0xcc] sm:$0xf]
      %v402 = vld [vmem:[%s246 + $0xd0] sm:$0xf]
      %v403 = vld [vmem:[%s246 + $0xd4] sm:$0xf]
      %v404 = vld [vmem:[%s246 + $0xd8] sm:$0xf]
      %v405 = vld [vmem:[%s246 + $0xdc] sm:$0xf]
      %v406 = vld [vmem:[%s246 + $0xe0] sm:$0xf]
      %v407 = vld [vmem:[%s246 + $0xe4] sm:$0xf]
      %v408 = vld [vmem:[%s246 + $0xe8] sm:$0xf]
      %v409 = vld [vmem:[%s246 + $0xec] sm:$0xf]
      %v410 = vld [vmem:[%s246 + $0xf0] sm:$0xf]
      %v411 = vld [vmem:[%s246 + $0xf4] sm:$0xf]
      %v412 = vld [vmem:[%s246 + $0xf8] sm:$0xf]
      %v413 = vld [vmem:[%s246 + $0xfc] sm:$0xf]
      %v414 = vld [vmem:[%s246 + $0x100] sm:$0xf]
      %v415 = vld [vmem:[%s246 + $0x104] sm:$0xf]
      %v416 = vld [vmem:[%s246 + $0x108] sm:$0xf]
      %v417 = vld [vmem:[%s246 + $0x10c] sm:$0xf]
      %v418 = vld [vmem:[%s246 + $0x110] sm:$0xf]
      %v419 = vld [vmem:[%s246 + $0x114] sm:$0xf]
      %v420 = vld [vmem:[%s246 + $0x118] sm:$0xf]
      %v421 = vld [vmem:[%s246 + $0x11c] sm:$0xf]
      %v422 = vld [vmem:[%s246 + $0x120] sm:$0xf]
      %v423 = vld [vmem:[%s246 + $0x124] sm:$0xf]
      %v424 = vld [vmem:[%s246 + $0x128] sm:$0xf]
      %v425 = vld [vmem:[%s246 + $0x12c] sm:$0xf]
      %v426 = vld [vmem:[%s246 + $0x130] sm:$0xf]
      %v427 = vld [vmem:[%s246 + $0x134] sm:$0xf]
      %v428 = vld [vmem:[%s246 + $0x138] sm:$0xf]
      %v429 = vld [vmem:[%s246 + $0x13c] sm:$0xf]
      %v526 = vunpack.c.l.b16 %v254
      %v527 = vunpack.c.h.b16 %v254
      %v528 = vunpack.c.l.b16 %v255
      %v529 = vunpack.c.h.b16 %v255
      %v530 = vunpack.c.l.b16 %v256
      %v531 = vunpack.c.l.b16 %v257
      %v532 = vunpack.c.h.b16 %v257
      %v533 = vunpack.c.l.b16 %v258
      %v534 = vunpack.c.h.b16 %v258
      %v535 = vunpack.c.l.b16 %v259
      %v536 = vunpack.c.l.b16 %v260
      %v537 = vunpack.c.h.b16 %v260
      %v538 = vunpack.c.l.b16 %v261
      %v539 = vunpack.c.h.b16 %v261
      %v540 = vunpack.c.l.b16 %v262
      %v541 = vunpack.c.l.b16 %v263
      %v542 = vunpack.c.h.b16 %v263
      %v543 = vunpack.c.l.b16 %v264
      %v544 = vunpack.c.h.b16 %v264
      %v545 = vunpack.c.l.b16 %v265
      %v546 = vunpack.c.l.b16 %v266
      %v547 = vunpack.c.h.b16 %v266
      %v548 = vunpack.c.l.b16 %v267
      %v549 = vunpack.c.h.b16 %v267
      %v550 = vunpack.c.l.b16 %v268
      %v551 = vunpack.c.l.b16 %v269
      %v552 = vunpack.c.h.b16 %v269
      %v553 = vunpack.c.l.b16 %v270
      %v554 = vunpack.c.h.b16 %v270
      %v555 = vunpack.c.l.b16 %v271
      %v556 = vunpack.c.l.b16 %v272
      %v557 = vunpack.c.h.b16 %v272
      %v558 = vunpack.c.l.b16 %v273
      %v559 = vunpack.c.h.b16 %v273
      %v560 = vunpack.c.l.b16 %v274
      %v561 = vunpack.c.l.b16 %v275
      %v562 = vunpack.c.h.b16 %v275
      %v563 = vunpack.c.l.b16 %v276
      %v564 = vunpack.c.h.b16 %v276
      %v565 = vunpack.c.l.b16 %v277
      %v566 = vunpack.c.l.b16 %v278
      %v567 = vunpack.c.h.b16 %v278
      %v568 = vunpack.c.l.b16 %v279
      %v569 = vunpack.c.h.b16 %v279
      %v570 = vunpack.c.l.b16 %v280
      %v571 = vunpack.c.l.b16 %v281
      %v572 = vunpack.c.h.b16 %v281
      %v573 = vunpack.c.l.b16 %v282
      %v574 = vunpack.c.h.b16 %v282
      %v575 = vunpack.c.l.b16 %v283
      %v576 = vunpack.c.l.b16 %v284
      %v577 = vunpack.c.h.b16 %v284
      %v578 = vunpack.c.l.b16 %v285
      %v579 = vunpack.c.h.b16 %v285
      %v580 = vunpack.c.l.b16 %v286
      %v581 = vunpack.c.l.b16 %v287
      %v582 = vunpack.c.h.b16 %v287
      %v583 = vunpack.c.l.b16 %v288
      %v584 = vunpack.c.h.b16 %v288
      %v585 = vunpack.c.l.b16 %v289
      %v586 = vunpack.c.l.b16 %v290
      %v587 = vunpack.c.h.b16 %v290
      %v588 = vunpack.c.l.b16 %v291
      %v589 = vunpack.c.h.b16 %v291
      %v590 = vunpack.c.l.b16 %v292
      %v591 = vunpack.c.l.b16 %v293
      %v592 = vunpack.c.h.b16 %v293
      %v593 = vunpack.c.l.b16 %v294
      %v594 = vunpack.c.h.b16 %v294
      %v595 = vunpack.c.l.b16 %v295
      %v596 = vunpack.c.l.b16 %v296
      %v597 = vunpack.c.h.b16 %v296
      %v598 = vunpack.c.l.b16 %v297
      %v599 = vunpack.c.h.b16 %v297
      %v600 = vunpack.c.l.b16 %v298
      %v601 = vunpack.c.l.b16 %v299
      %v602 = vunpack.c.h.b16 %v299
      %v603 = vunpack.c.l.b16 %v300
      %v604 = vunpack.c.h.b16 %v300
      %v605 = vunpack.c.l.b16 %v301
      %v606 = vunpack.c.l.b16 %v302
      %v607 = vunpack.c.h.b16 %v302
      %v608 = vunpack.c.l.b16 %v303
      %v609 = vunpack.c.h.b16 %v303
      %v610 = vunpack.c.l.b16 %v304
      %v611 = vunpack.c.l.b16 %v305
      %v612 = vunpack.c.h.b16 %v305
      %v613 = vunpack.c.l.b16 %v306
      %v614 = vunpack.c.h.b16 %v306
      %v615 = vunpack.c.l.b16 %v307
      %v616 = vunpack.c.l.b16 %v308
      %v617 = vunpack.c.h.b16 %v308
      %v618 = vunpack.c.l.b16 %v309
      %v619 = vunpack.c.h.b16 %v309
      %v620 = vunpack.c.l.b16 %v310
      %v621 = vunpack.c.l.b16 %v311
      %v622 = vunpack.c.h.b16 %v311
      %v623 = vunpack.c.l.b16 %v312
      %v624 = vunpack.c.h.b16 %v312
      %v625 = vunpack.c.l.b16 %v313
      %v626 = vunpack.c.l.b16 %v314
      %v627 = vunpack.c.h.b16 %v314
      %v628 = vunpack.c.l.b16 %v315
      %v629 = vunpack.c.h.b16 %v315
      %v630 = vunpack.c.l.b16 %v316
      %v631 = vunpack.c.l.b16 %v317
      %v632 = vunpack.c.h.b16 %v317
      %v633 = vunpack.c.l.b16 %v318
      %v634 = vunpack.c.h.b16 %v318
      %v635 = vunpack.c.l.b16 %v319
      %v636 = vunpack.c.l.b16 %v320
      %v637 = vunpack.c.h.b16 %v320
      %v638 = vunpack.c.l.b16 %v321
      %v639 = vunpack.c.h.b16 %v321
      %v640 = vunpack.c.l.b16 %v322
      %v641 = vunpack.c.l.b16 %v323
      %v642 = vunpack.c.h.b16 %v323
      %v643 = vunpack.c.l.b16 %v324
      %v644 = vunpack.c.h.b16 %v324
      %v645 = vunpack.c.l.b16 %v325
      %v646 = vunpack.c.l.b16 %v326
      %v647 = vunpack.c.h.b16 %v326
      %v648 = vunpack.c.l.b16 %v327
      %v649 = vunpack.c.h.b16 %v327
      %v650 = vunpack.c.l.b16 %v328
      %v651 = vunpack.c.l.b16 %v329
      %v652 = vunpack.c.h.b16 %v329
      %v653 = vunpack.c.l.b16 %v330
      %v654 = vunpack.c.h.b16 %v330
      %v655 = vunpack.c.l.b16 %v331
      %v656 = vunpack.c.l.b16 %v332
      %v657 = vunpack.c.h.b16 %v332
      %v658 = vunpack.c.l.b16 %v333
      %v659 = vunpack.c.h.b16 %v333
      %v660 = vunpack.c.l.b16 %v334
      %v661 = vunpack.c.l.b16 %v335
      %v662 = vunpack.c.h.b16 %v335
      %v663 = vunpack.c.l.b16 %v336
      %v664 = vunpack.c.h.b16 %v336
      %v665 = vunpack.c.l.b16 %v337
      %v666 = vunpack.c.l.b16 %v338
      %v667 = vunpack.c.h.b16 %v338
      %v668 = vunpack.c.l.b16 %v339
      %v669 = vunpack.c.h.b16 %v339
      %v670 = vunpack.c.l.b16 %v340
      %v671 = vunpack.c.l.b16 %v341
      %v672 = vunpack.c.h.b16 %v341
      %v673 = vunpack.c.l.b16 %v342
      %v674 = vunpack.c.h.b16 %v342
      %v675 = vunpack.c.l.b16 %v343
      %v676 = vunpack.c.l.b16 %v344
      %v677 = vunpack.c.h.b16 %v344
      %v678 = vunpack.c.l.b16 %v345
      %v679 = vunpack.c.h.b16 %v345
      %v680 = vunpack.c.l.b16 %v346
      %v681 = vunpack.c.l.b16 %v347
      %v682 = vunpack.c.h.b16 %v347
      %v683 = vunpack.c.l.b16 %v348
      %v684 = vunpack.c.h.b16 %v348
      %v685 = vunpack.c.l.b16 %v349
      %v686 = vpack.c.b16 %v531, %v526
      %v687 = vpack.c.b16 %v532, %v527
      %v688 = vpack.c.b16 %v533, %v528
      %v689 = vpack.c.b16 %v534, %v529
      %v690 = vpack.c.b16 %v535, %v530
      %v691 = vpack.c.b16 %v541, %v536
      %v692 = vpack.c.b16 %v542, %v537
      %v693 = vpack.c.b16 %v543, %v538
      %v694 = vpack.c.b16 %v544, %v539
      %v695 = vpack.c.b16 %v545, %v540
      %v696 = vpack.c.b16 %v551, %v546
      %v697 = vpack.c.b16 %v552, %v547
      %v698 = vpack.c.b16 %v553, %v548
      %v699 = vpack.c.b16 %v554, %v549
      %v700 = vpack.c.b16 %v555, %v550
      %v701 = vpack.c.b16 %v561, %v556
      %v702 = vpack.c.b16 %v562, %v557
      %v703 = vpack.c.b16 %v563, %v558
      %v704 = vpack.c.b16 %v564, %v559
      %v705 = vpack.c.b16 %v565, %v560
      %v706 = vpack.c.b16 %v571, %v566
      %v707 = vpack.c.b16 %v572, %v567
      %v708 = vpack.c.b16 %v573, %v568
      %v709 = vpack.c.b16 %v574, %v569
      %v710 = vpack.c.b16 %v575, %v570
      %v711 = vpack.c.b16 %v581, %v576
      %v712 = vpack.c.b16 %v582, %v577
      %v713 = vpack.c.b16 %v583, %v578
      %v714 = vpack.c.b16 %v584, %v579
      %v715 = vpack.c.b16 %v585, %v580
      %v716 = vpack.c.b16 %v591, %v586
      %v717 = vpack.c.b16 %v592, %v587
      %v718 = vpack.c.b16 %v593, %v588
      %v719 = vpack.c.b16 %v594, %v589
      %v720 = vpack.c.b16 %v595, %v590
      %v721 = vpack.c.b16 %v601, %v596
      %v722 = vpack.c.b16 %v602, %v597
      %v723 = vpack.c.b16 %v603, %v598
      %v724 = vpack.c.b16 %v604, %v599
      %v725 = vpack.c.b16 %v605, %v600
      %v726 = vpack.c.b16 %v611, %v606
      %v727 = vpack.c.b16 %v612, %v607
      %v728 = vpack.c.b16 %v613, %v608
      %v729 = vpack.c.b16 %v614, %v609
      %v730 = vpack.c.b16 %v615, %v610
      %v731 = vpack.c.b16 %v621, %v616
      %v732 = vpack.c.b16 %v622, %v617
      %v733 = vpack.c.b16 %v623, %v618
      %v734 = vpack.c.b16 %v624, %v619
      %v735 = vpack.c.b16 %v625, %v620
      %v736 = vpack.c.b16 %v631, %v626
      %v737 = vpack.c.b16 %v632, %v627
      %v738 = vpack.c.b16 %v633, %v628
      %v739 = vpack.c.b16 %v634, %v629
      %v740 = vpack.c.b16 %v635, %v630
      %v741 = vpack.c.b16 %v641, %v636
      %v742 = vpack.c.b16 %v642, %v637
      %v743 = vpack.c.b16 %v643, %v638
      %v744 = vpack.c.b16 %v644, %v639
      %v745 = vpack.c.b16 %v645, %v640
      %v746 = vpack.c.b16 %v651, %v646
      %v747 = vpack.c.b16 %v652, %v647
      %v748 = vpack.c.b16 %v653, %v648
      %v749 = vpack.c.b16 %v654, %v649
      %v750 = vpack.c.b16 %v655, %v650
      %v751 = vpack.c.b16 %v661, %v656
      %v752 = vpack.c.b16 %v662, %v657
      %v753 = vpack.c.b16 %v663, %v658
      %v754 = vpack.c.b16 %v664, %v659
      %v755 = vpack.c.b16 %v665, %v660
      %v756 = vpack.c.b16 %v671, %v666
      %v757 = vpack.c.b16 %v672, %v667
      %v758 = vpack.c.b16 %v673, %v668
      %v759 = vpack.c.b16 %v674, %v669
      %v760 = vpack.c.b16 %v675, %v670
      %v761 = vpack.c.b16 %v681, %v676
      %v762 = vpack.c.b16 %v682, %v677
      %v763 = vpack.c.b16 %v683, %v678
      %v764 = vpack.c.b16 %v684, %v679
      %v765 = vpack.c.b16 %v685, %v680
      %v926 = vunpack.c.l.b16 %v350
      %v927 = vunpack.c.l.b16 %v351
      %v928 = vunpack.c.l.b16 %v352
      %v929 = vunpack.c.l.b16 %v353
      %v930 = vunpack.c.l.b16 %v354
      %v931 = vunpack.c.l.b16 %v355
      %v932 = vunpack.c.l.b16 %v356
      %v933 = vunpack.c.l.b16 %v357
      %v934 = vunpack.c.l.b16 %v358
      %v935 = vunpack.c.l.b16 %v359
      %v936 = vunpack.c.l.b16 %v360
      %v937 = vunpack.c.l.b16 %v361
      %v938 = vunpack.c.l.b16 %v362
      %v939 = vunpack.c.l.b16 %v363
      %v940 = vunpack.c.l.b16 %v364
      %v941 = vunpack.c.l.b16 %v365
      %v942 = vunpack.c.l.b16 %v366
      %v943 = vunpack.c.l.b16 %v367
      %v944 = vunpack.c.l.b16 %v368
      %v945 = vunpack.c.l.b16 %v369
      %v946 = vunpack.c.l.b16 %v370
      %v947 = vunpack.c.l.b16 %v371
      %v948 = vunpack.c.l.b16 %v372
      %v949 = vunpack.c.l.b16 %v373
      %v950 = vunpack.c.l.b16 %v374
      %v951 = vunpack.c.l.b16 %v375
      %v952 = vunpack.c.l.b16 %v376
      %v953 = vunpack.c.l.b16 %v377
      %v954 = vunpack.c.l.b16 %v378
      %v955 = vunpack.c.l.b16 %v379
      %v956 = vunpack.c.l.b16 %v380
      %v957 = vunpack.c.l.b16 %v381
      %v958 = vunpack.c.l.b16 %v382
      %v959 = vunpack.c.l.b16 %v383
      %v960 = vunpack.c.l.b16 %v384
      %v961 = vunpack.c.l.b16 %v385
      %v962 = vunpack.c.l.b16 %v386
      %v963 = vunpack.c.l.b16 %v387
      %v964 = vunpack.c.l.b16 %v388
      %v965 = vunpack.c.l.b16 %v389
      %v966 = vunpack.c.l.b16 %v390
      %v967 = vunpack.c.l.b16 %v391
      %v968 = vunpack.c.l.b16 %v392
      %v969 = vunpack.c.l.b16 %v393
      %v970 = vunpack.c.l.b16 %v394
      %v971 = vunpack.c.l.b16 %v395
      %v972 = vunpack.c.l.b16 %v396
      %v973 = vunpack.c.l.b16 %v397
      %v974 = vunpack.c.l.b16 %v398
      %v975 = vunpack.c.l.b16 %v399
      %v976 = vunpack.c.l.b16 %v400
      %v977 = vunpack.c.l.b16 %v401
      %v978 = vunpack.c.l.b16 %v402
      %v979 = vunpack.c.l.b16 %v403
      %v980 = vunpack.c.l.b16 %v404
      %v981 = vunpack.c.l.b16 %v405
      %v982 = vunpack.c.l.b16 %v406
      %v983 = vunpack.c.l.b16 %v407
      %v984 = vunpack.c.l.b16 %v408
      %v985 = vunpack.c.l.b16 %v409
      %v986 = vunpack.c.l.b16 %v410
      %v987 = vunpack.c.l.b16 %v411
      %v988 = vunpack.c.l.b16 %v412
      %v989 = vunpack.c.l.b16 %v413
      %v990 = vunpack.c.l.b16 %v414
      %v991 = vunpack.c.l.b16 %v415
      %v992 = vunpack.c.l.b16 %v416
      %v993 = vunpack.c.l.b16 %v417
      %v994 = vunpack.c.l.b16 %v418
      %v995 = vunpack.c.l.b16 %v419
      %v996 = vunpack.c.l.b16 %v420
      %v997 = vunpack.c.l.b16 %v421
      %v998 = vunpack.c.l.b16 %v422
      %v999 = vunpack.c.l.b16 %v423
      %v1000 = vunpack.c.l.b16 %v424
      %v1001 = vunpack.c.l.b16 %v425
      %v1002 = vunpack.c.l.b16 %v426
      %v1003 = vunpack.c.l.b16 %v427
      %v1004 = vunpack.c.l.b16 %v428
      %v1005 = vunpack.c.l.b16 %v429
      %v1006 = vpack.c.b16 %v927, %v926
      %v1007 = vpack.c.b16 %v929, %v928
      %v1008 = vpack.c.b16 %v931, %v930
      %v1009 = vpack.c.b16 %v933, %v932
      %v1010 = vpack.c.b16 %v935, %v934
      %v1011 = vpack.c.b16 %v937, %v936
      %v1012 = vpack.c.b16 %v939, %v938
      %v1013 = vpack.c.b16 %v941, %v940
      %v1014 = vpack.c.b16 %v943, %v942
      %v1015 = vpack.c.b16 %v945, %v944
      %v1016 = vpack.c.b16 %v947, %v946
      %v1017 = vpack.c.b16 %v949, %v948
      %v1018 = vpack.c.b16 %v951, %v950
      %v1019 = vpack.c.b16 %v953, %v952
      %v1020 = vpack.c.b16 %v955, %v954
      %v1021 = vpack.c.b16 %v957, %v956
      %v1022 = vpack.c.b16 %v959, %v958
      %v1023 = vpack.c.b16 %v961, %v960
      %v1024 = vpack.c.b16 %v963, %v962
      %v1025 = vpack.c.b16 %v965, %v964
      %v1026 = vpack.c.b16 %v967, %v966
      %v1027 = vpack.c.b16 %v969, %v968
      %v1028 = vpack.c.b16 %v971, %v970
      %v1029 = vpack.c.b16 %v973, %v972
      %v1030 = vpack.c.b16 %v975, %v974
      %v1031 = vpack.c.b16 %v977, %v976
      %v1032 = vpack.c.b16 %v979, %v978
      %v1033 = vpack.c.b16 %v981, %v980
      %v1034 = vpack.c.b16 %v983, %v982
      %v1035 = vpack.c.b16 %v985, %v984
      %v1036 = vpack.c.b16 %v987, %v986
      %v1037 = vpack.c.b16 %v989, %v988
      %v1038 = vpack.c.b16 %v991, %v990
      %v1039 = vpack.c.b16 %v993, %v992
      %v1040 = vpack.c.b16 %v995, %v994
      %v1041 = vpack.c.b16 %v997, %v996
      %v1042 = vpack.c.b16 %v999, %v998
      %v1043 = vpack.c.b16 %v1001, %v1000
      %v1044 = vpack.c.b16 %v1003, %v1002
      %v1045 = vpack.c.b16 %v1005, %v1004
      %1086 = vmatpush.bf16.msra.mxu0 %v1013
      %1087 = vmatpush.bf16.msra.mxu0 %v1012
      %1088 = vmatpush.bf16.msra.mxu0 %v1011
      %1089 = vmatpush.bf16.msra.mxu0 %v1010
      %1090 = vmatpush.bf16.msra.mxu0 %v1009
      %1091 = vmatpush.bf16.msra.mxu0 %v1008
      %1092 = vmatpush.bf16.msra.mxu0 %v1007
      %1093 = vmatpush.bf16.msra.mxu0 %v1006
      %1094 = vmatmul.bf16.gmra.mxu0 %v686
      %v1095 = vpop.f32.mrf.mxu0
      %v1096 = vadd.f32 0.0, %v1095
      %v1097 = vpop.f32.mrf.mxu0
      %v1098 = vadd.f32 0.0, %v1097
      %1099 = vmatmul.bf16.gmra.mxu0 %v691
      %v1100 = vpop.f32.mrf.mxu0
      %v1101 = vadd.f32 0.0, %v1100
      %v1102 = vpop.f32.mrf.mxu0
      %v1103 = vadd.f32 0.0, %v1102
      %1104 = vmatmul.bf16.gmra.mxu0 %v696
      %v1105 = vpop.f32.mrf.mxu0
      %v1106 = vadd.f32 0.0, %v1105
      %v1107 = vpop.f32.mrf.mxu0
      %v1108 = vadd.f32 0.0, %v1107
      %1109 = vmatmul.bf16.gmra.mxu0 %v701
      %v1110 = vpop.f32.mrf.mxu0
      %v1111 = vadd.f32 0.0, %v1110
      %v1112 = vpop.f32.mrf.mxu0
      %v1113 = vadd.f32 0.0, %v1112
      %1114 = vmatmul.bf16.gmra.mxu0 %v706
      %v1115 = vpop.f32.mrf.mxu0
      %v1116 = vadd.f32 0.0, %v1115
      %v1117 = vpop.f32.mrf.mxu0
      %v1118 = vadd.f32 0.0, %v1117
      %1119 = vmatmul.bf16.gmra.mxu0 %v711
      %v1120 = vpop.f32.mrf.mxu0
      %v1121 = vadd.f32 0.0, %v1120
      %v1122 = vpop.f32.mrf.mxu0
      %v1123 = vadd.f32 0.0, %v1122
      %1124 = vmatmul.bf16.gmra.mxu0 %v716
      %v1125 = vpop.f32.mrf.mxu0
      %v1126 = vadd.f32 0.0, %v1125
      %v1127 = vpop.f32.mrf.mxu0
      %v1128 = vadd.f32 0.0, %v1127
      %1129 = vmatmul.bf16.gmra.mxu0 %v721
      %v1130 = vpop.f32.mrf.mxu0
      %v1131 = vadd.f32 0.0, %v1130
      %v1132 = vpop.f32.mrf.mxu0
      %v1133 = vadd.f32 0.0, %v1132
      %1134 = vmatmul.bf16.gmra.mxu0 %v726
      %v1135 = vpop.f32.mrf.mxu0
      %v1136 = vadd.f32 0.0, %v1135
      %v1137 = vpop.f32.mrf.mxu0
      %v1138 = vadd.f32 0.0, %v1137
      %1139 = vmatmul.bf16.gmra.mxu0 %v731
      %v1140 = vpop.f32.mrf.mxu0
      %v1141 = vadd.f32 0.0, %v1140
      %v1142 = vpop.f32.mrf.mxu0
      %v1143 = vadd.f32 0.0, %v1142
      %1144 = vmatmul.bf16.gmra.mxu0 %v736
      %v1145 = vpop.f32.mrf.mxu0
      %v1146 = vadd.f32 0.0, %v1145
      %v1147 = vpop.f32.mrf.mxu0
      %v1148 = vadd.f32 0.0, %v1147
      %1149 = vmatmul.bf16.gmra.mxu0 %v741
      %v1150 = vpop.f32.mrf.mxu0
      %v1151 = vadd.f32 0.0, %v1150
      %v1152 = vpop.f32.mrf.mxu0
      %v1153 = vadd.f32 0.0, %v1152
      %1154 = vmatmul.bf16.gmra.mxu0 %v746
      %v1155 = vpop.f32.mrf.mxu0
      %v1156 = vadd.f32 0.0, %v1155
      %v1157 = vpop.f32.mrf.mxu0
      %v1158 = vadd.f32 0.0, %v1157
      %1159 = vmatmul.bf16.gmra.mxu0 %v751
      %v1160 = vpop.f32.mrf.mxu0
      %v1161 = vadd.f32 0.0, %v1160
      %v1162 = vpop.f32.mrf.mxu0
      %v1163 = vadd.f32 0.0, %v1162
      %1164 = vmatmul.bf16.gmra.mxu0 %v756
      %v1165 = vpop.f32.mrf.mxu0
      %v1166 = vadd.f32 0.0, %v1165
      %v1167 = vpop.f32.mrf.mxu0
      %v1168 = vadd.f32 0.0, %v1167
      %1169 = vmatmul.bf16.gmra.mxu0 %v761
      %v1170 = vpop.f32.mrf.mxu0
      %v1171 = vadd.f32 0.0, %v1170
      %v1172 = vpop.f32.mrf.mxu0
      %v1173 = vadd.f32 0.0, %v1172
      %1174 = vdwg.mxu0
      %1175 = vmatpush.bf16.msra.mxu0 %v1021
      %1176 = vmatpush.bf16.msra.mxu0 %v1020
      %1177 = vmatpush.bf16.msra.mxu0 %v1019
      %1178 = vmatpush.bf16.msra.mxu0 %v1018
      %1179 = vmatpush.bf16.msra.mxu0 %v1017
      %1180 = vmatpush.bf16.msra.mxu0 %v1016
      %1181 = vmatpush.bf16.msra.mxu0 %v1015
      %1182 = vmatpush.bf16.msra.mxu0 %v1014
      %1183 = vmatmul.bf16.gmra.mxu0 %v687
      %v1184 = vpop.f32.mrf.mxu0
      %v1185 = vadd.f32 %v1096, %v1184
      %v1186 = vpop.f32.mrf.mxu0
      %v1187 = vadd.f32 %v1098, %v1186
      %1188 = vmatmul.bf16.gmra.mxu0 %v692
      %v1189 = vpop.f32.mrf.mxu0
      %v1190 = vadd.f32 %v1101, %v1189
      %v1191 = vpop.f32.mrf.mxu0
      %v1192 = vadd.f32 %v1103, %v1191
      %1193 = vmatmul.bf16.gmra.mxu0 %v697
      %v1194 = vpop.f32.mrf.mxu0
      %v1195 = vadd.f32 %v1106, %v1194
      %v1196 = vpop.f32.mrf.mxu0
      %v1197 = vadd.f32 %v1108, %v1196
      %1198 = vmatmul.bf16.gmra.mxu0 %v702
      %v1199 = vpop.f32.mrf.mxu0
      %v1200 = vadd.f32 %v1111, %v1199
      %v1201 = vpop.f32.mrf.mxu0
      %v1202 = vadd.f32 %v1113, %v1201
      %1203 = vmatmul.bf16.gmra.mxu0 %v707
      %v1204 = vpop.f32.mrf.mxu0
      %v1205 = vadd.f32 %v1116, %v1204
      %v1206 = vpop.f32.mrf.mxu0
      %v1207 = vadd.f32 %v1118, %v1206
      %1208 = vmatmul.bf16.gmra.mxu0 %v712
      %v1209 = vpop.f32.mrf.mxu0
      %v1210 = vadd.f32 %v1121, %v1209
      %v1211 = vpop.f32.mrf.mxu0
      %v1212 = vadd.f32 %v1123, %v1211
      %1213 = vmatmul.bf16.gmra.mxu0 %v717
      %v1214 = vpop.f32.mrf.mxu0
      %v1215 = vadd.f32 %v1126, %v1214
      %v1216 = vpop.f32.mrf.mxu0
      %v1217 = vadd.f32 %v1128, %v1216
      %1218 = vmatmul.bf16.gmra.mxu0 %v722
      %v1219 = vpop.f32.mrf.mxu0
      %v1220 = vadd.f32 %v1131, %v1219
      %v1221 = vpop.f32.mrf.mxu0
      %v1222 = vadd.f32 %v1133, %v1221
      %1223 = vmatmul.bf16.gmra.mxu0 %v727
      %v1224 = vpop.f32.mrf.mxu0
      %v1225 = vadd.f32 %v1136, %v1224
      %v1226 = vpop.f32.mrf.mxu0
      %v1227 = vadd.f32 %v1138, %v1226
      %1228 = vmatmul.bf16.gmra.mxu0 %v732
      %v1229 = vpop.f32.mrf.mxu0
      %v1230 = vadd.f32 %v1141, %v1229
      %v1231 = vpop.f32.mrf.mxu0
      %v1232 = vadd.f32 %v1143, %v1231
      %1233 = vmatmul.bf16.gmra.mxu0 %v737
      %v1234 = vpop.f32.mrf.mxu0
      %v1235 = vadd.f32 %v1146, %v1234
      %v1236 = vpop.f32.mrf.mxu0
      %v1237 = vadd.f32 %v1148, %v1236
      %1238 = vmatmul.bf16.gmra.mxu0 %v742
      %v1239 = vpop.f32.mrf.mxu0
      %v1240 = vadd.f32 %v1151, %v1239
      %v1241 = vpop.f32.mrf.mxu0
      %v1242 = vadd.f32 %v1153, %v1241
      %1243 = vmatmul.bf16.gmra.mxu0 %v747
      %v1244 = vpop.f32.mrf.mxu0
      %v1245 = vadd.f32 %v1156, %v1244
      %v1246 = vpop.f32.mrf.mxu0
      %v1247 = vadd.f32 %v1158, %v1246
      %1248 = vmatmul.bf16.gmra.mxu0 %v752
      %v1249 = vpop.f32.mrf.mxu0
      %v1250 = vadd.f32 %v1161, %v1249
      %v1251 = vpop.f32.mrf.mxu0
      %v1252 = vadd.f32 %v1163, %v1251
      %1253 = vmatmul.bf16.gmra.mxu0 %v757
      %v1254 = vpop.f32.mrf.mxu0
      %v1255 = vadd.f32 %v1166, %v1254
      %v1256 = vpop.f32.mrf.mxu0
      %v1257 = vadd.f32 %v1168, %v1256
      %1258 = vmatmul.bf16.gmra.mxu0 %v762
      %v1259 = vpop.f32.mrf.mxu0
      %v1260 = vadd.f32 %v1171, %v1259
      %v1261 = vpop.f32.mrf.mxu0
      %v1262 = vadd.f32 %v1173, %v1261
      %1263 = vdwg.mxu0
      %1264 = vmatpush.bf16.msra.mxu0 %v1029
      %1265 = vmatpush.bf16.msra.mxu0 %v1028
      %1266 = vmatpush.bf16.msra.mxu0 %v1027
      %1267 = vmatpush.bf16.msra.mxu0 %v1026
      %1268 = vmatpush.bf16.msra.mxu0 %v1025
      %1269 = vmatpush.bf16.msra.mxu0 %v1024
      %1270 = vmatpush.bf16.msra.mxu0 %v1023
      %1271 = vmatpush.bf16.msra.mxu0 %v1022
      %1272 = vmatmul.bf16.gmra.mxu0 %v688
      %v1273 = vpop.f32.mrf.mxu0
      %v1274 = vadd.f32 %v1185, %v1273
      %v1275 = vpop.f32.mrf.mxu0
      %v1276 = vadd.f32 %v1187, %v1275
      %1277 = vmatmul.bf16.gmra.mxu0 %v693
      %v1278 = vpop.f32.mrf.mxu0
      %v1279 = vadd.f32 %v1190, %v1278
      %v1280 = vpop.f32.mrf.mxu0
      %v1281 = vadd.f32 %v1192, %v1280
      %1282 = vmatmul.bf16.gmra.mxu0 %v698
      %v1283 = vpop.f32.mrf.mxu0
      %v1284 = vadd.f32 %v1195, %v1283
      %v1285 = vpop.f32.mrf.mxu0
      %v1286 = vadd.f32 %v1197, %v1285
      %1287 = vmatmul.bf16.gmra.mxu0 %v703
      %v1288 = vpop.f32.mrf.mxu0
      %v1289 = vadd.f32 %v1200, %v1288
      %v1290 = vpop.f32.mrf.mxu0
      %v1291 = vadd.f32 %v1202, %v1290
      %1292 = vmatmul.bf16.gmra.mxu0 %v708
      %v1293 = vpop.f32.mrf.mxu0
      %v1294 = vadd.f32 %v1205, %v1293
      %v1295 = vpop.f32.mrf.mxu0
      %v1296 = vadd.f32 %v1207, %v1295
      %1297 = vmatmul.bf16.gmra.mxu0 %v713
      %v1298 = vpop.f32.mrf.mxu0
      %v1299 = vadd.f32 %v1210, %v1298
      %v1300 = vpop.f32.mrf.mxu0
      %v1301 = vadd.f32 %v1212, %v1300
      %1302 = vmatmul.bf16.gmra.mxu0 %v718
      %v1303 = vpop.f32.mrf.mxu0
      %v1304 = vadd.f32 %v1215, %v1303
      %v1305 = vpop.f32.mrf.mxu0
      %v1306 = vadd.f32 %v1217, %v1305
      %1307 = vmatmul.bf16.gmra.mxu0 %v723
      %v1308 = vpop.f32.mrf.mxu0
      %v1309 = vadd.f32 %v1220, %v1308
      %v1310 = vpop.f32.mrf.mxu0
      %v1311 = vadd.f32 %v1222, %v1310
      %1312 = vmatmul.bf16.gmra.mxu0 %v728
      %v1313 = vpop.f32.mrf.mxu0
      %v1314 = vadd.f32 %v1225, %v1313
      %v1315 = vpop.f32.mrf.mxu0
      %v1316 = vadd.f32 %v1227, %v1315
      %1317 = vmatmul.bf16.gmra.mxu0 %v733
      %v1318 = vpop.f32.mrf.mxu0
      %v1319 = vadd.f32 %v1230, %v1318
      %v1320 = vpop.f32.mrf.mxu0
      %v1321 = vadd.f32 %v1232, %v1320
      %1322 = vmatmul.bf16.gmra.mxu0 %v738
      %v1323 = vpop.f32.mrf.mxu0
      %v1324 = vadd.f32 %v1235, %v1323
      %v1325 = vpop.f32.mrf.mxu0
      %v1326 = vadd.f32 %v1237, %v1325
      %1327 = vmatmul.bf16.gmra.mxu0 %v743
      %v1328 = vpop.f32.mrf.mxu0
      %v1329 = vadd.f32 %v1240, %v1328
      %v1330 = vpop.f32.mrf.mxu0
      %v1331 = vadd.f32 %v1242, %v1330
      %1332 = vmatmul.bf16.gmra.mxu0 %v748
      %v1333 = vpop.f32.mrf.mxu0
      %v1334 = vadd.f32 %v1245, %v1333
      %v1335 = vpop.f32.mrf.mxu0
      %v1336 = vadd.f32 %v1247, %v1335
      %1337 = vmatmul.bf16.gmra.mxu0 %v753
      %v1338 = vpop.f32.mrf.mxu0
      %v1339 = vadd.f32 %v1250, %v1338
      %v1340 = vpop.f32.mrf.mxu0
      %v1341 = vadd.f32 %v1252, %v1340
      %1342 = vmatmul.bf16.gmra.mxu0 %v758
      %v1343 = vpop.f32.mrf.mxu0
      %v1344 = vadd.f32 %v1255, %v1343
      %v1345 = vpop.f32.mrf.mxu0
      %v1346 = vadd.f32 %v1257, %v1345
      %1347 = vmatmul.bf16.gmra.mxu0 %v763
      %v1348 = vpop.f32.mrf.mxu0
      %v1349 = vadd.f32 %v1260, %v1348
      %v1350 = vpop.f32.mrf.mxu0
      %v1351 = vadd.f32 %v1262, %v1350
      %1352 = vdwg.mxu0
      %1353 = vmatpush.bf16.msra.mxu0 %v1037
      %1354 = vmatpush.bf16.msra.mxu0 %v1036
      %1355 = vmatpush.bf16.msra.mxu0 %v1035
      %1356 = vmatpush.bf16.msra.mxu0 %v1034
      %1357 = vmatpush.bf16.msra.mxu0 %v1033
      %1358 = vmatpush.bf16.msra.mxu0 %v1032
      %1359 = vmatpush.bf16.msra.mxu0 %v1031
      %1360 = vmatpush.bf16.msra.mxu0 %v1030
      %1361 = vmatmul.bf16.gmra.mxu0 %v689
      %v1362 = vpop.f32.mrf.mxu0
      %v1363 = vadd.f32 %v1274, %v1362
      %v1364 = vpop.f32.mrf.mxu0
      %v1365 = vadd.f32 %v1276, %v1364
      %1366 = vmatmul.bf16.gmra.mxu0 %v694
      %v1367 = vpop.f32.mrf.mxu0
      %v1368 = vadd.f32 %v1279, %v1367
      %v1369 = vpop.f32.mrf.mxu0
      %v1370 = vadd.f32 %v1281, %v1369
      %1371 = vmatmul.bf16.gmra.mxu0 %v699
      %v1372 = vpop.f32.mrf.mxu0
      %v1373 = vadd.f32 %v1284, %v1372
      %v1374 = vpop.f32.mrf.mxu0
      %v1375 = vadd.f32 %v1286, %v1374
      %1376 = vmatmul.bf16.gmra.mxu0 %v704
      %v1377 = vpop.f32.mrf.mxu0
      %v1378 = vadd.f32 %v1289, %v1377
      %v1379 = vpop.f32.mrf.mxu0
      %v1380 = vadd.f32 %v1291, %v1379
      %1381 = vmatmul.bf16.gmra.mxu0 %v709
      %v1382 = vpop.f32.mrf.mxu0
      %v1383 = vadd.f32 %v1294, %v1382
      %v1384 = vpop.f32.mrf.mxu0
      %v1385 = vadd.f32 %v1296, %v1384
      %1386 = vmatmul.bf16.gmra.mxu0 %v714
      %v1387 = vpop.f32.mrf.mxu0
      %v1388 = vadd.f32 %v1299, %v1387
      %v1389 = vpop.f32.mrf.mxu0
      %v1390 = vadd.f32 %v1301, %v1389
      %1391 = vmatmul.bf16.gmra.mxu0 %v719
      %v1392 = vpop.f32.mrf.mxu0
      %v1393 = vadd.f32 %v1304, %v1392
      %v1394 = vpop.f32.mrf.mxu0
      %v1395 = vadd.f32 %v1306, %v1394
      %1396 = vmatmul.bf16.gmra.mxu0 %v724
      %v1397 = vpop.f32.mrf.mxu0
      %v1398 = vadd.f32 %v1309, %v1397
      %v1399 = vpop.f32.mrf.mxu0
      %v1400 = vadd.f32 %v1311, %v1399
      %1401 = vmatmul.bf16.gmra.mxu0 %v729
      %v1402 = vpop.f32.mrf.mxu0
      %v1403 = vadd.f32 %v1314, %v1402
      %v1404 = vpop.f32.mrf.mxu0
      %v1405 = vadd.f32 %v1316, %v1404
      %1406 = vmatmul.bf16.gmra.mxu0 %v734
      %v1407 = vpop.f32.mrf.mxu0
      %v1408 = vadd.f32 %v1319, %v1407
      %v1409 = vpop.f32.mrf.mxu0
      %v1410 = vadd.f32 %v1321, %v1409
      %1411 = vmatmul.bf16.gmra.mxu0 %v739
      %v1412 = vpop.f32.mrf.mxu0
      %v1413 = vadd.f32 %v1324, %v1412
      %v1414 = vpop.f32.mrf.mxu0
      %v1415 = vadd.f32 %v1326, %v1414
      %1416 = vmatmul.bf16.gmra.mxu0 %v744
      %v1417 = vpop.f32.mrf.mxu0
      %v1418 = vadd.f32 %v1329, %v1417
      %v1419 = vpop.f32.mrf.mxu0
      %v1420 = vadd.f32 %v1331, %v1419
      %1421 = vmatmul.bf16.gmra.mxu0 %v749
      %v1422 = vpop.f32.mrf.mxu0
      %v1423 = vadd.f32 %v1334, %v1422
      %v1424 = vpop.f32.mrf.mxu0
      %v1425 = vadd.f32 %v1336, %v1424
      %1426 = vmatmul.bf16.gmra.mxu0 %v754
      %v1427 = vpop.f32.mrf.mxu0
      %v1428 = vadd.f32 %v1339, %v1427
      %v1429 = vpop.f32.mrf.mxu0
      %v1430 = vadd.f32 %v1341, %v1429
      %1431 = vmatmul.bf16.gmra.mxu0 %v759
      %v1432 = vpop.f32.mrf.mxu0
      %v1433 = vadd.f32 %v1344, %v1432
      %v1434 = vpop.f32.mrf.mxu0
      %v1435 = vadd.f32 %v1346, %v1434
      %1436 = vmatmul.bf16.gmra.mxu0 %v764
      %v1437 = vpop.f32.mrf.mxu0
      %v1438 = vadd.f32 %v1349, %v1437
      %v1439 = vpop.f32.mrf.mxu0
      %v1440 = vadd.f32 %v1351, %v1439
      %1441 = vdwg.mxu0
      %1442 = vmatpush.bf16.msra.mxu0 %v1045
      %1443 = vmatpush.bf16.msra.mxu0 %v1044
      %1444 = vmatpush.bf16.msra.mxu0 %v1043
      %1445 = vmatpush.bf16.msra.mxu0 %v1042
      %1446 = vmatpush.bf16.msra.mxu0 %v1041
      %1447 = vmatpush.bf16.msra.mxu0 %v1040
      %1448 = vmatpush.bf16.msra.mxu0 %v1039
      %1449 = vmatpush.bf16.msra.mxu0 %v1038
      %1450 = vmatmul.bf16.gmra.mxu0 %v690
      %v1451 = vpop.f32.mrf.mxu0
      %v1452 = vadd.f32 %v1363, %v1451
      %v1453 = vpop.f32.mrf.mxu0
      %v1454 = vadd.f32 %v1365, %v1453
      %1455 = vmatmul.bf16.gmra.mxu0 %v695
      %v1456 = vpop.f32.mrf.mxu0
      %v1457 = vadd.f32 %v1368, %v1456
      %v1458 = vpop.f32.mrf.mxu0
      %v1459 = vadd.f32 %v1370, %v1458
      %1460 = vmatmul.bf16.gmra.mxu0 %v700
      %v1461 = vpop.f32.mrf.mxu0
      %v1462 = vadd.f32 %v1373, %v1461
      %v1463 = vpop.f32.mrf.mxu0
      %v1464 = vadd.f32 %v1375, %v1463
      %1465 = vmatmul.bf16.gmra.mxu0 %v705
      %v1466 = vpop.f32.mrf.mxu0
      %v1467 = vadd.f32 %v1378, %v1466
      %v1468 = vpop.f32.mrf.mxu0
      %v1469 = vadd.f32 %v1380, %v1468
      %1470 = vmatmul.bf16.gmra.mxu0 %v710
      %v1471 = vpop.f32.mrf.mxu0
      %v1472 = vadd.f32 %v1383, %v1471
      %v1473 = vpop.f32.mrf.mxu0
      %v1474 = vadd.f32 %v1385, %v1473
      %1475 = vmatmul.bf16.gmra.mxu0 %v715
      %v1476 = vpop.f32.mrf.mxu0
      %v1477 = vadd.f32 %v1388, %v1476
      %v1478 = vpop.f32.mrf.mxu0
      %v1479 = vadd.f32 %v1390, %v1478
      %1480 = vmatmul.bf16.gmra.mxu0 %v720
      %v1481 = vpop.f32.mrf.mxu0
      %v1482 = vadd.f32 %v1393, %v1481
      %v1483 = vpop.f32.mrf.mxu0
      %v1484 = vadd.f32 %v1395, %v1483
      %1485 = vmatmul.bf16.gmra.mxu0 %v725
      %v1486 = vpop.f32.mrf.mxu0
      %v1487 = vadd.f32 %v1398, %v1486
      %v1488 = vpop.f32.mrf.mxu0
      %v1489 = vadd.f32 %v1400, %v1488
      %1490 = vmatmul.bf16.gmra.mxu0 %v730
      %v1491 = vpop.f32.mrf.mxu0
      %v1492 = vadd.f32 %v1403, %v1491
      %v1493 = vpop.f32.mrf.mxu0
      %v1494 = vadd.f32 %v1405, %v1493
      %1495 = vmatmul.bf16.gmra.mxu0 %v735
      %v1496 = vpop.f32.mrf.mxu0
      %v1497 = vadd.f32 %v1408, %v1496
      %v1498 = vpop.f32.mrf.mxu0
      %v1499 = vadd.f32 %v1410, %v1498
      %1500 = vmatmul.bf16.gmra.mxu0 %v740
      %v1501 = vpop.f32.mrf.mxu0
      %v1502 = vadd.f32 %v1413, %v1501
      %v1503 = vpop.f32.mrf.mxu0
      %v1504 = vadd.f32 %v1415, %v1503
      %1505 = vmatmul.bf16.gmra.mxu0 %v745
      %v1506 = vpop.f32.mrf.mxu0
      %v1507 = vadd.f32 %v1418, %v1506
      %v1508 = vpop.f32.mrf.mxu0
      %v1509 = vadd.f32 %v1420, %v1508
      %1510 = vmatmul.bf16.gmra.mxu0 %v750
      %v1511 = vpop.f32.mrf.mxu0
      %v1512 = vadd.f32 %v1423, %v1511
      %v1513 = vpop.f32.mrf.mxu0
      %v1514 = vadd.f32 %v1425, %v1513
      %1515 = vmatmul.bf16.gmra.mxu0 %v755
      %v1516 = vpop.f32.mrf.mxu0
      %v1517 = vadd.f32 %v1428, %v1516
      %v1518 = vpop.f32.mrf.mxu0
      %v1519 = vadd.f32 %v1430, %v1518
      %1520 = vmatmul.bf16.gmra.mxu0 %v760
      %v1521 = vpop.f32.mrf.mxu0
      %v1522 = vadd.f32 %v1433, %v1521
      %v1523 = vpop.f32.mrf.mxu0
      %v1524 = vadd.f32 %v1435, %v1523
      %1525 = vmatmul.bf16.gmra.mxu0 %v765
      %v1526 = vpop.f32.mrf.mxu0
      %v1527 = vadd.f32 %v1438, %v1526
      %v1528 = vpop.f32.mrf.mxu0
      %v1529 = vadd.f32 %v1440, %v1528
      %1530 = vdwg.mxu0
      %p1531 = scmp.eq.s32.totalorder %s20, 0
      // Predicated region
      $region37: #{salience_forward.7} parent=35 // pred_check
        %p1532 = pneg %p1531
      $region38: #{salience_forward.7} parent=35 // pred_check_branch
        %1534 = sbr.rel (%p1532) target = $region40
      $region39: #{salience_forward.7} parent=35 // pred_region
        %1535 = vst [vmem:[#allocation2] sm:$0xff] %v1452
        %1536 = vst [vmem:[#allocation2 + $0x8] sm:$0xff] %v1454
        %1537 = vst [vmem:[#allocation2 + $0x10] sm:$0xff] %v1457
        %1538 = vst [vmem:[#allocation2 + $0x18] sm:$0xff] %v1459
        %1539 = vst [vmem:[#allocation2 + $0x20] sm:$0xff] %v1462
        %1540 = vst [vmem:[#allocation2 + $0x28] sm:$0xff] %v1464
        %1541 = vst [vmem:[#allocation2 + $0x30] sm:$0xff] %v1467
        %1542 = vst [vmem:[#allocation2 + $0x38] sm:$0xff] %v1469
        %1543 = vst [vmem:[#allocation2 + $0x40] sm:$0xff] %v1472
        %1544 = vst [vmem:[#allocation2 + $0x48] sm:$0xff] %v1474
        %1545 = vst [vmem:[#allocation2 + $0x50] sm:$0xff] %v1477
        %1546 = vst [vmem:[#allocation2 + $0x58] sm:$0xff] %v1479
        %1547 = vst [vmem:[#allocation2 + $0x60] sm:$0xff] %v1482
        %1548 = vst [vmem:[#allocation2 + $0x68] sm:$0xff] %v1484
        %1549 = vst [vmem:[#allocation2 + $0x70] sm:$0xff] %v1487
        %1550 = vst [vmem:[#allocation2 + $0x78] sm:$0xff] %v1489
        %1551 = vst [vmem:[#allocation2 + $0x80] sm:$0xff] %v1492
        %1552 = vst [vmem:[#allocation2 + $0x88] sm:$0xff] %v1494
        %1553 = vst [vmem:[#allocation2 + $0x90] sm:$0xff] %v1497
        %1554 = vst [vmem:[#allocation2 + $0x98] sm:$0xff] %v1499
        %1555 = vst [vmem:[#allocation2 + $0xa0] sm:$0xff] %v1502
        %1556 = vst [vmem:[#allocation2 + $0xa8] sm:$0xff] %v1504
        %1557 = vst [vmem:[#allocation2 + $0xb0] sm:$0xff] %v1507
        %1558 = vst [vmem:[#allocation2 + $0xb8] sm:$0xff] %v1509
        %1559 = vst [vmem:[#allocation2 + $0xc0] sm:$0xff] %v1512
        %1560 = vst [vmem:[#allocation2 + $0xc8] sm:$0xff] %v1514
        %1561 = vst [vmem:[#allocation2 + $0xd0] sm:$0xff] %v1517
        %1562 = vst [vmem:[#allocation2 + $0xd8] sm:$0xff] %v1519
        %1563 = vst [vmem:[#allocation2 + $0xe0] sm:$0xff] %v1522
        %1564 = vst [vmem:[#allocation2 + $0xe8] sm:$0xff] %v1524
        %1565 = vst [vmem:[#allocation2 + $0xf0] sm:$0xff] %v1527
        %1566 = vst [vmem:[#allocation2 + $0xf8] sm:$0xff] %v1529
      $region40: #{salience_forward.7} parent=35 // pred_fallthru
        _
      %p1567 = scmp.gt.s32.totalorder %s20, 0
      // Predicated region
      $region41: #{salience_forward.7} parent=35 // pred_check
        %p1568 = pneg %p1567
      $region42: #{salience_forward.7} parent=35 // pred_check_branch
        %1570 = sbr.rel (%p1568) target = $region44
      $region43: #{salience_forward.7} parent=35 // pred_region
        %v1571 = vld [vmem:[#allocation2] sm:$0xff]
        %v1572 = vld [vmem:[#allocation2 + $0x8] sm:$0xff]
        %v1573 = vld [vmem:[#allocation2 + $0x10] sm:$0xff]
        %v1574 = vld [vmem:[#allocation2 + $0x18] sm:$0xff]
        %v1575 = vld [vmem:[#allocation2 + $0x20] sm:$0xff]
        %v1576 = vld [vmem:[#allocation2 + $0x28] sm:$0xff]
        %v1577 = vld [vmem:[#allocation2 + $0x30] sm:$0xff]
        %v1578 = vld [vmem:[#allocation2 + $0x38] sm:$0xff]
        %v1579 = vld [vmem:[#allocation2 + $0x40] sm:$0xff]
        %v1580 = vld [vmem:[#allocation2 + $0x48] sm:$0xff]
        %v1581 = vld [vmem:[#allocation2 + $0x50] sm:$0xff]
        %v1582 = vld [vmem:[#allocation2 + $0x58] sm:$0xff]
        %v1583 = vld [vmem:[#allocation2 + $0x60] sm:$0xff]
        %v1584 = vld [vmem:[#allocation2 + $0x68] sm:$0xff]
        %v1585 = vld [vmem:[#allocation2 + $0x70] sm:$0xff]
        %v1586 = vld [vmem:[#allocation2 + $0x78] sm:$0xff]
        %v1587 = vld [vmem:[#allocation2 + $0x80] sm:$0xff]
        %v1588 = vld [vmem:[#allocation2 + $0x88] sm:$0xff]
        %v1589 = vld [vmem:[#allocation2 + $0x90] sm:$0xff]
        %v1590 = vld [vmem:[#allocation2 + $0x98] sm:$0xff]
        %v1591 = vld [vmem:[#allocation2 + $0xa0] sm:$0xff]
        %v1592 = vld [vmem:[#allocation2 + $0xa8] sm:$0xff]
        %v1593 = vld [vmem:[#allocation2 + $0xb0] sm:$0xff]
        %v1594 = vld [vmem:[#allocation2 + $0xb8] sm:$0xff]
        %v1595 = vld [vmem:[#allocation2 + $0xc0] sm:$0xff]
        %v1596 = vld [vmem:[#allocation2 + $0xc8] sm:$0xff]
        %v1597 = vld [vmem:[#allocation2 + $0xd0] sm:$0xff]
        %v1598 = vld [vmem:[#allocation2 + $0xd8] sm:$0xff]
        %v1599 = vld [vmem:[#allocation2 + $0xe0] sm:$0xff]
        %v1600 = vld [vmem:[#allocation2 + $0xe8] sm:$0xff]
        %v1601 = vld [vmem:[#allocation2 + $0xf0] sm:$0xff]
        %v1602 = vld [vmem:[#allocation2 + $0xf8] sm:$0xff]
        %v1603 = vadd.f32 %v1571, %v1452
        %v1604 = vadd.f32 %v1572, %v1454
        %v1605 = vadd.f32 %v1573, %v1457
        %v1606 = vadd.f32 %v1574, %v1459
        %v1607 = vadd.f32 %v1575, %v1462
        %v1608 = vadd.f32 %v1576, %v1464
        %v1609 = vadd.f32 %v1577, %v1467
        %v1610 = vadd.f32 %v1578, %v1469
        %v1611 = vadd.f32 %v1579, %v1472
        %v1612 = vadd.f32 %v1580, %v1474
        %v1613 = vadd.f32 %v1581, %v1477
        %v1614 = vadd.f32 %v1582, %v1479
        %v1615 = vadd.f32 %v1583, %v1482
        %v1616 = vadd.f32 %v1584, %v1484
        %v1617 = vadd.f32 %v1585, %v1487
        %v1618 = vadd.f32 %v1586, %v1489
        %v1619 = vadd.f32 %v1587, %v1492
        %v1620 = vadd.f32 %v1588, %v1494
        %v1621 = vadd.f32 %v1589, %v1497
        %v1622 = vadd.f32 %v1590, %v1499
        %v1623 = vadd.f32 %v1591, %v1502
        %v1624 = vadd.f32 %v1592, %v1504
        %v1625 = vadd.f32 %v1593, %v1507
        %v1626 = vadd.f32 %v1594, %v1509
        %v1627 = vadd.f32 %v1595, %v1512
        %v1628 = vadd.f32 %v1596, %v1514
        %v1629 = vadd.f32 %v1597, %v1517
        %v1630 = vadd.f32 %v1598, %v1519
        %v1631 = vadd.f32 %v1599, %v1522
        %v1632 = vadd.f32 %v1600, %v1524
        %v1633 = vadd.f32 %v1601, %v1527
        %v1634 = vadd.f32 %v1602, %v1529
        %1635 = vst [vmem:[#allocation2] sm:$0xff] %v1603
        %1636 = vst [vmem:[#allocation2 + $0x8] sm:$0xff] %v1604
        %1637 = vst [vmem:[#allocation2 + $0x10] sm:$0xff] %v1605
        %1638 = vst [vmem:[#allocation2 + $0x18] sm:$0xff] %v1606
        %1639 = vst [vmem:[#allocation2 + $0x20] sm:$0xff] %v1607
        %1640 = vst [vmem:[#allocation2 + $0x28] sm:$0xff] %v1608
        %1641 = vst [vmem:[#allocation2 + $0x30] sm:$0xff] %v1609
        %1642 = vst [vmem:[#allocation2 + $0x38] sm:$0xff] %v1610
        %1643 = vst [vmem:[#allocation2 + $0x40] sm:$0xff] %v1611
        %1644 = vst [vmem:[#allocation2 + $0x48] sm:$0xff] %v1612
        %1645 = vst [vmem:[#allocation2 + $0x50] sm:$0xff] %v1613
        %1646 = vst [vmem:[#allocation2 + $0x58] sm:$0xff] %v1614
        %1647 = vst [vmem:[#allocation2 + $0x60] sm:$0xff] %v1615
        %1648 = vst [vmem:[#allocation2 + $0x68] sm:$0xff] %v1616
        %1649 = vst [vmem:[#allocation2 + $0x70] sm:$0xff] %v1617
        %1650 = vst [vmem:[#allocation2 + $0x78] sm:$0xff] %v1618
        %1651 = vst [vmem:[#allocation2 + $0x80] sm:$0xff] %v1619
        %1652 = vst [vmem:[#allocation2 + $0x88] sm:$0xff] %v1620
        %1653 = vst [vmem:[#allocation2 + $0x90] sm:$0xff] %v1621
        %1654 = vst [vmem:[#allocation2 + $0x98] sm:$0xff] %v1622
        %1655 = vst [vmem:[#allocation2 + $0xa0] sm:$0xff] %v1623
        %1656 = vst [vmem:[#allocation2 + $0xa8] sm:$0xff] %v1624
        %1657 = vst [vmem:[#allocation2 + $0xb0] sm:$0xff] %v1625
        %1658 = vst [vmem:[#allocation2 + $0xb8] sm:$0xff] %v1626
        %1659 = vst [vmem:[#allocation2 + $0xc0] sm:$0xff] %v1627
        %1660 = vst [vmem:[#allocation2 + $0xc8] sm:$0xff] %v1628
        %1661 = vst [vmem:[#allocation2 + $0xd0] sm:$0xff] %v1629
        %1662 = vst [vmem:[#allocation2 + $0xd8] sm:$0xff] %v1630
        %1663 = vst [vmem:[#allocation2 + $0xe0] sm:$0xff] %v1631
        %1664 = vst [vmem:[#allocation2 + $0xe8] sm:$0xff] %v1632
        %1665 = vst [vmem:[#allocation2 + $0xf0] sm:$0xff] %v1633
        %1666 = vst [vmem:[#allocation2 + $0xf8] sm:$0xff] %v1634
      $region44: #{salience_forward.7} parent=35 // pred_fallthru
        _
      // Predicated region
      $region45: #{salience_forward.7} parent=35 // pred_check
        %p1667 = pneg %p1531
      $region46: #{salience_forward.7} parent=35 // pred_check_branch
        %1669 = sbr.rel (%p1667) target = $region48
      $region47: #{salience_forward.7} parent=35 // pred_region
        %v1670 = vld [vmem:[#allocation2] sm:$0xff]
        %v1671 = vld [vmem:[#allocation2 + $0x8] sm:$0xff]
        %v1672 = vld [vmem:[#allocation2 + $0x10] sm:$0xff]
        %v1673 = vld [vmem:[#allocation2 + $0x18] sm:$0xff]
        %v1674 = vld [vmem:[#allocation2 + $0x20] sm:$0xff]
        %v1675 = vld [vmem:[#allocation2 + $0x28] sm:$0xff]
        %v1676 = vld [vmem:[#allocation2 + $0x30] sm:$0xff]
        %v1677 = vld [vmem:[#allocation2 + $0x38] sm:$0xff]
        %v1678 = vld [vmem:[#allocation2 + $0x40] sm:$0xff]
        %v1679 = vld [vmem:[#allocation2 + $0x48] sm:$0xff]
        %v1680 = vld [vmem:[#allocation2 + $0x50] sm:$0xff]
        %v1681 = vld [vmem:[#allocation2 + $0x58] sm:$0xff]
        %v1682 = vld [vmem:[#allocation2 + $0x60] sm:$0xff]
        %v1683 = vld [vmem:[#allocation2 + $0x68] sm:$0xff]
        %v1684 = vld [vmem:[#allocation2 + $0x70] sm:$0xff]
        %v1685 = vld [vmem:[#allocation2 + $0x78] sm:$0xff]
        %v1686 = vld [vmem:[#allocation2 + $0x80] sm:$0xff]
        %v1687 = vld [vmem:[#allocation2 + $0x88] sm:$0xff]
        %v1688 = vld [vmem:[#allocation2 + $0x90] sm:$0xff]
        %v1689 = vld [vmem:[#allocation2 + $0x98] sm:$0xff]
        %v1690 = vld [vmem:[#allocation2 + $0xa0] sm:$0xff]
        %v1691 = vld [vmem:[#allocation2 + $0xa8] sm:$0xff]
        %v1692 = vld [vmem:[#allocation2 + $0xb0] sm:$0xff]
        %v1693 = vld [vmem:[#allocation2 + $0xb8] sm:$0xff]
        %v1694 = vld [vmem:[#allocation2 + $0xc0] sm:$0xff]
        %v1695 = vld [vmem:[#allocation2 + $0xc8] sm:$0xff]
        %v1696 = vld [vmem:[#allocation2 + $0xd0] sm:$0xff]
        %v1697 = vld [vmem:[#allocation2 + $0xd8] sm:$0xff]
        %v1698 = vld [vmem:[#allocation2 + $0xe0] sm:$0xff]
        %v1699 = vld [vmem:[#allocation2 + $0xe8] sm:$0xff]
        %v1700 = vld [vmem:[#allocation2 + $0xf0] sm:$0xff]
        %v1701 = vld [vmem:[#allocation2 + $0xf8] sm:$0xff]
        %v1702 = vld [vmem:[%s2] sm:$0x1]
        %v1704 = vperm.slane %v1702, 0
        %v1706 = vmul.f32 %v1670, %v1704
        %v1707 = vmul.f32 %v1671, %v1704
        %v1708 = vmul.f32 %v1672, %v1704
        %v1709 = vmul.f32 %v1673, %v1704
        %v1710 = vmul.f32 %v1674, %v1704
        %v1711 = vmul.f32 %v1675, %v1704
        %v1712 = vmul.f32 %v1676, %v1704
        %v1713 = vmul.f32 %v1677, %v1704
        %v1714 = vmul.f32 %v1678, %v1704
        %v1715 = vmul.f32 %v1679, %v1704
        %v1716 = vmul.f32 %v1680, %v1704
        %v1717 = vmul.f32 %v1681, %v1704
        %v1718 = vmul.f32 %v1682, %v1704
        %v1719 = vmul.f32 %v1683, %v1704
        %v1720 = vmul.f32 %v1684, %v1704
        %v1721 = vmul.f32 %v1685, %v1704
        %v1722 = vmul.f32 %v1686, %v1704
        %v1723 = vmul.f32 %v1687, %v1704
        %v1724 = vmul.f32 %v1688, %v1704
        %v1725 = vmul.f32 %v1689, %v1704
        %v1726 = vmul.f32 %v1690, %v1704
        %v1727 = vmul.f32 %v1691, %v1704
        %v1728 = vmul.f32 %v1692, %v1704
        %v1729 = vmul.f32 %v1693, %v1704
        %v1730 = vmul.f32 %v1694, %v1704
        %v1731 = vmul.f32 %v1695, %v1704
        %v1732 = vmul.f32 %v1696, %v1704
        %v1733 = vmul.f32 %v1697, %v1704
        %v1734 = vmul.f32 %v1698, %v1704
        %v1735 = vmul.f32 %v1699, %v1704
        %v1736 = vmul.f32 %v1700, %v1704
        %v1737 = vmul.f32 %v1701, %v1704
        %v1738 = vld [vmem:[%s3] sm:$0x1]
        %v1740 = vperm.slane %v1738, 0
        %v1742 = vadd.f32 %v1706, %v1740
        %v1743 = vadd.f32 %v1707, %v1740
        %v1744 = vadd.f32 %v1708, %v1740
        %v1745 = vadd.f32 %v1709, %v1740
        %v1746 = vadd.f32 %v1710, %v1740
        %v1747 = vadd.f32 %v1711, %v1740
        %v1748 = vadd.f32 %v1712, %v1740
        %v1749 = vadd.f32 %v1713, %v1740
        %v1750 = vadd.f32 %v1714, %v1740
        %v1751 = vadd.f32 %v1715, %v1740
        %v1752 = vadd.f32 %v1716, %v1740
        %v1753 = vadd.f32 %v1717, %v1740
        %v1754 = vadd.f32 %v1718, %v1740
        %v1755 = vadd.f32 %v1719, %v1740
        %v1756 = vadd.f32 %v1720, %v1740
        %v1757 = vadd.f32 %v1721, %v1740
        %v1758 = vadd.f32 %v1722, %v1740
        %v1759 = vadd.f32 %v1723, %v1740
        %v1760 = vadd.f32 %v1724, %v1740
        %v1761 = vadd.f32 %v1725, %v1740
        %v1762 = vadd.f32 %v1726, %v1740
        %v1763 = vadd.f32 %v1727, %v1740
        %v1764 = vadd.f32 %v1728, %v1740
        %v1765 = vadd.f32 %v1729, %v1740
        %v1766 = vadd.f32 %v1730, %v1740
        %v1767 = vadd.f32 %v1731, %v1740
        %v1768 = vadd.f32 %v1732, %v1740
        %v1769 = vadd.f32 %v1733, %v1740
        %v1770 = vadd.f32 %v1734, %v1740
        %v1771 = vadd.f32 %v1735, %v1740
        %v1772 = vadd.f32 %v1736, %v1740
        %v1773 = vadd.f32 %v1737, %v1740
        %v1774 = vmax.f32 %v1742, 0.0
        %v1775 = vmax.f32 %v1743, 0.0
        %v1776 = vmax.f32 %v1744, 0.0
        %v1777 = vmax.f32 %v1745, 0.0
        %v1778 = vmax.f32 %v1746, 0.0
        %v1779 = vmax.f32 %v1747, 0.0
        %v1780 = vmax.f32 %v1748, 0.0
        %v1781 = vmax.f32 %v1749, 0.0
        %v1782 = vmax.f32 %v1750, 0.0
        %v1783 = vmax.f32 %v1751, 0.0
        %v1784 = vmax.f32 %v1752, 0.0
        %v1785 = vmax.f32 %v1753, 0.0
        %v1786 = vmax.f32 %v1754, 0.0
        %v1787 = vmax.f32 %v1755, 0.0
        %v1788 = vmax.f32 %v1756, 0.0
        %v1789 = vmax.f32 %v1757, 0.0
        %v1790 = vmax.f32 %v1758, 0.0
        %v1791 = vmax.f32 %v1759, 0.0
        %v1792 = vmax.f32 %v1760, 0.0
        %v1793 = vmax.f32 %v1761, 0.0
        %v1794 = vmax.f32 %v1762, 0.0
        %v1795 = vmax.f32 %v1763, 0.0
        %v1796 = vmax.f32 %v1764, 0.0
        %v1797 = vmax.f32 %v1765, 0.0
        %v1798 = vmax.f32 %v1766, 0.0
        %v1799 = vmax.f32 %v1767, 0.0
        %v1800 = vmax.f32 %v1768, 0.0
        %v1801 = vmax.f32 %v1769, 0.0
        %v1802 = vmax.f32 %v1770, 0.0
        %v1803 = vmax.f32 %v1771, 0.0
        %v1804 = vmax.f32 %v1772, 0.0
        %v1805 = vmax.f32 %v1773, 0.0
        %v1806 = vpack.c.bf16 %v1774, %v1774
        %v1807 = vpack.c.bf16 %v1775, %v1775
        %v1808 = vpack.c.bf16 %v1776, %v1776
        %v1809 = vpack.c.bf16 %v1777, %v1777
        %v1810 = vpack.c.bf16 %v1778, %v1778
        %v1811 = vpack.c.bf16 %v1779, %v1779
        %v1812 = vpack.c.bf16 %v1780, %v1780
        %v1813 = vpack.c.bf16 %v1781, %v1781
        %v1814 = vpack.c.bf16 %v1782, %v1782
        %v1815 = vpack.c.bf16 %v1783, %v1783
        %v1816 = vpack.c.bf16 %v1784, %v1784
        %v1817 = vpack.c.bf16 %v1785, %v1785
        %v1818 = vpack.c.bf16 %v1786, %v1786
        %v1819 = vpack.c.bf16 %v1787, %v1787
        %v1820 = vpack.c.bf16 %v1788, %v1788
        %v1821 = vpack.c.bf16 %v1789, %v1789
        %v1822 = vpack.c.bf16 %v1790, %v1790
        %v1823 = vpack.c.bf16 %v1791, %v1791
        %v1824 = vpack.c.bf16 %v1792, %v1792
        %v1825 = vpack.c.bf16 %v1793, %v1793
        %v1826 = vpack.c.bf16 %v1794, %v1794
        %v1827 = vpack.c.bf16 %v1795, %v1795
        %v1828 = vpack.c.bf16 %v1796, %v1796
        %v1829 = vpack.c.bf16 %v1797, %v1797
        %v1830 = vpack.c.bf16 %v1798, %v1798
        %v1831 = vpack.c.bf16 %v1799, %v1799
        %v1832 = vpack.c.bf16 %v1800, %v1800
        %v1833 = vpack.c.bf16 %v1801, %v1801
        %v1834 = vpack.c.bf16 %v1802, %v1802
        %v1835 = vpack.c.bf16 %v1803, %v1803
        %v1836 = vpack.c.bf16 %v1804, %v1804
        %v1837 = vpack.c.bf16 %v1805, %v1805
        %1838 = vst [vmem:[%s252] sm:$0xf] %v1806
        %1839 = vst [vmem:[%s252 + $0x4] sm:$0xf] %v1807
        %1840 = vst [vmem:[%s252 + $0x8] sm:$0xf] %v1808
        %1841 = vst [vmem:[%s252 + $0xc] sm:$0xf] %v1809
        %1842 = vst [vmem:[%s252 + $0x10] sm:$0xf] %v1810
        %1843 = vst [vmem:[%s252 + $0x14] sm:$0xf] %v1811
        %1844 = vst [vmem:[%s252 + $0x18] sm:$0xf] %v1812
        %1845 = vst [vmem:[%s252 + $0x1c] sm:$0xf] %v1813
        %1846 = vst [vmem:[%s252 + $0x20] sm:$0xf] %v1814
        %1847 = vst [vmem:[%s252 + $0x24] sm:$0xf] %v1815
        %1848 = vst [vmem:[%s252 + $0x28] sm:$0xf] %v1816
        %1849 = vst [vmem:[%s252 + $0x2c] sm:$0xf] %v1817
        %1850 = vst [vmem:[%s252 + $0x30] sm:$0xf] %v1818
        %1851 = vst [vmem:[%s252 + $0x34] sm:$0xf] %v1819
        %1852 = vst [vmem:[%s252 + $0x38] sm:$0xf] %v1820
        %1853 = vst [vmem:[%s252 + $0x3c] sm:$0xf] %v1821
        %1854 = vst [vmem:[%s252 + $0x40] sm:$0xf] %v1822
        %1855 = vst [vmem:[%s252 + $0x44] sm:$0xf] %v1823
        %1856 = vst [vmem:[%s252 + $0x48] sm:$0xf] %v1824
        %1857 = vst [vmem:[%s252 + $0x4c] sm:$0xf] %v1825
        %1858 = vst [vmem:[%s252 + $0x50] sm:$0xf] %v1826
        %1859 = vst [vmem:[%s252 + $0x54] sm:$0xf] %v1827
        %1860 = vst [vmem:[%s252 + $0x58] sm:$0xf] %v1828
        %1861 = vst [vmem:[%s252 + $0x5c] sm:$0xf] %v1829
        %1862 = vst [vmem:[%s252 + $0x60] sm:$0xf] %v1830
        %1863 = vst [vmem:[%s252 + $0x64] sm:$0xf] %v1831
        %1864 = vst [vmem:[%s252 + $0x68] sm:$0xf] %v1832
        %1865 = vst [vmem:[%s252 + $0x6c] sm:$0xf] %v1833
        %1866 = vst [vmem:[%s252 + $0x70] sm:$0xf] %v1834
        %1867 = vst [vmem:[%s252 + $0x74] sm:$0xf] %v1835
        %1868 = vst [vmem:[%s252 + $0x78] sm:$0xf] %v1836
        %1869 = vst [vmem:[%s252 + $0x7c] sm:$0xf] %v1837
      $region48: #{salience_forward.7} parent=35 // pred_fallthru
        _
      %s1870 = smul.u32 32, %s19
      %p1871 = scmp.lt.s32.totalorder %s1870, 63
      %s1872 = scalar_select %p1871, %s1870, 63
      %s1873 = smul.addr %s1872, 4
      %s1874 = scalar_lea.vmem %s4, %s1873
      // Predicated region
      $region49: #{salience_forward.7} parent=35 // pred_check
        %p1875 = pneg %p141
      $region50: #{salience_forward.7} parent=35 // pred_check_branch
        %1877 = sbr.rel (%p1875) target = $region52
      $region51: #{salience_forward.7} parent=35 // pred_region
        %s1878 = smul.u32 32, %s19
      $region52: #{salience_forward.7} parent=35 // pred_fallthru
        _
    $region36: #{salience_forward.7} parent=5 // pred_fallthru
      _
    %p1879 = scmp.le.s32.totalorder 2, %s10
    // Predicated region
    $region53: #{salience_forward.7} parent=5 // pred_check
      %p1880 = pneg %p1879
    $region54: #{salience_forward.7} parent=5 // pred_check_branch
      %1882 = sbr.rel (%p1880) target = $region56
    $region55: #{salience_forward.7} parent=5 // pred_region
      %s1883 = ssub.s32 %s10, 2
      // Predicated region
      $region57: #{salience_forward.7} parent=55 // pred_check
        %p1884 = pneg %p147
      $region58: #{salience_forward.7} parent=55 // pred_check_branch
        %1886 = sbr.rel (%p1884) target = $region60
      $region59: #{salience_forward.7} parent=55 // pred_region
        %s1887 = smul.u32 32, %s21
        %p1888 = scmp.lt.s32.totalorder %s1887, 63
        %s1889 = scalar_select %p1888, %s1887, 63
        %s1890 = smul.addr %s1889, 4
        %s1891 = scalar_lea.vmem %s4, %s1890
      $region60: #{salience_forward.7} parent=55 // pred_fallthru
        _
    $region56: #{salience_forward.7} parent=5 // pred_fallthru
      _
  $region6: #{salience_forward.7} parent=0 // loop_footer
    %s14 = sadd.s32 1, %s10
  $region7: #{salience_forward.7} parent=0 // loop_footer_branch
    %9 = sbr.rel target = $region3
  $region8: #{salience_forward.7} parent=0 // loop_exit
    _

// kernel: salience_forward.6
$region0: #{salience_forward.6}
  #allocation0 [shape = 'u32[]', space=smem, size = 0x4, offset = 0x4, fixed_abs, tag = 'smem constant byte address 0x4 - core index']
  #allocation1 [shape = 'u32[72,128]{1,0:T(1,128)}', space=vmem, size = 0x9000, scoped, tag = 'internal scratch']
  #allocation2 [shape = 'f32[256,128]{1,0:T(8,128)}', space=vmem, size = 0x20000, scoped, tag = 'scratch operand']
  %s0 = inlined_call_operand.vmem [shape: bf16[512,3200], index: 0, kind: input, shape index: {}]
  %s1 = inlined_call_operand.vmem [shape: bf16[3200,128], index: 1, kind: input, shape index: {}]
  %s2 = inlined_call_operand.vmem [shape: f32[1,128], index: 2, kind: input, shape index: {}]
  %s3 = inlined_call_operand.vmem [shape: f32[1,128], index: 3, kind: input, shape index: {}]
  %s4 = inlined_call_operand.vmem [shape: bf16[512,128], index: 4, kind: output, shape index: {}]
  %s5 = sld [smem:[#allocation0]]
  $region61: #{salience_forward.6} parent=0
    _
  %s7 = ssub.s32 1, %s5
  %s8 = scalar_select 0, %s7, %s5
  loop: start=0, step=1, limit=4
  $region2: #{salience_forward.6} parent=0 // loop_pre_header
    _
  $region3: #{salience_forward.6} parent=0 // loop_header
    %s10 = sphi 0, %s14
    %p11 = scmp.ge.s32.totalorder %s10, 4
    %s17 = sphi 0, %s29
    %s18 = sphi 0, %s25
    %s19 = sphi 0, %s17
    %s20 = sphi 0, %s18
    %s21 = sphi 0, %s19
    %s22 = sphi 0, %s20
    %s34 = sphi 0, %s36
    %s37 = sphi 0, %s34
    %s38 = sphi 0, %s37
    %s54 = sphi 0, %s38
    %s60 = sphi 0, %s62
    %s63 = sphi 0, %s60
    %s64 = sphi 0, %s63
    %s80 = sphi 0, %s64
    %s84 = sphi 0, %s84
    %s86 = sphi 0, %s84
    %s87 = sphi 0, %s86
    %s101 = sphi 0, %s87
    %s105 = sphi 0, %s105
    %s107 = sphi 0, %s105
    %s108 = sphi 0, %s107
    %s122 = sphi 0, %s108
    %s128 = sphi 0, %s130
    %s131 = sphi 0, %s128
    %s132 = sphi 0, %s131
    %s148 = sphi 0, %s132
  $region4: #{salience_forward.6} parent=0 // loop_header_branch
    %13 = sbr.rel (%p11) target = $region8
  $region5: #{salience_forward.6} parent=0 // loop_body
    %s15 = ssub.s32 %s10, 1
    %s16 = ssub.s32 %s10, 2
    %s23 = sadd.s32 1, %s18
    %p24 = scmp.ge.s32.totalorder %s23, 1
    %s25 = scalar_select %p24, 0, %s23
    %s26 = sadd.s32 1, %s17
    %s27 = scalar_select %p24, %s26, %s17
    %p28 = scmp.ge.s32.totalorder %s27, 2
    %s29 = scalar_select %p28, 0, %s27
    %s30 = ssub.s32 %s17, %s29
    %s31 = ssub.s32 %s18, %s25
    %s32 = sor.u32 %s30, %s31
    %p33 = scmp.eq.s32.totalorder %s32, 0
    %s35 = sadd.s32 %s34, 1
    %s36 = scalar_select %p33, %s34, %s35
    %p39 = pneg %p33
    %p40 = scmp.eq.s32.totalorder %s10, 1
    %p41 = por %p39, %p40
    %p42 = scmp.ne.s32.totalorder %s34, %s37
    %p43 = scmp.eq.s32.totalorder %s10, 0
    %p44 = por %p42, %p43
    %p45 = scmp.ne.s32.totalorder %s34, %s37
    %p46 = scmp.eq.s32.totalorder %s15, 1
    %p47 = por %p45, %p46
    %p48 = scmp.ne.s32.totalorder %s37, %s38
    %p49 = scmp.eq.s32.totalorder %s15, 0
    %p50 = por %p48, %p49
    %p51 = scmp.ne.s32.totalorder %s37, %s38
    %p52 = scmp.eq.s32.totalorder %s16, 1
    %p53 = por %p51, %p52
    %p55 = scmp.ne.s32.totalorder %s38, %s54
    %p56 = scmp.eq.s32.totalorder %s16, 0
    %p57 = por %p55, %p56
    %s58 = ssub.s32 %s18, %s25
    %p59 = scmp.eq.s32.totalorder %s58, 0
    %s61 = sadd.s32 %s60, 1
    %s62 = scalar_select %p59, %s60, %s61
    %p65 = pneg %p59
    %p66 = scmp.eq.s32.totalorder %s10, 1
    %p67 = por %p65, %p66
    %p68 = scmp.ne.s32.totalorder %s60, %s63
    %p69 = scmp.eq.s32.totalorder %s10, 0
    %p70 = por %p68, %p69
    %p71 = scmp.ne.s32.totalorder %s60, %s63
    %p72 = scmp.eq.s32.totalorder %s15, 1
    %p73 = por %p71, %p72
    %p74 = scmp.ne.s32.totalorder %s63, %s64
    %p75 = scmp.eq.s32.totalorder %s15, 0
    %p76 = por %p74, %p75
    %p77 = scmp.ne.s32.totalorder %s63, %s64
    %p78 = scmp.eq.s32.totalorder %s16, 1
    %p79 = por %p77, %p78
    %p81 = scmp.ne.s32.totalorder %s64, %s80
    %p82 = scmp.eq.s32.totalorder %s16, 0
    %p83 = por %p81, %p82
    %s85 = sadd.s32 %s84, 1
    %p88 = scmp.eq.s32.totalorder %s10, 1
    %p89 = scmp.ne.s32.totalorder %s84, %s86
    %p90 = scmp.eq.s32.totalorder %s10, 0
    %p91 = por %p89, %p90
    %p92 = scmp.ne.s32.totalorder %s84, %s86
    %p93 = scmp.eq.s32.totalorder %s15, 1
    %p94 = por %p92, %p93
    %p95 = scmp.ne.s32.totalorder %s86, %s87
    %p96 = scmp.eq.s32.totalorder %s15, 0
    %p97 = por %p95, %p96
    %p98 = scmp.ne.s32.totalorder %s86, %s87
    %p99 = scmp.eq.s32.totalorder %s16, 1
    %p100 = por %p98, %p99
    %p102 = scmp.ne.s32.totalorder %s87, %s101
    %p103 = scmp.eq.s32.totalorder %s16, 0
    %p104 = por %p102, %p103
    %s106 = sadd.s32 %s105, 1
    %p109 = scmp.eq.s32.totalorder %s10, 1
    %p110 = scmp.ne.s32.totalorder %s105, %s107
    %p111 = scmp.eq.s32.totalorder %s10, 0
    %p112 = por %p110, %p111
    %p113 = scmp.ne.s32.totalorder %s105, %s107
    %p114 = scmp.eq.s32.totalorder %s15, 1
    %p115 = por %p113, %p114
    %p116 = scmp.ne.s32.totalorder %s107, %s108
    %p117 = scmp.eq.s32.totalorder %s15, 0
    %p118 = por %p116, %p117
    %p119 = scmp.ne.s32.totalorder %s107, %s108
    %p120 = scmp.eq.s32.totalorder %s16, 1
    %p121 = por %p119, %p120
    %p123 = scmp.ne.s32.totalorder %s108, %s122
    %p124 = scmp.eq.s32.totalorder %s16, 0
    %p125 = por %p123, %p124
    %s126 = ssub.s32 %s17, %s29
    %p127 = scmp.eq.s32.totalorder %s126, 0
    %s129 = sadd.s32 %s128, 1
    %s130 = scalar_select %p127, %s128, %s129
    %p133 = pneg %p127
    %p134 = scmp.eq.s32.totalorder %s10, 1
    %p135 = por %p133, %p134
    %p136 = scmp.ne.s32.totalorder %s128, %s131
    %p137 = scmp.eq.s32.totalorder %s10, 0
    %p138 = por %p136, %p137
    %p139 = scmp.ne.s32.totalorder %s128, %s131
    %p140 = scmp.eq.s32.totalorder %s15, 1
    %p141 = por %p139, %p140
    %p142 = scmp.ne.s32.totalorder %s131, %s132
    %p143 = scmp.eq.s32.totalorder %s15, 0
    %p144 = por %p142, %p143
    %p145 = scmp.ne.s32.totalorder %s131, %s132
    %p146 = scmp.eq.s32.totalorder %s16, 1
    %p147 = por %p145, %p146
    %p149 = scmp.ne.s32.totalorder %s132, %s148
    %p150 = scmp.eq.s32.totalorder %s16, 0
    %p151 = por %p149, %p150
    %p152 = scmp.le.s32.totalorder 1, %s10
    %p153 = scmp.lt.s32.totalorder %s10, 3
    %p154 = pnand %p152, %p153
    %p155 = pneg %p154
    // Predicated region
    $region9: #{salience_forward.6} parent=5 // pred_check
      _
    $region10: #{salience_forward.6} parent=5 // pred_check_branch
      %157 = sbr.rel (%p154) target = $region12
    $region11: #{salience_forward.6} parent=5 // pred_region
      %s158 = ssub.s32 %s10, 1
      // Predicated region
      $region13: #{salience_forward.6} parent=11 // pred_check
        %p159 = pneg %p76
      $region14: #{salience_forward.6} parent=11 // pred_check_branch
        %161 = sbr.rel (%p159) target = $region16
      $region15: #{salience_forward.6} parent=11 // pred_region
        %s162 = smul.u32 400, %s20
        %p163 = scmp.lt.s32.totalorder %s162, 399
        %s164 = scalar_select %p163, %s162, 399
        %s165 = smul.addr %s164, 4
        %s166 = scalar_lea.vmem %s1, %s165
        %s167 = smul.u32 400, %s20
      $region16: #{salience_forward.6} parent=11 // pred_fallthru
        _
      // Predicated region
      $region17: #{salience_forward.6} parent=11 // pred_check
        %p168 = pneg %p97
      $region18: #{salience_forward.6} parent=11 // pred_check_branch
        %170 = sbr.rel (%p168) target = $region20
      $region19: #{salience_forward.6} parent=11 // pred_region
        _
      $region20: #{salience_forward.6} parent=11 // pred_fallthru
        _
      // Predicated region
      $region21: #{salience_forward.6} parent=11 // pred_check
        %p171 = pneg %p118
      $region22: #{salience_forward.6} parent=11 // pred_check_branch
        %173 = sbr.rel (%p171) target = $region24
      $region23: #{salience_forward.6} parent=11 // pred_region
        _
      $region24: #{salience_forward.6} parent=11 // pred_fallthru
        _
    $region12: #{salience_forward.6} parent=5 // pred_fallthru
      _
    %p174 = scmp.lt.s32.totalorder %s10, 2
    // Predicated region
    $region25: #{salience_forward.6} parent=5 // pred_check
      %p175 = pneg %p174
    $region26: #{salience_forward.6} parent=5 // pred_check_branch
      %177 = sbr.rel (%p175) target = $region28
    $region27: #{salience_forward.6} parent=5 // pred_region
      // Predicated region
      $region29: #{salience_forward.6} parent=27 // pred_check
        %p178 = pneg %p44
      $region30: #{salience_forward.6} parent=27 // pred_check_branch
        %180 = sbr.rel (%p178) target = $region32
      $region31: #{salience_forward.6} parent=27 // pred_region
        %s181 = smul.u32 32, %s17
        %s182 = smul.u32 25, %s18
        %p183 = scmp.lt.s32.totalorder %s181, 63
        %s184 = scalar_select %p183, %s181, 63
        %p185 = scmp.lt.s32.totalorder %s182, 24
        %s186 = scalar_select %p185, %s182, 24
        %s187 = smul.addr %s184, 25
        %s188 = sadd.s32 %s186, %s187
        %s189 = smul.addr %s188, 4
        %s190 = scalar_lea.vmem %s0, %s189
        %s191 = smul.u32 32, %s17
        %s192 = smul.u32 25, %s18
      $region32: #{salience_forward.6} parent=27 // pred_fallthru
        _
    $region28: #{salience_forward.6} parent=5 // pred_fallthru
      _
    %p193 = scmp.le.s32.totalorder 1, %s10
    %p194 = scmp.lt.s32.totalorder %s10, 3
    %p195 = pnand %p193, %p194
    %p196 = pneg %p195
    // Predicated region
    $region33: #{salience_forward.6} parent=5 // pred_check
      _
    $region34: #{salience_forward.6} parent=5 // pred_check_branch
      %198 = sbr.rel (%p195) target = $region36
    $region35: #{salience_forward.6} parent=5 // pred_region
      %s199 = ssub.s32 %s10, 1
      %s200 = smul.u32 32, %s19
      %s201 = smul.u32 25, %s20
      %p202 = scmp.lt.s32.totalorder %s200, 63
      %s203 = scalar_select %p202, %s200, 63
      %p204 = scmp.lt.s32.totalorder %s201, 24
      %s205 = scalar_select %p204, %s201, 24
      %s206 = smul.addr %s203, 25
      %s207 = sadd.s32 %s205, %s206
      %s208 = smul.addr %s207, 4
      %s209 = scalar_lea.vmem %s0, %s208
      %p210 = pneg %p50
      %p211 = pneg %p47
      %s212 = smul.u32 400, %s20
      %p213 = scmp.lt.s32.totalorder %s212, 399
      %s214 = scalar_select %p213, %s212, 399
      %s215 = smul.addr %s214, 4
      %s216 = scalar_lea.vmem %s1, %s215
      %p217 = pneg %p76
      %p218 = pneg %p73
      %p219 = pneg %p97
      %p220 = pneg %p94
      %p221 = pneg %p118
      %p222 = pneg %p115
      %p223 = pneg %p144
      %p224 = pneg %p141
      %s225 = smul.u32 32, %s19
      %p226 = scmp.lt.s32.totalorder %s225, 63
      %s227 = scalar_select %p226, %s225, 63
      %s228 = smul.addr %s227, 4
      %s229 = scalar_lea.vmem %s4, %s228
      %s230 = smul.u32 32, %s19
      %s231 = smul.u32 25, %s20
      %p232 = scmp.lt.s32.totalorder %s230, 63
      %s233 = scalar_select %p232, %s230, 63
      %p234 = scmp.lt.s32.totalorder %s231, 24
      %s235 = scalar_select %p234, %s231, 24
      %s236 = smul.addr %s233, 25
      %s237 = sadd.s32 %s235, %s236
      %s238 = smul.addr %s237, 4
      %s239 = scalar_lea.vmem %s0, %s238
      %s240 = smul.u32 32, %s19
      %s241 = smul.u32 25, %s20
      %s242 = smul.u32 400, %s20
      %p243 = scmp.lt.s32.totalorder %s242, 399
      %s244 = scalar_select %p243, %s242, 399
      %s245 = smul.addr %s244, 4
      %s246 = scalar_lea.vmem %s1, %s245
      %s247 = smul.u32 400, %s20
      %s248 = smul.u32 32, %s19
      %p249 = scmp.lt.s32.totalorder %s248, 63
      %s250 = scalar_select %p249, %s248, 63
      %s251 = smul.addr %s250, 4
      %s252 = scalar_lea.vmem %s4, %s251
      %s253 = smul.u32 32, %s19
      %v254 = vld [vmem:[%s239] sm:$0xff]
      %v255 = vld [vmem:[%s239 + $0x8] sm:$0xff]
      %v256 = vld [vmem:[%s239 + $0x10] sm:$0xff]
      %v257 = vld [vmem:[%s239 + $0x18] sm:$0xff]
      %v258 = vld [vmem:[%s239 + $0x20] sm:$0xff]
      %v259 = vld [vmem:[%s239 + $0x28] sm:$0xff]
      %v260 = vld [vmem:[%s239 + $0x30] sm:$0xff]
      %v261 = vld [vmem:[%s239 + $0x38] sm:$0xff]
      %v262 = vld [vmem:[%s239 + $0x40] sm:$0xff]
      %v263 = vld [vmem:[%s239 + $0x48] sm:$0xff]
      %v264 = vld [vmem:[%s239 + $0x50] sm:$0xff]
      %v265 = vld [vmem:[%s239 + $0x58] sm:$0xff]
      %v266 = vld [vmem:[%s239 + $0x60] sm:$0xf]
      %v267 = vld [vmem:[%s239 + $0x64] sm:$0xff]
      %v268 = vld [vmem:[%s239 + $0x6c] sm:$0xff]
      %v269 = vld [vmem:[%s239 + $0x74] sm:$0xff]
      %v270 = vld [vmem:[%s239 + $0x7c] sm:$0xff]
      %v271 = vld [vmem:[%s239 + $0x84] sm:$0xff]
      %v272 = vld [vmem:[%s239 + $0x8c] sm:$0xff]
      %v273 = vld [vmem:[%s239 + $0x94] sm:$0xff]
      %v274 = vld [vmem:[%s239 + $0x9c] sm:$0xff]
      %v275 = vld [vmem:[%s239 + $0xa4] sm:$0xff]
      %v276 = vld [vmem:[%s239 + $0xac] sm:$0xff]
      %v277 = vld [vmem:[%s239 + $0xb4] sm:$0xff]
      %v278 = vld [vmem:[%s239 + $0xbc] sm:$0xff]
      %v279 = vld [vmem:[%s239 + $0xc4] sm:$0xf]
      %v280 = vld [vmem:[%s239 + $0xc8] sm:$0xff]
      %v281 = vld [vmem:[%s239 + $0xd0] sm:$0xff]
      %v282 = vld [vmem:[%s239 + $0xd8] sm:$0xff]
      %v283 = vld [vmem:[%s239 + $0xe0] sm:$0xff]
      %v284 = vld [vmem:[%s239 + $0xe8] sm:$0xff]
      %v285 = vld [vmem:[%s239 + $0xf0] sm:$0xff]
      %v286 = vld [vmem:[%s239 + $0xf8] sm:$0xff]
      %v287 = vld [vmem:[%s239 + $0x100] sm:$0xff]
      %v288 = vld [vmem:[%s239 + $0x108] sm:$0xff]
      %v289 = vld [vmem:[%s239 + $0x110] sm:$0xff]
      %v290 = vld [vmem:[%s239 + $0x118] sm:$0xff]
      %v291 = vld [vmem:[%s239 + $0x120] sm:$0xff]
      %v292 = vld [vmem:[%s239 + $0x128] sm:$0xf]
      %v293 = vld [vmem:[%s239 + $0x12c] sm:$0xff]
      %v294 = vld [vmem:[%s239 + $0x134] sm:$0xff]
      %v295 = vld [vmem:[%s239 + $0x13c] sm:$0xff]
      %v296 = vld [vmem:[%s239 + $0x144] sm:$0xff]
      %v297 = vld [vmem:[%s239 + $0x14c] sm:$0xff]
      %v298 = vld [vmem:[%s239 + $0x154] sm:$0xff]
      %v299 = vld [vmem:[%s239 + $0x15c] sm:$0xff]
      %v300 = vld [vmem:[%s239 + $0x164] sm:$0xff]
      %v301 = vld [vmem:[%s239 + $0x16c] sm:$0xff]
      %v302 = vld [vmem:[%s239 + $0x174] sm:$0xff]
      %v303 = vld [vmem:[%s239 + $0x17c] sm:$0xff]
      %v304 = vld [vmem:[%s239 + $0x184] sm:$0xff]
      %v305 = vld [vmem:[%s239 + $0x18c] sm:$0xf]
      %v306 = vld [vmem:[%s239 + $0x190] sm:$0xff]
      %v307 = vld [vmem:[%s239 + $0x198] sm:$0xff]
      %v308 = vld [vmem:[%s239 + $0x1a0] sm:$0xff]
      %v309 = vld [vmem:[%s239 + $0x1a8] sm:$0xff]
      %v310 = vld [vmem:[%s239 + $0x1b0] sm:$0xff]
      %v311 = vld [vmem:[%s239 + $0x1b8] sm:$0xff]
      %v312 = vld [vmem:[%s239 + $0x1c0] sm:$0xff]
      %v313 = vld [vmem:[%s239 + $0x1c8] sm:$0xff]
      %v314 = vld [vmem:[%s239 + $0x1d0] sm:$0xff]
      %v315 = vld [vmem:[%s239 + $0x1d8] sm:$0xff]
      %v316 = vld [vmem:[%s239 + $0x1e0] sm:$0xff]
      %v317 = vld [vmem:[%s239 + $0x1e8] sm:$0xff]
      %v318 = vld [vmem:[%s239 + $0x1f0] sm:$0xf]
      %v319 = vld [vmem:[%s239 + $0x1f4] sm:$0xff]
      %v320 = vld [vmem:[%s239 + $0x1fc] sm:$0xff]
      %v321 = vld [vmem:[%s239 + $0x204] sm:$0xff]
      %v322 = vld [vmem:[%s239 + $0x20c] sm:$0xff]
      %v323 = vld [vmem:[%s239 + $0x214] sm:$0xff]
      %v324 = vld [vmem:[%s239 + $0x21c] sm:$0xff]
      %v325 = vld [vmem:[%s239 + $0x224] sm:$0xff]
      %v326 = vld [vmem:[%s239 + $0x22c] sm:$0xff]
      %v327 = vld [vmem:[%s239 + $0x234] sm:$0xff]
      %v328 = vld [vmem:[%s239 + $0x23c] sm:$0xff]
      %v329 = vld [vmem:[%s239 + $0x244] sm:$0xff]
      %v330 = vld [vmem:[%s239 + $0x24c] sm:$0xff]
      %v331 = vld [vmem:[%s239 + $0x254] sm:$0xf]
      %v332 = vld [vmem:[%s239 + $0x258] sm:$0xff]
      %v333 = vld [vmem:[%s239 + $0x260] sm:$0xff]
      %v334 = vld [vmem:[%s239 + $0x268] sm:$0xff]
      %v335 = vld [vmem:[%s239 + $0x270] sm:$0xff]
      %v336 = vld [vmem:[%s239 + $0x278] sm:$0xff]
      %v337 = vld [vmem:[%s239 + $0x280] sm:$0xff]
      %v338 = vld [vmem:[%s239 + $0x288] sm:$0xff]
      %v339 = vld [vmem:[%s239 + $0x290] sm:$0xff]
      %v340 = vld [vmem:[%s239 + $0x298] sm:$0xff]
      %v341 = vld [vmem:[%s239 + $0x2a0] sm:$0xff]
      %v342 = vld [vmem:[%s239 + $0x2a8] sm:$0xff]
      %v343 = vld [vmem:[%s239 + $0x2b0] sm:$0xff]
      %v344 = vld [vmem:[%s239 + $0x2b8] sm:$0xf]
      %v345 = vld [vmem:[%s239 + $0x2bc] sm:$0xff]
      %v346 = vld [vmem:[%s239 + $0x2c4] sm:$0xff]
      %v347 = vld [vmem:[%s239 + $0x2cc] sm:$0xff]
      %v348 = vld [vmem:[%s239 + $0x2d4] sm:$0xff]
      %v349 = vld [vmem:[%s239 + $0x2dc] sm:$0xff]
      %v350 = vld [vmem:[%s239 + $0x2e4] sm:$0xff]
      %v351 = vld [vmem:[%s239 + $0x2ec] sm:$0xff]
      %v352 = vld [vmem:[%s239 + $0x2f4] sm:$0xff]
      %v353 = vld [vmem:[%s239 + $0x2fc] sm:$0xff]
      %v354 = vld [vmem:[%s239 + $0x304] sm:$0xff]
      %v355 = vld [vmem:[%s239 + $0x30c] sm:$0xff]
      %v356 = vld [vmem:[%s239 + $0x314] sm:$0xff]
      %v357 = vld [vmem:[%s239 + $0x31c] sm:$0xf]
      %v358 = vld [vmem:[%s239 + $0x320] sm:$0xff]
      %v359 = vld [vmem:[%s239 + $0x328] sm:$0xff]
      %v360 = vld [vmem:[%s239 + $0x330] sm:$0xff]
      %v361 = vld [vmem:[%s239 + $0x338] sm:$0xff]
      %v362 = vld [vmem:[%s239 + $0x340] sm:$0xff]
      %v363 = vld [vmem:[%s239 + $0x348] sm:$0xff]
      %v364 = vld [vmem:[%s239 + $0x350] sm:$0xff]
      %v365 = vld [vmem:[%s239 + $0x358] sm:$0xff]
      %v366 = vld [vmem:[%s239 + $0x360] sm:$0xff]
      %v367 = vld [vmem:[%s239 + $0x368] sm:$0xff]
      %v368 = vld [vmem:[%s239 + $0x370] sm:$0xff]
      %v369 = vld [vmem:[%s239 + $0x378] sm:$0xff]
      %v370 = vld [vmem:[%s239 + $0x380] sm:$0xf]
      %v371 = vld [vmem:[%s239 + $0x384] sm:$0xff]
      %v372 = vld [vmem:[%s239 + $0x38c] sm:$0xff]
      %v373 = vld [vmem:[%s239 + $0x394] sm:$0xff]
      %v374 = vld [vmem:[%s239 + $0x39c] sm:$0xff]
      %v375 = vld [vmem:[%s239 + $0x3a4] sm:$0xff]
      %v376 = vld [vmem:[%s239 + $0x3ac] sm:$0xff]
      %v377 = vld [vmem:[%s239 + $0x3b4] sm:$0xff]
      %v378 = vld [vmem:[%s239 + $0x3bc] sm:$0xff]
      %v379 = vld [vmem:[%s239 + $0x3c4] sm:$0xff]
      %v380 = vld [vmem:[%s239 + $0x3cc] sm:$0xff]
      %v381 = vld [vmem:[%s239 + $0x3d4] sm:$0xff]
      %v382 = vld [vmem:[%s239 + $0x3dc] sm:$0xff]
      %v383 = vld [vmem:[%s239 + $0x3e4] sm:$0xf]
      %v384 = vld [vmem:[%s239 + $0x3e8] sm:$0xff]
      %v385 = vld [vmem:[%s239 + $0x3f0] sm:$0xff]
      %v386 = vld [vmem:[%s239 + $0x3f8] sm:$0xff]
      %v387 = vld [vmem:[%s239 + $0x400] sm:$0xff]
      %v388 = vld [vmem:[%s239 + $0x408] sm:$0xff]
      %v389 = vld [vmem:[%s239 + $0x410] sm:$0xff]
      %v390 = vld [vmem:[%s239 + $0x418] sm:$0xff]
      %v391 = vld [vmem:[%s239 + $0x420] sm:$0xff]
      %v392 = vld [vmem:[%s239 + $0x428] sm:$0xff]
      %v393 = vld [vmem:[%s239 + $0x430] sm:$0xff]
      %v394 = vld [vmem:[%s239 + $0x438] sm:$0xff]
      %v395 = vld [vmem:[%s239 + $0x440] sm:$0xff]
      %v396 = vld [vmem:[%s239 + $0x448] sm:$0xf]
      %v397 = vld [vmem:[%s239 + $0x44c] sm:$0xff]
      %v398 = vld [vmem:[%s239 + $0x454] sm:$0xff]
      %v399 = vld [vmem:[%s239 + $0x45c] sm:$0xff]
      %v400 = vld [vmem:[%s239 + $0x464] sm:$0xff]
      %v401 = vld [vmem:[%s239 + $0x46c] sm:$0xff]
      %v402 = vld [vmem:[%s239 + $0x474] sm:$0xff]
      %v403 = vld [vmem:[%s239 + $0x47c] sm:$0xff]
      %v404 = vld [vmem:[%s239 + $0x484] sm:$0xff]
      %v405 = vld [vmem:[%s239 + $0x48c] sm:$0xff]
      %v406 = vld [vmem:[%s239 + $0x494] sm:$0xff]
      %v407 = vld [vmem:[%s239 + $0x49c] sm:$0xff]
      %v408 = vld [vmem:[%s239 + $0x4a4] sm:$0xff]
      %v409 = vld [vmem:[%s239 + $0x4ac] sm:$0xf]
      %v410 = vld [vmem:[%s239 + $0x4b0] sm:$0xff]
      %v411 = vld [vmem:[%s239 + $0x4b8] sm:$0xff]
      %v412 = vld [vmem:[%s239 + $0x4c0] sm:$0xff]
      %v413 = vld [vmem:[%s239 + $0x4c8] sm:$0xff]
      %v414 = vld [vmem:[%s239 + $0x4d0] sm:$0xff]
      %v415 = vld [vmem:[%s239 + $0x4d8] sm:$0xff]
      %v416 = vld [vmem:[%s239 + $0x4e0] sm:$0xff]
      %v417 = vld [vmem:[%s239 + $0x4e8] sm:$0xff]
      %v418 = vld [vmem:[%s239 + $0x4f0] sm:$0xff]
      %v419 = vld [vmem:[%s239 + $0x4f8] sm:$0xff]
      %v420 = vld [vmem:[%s239 + $0x500] sm:$0xff]
      %v421 = vld [vmem:[%s239 + $0x508] sm:$0xff]
      %v422 = vld [vmem:[%s239 + $0x510] sm:$0xf]
      %v423 = vld [vmem:[%s239 + $0x514] sm:$0xff]
      %v424 = vld [vmem:[%s239 + $0x51c] sm:$0xff]
      %v425 = vld [vmem:[%s239 + $0x524] sm:$0xff]
      %v426 = vld [vmem:[%s239 + $0x52c] sm:$0xff]
      %v427 = vld [vmem:[%s239 + $0x534] sm:$0xff]
      %v428 = vld [vmem:[%s239 + $0x53c] sm:$0xff]
      %v429 = vld [vmem:[%s239 + $0x544] sm:$0xff]
      %v430 = vld [vmem:[%s239 + $0x54c] sm:$0xff]
      %v431 = vld [vmem:[%s239 + $0x554] sm:$0xff]
      %v432 = vld [vmem:[%s239 + $0x55c] sm:$0xff]
      %v433 = vld [vmem:[%s239 + $0x564] sm:$0xff]
      %v434 = vld [vmem:[%s239 + $0x56c] sm:$0xff]
      %v435 = vld [vmem:[%s239 + $0x574] sm:$0xf]
      %v436 = vld [vmem:[%s239 + $0x578] sm:$0xff]
      %v437 = vld [vmem:[%s239 + $0x580] sm:$0xff]
      %v438 = vld [vmem:[%s239 + $0x588] sm:$0xff]
      %v439 = vld [vmem:[%s239 + $0x590] sm:$0xff]
      %v440 = vld [vmem:[%s239 + $0x598] sm:$0xff]
      %v441 = vld [vmem:[%s239 + $0x5a0] sm:$0xff]
      %v442 = vld [vmem:[%s239 + $0x5a8] sm:$0xff]
      %v443 = vld [vmem:[%s239 + $0x5b0] sm:$0xff]
      %v444 = vld [vmem:[%s239 + $0x5b8] sm:$0xff]
      %v445 = vld [vmem:[%s239 + $0x5c0] sm:$0xff]
      %v446 = vld [vmem:[%s239 + $0x5c8] sm:$0xff]
      %v447 = vld [vmem:[%s239 + $0x5d0] sm:$0xff]
      %v448 = vld [vmem:[%s239 + $0x5d8] sm:$0xf]
      %v449 = vld [vmem:[%s239 + $0x5dc] sm:$0xff]
      %v450 = vld [vmem:[%s239 + $0x5e4] sm:$0xff]
      %v451 = vld [vmem:[%s239 + $0x5ec] sm:$0xff]
      %v452 = vld [vmem:[%s239 + $0x5f4] sm:$0xff]
      %v453 = vld [vmem:[%s239 + $0x5fc] sm:$0xff]
      %v454 = vld [vmem:[%s239 + $0x604] sm:$0xff]
      %v455 = vld [vmem:[%s239 + $0x60c] sm:$0xff]
      %v456 = vld [vmem:[%s239 + $0x614] sm:$0xff]
      %v457 = vld [vmem:[%s239 + $0x61c] sm:$0xff]
      %v458 = vld [vmem:[%s239 + $0x624] sm:$0xff]
      %v459 = vld [vmem:[%s239 + $0x62c] sm:$0xff]
      %v460 = vld [vmem:[%s239 + $0x634] sm:$0xff]
      %v461 = vld [vmem:[%s239 + $0x63c] sm:$0xf]
      %v462 = vld [vmem:[%s239 + $0x640] sm:$0xff]
      %v463 = vld [vmem:[%s239 + $0x648] sm:$0xff]
      %v464 = vld [vmem:[%s239 + $0x650] sm:$0xff]
      %v465 = vld [vmem:[%s239 + $0x658] sm:$0xff]
      %v466 = vld [vmem:[%s239 + $0x660] sm:$0xff]
      %v467 = vld [vmem:[%s239 + $0x668] sm:$0xff]
      %v468 = vld [vmem:[%s239 + $0x670] sm:$0xff]
      %v469 = vld [vmem:[%s239 + $0x678] sm:$0xff]
      %v470 = vld [vmem:[%s239 + $0x680] sm:$0xff]
      %v471 = vld [vmem:[%s239 + $0x688] sm:$0xff]
      %v472 = vld [vmem:[%s239 + $0x690] sm:$0xff]
      %v473 = vld [vmem:[%s239 + $0x698] sm:$0xff]
      %v474 = vld [vmem:[%s239 + $0x6a0] sm:$0xf]
      %v475 = vld [vmem:[%s239 + $0x6a4] sm:$0xff]
      %v476 = vld [vmem:[%s239 + $0x6ac] sm:$0xff]
      %v477 = vld [vmem:[%s239 + $0x6b4] sm:$0xff]
      %v478 = vld [vmem:[%s239 + $0x6bc] sm:$0xff]
      %v479 = vld [vmem:[%s239 + $0x6c4] sm:$0xff]
      %v480 = vld [vmem:[%s239 + $0x6cc] sm:$0xff]
      %v481 = vld [vmem:[%s239 + $0x6d4] sm:$0xff]
      %v482 = vld [vmem:[%s239 + $0x6dc] sm:$0xff]
      %v483 = vld [vmem:[%s239 + $0x6e4] sm:$0xff]
      %v484 = vld [vmem:[%s239 + $0x6ec] sm:$0xff]
      %v485 = vld [vmem:[%s239 + $0x6f4] sm:$0xff]
      %v486 = vld [vmem:[%s239 + $0x6fc] sm:$0xff]
      %v487 = vld [vmem:[%s239 + $0x704] sm:$0xf]
      %v488 = vld [vmem:[%s239 + $0x708] sm:$0xff]
      %v489 = vld [vmem:[%s239 + $0x710] sm:$0xff]
      %v490 = vld [vmem:[%s239 + $0x718] sm:$0xff]
      %v491 = vld [vmem:[%s239 + $0x720] sm:$0xff]
      %v492 = vld [vmem:[%s239 + $0x728] sm:$0xff]
      %v493 = vld [vmem:[%s239 + $0x730] sm:$0xff]
      %v494 = vld [vmem:[%s239 + $0x738] sm:$0xff]
      %v495 = vld [vmem:[%s239 + $0x740] sm:$0xff]
      %v496 = vld [vmem:[%s239 + $0x748] sm:$0xff]
      %v497 = vld [vmem:[%s239 + $0x750] sm:$0xff]
      %v498 = vld [vmem:[%s239 + $0x758] sm:$0xff]
      %v499 = vld [vmem:[%s239 + $0x760] sm:$0xff]
      %v500 = vld [vmem:[%s239 + $0x768] sm:$0xf]
      %v501 = vld [vmem:[%s239 + $0x76c] sm:$0xff]
      %v502 = vld [vmem:[%s239 + $0x774] sm:$0xff]
      %v503 = vld [vmem:[%s239 + $0x77c] sm:$0xff]
      %v504 = vld [vmem:[%s239 + $0x784] sm:$0xff]
      %v505 = vld [vmem:[%s239 + $0x78c] sm:$0xff]
      %v506 = vld [vmem:[%s239 + $0x794] sm:$0xff]
      %v507 = vld [vmem:[%s239 + $0x79c] sm:$0xff]
      %v508 = vld [vmem:[%s239 + $0x7a4] sm:$0xff]
      %v509 = vld [vmem:[%s239 + $0x7ac] sm:$0xff]
      %v510 = vld [vmem:[%s239 + $0x7b4] sm:$0xff]
      %v511 = vld [vmem:[%s239 + $0x7bc] sm:$0xff]
      %v512 = vld [vmem:[%s239 + $0x7c4] sm:$0xff]
      %v513 = vld [vmem:[%s239 + $0x7cc] sm:$0xf]
      %v514 = vld [vmem:[%s239 + $0x7d0] sm:$0xff]
      %v515 = vld [vmem:[%s239 + $0x7d8] sm:$0xff]
      %v516 = vld [vmem:[%s239 + $0x7e0] sm:$0xff]
      %v517 = vld [vmem:[%s239 + $0x7e8] sm:$0xff]
      %v518 = vld [vmem:[%s239 + $0x7f0] sm:$0xff]
      %v519 = vld [vmem:[%s239 + $0x7f8] sm:$0xff]
      %v520 = vld [vmem:[%s239 + $0x800] sm:$0xff]
      %v521 = vld [vmem:[%s239 + $0x808] sm:$0xff]
      %v522 = vld [vmem:[%s239 + $0x810] sm:$0xff]
      %v523 = vld [vmem:[%s239 + $0x818] sm:$0xff]
      %v524 = vld [vmem:[%s239 + $0x820] sm:$0xff]
      %v525 = vld [vmem:[%s239 + $0x828] sm:$0xff]
      %v526 = vld [vmem:[%s239 + $0x830] sm:$0xf]
      %v527 = vld [vmem:[%s239 + $0x834] sm:$0xff]
      %v528 = vld [vmem:[%s239 + $0x83c] sm:$0xff]
      %v529 = vld [vmem:[%s239 + $0x844] sm:$0xff]
      %v530 = vld [vmem:[%s239 + $0x84c] sm:$0xff]
      %v531 = vld [vmem:[%s239 + $0x854] sm:$0xff]
      %v532 = vld [vmem:[%s239 + $0x85c] sm:$0xff]
      %v533 = vld [vmem:[%s239 + $0x864] sm:$0xff]
      %v534 = vld [vmem:[%s239 + $0x86c] sm:$0xff]
      %v535 = vld [vmem:[%s239 + $0x874] sm:$0xff]
      %v536 = vld [vmem:[%s239 + $0x87c] sm:$0xff]
      %v537 = vld [vmem:[%s239 + $0x884] sm:$0xff]
      %v538 = vld [vmem:[%s239 + $0x88c] sm:$0xff]
      %v539 = vld [vmem:[%s239 + $0x894] sm:$0xf]
      %v540 = vld [vmem:[%s239 + $0x898] sm:$0xff]
      %v541 = vld [vmem:[%s239 + $0x8a0] sm:$0xff]
      %v542 = vld [vmem:[%s239 + $0x8a8] sm:$0xff]
      %v543 = vld [vmem:[%s239 + $0x8b0] sm:$0xff]
      %v544 = vld [vmem:[%s239 + $0x8b8] sm:$0xff]
      %v545 = vld [vmem:[%s239 + $0x8c0] sm:$0xff]
      %v546 = vld [vmem:[%s239 + $0x8c8] sm:$0xff]
      %v547 = vld [vmem:[%s239 + $0x8d0] sm:$0xff]
      %v548 = vld [vmem:[%s239 + $0x8d8] sm:$0xff]
      %v549 = vld [vmem:[%s239 + $0x8e0] sm:$0xff]
      %v550 = vld [vmem:[%s239 + $0x8e8] sm:$0xff]
      %v551 = vld [vmem:[%s239 + $0x8f0] sm:$0xff]
      %v552 = vld [vmem:[%s239 + $0x8f8] sm:$0xf]
      %v553 = vld [vmem:[%s239 + $0x8fc] sm:$0xff]
      %v554 = vld [vmem:[%s239 + $0x904] sm:$0xff]
      %v555 = vld [vmem:[%s239 + $0x90c] sm:$0xff]
      %v556 = vld [vmem:[%s239 + $0x914] sm:$0xff]
      %v557 = vld [vmem:[%s239 + $0x91c] sm:$0xff]
      %v558 = vld [vmem:[%s239 + $0x924] sm:$0xff]
      %v559 = vld [vmem:[%s239 + $0x92c] sm:$0xff]
      %v560 = vld [vmem:[%s239 + $0x934] sm:$0xff]
      %v561 = vld [vmem:[%s239 + $0x93c] sm:$0xff]
      %v562 = vld [vmem:[%s239 + $0x944] sm:$0xff]
      %v563 = vld [vmem:[%s239 + $0x94c] sm:$0xff]
      %v564 = vld [vmem:[%s239 + $0x954] sm:$0xff]
      %v565 = vld [vmem:[%s239 + $0x95c] sm:$0xf]
      %v566 = vld [vmem:[%s239 + $0x960] sm:$0xff]
      %v567 = vld [vmem:[%s239 + $0x968] sm:$0xff]
      %v568 = vld [vmem:[%s239 + $0x970] sm:$0xff]
      %v569 = vld [vmem:[%s239 + $0x978] sm:$0xff]
      %v570 = vld [vmem:[%s239 + $0x980] sm:$0xff]
      %v571 = vld [vmem:[%s239 + $0x988] sm:$0xff]
      %v572 = vld [vmem:[%s239 + $0x990] sm:$0xff]
      %v573 = vld [vmem:[%s239 + $0x998] sm:$0xff]
      %v574 = vld [vmem:[%s239 + $0x9a0] sm:$0xff]
      %v575 = vld [vmem:[%s239 + $0x9a8] sm:$0xff]
      %v576 = vld [vmem:[%s239 + $0x9b0] sm:$0xff]
      %v577 = vld [vmem:[%s239 + $0x9b8] sm:$0xff]
      %v578 = vld [vmem:[%s239 + $0x9c0] sm:$0xf]
      %v579 = vld [vmem:[%s239 + $0x9c4] sm:$0xff]
      %v580 = vld [vmem:[%s239 + $0x9cc] sm:$0xff]
      %v581 = vld [vmem:[%s239 + $0x9d4] sm:$0xff]
      %v582 = vld [vmem:[%s239 + $0x9dc] sm:$0xff]
      %v583 = vld [vmem:[%s239 + $0x9e4] sm:$0xff]
      %v584 = vld [vmem:[%s239 + $0x9ec] sm:$0xff]
      %v585 = vld [vmem:[%s239 + $0x9f4] sm:$0xff]
      %v586 = vld [vmem:[%s239 + $0x9fc] sm:$0xff]
      %v587 = vld [vmem:[%s239 + $0xa04] sm:$0xff]
      %v588 = vld [vmem:[%s239 + $0xa0c] sm:$0xff]
      %v589 = vld [vmem:[%s239 + $0xa14] sm:$0xff]
      %v590 = vld [vmem:[%s239 + $0xa1c] sm:$0xff]
      %v591 = vld [vmem:[%s239 + $0xa24] sm:$0xf]
      %v592 = vld [vmem:[%s239 + $0xa28] sm:$0xff]
      %v593 = vld [vmem:[%s239 + $0xa30] sm:$0xff]
      %v594 = vld [vmem:[%s239 + $0xa38] sm:$0xff]
      %v595 = vld [vmem:[%s239 + $0xa40] sm:$0xff]
      %v596 = vld [vmem:[%s239 + $0xa48] sm:$0xff]
      %v597 = vld [vmem:[%s239 + $0xa50] sm:$0xff]
      %v598 = vld [vmem:[%s239 + $0xa58] sm:$0xff]
      %v599 = vld [vmem:[%s239 + $0xa60] sm:$0xff]
      %v600 = vld [vmem:[%s239 + $0xa68] sm:$0xff]
      %v601 = vld [vmem:[%s239 + $0xa70] sm:$0xff]
      %v602 = vld [vmem:[%s239 + $0xa78] sm:$0xff]
      %v603 = vld [vmem:[%s239 + $0xa80] sm:$0xff]
      %v604 = vld [vmem:[%s239 + $0xa88] sm:$0xf]
      %v605 = vld [vmem:[%s239 + $0xa8c] sm:$0xff]
      %v606 = vld [vmem:[%s239 + $0xa94] sm:$0xff]
      %v607 = vld [vmem:[%s239 + $0xa9c] sm:$0xff]
      %v608 = vld [vmem:[%s239 + $0xaa4] sm:$0xff]
      %v609 = vld [vmem:[%s239 + $0xaac] sm:$0xff]
      %v610 = vld [vmem:[%s239 + $0xab4] sm:$0xff]
      %v611 = vld [vmem:[%s239 + $0xabc] sm:$0xff]
      %v612 = vld [vmem:[%s239 + $0xac4] sm:$0xff]
      %v613 = vld [vmem:[%s239 + $0xacc] sm:$0xff]
      %v614 = vld [vmem:[%s239 + $0xad4] sm:$0xff]
      %v615 = vld [vmem:[%s239 + $0xadc] sm:$0xff]
      %v616 = vld [vmem:[%s239 + $0xae4] sm:$0xff]
      %v617 = vld [vmem:[%s239 + $0xaec] sm:$0xf]
      %v618 = vld [vmem:[%s239 + $0xaf0] sm:$0xff]
      %v619 = vld [vmem:[%s239 + $0xaf8] sm:$0xff]
      %v620 = vld [vmem:[%s239 + $0xb00] sm:$0xff]
      %v621 = vld [vmem:[%s239 + $0xb08] sm:$0xff]
      %v622 = vld [vmem:[%s239 + $0xb10] sm:$0xff]
      %v623 = vld [vmem:[%s239 + $0xb18] sm:$0xff]
      %v624 = vld [vmem:[%s239 + $0xb20] sm:$0xff]
      %v625 = vld [vmem:[%s239 + $0xb28] sm:$0xff]
      %v626 = vld [vmem:[%s239 + $0xb30] sm:$0xff]
      %v627 = vld [vmem:[%s239 + $0xb38] sm:$0xff]
      %v628 = vld [vmem:[%s239 + $0xb40] sm:$0xff]
      %v629 = vld [vmem:[%s239 + $0xb48] sm:$0xff]
      %v630 = vld [vmem:[%s239 + $0xb50] sm:$0xf]
      %v631 = vld [vmem:[%s239 + $0xb54] sm:$0xff]
      %v632 = vld [vmem:[%s239 + $0xb5c] sm:$0xff]
      %v633 = vld [vmem:[%s239 + $0xb64] sm:$0xff]
      %v634 = vld [vmem:[%s239 + $0xb6c] sm:$0xff]
      %v635 = vld [vmem:[%s239 + $0xb74] sm:$0xff]
      %v636 = vld [vmem:[%s239 + $0xb7c] sm:$0xff]
      %v637 = vld [vmem:[%s239 + $0xb84] sm:$0xff]
      %v638 = vld [vmem:[%s239 + $0xb8c] sm:$0xff]
      %v639 = vld [vmem:[%s239 + $0xb94] sm:$0xff]
      %v640 = vld [vmem:[%s239 + $0xb9c] sm:$0xff]
      %v641 = vld [vmem:[%s239 + $0xba4] sm:$0xff]
      %v642 = vld [vmem:[%s239 + $0xbac] sm:$0xff]
      %v643 = vld [vmem:[%s239 + $0xbb4] sm:$0xf]
      %v644 = vld [vmem:[%s239 + $0xbb8] sm:$0xff]
      %v645 = vld [vmem:[%s239 + $0xbc0] sm:$0xff]
      %v646 = vld [vmem:[%s239 + $0xbc8] sm:$0xff]
      %v647 = vld [vmem:[%s239 + $0xbd0] sm:$0xff]
      %v648 = vld [vmem:[%s239 + $0xbd8] sm:$0xff]
      %v649 = vld [vmem:[%s239 + $0xbe0] sm:$0xff]
      %v650 = vld [vmem:[%s239 + $0xbe8] sm:$0xff]
      %v651 = vld [vmem:[%s239 + $0xbf0] sm:$0xff]
      %v652 = vld [vmem:[%s239 + $0xbf8] sm:$0xff]
      %v653 = vld [vmem:[%s239 + $0xc00] sm:$0xff]
      %v654 = vld [vmem:[%s239 + $0xc08] sm:$0xff]
      %v655 = vld [vmem:[%s239 + $0xc10] sm:$0xff]
      %v656 = vld [vmem:[%s239 + $0xc18] sm:$0xf]
      %v657 = vld [vmem:[%s239 + $0xc1c] sm:$0xff]
      %v658 = vld [vmem:[%s239 + $0xc24] sm:$0xff]
      %v659 = vld [vmem:[%s239 + $0xc2c] sm:$0xff]
      %v660 = vld [vmem:[%s239 + $0xc34] sm:$0xff]
      %v661 = vld [vmem:[%s239 + $0xc3c] sm:$0xff]
      %v662 = vld [vmem:[%s239 + $0xc44] sm:$0xff]
      %v663 = vld [vmem:[%s239 + $0xc4c] sm:$0xff]
      %v664 = vld [vmem:[%s239 + $0xc54] sm:$0xff]
      %v665 = vld [vmem:[%s239 + $0xc5c] sm:$0xff]
      %v666 = vld [vmem:[%s239 + $0xc64] sm:$0xff]
      %v667 = vld [vmem:[%s239 + $0xc6c] sm:$0xff]
      %v668 = vld [vmem:[%s239 + $0xc74] sm:$0xff]
      %v669 = vld [vmem:[%s239 + $0xc7c] sm:$0xf]
      %v670 = vld [vmem:[%s246] sm:$0xf]
      %v671 = vld [vmem:[%s246 + $0x4] sm:$0xf]
      %v672 = vld [vmem:[%s246 + $0x8] sm:$0xf]
      %v673 = vld [vmem:[%s246 + $0xc] sm:$0xf]
      %v674 = vld [vmem:[%s246 + $0x10] sm:$0xf]
      %v675 = vld [vmem:[%s246 + $0x14] sm:$0xf]
      %v676 = vld [vmem:[%s246 + $0x18] sm:$0xf]
      %v677 = vld [vmem:[%s246 + $0x1c] sm:$0xf]
      %v678 = vld [vmem:[%s246 + $0x20] sm:$0xf]
      %v679 = vld [vmem:[%s246 + $0x24] sm:$0xf]
      %v680 = vld [vmem:[%s246 + $0x28] sm:$0xf]
      %v681 = vld [vmem:[%s246 + $0x2c] sm:$0xf]
      %v682 = vld [vmem:[%s246 + $0x30] sm:$0xf]
      %v683 = vld [vmem:[%s246 + $0x34] sm:$0xf]
      %v684 = vld [vmem:[%s246 + $0x38] sm:$0xf]
      %v685 = vld [vmem:[%s246 + $0x3c] sm:$0xf]
      %v686 = vld [vmem:[%s246 + $0x40] sm:$0xf]
      %v687 = vld [vmem:[%s246 + $0x44] sm:$0xf]
      %v688 = vld [vmem:[%s246 + $0x48] sm:$0xf]
      %v689 = vld [vmem:[%s246 + $0x4c] sm:$0xf]
      %v690 = vld [vmem:[%s246 + $0x50] sm:$0xf]
      %v691 = vld [vmem:[%s246 + $0x54] sm:$0xf]
      %v692 = vld [vmem:[%s246 + $0x58] sm:$0xf]
      %v693 = vld [vmem:[%s246 + $0x5c] sm:$0xf]
      %v694 = vld [vmem:[%s246 + $0x60] sm:$0xf]
      %v695 = vld [vmem:[%s246 + $0x64] sm:$0xf]
      %v696 = vld [vmem:[%s246 + $0x68] sm:$0xf]
      %v697 = vld [vmem:[%s246 + $0x6c] sm:$0xf]
      %v698 = vld [vmem:[%s246 + $0x70] sm:$0xf]
      %v699 = vld [vmem:[%s246 + $0x74] sm:$0xf]
      %v700 = vld [vmem:[%s246 + $0x78] sm:$0xf]
      %v701 = vld [vmem:[%s246 + $0x7c] sm:$0xf]
      %v702 = vld [vmem:[%s246 + $0x80] sm:$0xf]
      %v703 = vld [vmem:[%s246 + $0x84] sm:$0xf]
      %v704 = vld [vmem:[%s246 + $0x88] sm:$0xf]
      %v705 = vld [vmem:[%s246 + $0x8c] sm:$0xf]
      %v706 = vld [vmem:[%s246 + $0x90] sm:$0xf]
      %v707 = vld [vmem:[%s246 + $0x94] sm:$0xf]
      %v708 = vld [vmem:[%s246 + $0x98] sm:$0xf]
      %v709 = vld [vmem:[%s246 + $0x9c] sm:$0xf]
      %v710 = vld [vmem:[%s246 + $0xa0] sm:$0xf]
      %v711 = vld [vmem:[%s246 + $0xa4] sm:$0xf]
      %v712 = vld [vmem:[%s246 + $0xa8] sm:$0xf]
      %v713 = vld [vmem:[%s246 + $0xac] sm:$0xf]
      %v714 = vld [vmem:[%s246 + $0xb0] sm:$0xf]
      %v715 = vld [vmem:[%s246 + $0xb4] sm:$0xf]
      %v716 = vld [vmem:[%s246 + $0xb8] sm:$0xf]
      %v717 = vld [vmem:[%s246 + $0xbc] sm:$0xf]
      %v718 = vld [vmem:[%s246 + $0xc0] sm:$0xf]
      %v719 = vld [vmem:[%s246 + $0xc4] sm:$0xf]
      %v720 = vld [vmem:[%s246 + $0xc8] sm:$0xf]
      %v721 = vld [vmem:[%s246 + $0xcc] sm:$0xf]
      %v722 = vld [vmem:[%s246 + $0xd0] sm:$0xf]
      %v723 = vld [vmem:[%s246 + $0xd4] sm:$0xf]
      %v724 = vld [vmem:[%s246 + $0xd8] sm:$0xf]
      %v725 = vld [vmem:[%s246 + $0xdc] sm:$0xf]
      %v726 = vld [vmem:[%s246 + $0xe0] sm:$0xf]
      %v727 = vld [vmem:[%s246 + $0xe4] sm:$0xf]
      %v728 = vld [vmem:[%s246 + $0xe8] sm:$0xf]
      %v729 = vld [vmem:[%s246 + $0xec] sm:$0xf]
      %v730 = vld [vmem:[%s246 + $0xf0] sm:$0xf]
      %v731 = vld [vmem:[%s246 + $0xf4] sm:$0xf]
      %v732 = vld [vmem:[%s246 + $0xf8] sm:$0xf]
      %v733 = vld [vmem:[%s246 + $0xfc] sm:$0xf]
      %v734 = vld [vmem:[%s246 + $0x100] sm:$0xf]
      %v735 = vld [vmem:[%s246 + $0x104] sm:$0xf]
      %v736 = vld [vmem:[%s246 + $0x108] sm:$0xf]
      %v737 = vld [vmem:[%s246 + $0x10c] sm:$0xf]
      %v738 = vld [vmem:[%s246 + $0x110] sm:$0xf]
      %v739 = vld [vmem:[%s246 + $0x114] sm:$0xf]
      %v740 = vld [vmem:[%s246 + $0x118] sm:$0xf]
      %v741 = vld [vmem:[%s246 + $0x11c] sm:$0xf]
      %v742 = vld [vmem:[%s246 + $0x120] sm:$0xf]
      %v743 = vld [vmem:[%s246 + $0x124] sm:$0xf]
      %v744 = vld [vmem:[%s246 + $0x128] sm:$0xf]
      %v745 = vld [vmem:[%s246 + $0x12c] sm:$0xf]
      %v746 = vld [vmem:[%s246 + $0x130] sm:$0xf]
      %v747 = vld [vmem:[%s246 + $0x134] sm:$0xf]
      %v748 = vld [vmem:[%s246 + $0x138] sm:$0xf]
      %v749 = vld [vmem:[%s246 + $0x13c] sm:$0xf]
      %v750 = vld [vmem:[%s246 + $0x140] sm:$0xf]
      %v751 = vld [vmem:[%s246 + $0x144] sm:$0xf]
      %v752 = vld [vmem:[%s246 + $0x148] sm:$0xf]
      %v753 = vld [vmem:[%s246 + $0x14c] sm:$0xf]
      %v754 = vld [vmem:[%s246 + $0x150] sm:$0xf]
      %v755 = vld [vmem:[%s246 + $0x154] sm:$0xf]
      %v756 = vld [vmem:[%s246 + $0x158] sm:$0xf]
      %v757 = vld [vmem:[%s246 + $0x15c] sm:$0xf]
      %v758 = vld [vmem:[%s246 + $0x160] sm:$0xf]
      %v759 = vld [vmem:[%s246 + $0x164] sm:$0xf]
      %v760 = vld [vmem:[%s246 + $0x168] sm:$0xf]
      %v761 = vld [vmem:[%s246 + $0x16c] sm:$0xf]
      %v762 = vld [vmem:[%s246 + $0x170] sm:$0xf]
      %v763 = vld [vmem:[%s246 + $0x174] sm:$0xf]
      %v764 = vld [vmem:[%s246 + $0x178] sm:$0xf]
      %v765 = vld [vmem:[%s246 + $0x17c] sm:$0xf]
      %v766 = vld [vmem:[%s246 + $0x180] sm:$0xf]
      %v767 = vld [vmem:[%s246 + $0x184] sm:$0xf]
      %v768 = vld [vmem:[%s246 + $0x188] sm:$0xf]
      %v769 = vld [vmem:[%s246 + $0x18c] sm:$0xf]
      %v770 = vld [vmem:[%s246 + $0x190] sm:$0xf]
      %v771 = vld [vmem:[%s246 + $0x194] sm:$0xf]
      %v772 = vld [vmem:[%s246 + $0x198] sm:$0xf]
      %v773 = vld [vmem:[%s246 + $0x19c] sm:$0xf]
      %v774 = vld [vmem:[%s246 + $0x1a0] sm:$0xf]
      %v775 = vld [vmem:[%s246 + $0x1a4] sm:$0xf]
      %v776 = vld [vmem:[%s246 + $0x1a8] sm:$0xf]
      %v777 = vld [vmem:[%s246 + $0x1ac] sm:$0xf]
      %v778 = vld [vmem:[%s246 + $0x1b0] sm:$0xf]
      %v779 = vld [vmem:[%s246 + $0x1b4] sm:$0xf]
      %v780 = vld [vmem:[%s246 + $0x1b8] sm:$0xf]
      %v781 = vld [vmem:[%s246 + $0x1bc] sm:$0xf]
      %v782 = vld [vmem:[%s246 + $0x1c0] sm:$0xf]
      %v783 = vld [vmem:[%s246 + $0x1c4] sm:$0xf]
      %v784 = vld [vmem:[%s246 + $0x1c8] sm:$0xf]
      %v785 = vld [vmem:[%s246 + $0x1cc] sm:$0xf]
      %v786 = vld [vmem:[%s246 + $0x1d0] sm:$0xf]
      %v787 = vld [vmem:[%s246 + $0x1d4] sm:$0xf]
      %v788 = vld [vmem:[%s246 + $0x1d8] sm:$0xf]
      %v789 = vld [vmem:[%s246 + $0x1dc] sm:$0xf]
      %v790 = vld [vmem:[%s246 + $0x1e0] sm:$0xf]
      %v791 = vld [vmem:[%s246 + $0x1e4] sm:$0xf]
      %v792 = vld [vmem:[%s246 + $0x1e8] sm:$0xf]
      %v793 = vld [vmem:[%s246 + $0x1ec] sm:$0xf]
      %v794 = vld [vmem:[%s246 + $0x1f0] sm:$0xf]
      %v795 = vld [vmem:[%s246 + $0x1f4] sm:$0xf]
      %v796 = vld [vmem:[%s246 + $0x1f8] sm:$0xf]
      %v797 = vld [vmem:[%s246 + $0x1fc] sm:$0xf]
      %v798 = vld [vmem:[%s246 + $0x200] sm:$0xf]
      %v799 = vld [vmem:[%s246 + $0x204] sm:$0xf]
      %v800 = vld [vmem:[%s246 + $0x208] sm:$0xf]
      %v801 = vld [vmem:[%s246 + $0x20c] sm:$0xf]
      %v802 = vld [vmem:[%s246 + $0x210] sm:$0xf]
      %v803 = vld [vmem:[%s246 + $0x214] sm:$0xf]
      %v804 = vld [vmem:[%s246 + $0x218] sm:$0xf]
      %v805 = vld [vmem:[%s246 + $0x21c] sm:$0xf]
      %v806 = vld [vmem:[%s246 + $0x220] sm:$0xf]
      %v807 = vld [vmem:[%s246 + $0x224] sm:$0xf]
      %v808 = vld [vmem:[%s246 + $0x228] sm:$0xf]
      %v809 = vld [vmem:[%s246 + $0x22c] sm:$0xf]
      %v810 = vld [vmem:[%s246 + $0x230] sm:$0xf]
      %v811 = vld [vmem:[%s246 + $0x234] sm:$0xf]
      %v812 = vld [vmem:[%s246 + $0x238] sm:$0xf]
      %v813 = vld [vmem:[%s246 + $0x23c] sm:$0xf]
      %v814 = vld [vmem:[%s246 + $0x240] sm:$0xf]
      %v815 = vld [vmem:[%s246 + $0x244] sm:$0xf]
      %v816 = vld [vmem:[%s246 + $0x248] sm:$0xf]
      %v817 = vld [vmem:[%s246 + $0x24c] sm:$0xf]
      %v818 = vld [vmem:[%s246 + $0x250] sm:$0xf]
      %v819 = vld [vmem:[%s246 + $0x254] sm:$0xf]
      %v820 = vld [vmem:[%s246 + $0x258] sm:$0xf]
      %v821 = vld [vmem:[%s246 + $0x25c] sm:$0xf]
      %v822 = vld [vmem:[%s246 + $0x260] sm:$0xf]
      %v823 = vld [vmem:[%s246 + $0x264] sm:$0xf]
      %v824 = vld [vmem:[%s246 + $0x268] sm:$0xf]
      %v825 = vld [vmem:[%s246 + $0x26c] sm:$0xf]
      %v826 = vld [vmem:[%s246 + $0x270] sm:$0xf]
      %v827 = vld [vmem:[%s246 + $0x274] sm:$0xf]
      %v828 = vld [vmem:[%s246 + $0x278] sm:$0xf]
      %v829 = vld [vmem:[%s246 + $0x27c] sm:$0xf]
      %v830 = vld [vmem:[%s246 + $0x280] sm:$0xf]
      %v831 = vld [vmem:[%s246 + $0x284] sm:$0xf]
      %v832 = vld [vmem:[%s246 + $0x288] sm:$0xf]
      %v833 = vld [vmem:[%s246 + $0x28c] sm:$0xf]
      %v834 = vld [vmem:[%s246 + $0x290] sm:$0xf]
      %v835 = vld [vmem:[%s246 + $0x294] sm:$0xf]
      %v836 = vld [vmem:[%s246 + $0x298] sm:$0xf]
      %v837 = vld [vmem:[%s246 + $0x29c] sm:$0xf]
      %v838 = vld [vmem:[%s246 + $0x2a0] sm:$0xf]
      %v839 = vld [vmem:[%s246 + $0x2a4] sm:$0xf]
      %v840 = vld [vmem:[%s246 + $0x2a8] sm:$0xf]
      %v841 = vld [vmem:[%s246 + $0x2ac] sm:$0xf]
      %v842 = vld [vmem:[%s246 + $0x2b0] sm:$0xf]
      %v843 = vld [vmem:[%s246 + $0x2b4] sm:$0xf]
      %v844 = vld [vmem:[%s246 + $0x2b8] sm:$0xf]
      %v845 = vld [vmem:[%s246 + $0x2bc] sm:$0xf]
      %v846 = vld [vmem:[%s246 + $0x2c0] sm:$0xf]
      %v847 = vld [vmem:[%s246 + $0x2c4] sm:$0xf]
      %v848 = vld [vmem:[%s246 + $0x2c8] sm:$0xf]
      %v849 = vld [vmem:[%s246 + $0x2cc] sm:$0xf]
      %v850 = vld [vmem:[%s246 + $0x2d0] sm:$0xf]
      %v851 = vld [vmem:[%s246 + $0x2d4] sm:$0xf]
      %v852 = vld [vmem:[%s246 + $0x2d8] sm:$0xf]
      %v853 = vld [vmem:[%s246 + $0x2dc] sm:$0xf]
      %v854 = vld [vmem:[%s246 + $0x2e0] sm:$0xf]
      %v855 = vld [vmem:[%s246 + $0x2e4] sm:$0xf]
      %v856 = vld [vmem:[%s246 + $0x2e8] sm:$0xf]
      %v857 = vld [vmem:[%s246 + $0x2ec] sm:$0xf]
      %v858 = vld [vmem:[%s246 + $0x2f0] sm:$0xf]
      %v859 = vld [vmem:[%s246 + $0x2f4] sm:$0xf]
      %v860 = vld [vmem:[%s246 + $0x2f8] sm:$0xf]
      %v861 = vld [vmem:[%s246 + $0x2fc] sm:$0xf]
      %v862 = vld [vmem:[%s246 + $0x300] sm:$0xf]
      %v863 = vld [vmem:[%s246 + $0x304] sm:$0xf]
      %v864 = vld [vmem:[%s246 + $0x308] sm:$0xf]
      %v865 = vld [vmem:[%s246 + $0x30c] sm:$0xf]
      %v866 = vld [vmem:[%s246 + $0x310] sm:$0xf]
      %v867 = vld [vmem:[%s246 + $0x314] sm:$0xf]
      %v868 = vld [vmem:[%s246 + $0x318] sm:$0xf]
      %v869 = vld [vmem:[%s246 + $0x31c] sm:$0xf]
      %v870 = vld [vmem:[%s246 + $0x320] sm:$0xf]
      %v871 = vld [vmem:[%s246 + $0x324] sm:$0xf]
      %v872 = vld [vmem:[%s246 + $0x328] sm:$0xf]
      %v873 = vld [vmem:[%s246 + $0x32c] sm:$0xf]
      %v874 = vld [vmem:[%s246 + $0x330] sm:$0xf]
      %v875 = vld [vmem:[%s246 + $0x334] sm:$0xf]
      %v876 = vld [vmem:[%s246 + $0x338] sm:$0xf]
      %v877 = vld [vmem:[%s246 + $0x33c] sm:$0xf]
      %v878 = vld [vmem:[%s246 + $0x340] sm:$0xf]
      %v879 = vld [vmem:[%s246 + $0x344] sm:$0xf]
      %v880 = vld [vmem:[%s246 + $0x348] sm:$0xf]
      %v881 = vld [vmem:[%s246 + $0x34c] sm:$0xf]
      %v882 = vld [vmem:[%s246 + $0x350] sm:$0xf]
      %v883 = vld [vmem:[%s246 + $0x354] sm:$0xf]
      %v884 = vld [vmem:[%s246 + $0x358] sm:$0xf]
      %v885 = vld [vmem:[%s246 + $0x35c] sm:$0xf]
      %v886 = vld [vmem:[%s246 + $0x360] sm:$0xf]
      %v887 = vld [vmem:[%s246 + $0x364] sm:$0xf]
      %v888 = vld [vmem:[%s246 + $0x368] sm:$0xf]
      %v889 = vld [vmem:[%s246 + $0x36c] sm:$0xf]
      %v890 = vld [vmem:[%s246 + $0x370] sm:$0xf]
      %v891 = vld [vmem:[%s246 + $0x374] sm:$0xf]
      %v892 = vld [vmem:[%s246 + $0x378] sm:$0xf]
      %v893 = vld [vmem:[%s246 + $0x37c] sm:$0xf]
      %v894 = vld [vmem:[%s246 + $0x380] sm:$0xf]
      %v895 = vld [vmem:[%s246 + $0x384] sm:$0xf]
      %v896 = vld [vmem:[%s246 + $0x388] sm:$0xf]
      %v897 = vld [vmem:[%s246 + $0x38c] sm:$0xf]
      %v898 = vld [vmem:[%s246 + $0x390] sm:$0xf]
      %v899 = vld [vmem:[%s246 + $0x394] sm:$0xf]
      %v900 = vld [vmem:[%s246 + $0x398] sm:$0xf]
      %v901 = vld [vmem:[%s246 + $0x39c] sm:$0xf]
      %v902 = vld [vmem:[%s246 + $0x3a0] sm:$0xf]
      %v903 = vld [vmem:[%s246 + $0x3a4] sm:$0xf]
      %v904 = vld [vmem:[%s246 + $0x3a8] sm:$0xf]
      %v905 = vld [vmem:[%s246 + $0x3ac] sm:$0xf]
      %v906 = vld [vmem:[%s246 + $0x3b0] sm:$0xf]
      %v907 = vld [vmem:[%s246 + $0x3b4] sm:$0xf]
      %v908 = vld [vmem:[%s246 + $0x3b8] sm:$0xf]
      %v909 = vld [vmem:[%s246 + $0x3bc] sm:$0xf]
      %v910 = vld [vmem:[%s246 + $0x3c0] sm:$0xf]
      %v911 = vld [vmem:[%s246 + $0x3c4] sm:$0xf]
      %v912 = vld [vmem:[%s246 + $0x3c8] sm:$0xf]
      %v913 = vld [vmem:[%s246 + $0x3cc] sm:$0xf]
      %v914 = vld [vmem:[%s246 + $0x3d0] sm:$0xf]
      %v915 = vld [vmem:[%s246 + $0x3d4] sm:$0xf]
      %v916 = vld [vmem:[%s246 + $0x3d8] sm:$0xf]
      %v917 = vld [vmem:[%s246 + $0x3dc] sm:$0xf]
      %v918 = vld [vmem:[%s246 + $0x3e0] sm:$0xf]
      %v919 = vld [vmem:[%s246 + $0x3e4] sm:$0xf]
      %v920 = vld [vmem:[%s246 + $0x3e8] sm:$0xf]
      %v921 = vld [vmem:[%s246 + $0x3ec] sm:$0xf]
      %v922 = vld [vmem:[%s246 + $0x3f0] sm:$0xf]
      %v923 = vld [vmem:[%s246 + $0x3f4] sm:$0xf]
      %v924 = vld [vmem:[%s246 + $0x3f8] sm:$0xf]
      %v925 = vld [vmem:[%s246 + $0x3fc] sm:$0xf]
      %v926 = vld [vmem:[%s246 + $0x400] sm:$0xf]
      %v927 = vld [vmem:[%s246 + $0x404] sm:$0xf]
      %v928 = vld [vmem:[%s246 + $0x408] sm:$0xf]
      %v929 = vld [vmem:[%s246 + $0x40c] sm:$0xf]
      %v930 = vld [vmem:[%s246 + $0x410] sm:$0xf]
      %v931 = vld [vmem:[%s246 + $0x414] sm:$0xf]
      %v932 = vld [vmem:[%s246 + $0x418] sm:$0xf]
      %v933 = vld [vmem:[%s246 + $0x41c] sm:$0xf]
      %v934 = vld [vmem:[%s246 + $0x420] sm:$0xf]
      %v935 = vld [vmem:[%s246 + $0x424] sm:$0xf]
      %v936 = vld [vmem:[%s246 + $0x428] sm:$0xf]
      %v937 = vld [vmem:[%s246 + $0x42c] sm:$0xf]
      %v938 = vld [vmem:[%s246 + $0x430] sm:$0xf]
      %v939 = vld [vmem:[%s246 + $0x434] sm:$0xf]
      %v940 = vld [vmem:[%s246 + $0x438] sm:$0xf]
      %v941 = vld [vmem:[%s246 + $0x43c] sm:$0xf]
      %v942 = vld [vmem:[%s246 + $0x440] sm:$0xf]
      %v943 = vld [vmem:[%s246 + $0x444] sm:$0xf]
      %v944 = vld [vmem:[%s246 + $0x448] sm:$0xf]
      %v945 = vld [vmem:[%s246 + $0x44c] sm:$0xf]
      %v946 = vld [vmem:[%s246 + $0x450] sm:$0xf]
      %v947 = vld [vmem:[%s246 + $0x454] sm:$0xf]
      %v948 = vld [vmem:[%s246 + $0x458] sm:$0xf]
      %v949 = vld [vmem:[%s246 + $0x45c] sm:$0xf]
      %v950 = vld [vmem:[%s246 + $0x460] sm:$0xf]
      %v951 = vld [vmem:[%s246 + $0x464] sm:$0xf]
      %v952 = vld [vmem:[%s246 + $0x468] sm:$0xf]
      %v953 = vld [vmem:[%s246 + $0x46c] sm:$0xf]
      %v954 = vld [vmem:[%s246 + $0x470] sm:$0xf]
      %v955 = vld [vmem:[%s246 + $0x474] sm:$0xf]
      %v956 = vld [vmem:[%s246 + $0x478] sm:$0xf]
      %v957 = vld [vmem:[%s246 + $0x47c] sm:$0xf]
      %v958 = vld [vmem:[%s246 + $0x480] sm:$0xf]
      %v959 = vld [vmem:[%s246 + $0x484] sm:$0xf]
      %v960 = vld [vmem:[%s246 + $0x488] sm:$0xf]
      %v961 = vld [vmem:[%s246 + $0x48c] sm:$0xf]
      %v962 = vld [vmem:[%s246 + $0x490] sm:$0xf]
      %v963 = vld [vmem:[%s246 + $0x494] sm:$0xf]
      %v964 = vld [vmem:[%s246 + $0x498] sm:$0xf]
      %v965 = vld [vmem:[%s246 + $0x49c] sm:$0xf]
      %v966 = vld [vmem:[%s246 + $0x4a0] sm:$0xf]
      %v967 = vld [vmem:[%s246 + $0x4a4] sm:$0xf]
      %v968 = vld [vmem:[%s246 + $0x4a8] sm:$0xf]
      %v969 = vld [vmem:[%s246 + $0x4ac] sm:$0xf]
      %v970 = vld [vmem:[%s246 + $0x4b0] sm:$0xf]
      %v971 = vld [vmem:[%s246 + $0x4b4] sm:$0xf]
      %v972 = vld [vmem:[%s246 + $0x4b8] sm:$0xf]
      %v973 = vld [vmem:[%s246 + $0x4bc] sm:$0xf]
      %v974 = vld [vmem:[%s246 + $0x4c0] sm:$0xf]
      %v975 = vld [vmem:[%s246 + $0x4c4] sm:$0xf]
      %v976 = vld [vmem:[%s246 + $0x4c8] sm:$0xf]
      %v977 = vld [vmem:[%s246 + $0x4cc] sm:$0xf]
      %v978 = vld [vmem:[%s246 + $0x4d0] sm:$0xf]
      %v979 = vld [vmem:[%s246 + $0x4d4] sm:$0xf]
      %v980 = vld [vmem:[%s246 + $0x4d8] sm:$0xf]
      %v981 = vld [vmem:[%s246 + $0x4dc] sm:$0xf]
      %v982 = vld [vmem:[%s246 + $0x4e0] sm:$0xf]
      %v983 = vld [vmem:[%s246 + $0x4e4] sm:$0xf]
      %v984 = vld [vmem:[%s246 + $0x4e8] sm:$0xf]
      %v985 = vld [vmem:[%s246 + $0x4ec] sm:$0xf]
      %v986 = vld [vmem:[%s246 + $0x4f0] sm:$0xf]
      %v987 = vld [vmem:[%s246 + $0x4f4] sm:$0xf]
      %v988 = vld [vmem:[%s246 + $0x4f8] sm:$0xf]
      %v989 = vld [vmem:[%s246 + $0x4fc] sm:$0xf]
      %v990 = vld [vmem:[%s246 + $0x500] sm:$0xf]
      %v991 = vld [vmem:[%s246 + $0x504] sm:$0xf]
      %v992 = vld [vmem:[%s246 + $0x508] sm:$0xf]
      %v993 = vld [vmem:[%s246 + $0x50c] sm:$0xf]
      %v994 = vld [vmem:[%s246 + $0x510] sm:$0xf]
      %v995 = vld [vmem:[%s246 + $0x514] sm:$0xf]
      %v996 = vld [vmem:[%s246 + $0x518] sm:$0xf]
      %v997 = vld [vmem:[%s246 + $0x51c] sm:$0xf]
      %v998 = vld [vmem:[%s246 + $0x520] sm:$0xf]
      %v999 = vld [vmem:[%s246 + $0x524] sm:$0xf]
      %v1000 = vld [vmem:[%s246 + $0x528] sm:$0xf]
      %v1001 = vld [vmem:[%s246 + $0x52c] sm:$0xf]
      %v1002 = vld [vmem:[%s246 + $0x530] sm:$0xf]
      %v1003 = vld [vmem:[%s246 + $0x534] sm:$0xf]
      %v1004 = vld [vmem:[%s246 + $0x538] sm:$0xf]
      %v1005 = vld [vmem:[%s246 + $0x53c] sm:$0xf]
      %v1006 = vld [vmem:[%s246 + $0x540] sm:$0xf]
      %v1007 = vld [vmem:[%s246 + $0x544] sm:$0xf]
      %v1008 = vld [vmem:[%s246 + $0x548] sm:$0xf]
      %v1009 = vld [vmem:[%s246 + $0x54c] sm:$0xf]
      %v1010 = vld [vmem:[%s246 + $0x550] sm:$0xf]
      %v1011 = vld [vmem:[%s246 + $0x554] sm:$0xf]
      %v1012 = vld [vmem:[%s246 + $0x558] sm:$0xf]
      %v1013 = vld [vmem:[%s246 + $0x55c] sm:$0xf]
      %v1014 = vld [vmem:[%s246 + $0x560] sm:$0xf]
      %v1015 = vld [vmem:[%s246 + $0x564] sm:$0xf]
      %v1016 = vld [vmem:[%s246 + $0x568] sm:$0xf]
      %v1017 = vld [vmem:[%s246 + $0x56c] sm:$0xf]
      %v1018 = vld [vmem:[%s246 + $0x570] sm:$0xf]
      %v1019 = vld [vmem:[%s246 + $0x574] sm:$0xf]
      %v1020 = vld [vmem:[%s246 + $0x578] sm:$0xf]
      %v1021 = vld [vmem:[%s246 + $0x57c] sm:$0xf]
      %v1022 = vld [vmem:[%s246 + $0x580] sm:$0xf]
      %v1023 = vld [vmem:[%s246 + $0x584] sm:$0xf]
      %v1024 = vld [vmem:[%s246 + $0x588] sm:$0xf]
      %v1025 = vld [vmem:[%s246 + $0x58c] sm:$0xf]
      %v1026 = vld [vmem:[%s246 + $0x590] sm:$0xf]
      %v1027 = vld [vmem:[%s246 + $0x594] sm:$0xf]
      %v1028 = vld [vmem:[%s246 + $0x598] sm:$0xf]
      %v1029 = vld [vmem:[%s246 + $0x59c] sm:$0xf]
      %v1030 = vld [vmem:[%s246 + $0x5a0] sm:$0xf]
      %v1031 = vld [vmem:[%s246 + $0x5a4] sm:$0xf]
      %v1032 = vld [vmem:[%s246 + $0x5a8] sm:$0xf]
      %v1033 = vld [vmem:[%s246 + $0x5ac] sm:$0xf]
      %v1034 = vld [vmem:[%s246 + $0x5b0] sm:$0xf]
      %v1035 = vld [vmem:[%s246 + $0x5b4] sm:$0xf]
      %v1036 = vld [vmem:[%s246 + $0x5b8] sm:$0xf]
      %v1037 = vld [vmem:[%s246 + $0x5bc] sm:$0xf]
      %v1038 = vld [vmem:[%s246 + $0x5c0] sm:$0xf]
      %v1039 = vld [vmem:[%s246 + $0x5c4] sm:$0xf]
      %v1040 = vld [vmem:[%s246 + $0x5c8] sm:$0xf]
      %v1041 = vld [vmem:[%s246 + $0x5cc] sm:$0xf]
      %v1042 = vld [vmem:[%s246 + $0x5d0] sm:$0xf]
      %v1043 = vld [vmem:[%s246 + $0x5d4] sm:$0xf]
      %v1044 = vld [vmem:[%s246 + $0x5d8] sm:$0xf]
      %v1045 = vld [vmem:[%s246 + $0x5dc] sm:$0xf]
      %v1046 = vld [vmem:[%s246 + $0x5e0] sm:$0xf]
      %v1047 = vld [vmem:[%s246 + $0x5e4] sm:$0xf]
      %v1048 = vld [vmem:[%s246 + $0x5e8] sm:$0xf]
      %v1049 = vld [vmem:[%s246 + $0x5ec] sm:$0xf]
      %v1050 = vld [vmem:[%s246 + $0x5f0] sm:$0xf]
      %v1051 = vld [vmem:[%s246 + $0x5f4] sm:$0xf]
      %v1052 = vld [vmem:[%s246 + $0x5f8] sm:$0xf]
      %v1053 = vld [vmem:[%s246 + $0x5fc] sm:$0xf]
      %v1054 = vld [vmem:[%s246 + $0x600] sm:$0xf]
      %v1055 = vld [vmem:[%s246 + $0x604] sm:$0xf]
      %v1056 = vld [vmem:[%s246 + $0x608] sm:$0xf]
      %v1057 = vld [vmem:[%s246 + $0x60c] sm:$0xf]
      %v1058 = vld [vmem:[%s246 + $0x610] sm:$0xf]
      %v1059 = vld [vmem:[%s246 + $0x614] sm:$0xf]
      %v1060 = vld [vmem:[%s246 + $0x618] sm:$0xf]
      %v1061 = vld [vmem:[%s246 + $0x61c] sm:$0xf]
      %v1062 = vld [vmem:[%s246 + $0x620] sm:$0xf]
      %v1063 = vld [vmem:[%s246 + $0x624] sm:$0xf]
      %v1064 = vld [vmem:[%s246 + $0x628] sm:$0xf]
      %v1065 = vld [vmem:[%s246 + $0x62c] sm:$0xf]
      %v1066 = vld [vmem:[%s246 + $0x630] sm:$0xf]
      %v1067 = vld [vmem:[%s246 + $0x634] sm:$0xf]
      %v1068 = vld [vmem:[%s246 + $0x638] sm:$0xf]
      %v1069 = vld [vmem:[%s246 + $0x63c] sm:$0xf]
      %v1486 = vunpack.c.l.b16 %v254
      %v1487 = vunpack.c.h.b16 %v254
      %v1488 = vunpack.c.l.b16 %v255
      %v1489 = vunpack.c.h.b16 %v255
      %v1490 = vunpack.c.l.b16 %v256
      %v1491 = vunpack.c.h.b16 %v256
      %v1492 = vunpack.c.l.b16 %v257
      %v1493 = vunpack.c.h.b16 %v257
      %v1494 = vunpack.c.l.b16 %v258
      %v1495 = vunpack.c.h.b16 %v258
      %v1496 = vunpack.c.l.b16 %v259
      %v1497 = vunpack.c.h.b16 %v259
      %v1498 = vunpack.c.l.b16 %v260
      %v1499 = vunpack.c.h.b16 %v260
      %v1500 = vunpack.c.l.b16 %v261
      %v1501 = vunpack.c.h.b16 %v261
      %v1502 = vunpack.c.l.b16 %v262
      %v1503 = vunpack.c.h.b16 %v262
      %v1504 = vunpack.c.l.b16 %v263
      %v1505 = vunpack.c.h.b16 %v263
      %v1506 = vunpack.c.l.b16 %v264
      %v1507 = vunpack.c.h.b16 %v264
      %v1508 = vunpack.c.l.b16 %v265
      %v1509 = vunpack.c.h.b16 %v265
      %v1510 = vunpack.c.l.b16 %v266
      %v1511 = vunpack.c.l.b16 %v267
      %v1512 = vunpack.c.h.b16 %v267
      %v1513 = vunpack.c.l.b16 %v268
      %v1514 = vunpack.c.h.b16 %v268
      %v1515 = vunpack.c.l.b16 %v269
      %v1516 = vunpack.c.h.b16 %v269
      %v1517 = vunpack.c.l.b16 %v270
      %v1518 = vunpack.c.h.b16 %v270
      %v1519 = vunpack.c.l.b16 %v271
      %v1520 = vunpack.c.h.b16 %v271
      %v1521 = vunpack.c.l.b16 %v272
      %v1522 = vunpack.c.h.b16 %v272
      %v1523 = vunpack.c.l.b16 %v273
      %v1524 = vunpack.c.h.b16 %v273
      %v1525 = vunpack.c.l.b16 %v274
      %v1526 = vunpack.c.h.b16 %v274
      %v1527 = vunpack.c.l.b16 %v275
      %v1528 = vunpack.c.h.b16 %v275
      %v1529 = vunpack.c.l.b16 %v276
      %v1530 = vunpack.c.h.b16 %v276
      %v1531 = vunpack.c.l.b16 %v277
      %v1532 = vunpack.c.h.b16 %v277
      %v1533 = vunpack.c.l.b16 %v278
      %v1534 = vunpack.c.h.b16 %v278
      %v1535 = vunpack.c.l.b16 %v279
      %v1536 = vunpack.c.l.b16 %v280
      %v1537 = vunpack.c.h.b16 %v280
      %v1538 = vunpack.c.l.b16 %v281
      %v1539 = vunpack.c.h.b16 %v281
      %v1540 = vunpack.c.l.b16 %v282
      %v1541 = vunpack.c.h.b16 %v282
      %v1542 = vunpack.c.l.b16 %v283
      %v1543 = vunpack.c.h.b16 %v283
      %v1544 = vunpack.c.l.b16 %v284
      %v1545 = vunpack.c.h.b16 %v284
      %v1546 = vunpack.c.l.b16 %v285
      %v1547 = vunpack.c.h.b16 %v285
      %v1548 = vunpack.c.l.b16 %v286
      %v1549 = vunpack.c.h.b16 %v286
      %v1550 = vunpack.c.l.b16 %v287
      %v1551 = vunpack.c.h.b16 %v287
      %v1552 = vunpack.c.l.b16 %v288
      %v1553 = vunpack.c.h.b16 %v288
      %v1554 = vunpack.c.l.b16 %v289
      %v1555 = vunpack.c.h.b16 %v289
      %v1556 = vunpack.c.l.b16 %v290
      %v1557 = vunpack.c.h.b16 %v290
      %v1558 = vunpack.c.l.b16 %v291
      %v1559 = vunpack.c.h.b16 %v291
      %v1560 = vunpack.c.l.b16 %v292
      %v1561 = vunpack.c.l.b16 %v293
      %v1562 = vunpack.c.h.b16 %v293
      %v1563 = vunpack.c.l.b16 %v294
      %v1564 = vunpack.c.h.b16 %v294
      %v1565 = vunpack.c.l.b16 %v295
      %v1566 = vunpack.c.h.b16 %v295
      %v1567 = vunpack.c.l.b16 %v296
      %v1568 = vunpack.c.h.b16 %v296
      %v1569 = vunpack.c.l.b16 %v297
      %v1570 = vunpack.c.h.b16 %v297
      %v1571 = vunpack.c.l.b16 %v298
      %v1572 = vunpack.c.h.b16 %v298
      %v1573 = vunpack.c.l.b16 %v299
      %v1574 = vunpack.c.h.b16 %v299
      %v1575 = vunpack.c.l.b16 %v300
      %v1576 = vunpack.c.h.b16 %v300
      %v1577 = vunpack.c.l.b16 %v301
      %v1578 = vunpack.c.h.b16 %v301
      %v1579 = vunpack.c.l.b16 %v302
      %v1580 = vunpack.c.h.b16 %v302
      %v1581 = vunpack.c.l.b16 %v303
      %v1582 = vunpack.c.h.b16 %v303
      %v1583 = vunpack.c.l.b16 %v304
      %v1584 = vunpack.c.h.b16 %v304
      %v1585 = vunpack.c.l.b16 %v305
      %v1586 = vunpack.c.l.b16 %v306
      %v1587 = vunpack.c.h.b16 %v306
      %v1588 = vunpack.c.l.b16 %v307
      %v1589 = vunpack.c.h.b16 %v307
      %v1590 = vunpack.c.l.b16 %v308
      %v1591 = vunpack.c.h.b16 %v308
      %v1592 = vunpack.c.l.b16 %v309
      %v1593 = vunpack.c.h.b16 %v309
      %v1594 = vunpack.c.l.b16 %v310
      %v1595 = vunpack.c.h.b16 %v310
      %v1596 = vunpack.c.l.b16 %v311
      %v1597 = vunpack.c.h.b16 %v311
      %v1598 = vunpack.c.l.b16 %v312
      %v1599 = vunpack.c.h.b16 %v312
      %v1600 = vunpack.c.l.b16 %v313
      %v1601 = vunpack.c.h.b16 %v313
      %v1602 = vunpack.c.l.b16 %v314
      %v1603 = vunpack.c.h.b16 %v314
      %v1604 = vunpack.c.l.b16 %v315
      %v1605 = vunpack.c.h.b16 %v315
      %v1606 = vunpack.c.l.b16 %v316
      %v1607 = vunpack.c.h.b16 %v316
      %v1608 = vunpack.c.l.b16 %v317
      %v1609 = vunpack.c.h.b16 %v317
      %v1610 = vunpack.c.l.b16 %v318
      %v1611 = vunpack.c.l.b16 %v319
      %v1612 = vunpack.c.h.b16 %v319
      %v1613 = vunpack.c.l.b16 %v320
      %v1614 = vunpack.c.h.b16 %v320
      %v1615 = vunpack.c.l.b16 %v321
      %v1616 = vunpack.c.h.b16 %v321
      %v1617 = vunpack.c.l.b16 %v322
      %v1618 = vunpack.c.h.b16 %v322
      %v1619 = vunpack.c.l.b16 %v323
      %v1620 = vunpack.c.h.b16 %v323
      %v1621 = vunpack.c.l.b16 %v324
      %v1622 = vunpack.c.h.b16 %v324
      %v1623 = vunpack.c.l.b16 %v325
      %v1624 = vunpack.c.h.b16 %v325
      %v1625 = vunpack.c.l.b16 %v326
      %v1626 = vunpack.c.h.b16 %v326
      %v1627 = vunpack.c.l.b16 %v327
      %v1628 = vunpack.c.h.b16 %v327
      %v1629 = vunpack.c.l.b16 %v328
      %v1630 = vunpack.c.h.b16 %v328
      %v1631 = vunpack.c.l.b16 %v329
      %v1632 = vunpack.c.h.b16 %v329
      %v1633 = vunpack.c.l.b16 %v330
      %v1634 = vunpack.c.h.b16 %v330
      %v1635 = vunpack.c.l.b16 %v331
      %v1636 = vunpack.c.l.b16 %v332
      %v1637 = vunpack.c.h.b16 %v332
      %v1638 = vunpack.c.l.b16 %v333
      %v1639 = vunpack.c.h.b16 %v333
      %v1640 = vunpack.c.l.b16 %v334
      %v1641 = vunpack.c.h.b16 %v334
      %v1642 = vunpack.c.l.b16 %v335
      %v1643 = vunpack.c.h.b16 %v335
      %v1644 = vunpack.c.l.b16 %v336
      %v1645 = vunpack.c.h.b16 %v336
      %v1646 = vunpack.c.l.b16 %v337
      %v1647 = vunpack.c.h.b16 %v337
      %v1648 = vunpack.c.l.b16 %v338
      %v1649 = vunpack.c.h.b16 %v338
      %v1650 = vunpack.c.l.b16 %v339
      %v1651 = vunpack.c.h.b16 %v339
      %v1652 = vunpack.c.l.b16 %v340
      %v1653 = vunpack.c.h.b16 %v340
      %v1654 = vunpack.c.l.b16 %v341
      %v1655 = vunpack.c.h.b16 %v341
      %v1656 = vunpack.c.l.b16 %v342
      %v1657 = vunpack.c.h.b16 %v342
      %v1658 = vunpack.c.l.b16 %v343
      %v1659 = vunpack.c.h.b16 %v343
      %v1660 = vunpack.c.l.b16 %v344
      %v1661 = vunpack.c.l.b16 %v345
      %v1662 = vunpack.c.h.b16 %v345
      %v1663 = vunpack.c.l.b16 %v346
      %v1664 = vunpack.c.h.b16 %v346
      %v1665 = vunpack.c.l.b16 %v347
      %v1666 = vunpack.c.h.b16 %v347
      %v1667 = vunpack.c.l.b16 %v348
      %v1668 = vunpack.c.h.b16 %v348
      %v1669 = vunpack.c.l.b16 %v349
      %v1670 = vunpack.c.h.b16 %v349
      %v1671 = vunpack.c.l.b16 %v350
      %v1672 = vunpack.c.h.b16 %v350
      %v1673 = vunpack.c.l.b16 %v351
      %v1674 = vunpack.c.h.b16 %v351
      %v1675 = vunpack.c.l.b16 %v352
      %v1676 = vunpack.c.h.b16 %v352
      %v1677 = vunpack.c.l.b16 %v353
      %v1678 = vunpack.c.h.b16 %v353
      %v1679 = vunpack.c.l.b16 %v354
      %v1680 = vunpack.c.h.b16 %v354
      %v1681 = vunpack.c.l.b16 %v355
      %v1682 = vunpack.c.h.b16 %v355
      %v1683 = vunpack.c.l.b16 %v356
      %v1684 = vunpack.c.h.b16 %v356
      %v1685 = vunpack.c.l.b16 %v357
      %v1686 = vunpack.c.l.b16 %v358
      %v1687 = vunpack.c.h.b16 %v358
      %v1688 = vunpack.c.l.b16 %v359
      %v1689 = vunpack.c.h.b16 %v359
      %v1690 = vunpack.c.l.b16 %v360
      %v1691 = vunpack.c.h.b16 %v360
      %v1692 = vunpack.c.l.b16 %v361
      %v1693 = vunpack.c.h.b16 %v361
      %v1694 = vunpack.c.l.b16 %v362
      %v1695 = vunpack.c.h.b16 %v362
      %v1696 = vunpack.c.l.b16 %v363
      %v1697 = vunpack.c.h.b16 %v363
      %v1698 = vunpack.c.l.b16 %v364
      %v1699 = vunpack.c.h.b16 %v364
      %v1700 = vunpack.c.l.b16 %v365
      %v1701 = vunpack.c.h.b16 %v365
      %v1702 = vunpack.c.l.b16 %v366
      %v1703 = vunpack.c.h.b16 %v366
      %v1704 = vunpack.c.l.b16 %v367
      %v1705 = vunpack.c.h.b16 %v367
      %v1706 = vunpack.c.l.b16 %v368
      %v1707 = vunpack.c.h.b16 %v368
      %v1708 = vunpack.c.l.b16 %v369
      %v1709 = vunpack.c.h.b16 %v369
      %v1710 = vunpack.c.l.b16 %v370
      %v1711 = vunpack.c.l.b16 %v371
      %v1712 = vunpack.c.h.b16 %v371
      %v1713 = vunpack.c.l.b16 %v372
      %v1714 = vunpack.c.h.b16 %v372
      %v1715 = vunpack.c.l.b16 %v373
      %v1716 = vunpack.c.h.b16 %v373
      %v1717 = vunpack.c.l.b16 %v374
      %v1718 = vunpack.c.h.b16 %v374
      %v1719 = vunpack.c.l.b16 %v375
      %v1720 = vunpack.c.h.b16 %v375
      %v1721 = vunpack.c.l.b16 %v376
      %v1722 = vunpack.c.h.b16 %v376
      %v1723 = vunpack.c.l.b16 %v377
      %v1724 = vunpack.c.h.b16 %v377
      %v1725 = vunpack.c.l.b16 %v378
      %v1726 = vunpack.c.h.b16 %v378
      %v1727 = vunpack.c.l.b16 %v379
      %v1728 = vunpack.c.h.b16 %v379
      %v1729 = vunpack.c.l.b16 %v380
      %v1730 = vunpack.c.h.b16 %v380
      %v1731 = vunpack.c.l.b16 %v381
      %v1732 = vunpack.c.h.b16 %v381
      %v1733 = vunpack.c.l.b16 %v382
      %v1734 = vunpack.c.h.b16 %v382
      %v1735 = vunpack.c.l.b16 %v383
      %v1736 = vunpack.c.l.b16 %v384
      %v1737 = vunpack.c.h.b16 %v384
      %v1738 = vunpack.c.l.b16 %v385
      %v1739 = vunpack.c.h.b16 %v385
      %v1740 = vunpack.c.l.b16 %v386
      %v1741 = vunpack.c.h.b16 %v386
      %v1742 = vunpack.c.l.b16 %v387
      %v1743 = vunpack.c.h.b16 %v387
      %v1744 = vunpack.c.l.b16 %v388
      %v1745 = vunpack.c.h.b16 %v388
      %v1746 = vunpack.c.l.b16 %v389
      %v1747 = vunpack.c.h.b16 %v389
      %v1748 = vunpack.c.l.b16 %v390
      %v1749 = vunpack.c.h.b16 %v390
      %v1750 = vunpack.c.l.b16 %v391
      %v1751 = vunpack.c.h.b16 %v391
      %v1752 = vunpack.c.l.b16 %v392
      %v1753 = vunpack.c.h.b16 %v392
      %v1754 = vunpack.c.l.b16 %v393
      %v1755 = vunpack.c.h.b16 %v393
      %v1756 = vunpack.c.l.b16 %v394
      %v1757 = vunpack.c.h.b16 %v394
      %v1758 = vunpack.c.l.b16 %v395
      %v1759 = vunpack.c.h.b16 %v395
      %v1760 = vunpack.c.l.b16 %v396
      %v1761 = vunpack.c.l.b16 %v397
      %v1762 = vunpack.c.h.b16 %v397
      %v1763 = vunpack.c.l.b16 %v398
      %v1764 = vunpack.c.h.b16 %v398
      %v1765 = vunpack.c.l.b16 %v399
      %v1766 = vunpack.c.h.b16 %v399
      %v1767 = vunpack.c.l.b16 %v400
      %v1768 = vunpack.c.h.b16 %v400
      %v1769 = vunpack.c.l.b16 %v401
      %v1770 = vunpack.c.h.b16 %v401
      %v1771 = vunpack.c.l.b16 %v402
      %v1772 = vunpack.c.h.b16 %v402
      %v1773 = vunpack.c.l.b16 %v403
      %v1774 = vunpack.c.h.b16 %v403
      %v1775 = vunpack.c.l.b16 %v404
      %v1776 = vunpack.c.h.b16 %v404
      %v1777 = vunpack.c.l.b16 %v405
      %v1778 = vunpack.c.h.b16 %v405
      %v1779 = vunpack.c.l.b16 %v406
      %v1780 = vunpack.c.h.b16 %v406
      %v1781 = vunpack.c.l.b16 %v407
      %v1782 = vunpack.c.h.b16 %v407
      %v1783 = vunpack.c.l.b16 %v408
      %v1784 = vunpack.c.h.b16 %v408
      %v1785 = vunpack.c.l.b16 %v409
      %v1786 = vunpack.c.l.b16 %v410
      %v1787 = vunpack.c.h.b16 %v410
      %v1788 = vunpack.c.l.b16 %v411
      %v1789 = vunpack.c.h.b16 %v411
      %v1790 = vunpack.c.l.b16 %v412
      %v1791 = vunpack.c.h.b16 %v412
      %v1792 = vunpack.c.l.b16 %v413
      %v1793 = vunpack.c.h.b16 %v413
      %v1794 = vunpack.c.l.b16 %v414
      %v1795 = vunpack.c.h.b16 %v414
      %v1796 = vunpack.c.l.b16 %v415
      %v1797 = vunpack.c.h.b16 %v415
      %v1798 = vunpack.c.l.b16 %v416
      %v1799 = vunpack.c.h.b16 %v416
      %v1800 = vunpack.c.l.b16 %v417
      %v1801 = vunpack.c.h.b16 %v417
      %v1802 = vunpack.c.l.b16 %v418
      %v1803 = vunpack.c.h.b16 %v418
      %v1804 = vunpack.c.l.b16 %v419
      %v1805 = vunpack.c.h.b16 %v419
      %v1806 = vunpack.c.l.b16 %v420
      %v1807 = vunpack.c.h.b16 %v420
      %v1808 = vunpack.c.l.b16 %v421
      %v1809 = vunpack.c.h.b16 %v421
      %v1810 = vunpack.c.l.b16 %v422
      %v1811 = vunpack.c.l.b16 %v423
      %v1812 = vunpack.c.h.b16 %v423
      %v1813 = vunpack.c.l.b16 %v424
      %v1814 = vunpack.c.h.b16 %v424
      %v1815 = vunpack.c.l.b16 %v425
      %v1816 = vunpack.c.h.b16 %v425
      %v1817 = vunpack.c.l.b16 %v426
      %v1818 = vunpack.c.h.b16 %v426
      %v1819 = vunpack.c.l.b16 %v427
      %v1820 = vunpack.c.h.b16 %v427
      %v1821 = vunpack.c.l.b16 %v428
      %v1822 = vunpack.c.h.b16 %v428
      %v1823 = vunpack.c.l.b16 %v429
      %v1824 = vunpack.c.h.b16 %v429
      %v1825 = vunpack.c.l.b16 %v430
      %v1826 = vunpack.c.h.b16 %v430
      %v1827 = vunpack.c.l.b16 %v431
      %v1828 = vunpack.c.h.b16 %v431
      %v1829 = vunpack.c.l.b16 %v432
      %v1830 = vunpack.c.h.b16 %v432
      %v1831 = vunpack.c.l.b16 %v433
      %v1832 = vunpack.c.h.b16 %v433
      %v1833 = vunpack.c.l.b16 %v434
      %v1834 = vunpack.c.h.b16 %v434
      %v1835 = vunpack.c.l.b16 %v435
      %v1836 = vunpack.c.l.b16 %v436
      %v1837 = vunpack.c.h.b16 %v436
      %v1838 = vunpack.c.l.b16 %v437
      %v1839 = vunpack.c.h.b16 %v437
      %v1840 = vunpack.c.l.b16 %v438
      %v1841 = vunpack.c.h.b16 %v438
      %v1842 = vunpack.c.l.b16 %v439
      %v1843 = vunpack.c.h.b16 %v439
      %v1844 = vunpack.c.l.b16 %v440
      %v1845 = vunpack.c.h.b16 %v440
      %v1846 = vunpack.c.l.b16 %v441
      %v1847 = vunpack.c.h.b16 %v441
      %v1848 = vunpack.c.l.b16 %v442
      %v1849 = vunpack.c.h.b16 %v442
      %v1850 = vunpack.c.l.b16 %v443
      %v1851 = vunpack.c.h.b16 %v443
      %v1852 = vunpack.c.l.b16 %v444
      %v1853 = vunpack.c.h.b16 %v444
      %v1854 = vunpack.c.l.b16 %v445
      %v1855 = vunpack.c.h.b16 %v445
      %v1856 = vunpack.c.l.b16 %v446
      %v1857 = vunpack.c.h.b16 %v446
      %v1858 = vunpack.c.l.b16 %v447
      %v1859 = vunpack.c.h.b16 %v447
      %v1860 = vunpack.c.l.b16 %v448
      %v1861 = vunpack.c.l.b16 %v449
      %v1862 = vunpack.c.h.b16 %v449
      %v1863 = vunpack.c.l.b16 %v450
      %v1864 = vunpack.c.h.b16 %v450
      %v1865 = vunpack.c.l.b16 %v451
      %v1866 = vunpack.c.h.b16 %v451
      %v1867 = vunpack.c.l.b16 %v452
      %v1868 = vunpack.c.h.b16 %v452
      %v1869 = vunpack.c.l.b16 %v453
      %v1870 = vunpack.c.h.b16 %v453
      %v1871 = vunpack.c.l.b16 %v454
      %v1872 = vunpack.c.h.b16 %v454
      %v1873 = vunpack.c.l.b16 %v455
      %v1874 = vunpack.c.h.b16 %v455
      %v1875 = vunpack.c.l.b16 %v456
      %v1876 = vunpack.c.h.b16 %v456
      %v1877 = vunpack.c.l.b16 %v457
      %v1878 = vunpack.c.h.b16 %v457
      %v1879 = vunpack.c.l.b16 %v458
      %v1880 = vunpack.c.h.b16 %v458
      %v1881 = vunpack.c.l.b16 %v459
      %v1882 = vunpack.c.h.b16 %v459
      %v1883 = vunpack.c.l.b16 %v460
      %v1884 = vunpack.c.h.b16 %v460
      %v1885 = vunpack.c.l.b16 %v461
      %v1886 = vunpack.c.l.b16 %v462
      %v1887 = vunpack.c.h.b16 %v462
      %v1888 = vunpack.c.l.b16 %v463
      %v1889 = vunpack.c.h.b16 %v463
      %v1890 = vunpack.c.l.b16 %v464
      %v1891 = vunpack.c.h.b16 %v464
      %v1892 = vunpack.c.l.b16 %v465
      %v1893 = vunpack.c.h.b16 %v465
      %v1894 = vunpack.c.l.b16 %v466
      %v1895 = vunpack.c.h.b16 %v466
      %v1896 = vunpack.c.l.b16 %v467
      %v1897 = vunpack.c.h.b16 %v467
      %v1898 = vunpack.c.l.b16 %v468
      %v1899 = vunpack.c.h.b16 %v468
      %v1900 = vunpack.c.l.b16 %v469
      %v1901 = vunpack.c.h.b16 %v469
      %v1902 = vunpack.c.l.b16 %v470
      %v1903 = vunpack.c.h.b16 %v470
      %v1904 = vunpack.c.l.b16 %v471
      %v1905 = vunpack.c.h.b16 %v471
      %v1906 = vunpack.c.l.b16 %v472
      %v1907 = vunpack.c.h.b16 %v472
      %v1908 = vunpack.c.l.b16 %v473
      %v1909 = vunpack.c.h.b16 %v473
      %v1910 = vunpack.c.l.b16 %v474
      %v1911 = vunpack.c.l.b16 %v475
      %v1912 = vunpack.c.h.b16 %v475
      %v1913 = vunpack.c.l.b16 %v476
      %v1914 = vunpack.c.h.b16 %v476
      %v1915 = vunpack.c.l.b16 %v477
      %v1916 = vunpack.c.h.b16 %v477
      %v1917 = vunpack.c.l.b16 %v478
      %v1918 = vunpack.c.h.b16 %v478
      %v1919 = vunpack.c.l.b16 %v479
      %v1920 = vunpack.c.h.b16 %v479
      %v1921 = vunpack.c.l.b16 %v480
      %v1922 = vunpack.c.h.b16 %v480
      %v1923 = vunpack.c.l.b16 %v481
      %v1924 = vunpack.c.h.b16 %v481
      %v1925 = vunpack.c.l.b16 %v482
      %v1926 = vunpack.c.h.b16 %v482
      %v1927 = vunpack.c.l.b16 %v483
      %v1928 = vunpack.c.h.b16 %v483
      %v1929 = vunpack.c.l.b16 %v484
      %v1930 = vunpack.c.h.b16 %v484
      %v1931 = vunpack.c.l.b16 %v485
      %v1932 = vunpack.c.h.b16 %v485
      %v1933 = vunpack.c.l.b16 %v486
      %v1934 = vunpack.c.h.b16 %v486
      %v1935 = vunpack.c.l.b16 %v487
      %v1936 = vunpack.c.l.b16 %v488
      %v1937 = vunpack.c.h.b16 %v488
      %v1938 = vunpack.c.l.b16 %v489
      %v1939 = vunpack.c.h.b16 %v489
      %v1940 = vunpack.c.l.b16 %v490
      %v1941 = vunpack.c.h.b16 %v490
      %v1942 = vunpack.c.l.b16 %v491
      %v1943 = vunpack.c.h.b16 %v491
      %v1944 = vunpack.c.l.b16 %v492
      %v1945 = vunpack.c.h.b16 %v492
      %v1946 = vunpack.c.l.b16 %v493
      %v1947 = vunpack.c.h.b16 %v493
      %v1948 = vunpack.c.l.b16 %v494
      %v1949 = vunpack.c.h.b16 %v494
      %v1950 = vunpack.c.l.b16 %v495
      %v1951 = vunpack.c.h.b16 %v495
      %v1952 = vunpack.c.l.b16 %v496
      %v1953 = vunpack.c.h.b16 %v496
      %v1954 = vunpack.c.l.b16 %v497
      %v1955 = vunpack.c.h.b16 %v497
      %v1956 = vunpack.c.l.b16 %v498
      %v1957 = vunpack.c.h.b16 %v498
      %v1958 = vunpack.c.l.b16 %v499
      %v1959 = vunpack.c.h.b16 %v499
      %v1960 = vunpack.c.l.b16 %v500
      %v1961 = vunpack.c.l.b16 %v501
      %v1962 = vunpack.c.h.b16 %v501
      %v1963 = vunpack.c.l.b16 %v502
      %v1964 = vunpack.c.h.b16 %v502
      %v1965 = vunpack.c.l.b16 %v503
      %v1966 = vunpack.c.h.b16 %v503
      %v1967 = vunpack.c.l.b16 %v504
      %v1968 = vunpack.c.h.b16 %v504
      %v1969 = vunpack.c.l.b16 %v505
      %v1970 = vunpack.c.h.b16 %v505
      %v1971 = vunpack.c.l.b16 %v506
      %v1972 = vunpack.c.h.b16 %v506
      %v1973 = vunpack.c.l.b16 %v507
      %v1974 = vunpack.c.h.b16 %v507
      %v1975 = vunpack.c.l.b16 %v508
      %v1976 = vunpack.c.h.b16 %v508
      %v1977 = vunpack.c.l.b16 %v509
      %v1978 = vunpack.c.h.b16 %v509
      %v1979 = vunpack.c.l.b16 %v510
      %v1980 = vunpack.c.h.b16 %v510
      %v1981 = vunpack.c.l.b16 %v511
      %v1982 = vunpack.c.h.b16 %v511
      %v1983 = vunpack.c.l.b16 %v512
      %v1984 = vunpack.c.h.b16 %v512
      %v1985 = vunpack.c.l.b16 %v513
      %v1986 = vunpack.c.l.b16 %v514
      %v1987 = vunpack.c.h.b16 %v514
      %v1988 = vunpack.c.l.b16 %v515
      %v1989 = vunpack.c.h.b16 %v515
      %v1990 = vunpack.c.l.b16 %v516
      %v1991 = vunpack.c.h.b16 %v516
      %v1992 = vunpack.c.l.b16 %v517
      %v1993 = vunpack.c.h.b16 %v517
      %v1994 = vunpack.c.l.b16 %v518
      %v1995 = vunpack.c.h.b16 %v518
      %v1996 = vunpack.c.l.b16 %v519
      %v1997 = vunpack.c.h.b16 %v519
      %v1998 = vunpack.c.l.b16 %v520
      %v1999 = vunpack.c.h.b16 %v520
      %v2000 = vunpack.c.l.b16 %v521
      %v2001 = vunpack.c.h.b16 %v521
      %v2002 = vunpack.c.l.b16 %v522
      %v2003 = vunpack.c.h.b16 %v522
      %v2004 = vunpack.c.l.b16 %v523
      %v2005 = vunpack.c.h.b16 %v523
      %v2006 = vunpack.c.l.b16 %v524
      %v2007 = vunpack.c.h.b16 %v524
      %v2008 = vunpack.c.l.b16 %v525
      %v2009 = vunpack.c.h.b16 %v525
      %v2010 = vunpack.c.l.b16 %v526
      %v2011 = vunpack.c.l.b16 %v527
      %v2012 = vunpack.c.h.b16 %v527
      %v2013 = vunpack.c.l.b16 %v528
      %v2014 = vunpack.c.h.b16 %v528
      %v2015 = vunpack.c.l.b16 %v529
      %v2016 = vunpack.c.h.b16 %v529
      %v2017 = vunpack.c.l.b16 %v530
      %v2018 = vunpack.c.h.b16 %v530
      %v2019 = vunpack.c.l.b16 %v531
      %v2020 = vunpack.c.h.b16 %v531
      %v2021 = vunpack.c.l.b16 %v532
      %v2022 = vunpack.c.h.b16 %v532
      %v2023 = vunpack.c.l.b16 %v533
      %v2024 = vunpack.c.h.b16 %v533
      %v2025 = vunpack.c.l.b16 %v534
      %v2026 = vunpack.c.h.b16 %v534
      %v2027 = vunpack.c.l.b16 %v535
      %v2028 = vunpack.c.h.b16 %v535
      %v2029 = vunpack.c.l.b16 %v536
      %v2030 = vunpack.c.h.b16 %v536
      %v2031 = vunpack.c.l.b16 %v537
      %v2032 = vunpack.c.h.b16 %v537
      %v2033 = vunpack.c.l.b16 %v538
      %v2034 = vunpack.c.h.b16 %v538
      %v2035 = vunpack.c.l.b16 %v539
      %v2036 = vunpack.c.l.b16 %v540
      %v2037 = vunpack.c.h.b16 %v540
      %v2038 = vunpack.c.l.b16 %v541
      %v2039 = vunpack.c.h.b16 %v541
      %v2040 = vunpack.c.l.b16 %v542
      %v2041 = vunpack.c.h.b16 %v542
      %v2042 = vunpack.c.l.b16 %v543
      %v2043 = vunpack.c.h.b16 %v543
      %v2044 = vunpack.c.l.b16 %v544
      %v2045 = vunpack.c.h.b16 %v544
      %v2046 = vunpack.c.l.b16 %v545
      %v2047 = vunpack.c.h.b16 %v545
      %v2048 = vunpack.c.l.b16 %v546
      %v2049 = vunpack.c.h.b16 %v546
      %v2050 = vunpack.c.l.b16 %v547
      %v2051 = vunpack.c.h.b16 %v547
      %v2052 = vunpack.c.l.b16 %v548
      %v2053 = vunpack.c.h.b16 %v548
      %v2054 = vunpack.c.l.b16 %v549
      %v2055 = vunpack.c.h.b16 %v549
      %v2056 = vunpack.c.l.b16 %v550
      %v2057 = vunpack.c.h.b16 %v550
      %v2058 = vunpack.c.l.b16 %v551
      %v2059 = vunpack.c.h.b16 %v551
      %v2060 = vunpack.c.l.b16 %v552
      %v2061 = vunpack.c.l.b16 %v553
      %v2062 = vunpack.c.h.b16 %v553
      %v2063 = vunpack.c.l.b16 %v554
      %v2064 = vunpack.c.h.b16 %v554
      %v2065 = vunpack.c.l.b16 %v555
      %v2066 = vunpack.c.h.b16 %v555
      %v2067 = vunpack.c.l.b16 %v556
      %v2068 = vunpack.c.h.b16 %v556
      %v2069 = vunpack.c.l.b16 %v557
      %v2070 = vunpack.c.h.b16 %v557
      %v2071 = vunpack.c.l.b16 %v558
      %v2072 = vunpack.c.h.b16 %v558
      %v2073 = vunpack.c.l.b16 %v559
      %v2074 = vunpack.c.h.b16 %v559
      %v2075 = vunpack.c.l.b16 %v560
      %v2076 = vunpack.c.h.b16 %v560
      %v2077 = vunpack.c.l.b16 %v561
      %v2078 = vunpack.c.h.b16 %v561
      %v2079 = vunpack.c.l.b16 %v562
      %v2080 = vunpack.c.h.b16 %v562
      %v2081 = vunpack.c.l.b16 %v563
      %v2082 = vunpack.c.h.b16 %v563
      %v2083 = vunpack.c.l.b16 %v564
      %v2084 = vunpack.c.h.b16 %v564
      %v2085 = vunpack.c.l.b16 %v565
      %v2086 = vunpack.c.l.b16 %v566
      %v2087 = vunpack.c.h.b16 %v566
      %v2088 = vunpack.c.l.b16 %v567
      %v2089 = vunpack.c.h.b16 %v567
      %v2090 = vunpack.c.l.b16 %v568
      %v2091 = vunpack.c.h.b16 %v568
      %v2092 = vunpack.c.l.b16 %v569
      %v2093 = vunpack.c.h.b16 %v569
      %v2094 = vunpack.c.l.b16 %v570
      %v2095 = vunpack.c.h.b16 %v570
      %v2096 = vunpack.c.l.b16 %v571
      %v2097 = vunpack.c.h.b16 %v571
      %v2098 = vunpack.c.l.b16 %v572
      %v2099 = vunpack.c.h.b16 %v572
      %v2100 = vunpack.c.l.b16 %v573
      %v2101 = vunpack.c.h.b16 %v573
      %v2102 = vunpack.c.l.b16 %v574
      %v2103 = vunpack.c.h.b16 %v574
      %v2104 = vunpack.c.l.b16 %v575
      %v2105 = vunpack.c.h.b16 %v575
      %v2106 = vunpack.c.l.b16 %v576
      %v2107 = vunpack.c.h.b16 %v576
      %v2108 = vunpack.c.l.b16 %v577
      %v2109 = vunpack.c.h.b16 %v577
      %v2110 = vunpack.c.l.b16 %v578
      %v2111 = vunpack.c.l.b16 %v579
      %v2112 = vunpack.c.h.b16 %v579
      %v2113 = vunpack.c.l.b16 %v580
      %v2114 = vunpack.c.h.b16 %v580
      %v2115 = vunpack.c.l.b16 %v581
      %v2116 = vunpack.c.h.b16 %v581
      %v2117 = vunpack.c.l.b16 %v582
      %v2118 = vunpack.c.h.b16 %v582
      %v2119 = vunpack.c.l.b16 %v583
      %v2120 = vunpack.c.h.b16 %v583
      %v2121 = vunpack.c.l.b16 %v584
      %v2122 = vunpack.c.h.b16 %v584
      %v2123 = vunpack.c.l.b16 %v585
      %v2124 = vunpack.c.h.b16 %v585
      %v2125 = vunpack.c.l.b16 %v586
      %v2126 = vunpack.c.h.b16 %v586
      %v2127 = vunpack.c.l.b16 %v587
      %v2128 = vunpack.c.h.b16 %v587
      %v2129 = vunpack.c.l.b16 %v588
      %v2130 = vunpack.c.h.b16 %v588
      %v2131 = vunpack.c.l.b16 %v589
      %v2132 = vunpack.c.h.b16 %v589
      %v2133 = vunpack.c.l.b16 %v590
      %v2134 = vunpack.c.h.b16 %v590
      %v2135 = vunpack.c.l.b16 %v591
      %v2136 = vunpack.c.l.b16 %v592
      %v2137 = vunpack.c.h.b16 %v592
      %v2138 = vunpack.c.l.b16 %v593
      %v2139 = vunpack.c.h.b16 %v593
      %v2140 = vunpack.c.l.b16 %v594
      %v2141 = vunpack.c.h.b16 %v594
      %v2142 = vunpack.c.l.b16 %v595
      %v2143 = vunpack.c.h.b16 %v595
      %v2144 = vunpack.c.l.b16 %v596
      %v2145 = vunpack.c.h.b16 %v596
      %v2146 = vunpack.c.l.b16 %v597
      %v2147 = vunpack.c.h.b16 %v597
      %v2148 = vunpack.c.l.b16 %v598
      %v2149 = vunpack.c.h.b16 %v598
      %v2150 = vunpack.c.l.b16 %v599
      %v2151 = vunpack.c.h.b16 %v599
      %v2152 = vunpack.c.l.b16 %v600
      %v2153 = vunpack.c.h.b16 %v600
      %v2154 = vunpack.c.l.b16 %v601
      %v2155 = vunpack.c.h.b16 %v601
      %v2156 = vunpack.c.l.b16 %v602
      %v2157 = vunpack.c.h.b16 %v602
      %v2158 = vunpack.c.l.b16 %v603
      %v2159 = vunpack.c.h.b16 %v603
      %v2160 = vunpack.c.l.b16 %v604
      %v2161 = vunpack.c.l.b16 %v605
      %v2162 = vunpack.c.h.b16 %v605
      %v2163 = vunpack.c.l.b16 %v606
      %v2164 = vunpack.c.h.b16 %v606
      %v2165 = vunpack.c.l.b16 %v607
      %v2166 = vunpack.c.h.b16 %v607
      %v2167 = vunpack.c.l.b16 %v608
      %v2168 = vunpack.c.h.b16 %v608
      %v2169 = vunpack.c.l.b16 %v609
      %v2170 = vunpack.c.h.b16 %v609
      %v2171 = vunpack.c.l.b16 %v610
      %v2172 = vunpack.c.h.b16 %v610
      %v2173 = vunpack.c.l.b16 %v611
      %v2174 = vunpack.c.h.b16 %v611
      %v2175 = vunpack.c.l.b16 %v612
      %v2176 = vunpack.c.h.b16 %v612
      %v2177 = vunpack.c.l.b16 %v613
      %v2178 = vunpack.c.h.b16 %v613
      %v2179 = vunpack.c.l.b16 %v614
      %v2180 = vunpack.c.h.b16 %v614
      %v2181 = vunpack.c.l.b16 %v615
      %v2182 = vunpack.c.h.b16 %v615
      %v2183 = vunpack.c.l.b16 %v616
      %v2184 = vunpack.c.h.b16 %v616
      %v2185 = vunpack.c.l.b16 %v617
      %v2186 = vunpack.c.l.b16 %v618
      %v2187 = vunpack.c.h.b16 %v618
      %v2188 = vunpack.c.l.b16 %v619
      %v2189 = vunpack.c.h.b16 %v619
      %v2190 = vunpack.c.l.b16 %v620
      %v2191 = vunpack.c.h.b16 %v620
      %v2192 = vunpack.c.l.b16 %v621
      %v2193 = vunpack.c.h.b16 %v621
      %v2194 = vunpack.c.l.b16 %v622
      %v2195 = vunpack.c.h.b16 %v622
      %v2196 = vunpack.c.l.b16 %v623
      %v2197 = vunpack.c.h.b16 %v623
      %v2198 = vunpack.c.l.b16 %v624
      %v2199 = vunpack.c.h.b16 %v624
      %v2200 = vunpack.c.l.b16 %v625
      %v2201 = vunpack.c.h.b16 %v625
      %v2202 = vunpack.c.l.b16 %v626
      %v2203 = vunpack.c.h.b16 %v626
      %v2204 = vunpack.c.l.b16 %v627
      %v2205 = vunpack.c.h.b16 %v627
      %v2206 = vunpack.c.l.b16 %v628
      %v2207 = vunpack.c.h.b16 %v628
      %v2208 = vunpack.c.l.b16 %v629
      %v2209 = vunpack.c.h.b16 %v629
      %v2210 = vunpack.c.l.b16 %v630
      %v2211 = vunpack.c.l.b16 %v631
      %v2212 = vunpack.c.h.b16 %v631
      %v2213 = vunpack.c.l.b16 %v632
      %v2214 = vunpack.c.h.b16 %v632
      %v2215 = vunpack.c.l.b16 %v633
      %v2216 = vunpack.c.h.b16 %v633
      %v2217 = vunpack.c.l.b16 %v634
      %v2218 = vunpack.c.h.b16 %v634
      %v2219 = vunpack.c.l.b16 %v635
      %v2220 = vunpack.c.h.b16 %v635
      %v2221 = vunpack.c.l.b16 %v636
      %v2222 = vunpack.c.h.b16 %v636
      %v2223 = vunpack.c.l.b16 %v637
      %v2224 = vunpack.c.h.b16 %v637
      %v2225 = vunpack.c.l.b16 %v638
      %v2226 = vunpack.c.h.b16 %v638
      %v2227 = vunpack.c.l.b16 %v639
      %v2228 = vunpack.c.h.b16 %v639
      %v2229 = vunpack.c.l.b16 %v640
      %v2230 = vunpack.c.h.b16 %v640
      %v2231 = vunpack.c.l.b16 %v641
      %v2232 = vunpack.c.h.b16 %v641
      %v2233 = vunpack.c.l.b16 %v642
      %v2234 = vunpack.c.h.b16 %v642
      %v2235 = vunpack.c.l.b16 %v643
      %v2236 = vunpack.c.l.b16 %v644
      %v2237 = vunpack.c.h.b16 %v644
      %v2238 = vunpack.c.l.b16 %v645
      %v2239 = vunpack.c.h.b16 %v645
      %v2240 = vunpack.c.l.b16 %v646
      %v2241 = vunpack.c.h.b16 %v646
      %v2242 = vunpack.c.l.b16 %v647
      %v2243 = vunpack.c.h.b16 %v647
      %v2244 = vunpack.c.l.b16 %v648
      %v2245 = vunpack.c.h.b16 %v648
      %v2246 = vunpack.c.l.b16 %v649
      %v2247 = vunpack.c.h.b16 %v649
      %v2248 = vunpack.c.l.b16 %v650
      %v2249 = vunpack.c.h.b16 %v650
      %v2250 = vunpack.c.l.b16 %v651
      %v2251 = vunpack.c.h.b16 %v651
      %v2252 = vunpack.c.l.b16 %v652
      %v2253 = vunpack.c.h.b16 %v652
      %v2254 = vunpack.c.l.b16 %v653
      %v2255 = vunpack.c.h.b16 %v653
      %v2256 = vunpack.c.l.b16 %v654
      %v2257 = vunpack.c.h.b16 %v654
      %v2258 = vunpack.c.l.b16 %v655
      %v2259 = vunpack.c.h.b16 %v655
      %v2260 = vunpack.c.l.b16 %v656
      %v2261 = vunpack.c.l.b16 %v657
      %v2262 = vunpack.c.h.b16 %v657
      %v2263 = vunpack.c.l.b16 %v658
      %v2264 = vunpack.c.h.b16 %v658
      %v2265 = vunpack.c.l.b16 %v659
      %v2266 = vunpack.c.h.b16 %v659
      %v2267 = vunpack.c.l.b16 %v660
      %v2268 = vunpack.c.h.b16 %v660
      %v2269 = vunpack.c.l.b16 %v661
      %v2270 = vunpack.c.h.b16 %v661
      %v2271 = vunpack.c.l.b16 %v662
      %v2272 = vunpack.c.h.b16 %v662
      %v2273 = vunpack.c.l.b16 %v663
      %v2274 = vunpack.c.h.b16 %v663
      %v2275 = vunpack.c.l.b16 %v664
      %v2276 = vunpack.c.h.b16 %v664
      %v2277 = vunpack.c.l.b16 %v665
      %v2278 = vunpack.c.h.b16 %v665
      %v2279 = vunpack.c.l.b16 %v666
      %v2280 = vunpack.c.h.b16 %v666
      %v2281 = vunpack.c.l.b16 %v667
      %v2282 = vunpack.c.h.b16 %v667
      %v2283 = vunpack.c.l.b16 %v668
      %v2284 = vunpack.c.h.b16 %v668
      %v2285 = vunpack.c.l.b16 %v669
      %v2286 = vpack.c.b16 %v1511, %v1486
      %v2287 = vpack.c.b16 %v1512, %v1487
      %v2288 = vpack.c.b16 %v1513, %v1488
      %v2289 = vpack.c.b16 %v1514, %v1489
      %v2290 = vpack.c.b16 %v1515, %v1490
      %v2291 = vpack.c.b16 %v1516, %v1491
      %v2292 = vpack.c.b16 %v1517, %v1492
      %v2293 = vpack.c.b16 %v1518, %v1493
      %v2294 = vpack.c.b16 %v1519, %v1494
      %v2295 = vpack.c.b16 %v1520, %v1495
      %v2296 = vpack.c.b16 %v1521, %v1496
      %v2297 = vpack.c.b16 %v1522, %v1497
      %v2298 = vpack.c.b16 %v1523, %v1498
      %v2299 = vpack.c.b16 %v1524, %v1499
      %v2300 = vpack.c.b16 %v1525, %v1500
      %v2301 = vpack.c.b16 %v1526, %v1501
      %v2302 = vpack.c.b16 %v1527, %v1502
      %v2303 = vpack.c.b16 %v1528, %v1503
      %v2304 = vpack.c.b16 %v1529, %v1504
      %v2305 = vpack.c.b16 %v1530, %v1505
      %v2306 = vpack.c.b16 %v1531, %v1506
      %v2307 = vpack.c.b16 %v1532, %v1507
      %v2308 = vpack.c.b16 %v1533, %v1508
      %v2309 = vpack.c.b16 %v1534, %v1509
      %v2310 = vpack.c.b16 %v1535, %v1510
      %v2311 = vpack.c.b16 %v1561, %v1536
      %v2312 = vpack.c.b16 %v1562, %v1537
      %v2313 = vpack.c.b16 %v1563, %v1538
      %v2314 = vpack.c.b16 %v1564, %v1539
      %v2315 = vpack.c.b16 %v1565, %v1540
      %v2316 = vpack.c.b16 %v1566, %v1541
      %v2317 = vpack.c.b16 %v1567, %v1542
      %v2318 = vpack.c.b16 %v1568, %v1543
      %v2319 = vpack.c.b16 %v1569, %v1544
      %v2320 = vpack.c.b16 %v1570, %v1545
      %v2321 = vpack.c.b16 %v1571, %v1546
      %v2322 = vpack.c.b16 %v1572, %v1547
      %v2323 = vpack.c.b16 %v1573, %v1548
      %v2324 = vpack.c.b16 %v1574, %v1549
      %v2325 = vpack.c.b16 %v1575, %v1550
      %v2326 = vpack.c.b16 %v1576, %v1551
      %v2327 = vpack.c.b16 %v1577, %v1552
      %v2328 = vpack.c.b16 %v1578, %v1553
      %v2329 = vpack.c.b16 %v1579, %v1554
      %v2330 = vpack.c.b16 %v1580, %v1555
      %v2331 = vpack.c.b16 %v1581, %v1556
      %v2332 = vpack.c.b16 %v1582, %v1557
      %v2333 = vpack.c.b16 %v1583, %v1558
      %v2334 = vpack.c.b16 %v1584, %v1559
      %v2335 = vpack.c.b16 %v1585, %v1560
      %v2336 = vpack.c.b16 %v1611, %v1586
      %v2337 = vpack.c.b16 %v1612, %v1587
      %v2338 = vpack.c.b16 %v1613, %v1588
      %v2339 = vpack.c.b16 %v1614, %v1589
      %v2340 = vpack.c.b16 %v1615, %v1590
      %v2341 = vpack.c.b16 %v1616, %v1591
      %v2342 = vpack.c.b16 %v1617, %v1592
      %v2343 = vpack.c.b16 %v1618, %v1593
      %v2344 = vpack.c.b16 %v1619, %v1594
      %v2345 = vpack.c.b16 %v1620, %v1595
      %v2346 = vpack.c.b16 %v1621, %v1596
      %v2347 = vpack.c.b16 %v1622, %v1597
      %v2348 = vpack.c.b16 %v1623, %v1598
      %v2349 = vpack.c.b16 %v1624, %v1599
      %v2350 = vpack.c.b16 %v1625, %v1600
      %v2351 = vpack.c.b16 %v1626, %v1601
      %v2352 = vpack.c.b16 %v1627, %v1602
      %v2353 = vpack.c.b16 %v1628, %v1603
      %v2354 = vpack.c.b16 %v1629, %v1604
      %v2355 = vpack.c.b16 %v1630, %v1605
      %v2356 = vpack.c.b16 %v1631, %v1606
      %v2357 = vpack.c.b16 %v1632, %v1607
      %v2358 = vpack.c.b16 %v1633, %v1608
      %v2359 = vpack.c.b16 %v1634, %v1609
      %v2360 = vpack.c.b16 %v1635, %v1610
      %v2361 = vpack.c.b16 %v1661, %v1636
      %v2362 = vpack.c.b16 %v1662, %v1637
      %v2363 = vpack.c.b16 %v1663, %v1638
      %v2364 = vpack.c.b16 %v1664, %v1639
      %v2365 = vpack.c.b16 %v1665, %v1640
      %v2366 = vpack.c.b16 %v1666, %v1641
      %v2367 = vpack.c.b16 %v1667, %v1642
      %v2368 = vpack.c.b16 %v1668, %v1643
      %v2369 = vpack.c.b16 %v1669, %v1644
      %v2370 = vpack.c.b16 %v1670, %v1645
      %v2371 = vpack.c.b16 %v1671, %v1646
      %v2372 = vpack.c.b16 %v1672, %v1647
      %v2373 = vpack.c.b16 %v1673, %v1648
      %v2374 = vpack.c.b16 %v1674, %v1649
      %v2375 = vpack.c.b16 %v1675, %v1650
      %v2376 = vpack.c.b16 %v1676, %v1651
      %v2377 = vpack.c.b16 %v1677, %v1652
      %v2378 = vpack.c.b16 %v1678, %v1653
      %v2379 = vpack.c.b16 %v1679, %v1654
      %v2380 = vpack.c.b16 %v1680, %v1655
      %v2381 = vpack.c.b16 %v1681, %v1656
      %v2382 = vpack.c.b16 %v1682, %v1657
      %v2383 = vpack.c.b16 %v1683, %v1658
      %v2384 = vpack.c.b16 %v1684, %v1659
      %v2385 = vpack.c.b16 %v1685, %v1660
      %v2386 = vpack.c.b16 %v1711, %v1686
      %v2387 = vpack.c.b16 %v1712, %v1687
      %v2388 = vpack.c.b16 %v1713, %v1688
      %v2389 = vpack.c.b16 %v1714, %v1689
      %v2390 = vpack.c.b16 %v1715, %v1690
      %v2391 = vpack.c.b16 %v1716, %v1691
      %v2392 = vpack.c.b16 %v1717, %v1692
      %v2393 = vpack.c.b16 %v1718, %v1693
      %v2394 = vpack.c.b16 %v1719, %v1694
      %v2395 = vpack.c.b16 %v1720, %v1695
      %v2396 = vpack.c.b16 %v1721, %v1696
      %v2397 = vpack.c.b16 %v1722, %v1697
      %v2398 = vpack.c.b16 %v1723, %v1698
      %v2399 = vpack.c.b16 %v1724, %v1699
      %v2400 = vpack.c.b16 %v1725, %v1700
      %v2401 = vpack.c.b16 %v1726, %v1701
      %v2402 = vpack.c.b16 %v1727, %v1702
      %v2403 = vpack.c.b16 %v1728, %v1703
      %v2404 = vpack.c.b16 %v1729, %v1704
      %v2405 = vpack.c.b16 %v1730, %v1705
      %v2406 = vpack.c.b16 %v1731, %v1706
      %v2407 = vpack.c.b16 %v1732, %v1707
      %v2408 = vpack.c.b16 %v1733, %v1708
      %v2409 = vpack.c.b16 %v1734, %v1709
      %v2410 = vpack.c.b16 %v1735, %v1710
      %v2411 = vpack.c.b16 %v1761, %v1736
      %v2412 = vpack.c.b16 %v1762, %v1737
      %v2413 = vpack.c.b16 %v1763, %v1738
      %v2414 = vpack.c.b16 %v1764, %v1739
      %v2415 = vpack.c.b16 %v1765, %v1740
      %v2416 = vpack.c.b16 %v1766, %v1741
      %v2417 = vpack.c.b16 %v1767, %v1742
      %v2418 = vpack.c.b16 %v1768, %v1743
      %v2419 = vpack.c.b16 %v1769, %v1744
      %v2420 = vpack.c.b16 %v1770, %v1745
      %v2421 = vpack.c.b16 %v1771, %v1746
      %v2422 = vpack.c.b16 %v1772, %v1747
      %v2423 = vpack.c.b16 %v1773, %v1748
      %v2424 = vpack.c.b16 %v1774, %v1749
      %v2425 = vpack.c.b16 %v1775, %v1750
      %v2426 = vpack.c.b16 %v1776, %v1751
      %v2427 = vpack.c.b16 %v1777, %v1752
      %v2428 = vpack.c.b16 %v1778, %v1753
      %v2429 = vpack.c.b16 %v1779, %v1754
      %v2430 = vpack.c.b16 %v1780, %v1755
      %v2431 = vpack.c.b16 %v1781, %v1756
      %v2432 = vpack.c.b16 %v1782, %v1757
      %v2433 = vpack.c.b16 %v1783, %v1758
      %v2434 = vpack.c.b16 %v1784, %v1759
      %v2435 = vpack.c.b16 %v1785, %v1760
      %v2436 = vpack.c.b16 %v1811, %v1786
      %v2437 = vpack.c.b16 %v1812, %v1787
      %v2438 = vpack.c.b16 %v1813, %v1788
      %v2439 = vpack.c.b16 %v1814, %v1789
      %v2440 = vpack.c.b16 %v1815, %v1790
      %v2441 = vpack.c.b16 %v1816, %v1791
      %v2442 = vpack.c.b16 %v1817, %v1792
      %v2443 = vpack.c.b16 %v1818, %v1793
      %v2444 = vpack.c.b16 %v1819, %v1794
      %v2445 = vpack.c.b16 %v1820, %v1795
      %v2446 = vpack.c.b16 %v1821, %v1796
      %v2447 = vpack.c.b16 %v1822, %v1797
      %v2448 = vpack.c.b16 %v1823, %v1798
      %v2449 = vpack.c.b16 %v1824, %v1799
      %v2450 = vpack.c.b16 %v1825, %v1800
      %v2451 = vpack.c.b16 %v1826, %v1801
      %v2452 = vpack.c.b16 %v1827, %v1802
      %v2453 = vpack.c.b16 %v1828, %v1803
      %v2454 = vpack.c.b16 %v1829, %v1804
      %v2455 = vpack.c.b16 %v1830, %v1805
      %v2456 = vpack.c.b16 %v1831, %v1806
      %v2457 = vpack.c.b16 %v1832, %v1807
      %v2458 = vpack.c.b16 %v1833, %v1808
      %v2459 = vpack.c.b16 %v1834, %v1809
      %v2460 = vpack.c.b16 %v1835, %v1810
      %v2461 = vpack.c.b16 %v1861, %v1836
      %v2462 = vpack.c.b16 %v1862, %v1837
      %v2463 = vpack.c.b16 %v1863, %v1838
      %v2464 = vpack.c.b16 %v1864, %v1839
      %v2465 = vpack.c.b16 %v1865, %v1840
      %v2466 = vpack.c.b16 %v1866, %v1841
      %v2467 = vpack.c.b16 %v1867, %v1842
      %v2468 = vpack.c.b16 %v1868, %v1843
      %v2469 = vpack.c.b16 %v1869, %v1844
      %v2470 = vpack.c.b16 %v1870, %v1845
      %v2471 = vpack.c.b16 %v1871, %v1846
      %v2472 = vpack.c.b16 %v1872, %v1847
      %v2473 = vpack.c.b16 %v1873, %v1848
      %v2474 = vpack.c.b16 %v1874, %v1849
      %v2475 = vpack.c.b16 %v1875, %v1850
      %v2476 = vpack.c.b16 %v1876, %v1851
      %v2477 = vpack.c.b16 %v1877, %v1852
      %v2478 = vpack.c.b16 %v1878, %v1853
      %v2479 = vpack.c.b16 %v1879, %v1854
      %v2480 = vpack.c.b16 %v1880, %v1855
      %v2481 = vpack.c.b16 %v1881, %v1856
      %v2482 = vpack.c.b16 %v1882, %v1857
      %v2483 = vpack.c.b16 %v1883, %v1858
      %v2484 = vpack.c.b16 %v1884, %v1859
      %v2485 = vpack.c.b16 %v1885, %v1860
      %v2486 = vpack.c.b16 %v1911, %v1886
      %v2487 = vpack.c.b16 %v1912, %v1887
      %v2488 = vpack.c.b16 %v1913, %v1888
      %v2489 = vpack.c.b16 %v1914, %v1889
      %v2490 = vpack.c.b16 %v1915, %v1890
      %v2491 = vpack.c.b16 %v1916, %v1891
      %v2492 = vpack.c.b16 %v1917, %v1892
      %v2493 = vpack.c.b16 %v1918, %v1893
      %v2494 = vpack.c.b16 %v1919, %v1894
      %v2495 = vpack.c.b16 %v1920, %v1895
      %v2496 = vpack.c.b16 %v1921, %v1896
      %v2497 = vpack.c.b16 %v1922, %v1897
      %v2498 = vpack.c.b16 %v1923, %v1898
      %v2499 = vpack.c.b16 %v1924, %v1899
      %v2500 = vpack.c.b16 %v1925, %v1900
      %v2501 = vpack.c.b16 %v1926, %v1901
      %v2502 = vpack.c.b16 %v1927, %v1902
      %v2503 = vpack.c.b16 %v1928, %v1903
      %v2504 = vpack.c.b16 %v1929, %v1904
      %v2505 = vpack.c.b16 %v1930, %v1905
      %v2506 = vpack.c.b16 %v1931, %v1906
      %v2507 = vpack.c.b16 %v1932, %v1907
      %v2508 = vpack.c.b16 %v1933, %v1908
      %v2509 = vpack.c.b16 %v1934, %v1909
      %v2510 = vpack.c.b16 %v1935, %v1910
      %v2511 = vpack.c.b16 %v1961, %v1936
      %v2512 = vpack.c.b16 %v1962, %v1937
      %v2513 = vpack.c.b16 %v1963, %v1938
      %v2514 = vpack.c.b16 %v1964, %v1939
      %v2515 = vpack.c.b16 %v1965, %v1940
      %v2516 = vpack.c.b16 %v1966, %v1941
      %v2517 = vpack.c.b16 %v1967, %v1942
      %v2518 = vpack.c.b16 %v1968, %v1943
      %v2519 = vpack.c.b16 %v1969, %v1944
      %v2520 = vpack.c.b16 %v1970, %v1945
      %v2521 = vpack.c.b16 %v1971, %v1946
      %v2522 = vpack.c.b16 %v1972, %v1947
      %v2523 = vpack.c.b16 %v1973, %v1948
      %v2524 = vpack.c.b16 %v1974, %v1949
      %v2525 = vpack.c.b16 %v1975, %v1950
      %v2526 = vpack.c.b16 %v1976, %v1951
      %v2527 = vpack.c.b16 %v1977, %v1952
      %v2528 = vpack.c.b16 %v1978, %v1953
      %v2529 = vpack.c.b16 %v1979, %v1954
      %v2530 = vpack.c.b16 %v1980, %v1955
      %v2531 = vpack.c.b16 %v1981, %v1956
      %v2532 = vpack.c.b16 %v1982, %v1957
      %v2533 = vpack.c.b16 %v1983, %v1958
      %v2534 = vpack.c.b16 %v1984, %v1959
      %v2535 = vpack.c.b16 %v1985, %v1960
      %v2536 = vpack.c.b16 %v2011, %v1986
      %v2537 = vpack.c.b16 %v2012, %v1987
      %v2538 = vpack.c.b16 %v2013, %v1988
      %v2539 = vpack.c.b16 %v2014, %v1989
      %v2540 = vpack.c.b16 %v2015, %v1990
      %v2541 = vpack.c.b16 %v2016, %v1991
      %v2542 = vpack.c.b16 %v2017, %v1992
      %v2543 = vpack.c.b16 %v2018, %v1993
      %v2544 = vpack.c.b16 %v2019, %v1994
      %v2545 = vpack.c.b16 %v2020, %v1995
      %v2546 = vpack.c.b16 %v2021, %v1996
      %v2547 = vpack.c.b16 %v2022, %v1997
      %v2548 = vpack.c.b16 %v2023, %v1998
      %v2549 = vpack.c.b16 %v2024, %v1999
      %v2550 = vpack.c.b16 %v2025, %v2000
      %v2551 = vpack.c.b16 %v2026, %v2001
      %v2552 = vpack.c.b16 %v2027, %v2002
      %v2553 = vpack.c.b16 %v2028, %v2003
      %v2554 = vpack.c.b16 %v2029, %v2004
      %v2555 = vpack.c.b16 %v2030, %v2005
      %v2556 = vpack.c.b16 %v2031, %v2006
      %v2557 = vpack.c.b16 %v2032, %v2007
      %v2558 = vpack.c.b16 %v2033, %v2008
      %v2559 = vpack.c.b16 %v2034, %v2009
      %v2560 = vpack.c.b16 %v2035, %v2010
      %v2561 = vpack.c.b16 %v2061, %v2036
      %v2562 = vpack.c.b16 %v2062, %v2037
      %v2563 = vpack.c.b16 %v2063, %v2038
      %v2564 = vpack.c.b16 %v2064, %v2039
      %v2565 = vpack.c.b16 %v2065, %v2040
      %v2566 = vpack.c.b16 %v2066, %v2041
      %v2567 = vpack.c.b16 %v2067, %v2042
      %v2568 = vpack.c.b16 %v2068, %v2043
      %v2569 = vpack.c.b16 %v2069, %v2044
      %v2570 = vpack.c.b16 %v2070, %v2045
      %v2571 = vpack.c.b16 %v2071, %v2046
      %v2572 = vpack.c.b16 %v2072, %v2047
      %v2573 = vpack.c.b16 %v2073, %v2048
      %v2574 = vpack.c.b16 %v2074, %v2049
      %v2575 = vpack.c.b16 %v2075, %v2050
      %v2576 = vpack.c.b16 %v2076, %v2051
      %v2577 = vpack.c.b16 %v2077, %v2052
      %v2578 = vpack.c.b16 %v2078, %v2053
      %v2579 = vpack.c.b16 %v2079, %v2054
      %v2580 = vpack.c.b16 %v2080, %v2055
      %v2581 = vpack.c.b16 %v2081, %v2056
      %v2582 = vpack.c.b16 %v2082, %v2057
      %v2583 = vpack.c.b16 %v2083, %v2058
      %v2584 = vpack.c.b16 %v2084, %v2059
      %v2585 = vpack.c.b16 %v2085, %v2060
      %v2586 = vpack.c.b16 %v2111, %v2086
      %v2587 = vpack.c.b16 %v2112, %v2087
      %v2588 = vpack.c.b16 %v2113, %v2088
      %v2589 = vpack.c.b16 %v2114, %v2089
      %v2590 = vpack.c.b16 %v2115, %v2090
      %v2591 = vpack.c.b16 %v2116, %v2091
      %v2592 = vpack.c.b16 %v2117, %v2092
      %v2593 = vpack.c.b16 %v2118, %v2093
      %v2594 = vpack.c.b16 %v2119, %v2094
      %v2595 = vpack.c.b16 %v2120, %v2095
      %v2596 = vpack.c.b16 %v2121, %v2096
      %v2597 = vpack.c.b16 %v2122, %v2097
      %v2598 = vpack.c.b16 %v2123, %v2098
      %v2599 = vpack.c.b16 %v2124, %v2099
      %v2600 = vpack.c.b16 %v2125, %v2100
      %v2601 = vpack.c.b16 %v2126, %v2101
      %v2602 = vpack.c.b16 %v2127, %v2102
      %v2603 = vpack.c.b16 %v2128, %v2103
      %v2604 = vpack.c.b16 %v2129, %v2104
      %v2605 = vpack.c.b16 %v2130, %v2105
      %v2606 = vpack.c.b16 %v2131, %v2106
      %v2607 = vpack.c.b16 %v2132, %v2107
      %v2608 = vpack.c.b16 %v2133, %v2108
      %v2609 = vpack.c.b16 %v2134, %v2109
      %v2610 = vpack.c.b16 %v2135, %v2110
      %v2611 = vpack.c.b16 %v2161, %v2136
      %v2612 = vpack.c.b16 %v2162, %v2137
      %v2613 = vpack.c.b16 %v2163, %v2138
      %v2614 = vpack.c.b16 %v2164, %v2139
      %v2615 = vpack.c.b16 %v2165, %v2140
      %v2616 = vpack.c.b16 %v2166, %v2141
      %v2617 = vpack.c.b16 %v2167, %v2142
      %v2618 = vpack.c.b16 %v2168, %v2143
      %v2619 = vpack.c.b16 %v2169, %v2144
      %v2620 = vpack.c.b16 %v2170, %v2145
      %v2621 = vpack.c.b16 %v2171, %v2146
      %v2622 = vpack.c.b16 %v2172, %v2147
      %v2623 = vpack.c.b16 %v2173, %v2148
      %v2624 = vpack.c.b16 %v2174, %v2149
      %v2625 = vpack.c.b16 %v2175, %v2150
      %v2626 = vpack.c.b16 %v2176, %v2151
      %v2627 = vpack.c.b16 %v2177, %v2152
      %v2628 = vpack.c.b16 %v2178, %v2153
      %v2629 = vpack.c.b16 %v2179, %v2154
      %v2630 = vpack.c.b16 %v2180, %v2155
      %v2631 = vpack.c.b16 %v2181, %v2156
      %v2632 = vpack.c.b16 %v2182, %v2157
      %v2633 = vpack.c.b16 %v2183, %v2158
      %v2634 = vpack.c.b16 %v2184, %v2159
      %v2635 = vpack.c.b16 %v2185, %v2160
      %v2636 = vpack.c.b16 %v2211, %v2186
      %v2637 = vpack.c.b16 %v2212, %v2187
      %v2638 = vpack.c.b16 %v2213, %v2188
      %v2639 = vpack.c.b16 %v2214, %v2189
      %v2640 = vpack.c.b16 %v2215, %v2190
      %v2641 = vpack.c.b16 %v2216, %v2191
      %v2642 = vpack.c.b16 %v2217, %v2192
      %v2643 = vpack.c.b16 %v2218, %v2193
      %v2644 = vpack.c.b16 %v2219, %v2194
      %v2645 = vpack.c.b16 %v2220, %v2195
      %v2646 = vpack.c.b16 %v2221, %v2196
      %v2647 = vpack.c.b16 %v2222, %v2197
      %v2648 = vpack.c.b16 %v2223, %v2198
      %v2649 = vpack.c.b16 %v2224, %v2199
      %v2650 = vpack.c.b16 %v2225, %v2200
      %v2651 = vpack.c.b16 %v2226, %v2201
      %v2652 = vpack.c.b16 %v2227, %v2202
      %v2653 = vpack.c.b16 %v2228, %v2203
      %v2654 = vpack.c.b16 %v2229, %v2204
      %v2655 = vpack.c.b16 %v2230, %v2205
      %v2656 = vpack.c.b16 %v2231, %v2206
      %v2657 = vpack.c.b16 %v2232, %v2207
      %v2658 = vpack.c.b16 %v2233, %v2208
      %v2659 = vpack.c.b16 %v2234, %v2209
      %v2660 = vpack.c.b16 %v2235, %v2210
      %v2661 = vpack.c.b16 %v2261, %v2236
      %v2662 = vpack.c.b16 %v2262, %v2237
      %v2663 = vpack.c.b16 %v2263, %v2238
      %v2664 = vpack.c.b16 %v2264, %v2239
      %v2665 = vpack.c.b16 %v2265, %v2240
      %v2666 = vpack.c.b16 %v2266, %v2241
      %v2667 = vpack.c.b16 %v2267, %v2242
      %v2668 = vpack.c.b16 %v2268, %v2243
      %v2669 = vpack.c.b16 %v2269, %v2244
      %v2670 = vpack.c.b16 %v2270, %v2245
      %v2671 = vpack.c.b16 %v2271, %v2246
      %v2672 = vpack.c.b16 %v2272, %v2247
      %v2673 = vpack.c.b16 %v2273, %v2248
      %v2674 = vpack.c.b16 %v2274, %v2249
      %v2675 = vpack.c.b16 %v2275, %v2250
      %v2676 = vpack.c.b16 %v2276, %v2251
      %v2677 = vpack.c.b16 %v2277, %v2252
      %v2678 = vpack.c.b16 %v2278, %v2253
      %v2679 = vpack.c.b16 %v2279, %v2254
      %v2680 = vpack.c.b16 %v2280, %v2255
      %v2681 = vpack.c.b16 %v2281, %v2256
      %v2682 = vpack.c.b16 %v2282, %v2257
      %v2683 = vpack.c.b16 %v2283, %v2258
      %v2684 = vpack.c.b16 %v2284, %v2259
      %v2685 = vpack.c.b16 %v2285, %v2260
      %v3486 = vunpack.c.l.b16 %v670
      %v3487 = vunpack.c.l.b16 %v671
      %v3488 = vunpack.c.l.b16 %v672
      %v3489 = vunpack.c.l.b16 %v673
      %v3490 = vunpack.c.l.b16 %v674
      %v3491 = vunpack.c.l.b16 %v675
      %v3492 = vunpack.c.l.b16 %v676
      %v3493 = vunpack.c.l.b16 %v677
      %v3494 = vunpack.c.l.b16 %v678
      %v3495 = vunpack.c.l.b16 %v679
      %v3496 = vunpack.c.l.b16 %v680
      %v3497 = vunpack.c.l.b16 %v681
      %v3498 = vunpack.c.l.b16 %v682
      %v3499 = vunpack.c.l.b16 %v683
      %v3500 = vunpack.c.l.b16 %v684
      %v3501 = vunpack.c.l.b16 %v685
      %v3502 = vunpack.c.l.b16 %v686
      %v3503 = vunpack.c.l.b16 %v687
      %v3504 = vunpack.c.l.b16 %v688
      %v3505 = vunpack.c.l.b16 %v689
      %v3506 = vunpack.c.l.b16 %v690
      %v3507 = vunpack.c.l.b16 %v691
      %v3508 = vunpack.c.l.b16 %v692
      %v3509 = vunpack.c.l.b16 %v693
      %v3510 = vunpack.c.l.b16 %v694
      %v3511 = vunpack.c.l.b16 %v695
      %v3512 = vunpack.c.l.b16 %v696
      %v3513 = vunpack.c.l.b16 %v697
      %v3514 = vunpack.c.l.b16 %v698
      %v3515 = vunpack.c.l.b16 %v699
      %v3516 = vunpack.c.l.b16 %v700
      %v3517 = vunpack.c.l.b16 %v701
      %v3518 = vunpack.c.l.b16 %v702
      %v3519 = vunpack.c.l.b16 %v703
      %v3520 = vunpack.c.l.b16 %v704
      %v3521 = vunpack.c.l.b16 %v705
      %v3522 = vunpack.c.l.b16 %v706
      %v3523 = vunpack.c.l.b16 %v707
      %v3524 = vunpack.c.l.b16 %v708
      %v3525 = vunpack.c.l.b16 %v709
      %v3526 = vunpack.c.l.b16 %v710
      %v3527 = vunpack.c.l.b16 %v711
      %v3528 = vunpack.c.l.b16 %v712
      %v3529 = vunpack.c.l.b16 %v713
      %v3530 = vunpack.c.l.b16 %v714
      %v3531 = vunpack.c.l.b16 %v715
      %v3532 = vunpack.c.l.b16 %v716
      %v3533 = vunpack.c.l.b16 %v717
      %v3534 = vunpack.c.l.b16 %v718
      %v3535 = vunpack.c.l.b16 %v719
      %v3536 = vunpack.c.l.b16 %v720
      %v3537 = vunpack.c.l.b16 %v721
      %v3538 = vunpack.c.l.b16 %v722
      %v3539 = vunpack.c.l.b16 %v723
      %v3540 = vunpack.c.l.b16 %v724
      %v3541 = vunpack.c.l.b16 %v725
      %v3542 = vunpack.c.l.b16 %v726
      %v3543 = vunpack.c.l.b16 %v727
      %v3544 = vunpack.c.l.b16 %v728
      %v3545 = vunpack.c.l.b16 %v729
      %v3546 = vunpack.c.l.b16 %v730
      %v3547 = vunpack.c.l.b16 %v731
      %v3548 = vunpack.c.l.b16 %v732
      %v3549 = vunpack.c.l.b16 %v733
      %v3550 = vunpack.c.l.b16 %v734
      %v3551 = vunpack.c.l.b16 %v735
      %v3552 = vunpack.c.l.b16 %v736
      %v3553 = vunpack.c.l.b16 %v737
      %v3554 = vunpack.c.l.b16 %v738
      %v3555 = vunpack.c.l.b16 %v739
      %v3556 = vunpack.c.l.b16 %v740
      %v3557 = vunpack.c.l.b16 %v741
      %v3558 = vunpack.c.l.b16 %v742
      %v3559 = vunpack.c.l.b16 %v743
      %v3560 = vunpack.c.l.b16 %v744
      %v3561 = vunpack.c.l.b16 %v745
      %v3562 = vunpack.c.l.b16 %v746
      %v3563 = vunpack.c.l.b16 %v747
      %v3564 = vunpack.c.l.b16 %v748
      %v3565 = vunpack.c.l.b16 %v749
      %v3566 = vunpack.c.l.b16 %v750
      %v3567 = vunpack.c.l.b16 %v751
      %v3568 = vunpack.c.l.b16 %v752
      %v3569 = vunpack.c.l.b16 %v753
      %v3570 = vunpack.c.l.b16 %v754
      %v3571 = vunpack.c.l.b16 %v755
      %v3572 = vunpack.c.l.b16 %v756
      %v3573 = vunpack.c.l.b16 %v757
      %v3574 = vunpack.c.l.b16 %v758
      %v3575 = vunpack.c.l.b16 %v759
      %v3576 = vunpack.c.l.b16 %v760
      %v3577 = vunpack.c.l.b16 %v761
      %v3578 = vunpack.c.l.b16 %v762
      %v3579 = vunpack.c.l.b16 %v763
      %v3580 = vunpack.c.l.b16 %v764
      %v3581 = vunpack.c.l.b16 %v765
      %v3582 = vunpack.c.l.b16 %v766
      %v3583 = vunpack.c.l.b16 %v767
      %v3584 = vunpack.c.l.b16 %v768
      %v3585 = vunpack.c.l.b16 %v769
      %v3586 = vunpack.c.l.b16 %v770
      %v3587 = vunpack.c.l.b16 %v771
      %v3588 = vunpack.c.l.b16 %v772
      %v3589 = vunpack.c.l.b16 %v773
      %v3590 = vunpack.c.l.b16 %v774
      %v3591 = vunpack.c.l.b16 %v775
      %v3592 = vunpack.c.l.b16 %v776
      %v3593 = vunpack.c.l.b16 %v777
      %v3594 = vunpack.c.l.b16 %v778
      %v3595 = vunpack.c.l.b16 %v779
      %v3596 = vunpack.c.l.b16 %v780
      %v3597 = vunpack.c.l.b16 %v781
      %v3598 = vunpack.c.l.b16 %v782
      %v3599 = vunpack.c.l.b16 %v783
      %v3600 = vunpack.c.l.b16 %v784
      %v3601 = vunpack.c.l.b16 %v785
      %v3602 = vunpack.c.l.b16 %v786
      %v3603 = vunpack.c.l.b16 %v787
      %v3604 = vunpack.c.l.b16 %v788
      %v3605 = vunpack.c.l.b16 %v789
      %v3606 = vunpack.c.l.b16 %v790
      %v3607 = vunpack.c.l.b16 %v791
      %v3608 = vunpack.c.l.b16 %v792
      %v3609 = vunpack.c.l.b16 %v793
      %v3610 = vunpack.c.l.b16 %v794
      %v3611 = vunpack.c.l.b16 %v795
      %v3612 = vunpack.c.l.b16 %v796
      %v3613 = vunpack.c.l.b16 %v797
      %v3614 = vunpack.c.l.b16 %v798
      %v3615 = vunpack.c.l.b16 %v799
      %v3616 = vunpack.c.l.b16 %v800
      %v3617 = vunpack.c.l.b16 %v801
      %v3618 = vunpack.c.l.b16 %v802
      %v3619 = vunpack.c.l.b16 %v803
      %v3620 = vunpack.c.l.b16 %v804
      %v3621 = vunpack.c.l.b16 %v805
      %v3622 = vunpack.c.l.b16 %v806
      %v3623 = vunpack.c.l.b16 %v807
      %v3624 = vunpack.c.l.b16 %v808
      %v3625 = vunpack.c.l.b16 %v809
      %v3626 = vunpack.c.l.b16 %v810
      %v3627 = vunpack.c.l.b16 %v811
      %v3628 = vunpack.c.l.b16 %v812
      %v3629 = vunpack.c.l.b16 %v813
      %v3630 = vunpack.c.l.b16 %v814
      %v3631 = vunpack.c.l.b16 %v815
      %v3632 = vunpack.c.l.b16 %v816
      %v3633 = vunpack.c.l.b16 %v817
      %v3634 = vunpack.c.l.b16 %v818
      %v3635 = vunpack.c.l.b16 %v819
      %v3636 = vunpack.c.l.b16 %v820
      %v3637 = vunpack.c.l.b16 %v821
      %v3638 = vunpack.c.l.b16 %v822
      %v3639 = vunpack.c.l.b16 %v823
      %v3640 = vunpack.c.l.b16 %v824
      %v3641 = vunpack.c.l.b16 %v825
      %v3642 = vunpack.c.l.b16 %v826
      %v3643 = vunpack.c.l.b16 %v827
      %v3644 = vunpack.c.l.b16 %v828
      %v3645 = vunpack.c.l.b16 %v829
      %v3646 = vunpack.c.l.b16 %v830
      %v3647 = vunpack.c.l.b16 %v831
      %v3648 = vunpack.c.l.b16 %v832
      %v3649 = vunpack.c.l.b16 %v833
      %v3650 = vunpack.c.l.b16 %v834
      %v3651 = vunpack.c.l.b16 %v835
      %v3652 = vunpack.c.l.b16 %v836
      %v3653 = vunpack.c.l.b16 %v837
      %v3654 = vunpack.c.l.b16 %v838
      %v3655 = vunpack.c.l.b16 %v839
      %v3656 = vunpack.c.l.b16 %v840
      %v3657 = vunpack.c.l.b16 %v841
      %v3658 = vunpack.c.l.b16 %v842
      %v3659 = vunpack.c.l.b16 %v843
      %v3660 = vunpack.c.l.b16 %v844
      %v3661 = vunpack.c.l.b16 %v845
      %v3662 = vunpack.c.l.b16 %v846
      %v3663 = vunpack.c.l.b16 %v847
      %v3664 = vunpack.c.l.b16 %v848
      %v3665 = vunpack.c.l.b16 %v849
      %v3666 = vunpack.c.l.b16 %v850
      %v3667 = vunpack.c.l.b16 %v851
      %v3668 = vunpack.c.l.b16 %v852
      %v3669 = vunpack.c.l.b16 %v853
      %v3670 = vunpack.c.l.b16 %v854
      %v3671 = vunpack.c.l.b16 %v855
      %v3672 = vunpack.c.l.b16 %v856
      %v3673 = vunpack.c.l.b16 %v857
      %v3674 = vunpack.c.l.b16 %v858
      %v3675 = vunpack.c.l.b16 %v859
      %v3676 = vunpack.c.l.b16 %v860
      %v3677 = vunpack.c.l.b16 %v861
      %v3678 = vunpack.c.l.b16 %v862
      %v3679 = vunpack.c.l.b16 %v863
      %v3680 = vunpack.c.l.b16 %v864
      %v3681 = vunpack.c.l.b16 %v865
      %v3682 = vunpack.c.l.b16 %v866
      %v3683 = vunpack.c.l.b16 %v867
      %v3684 = vunpack.c.l.b16 %v868
      %v3685 = vunpack.c.l.b16 %v869
      %v3686 = vunpack.c.l.b16 %v870
      %v3687 = vunpack.c.l.b16 %v871
      %v3688 = vunpack.c.l.b16 %v872
      %v3689 = vunpack.c.l.b16 %v873
      %v3690 = vunpack.c.l.b16 %v874
      %v3691 = vunpack.c.l.b16 %v875
      %v3692 = vunpack.c.l.b16 %v876
      %v3693 = vunpack.c.l.b16 %v877
      %v3694 = vunpack.c.l.b16 %v878
      %v3695 = vunpack.c.l.b16 %v879
      %v3696 = vunpack.c.l.b16 %v880
      %v3697 = vunpack.c.l.b16 %v881
      %v3698 = vunpack.c.l.b16 %v882
      %v3699 = vunpack.c.l.b16 %v883
      %v3700 = vunpack.c.l.b16 %v884
      %v3701 = vunpack.c.l.b16 %v885
      %v3702 = vunpack.c.l.b16 %v886
      %v3703 = vunpack.c.l.b16 %v887
      %v3704 = vunpack.c.l.b16 %v888
      %v3705 = vunpack.c.l.b16 %v889
      %v3706 = vunpack.c.l.b16 %v890
      %v3707 = vunpack.c.l.b16 %v891
      %v3708 = vunpack.c.l.b16 %v892
      %v3709 = vunpack.c.l.b16 %v893
      %v3710 = vunpack.c.l.b16 %v894
      %v3711 = vunpack.c.l.b16 %v895
      %v3712 = vunpack.c.l.b16 %v896
      %v3713 = vunpack.c.l.b16 %v897
      %v3714 = vunpack.c.l.b16 %v898
      %v3715 = vunpack.c.l.b16 %v899
      %v3716 = vunpack.c.l.b16 %v900
      %v3717 = vunpack.c.l.b16 %v901
      %v3718 = vunpack.c.l.b16 %v902
      %v3719 = vunpack.c.l.b16 %v903
      %v3720 = vunpack.c.l.b16 %v904
      %v3721 = vunpack.c.l.b16 %v905
      %v3722 = vunpack.c.l.b16 %v906
      %v3723 = vunpack.c.l.b16 %v907
      %v3724 = vunpack.c.l.b16 %v908
      %v3725 = vunpack.c.l.b16 %v909
      %v3726 = vunpack.c.l.b16 %v910
      %v3727 = vunpack.c.l.b16 %v911
      %v3728 = vunpack.c.l.b16 %v912
      %v3729 = vunpack.c.l.b16 %v913
      %v3730 = vunpack.c.l.b16 %v914
      %v3731 = vunpack.c.l.b16 %v915
      %v3732 = vunpack.c.l.b16 %v916
      %v3733 = vunpack.c.l.b16 %v917
      %v3734 = vunpack.c.l.b16 %v918
      %v3735 = vunpack.c.l.b16 %v919
      %v3736 = vunpack.c.l.b16 %v920
      %v3737 = vunpack.c.l.b16 %v921
      %v3738 = vunpack.c.l.b16 %v922
      %v3739 = vunpack.c.l.b16 %v923
      %v3740 = vunpack.c.l.b16 %v924
      %v3741 = vunpack.c.l.b16 %v925
      %v3742 = vunpack.c.l.b16 %v926
      %v3743 = vunpack.c.l.b16 %v927
      %v3744 = vunpack.c.l.b16 %v928
      %v3745 = vunpack.c.l.b16 %v929
      %v3746 = vunpack.c.l.b16 %v930
      %v3747 = vunpack.c.l.b16 %v931
      %v3748 = vunpack.c.l.b16 %v932
      %v3749 = vunpack.c.l.b16 %v933
      %v3750 = vunpack.c.l.b16 %v934
      %v3751 = vunpack.c.l.b16 %v935
      %v3752 = vunpack.c.l.b16 %v936
      %v3753 = vunpack.c.l.b16 %v937
      %v3754 = vunpack.c.l.b16 %v938
      %v3755 = vunpack.c.l.b16 %v939
      %v3756 = vunpack.c.l.b16 %v940
      %v3757 = vunpack.c.l.b16 %v941
      %v3758 = vunpack.c.l.b16 %v942
      %v3759 = vunpack.c.l.b16 %v943
      %v3760 = vunpack.c.l.b16 %v944
      %v3761 = vunpack.c.l.b16 %v945
      %v3762 = vunpack.c.l.b16 %v946
      %v3763 = vunpack.c.l.b16 %v947
      %v3764 = vunpack.c.l.b16 %v948
      %v3765 = vunpack.c.l.b16 %v949
      %v3766 = vunpack.c.l.b16 %v950
      %v3767 = vunpack.c.l.b16 %v951
      %v3768 = vunpack.c.l.b16 %v952
      %v3769 = vunpack.c.l.b16 %v953
      %v3770 = vunpack.c.l.b16 %v954
      %v3771 = vunpack.c.l.b16 %v955
      %v3772 = vunpack.c.l.b16 %v956
      %v3773 = vunpack.c.l.b16 %v957
      %v3774 = vunpack.c.l.b16 %v958
      %v3775 = vunpack.c.l.b16 %v959
      %v3776 = vunpack.c.l.b16 %v960
      %v3777 = vunpack.c.l.b16 %v961
      %v3778 = vunpack.c.l.b16 %v962
      %v3779 = vunpack.c.l.b16 %v963
      %v3780 = vunpack.c.l.b16 %v964
      %v3781 = vunpack.c.l.b16 %v965
      %v3782 = vunpack.c.l.b16 %v966
      %v3783 = vunpack.c.l.b16 %v967
      %v3784 = vunpack.c.l.b16 %v968
      %v3785 = vunpack.c.l.b16 %v969
      %v3786 = vunpack.c.l.b16 %v970
      %v3787 = vunpack.c.l.b16 %v971
      %v3788 = vunpack.c.l.b16 %v972
      %v3789 = vunpack.c.l.b16 %v973
      %v3790 = vunpack.c.l.b16 %v974
      %v3791 = vunpack.c.l.b16 %v975
      %v3792 = vunpack.c.l.b16 %v976
      %v3793 = vunpack.c.l.b16 %v977
      %v3794 = vunpack.c.l.b16 %v978
      %v3795 = vunpack.c.l.b16 %v979
      %v3796 = vunpack.c.l.b16 %v980
      %v3797 = vunpack.c.l.b16 %v981
      %v3798 = vunpack.c.l.b16 %v982
      %v3799 = vunpack.c.l.b16 %v983
      %v3800 = vunpack.c.l.b16 %v984
      %v3801 = vunpack.c.l.b16 %v985
      %v3802 = vunpack.c.l.b16 %v986
      %v3803 = vunpack.c.l.b16 %v987
      %v3804 = vunpack.c.l.b16 %v988
      %v3805 = vunpack.c.l.b16 %v989
      %v3806 = vunpack.c.l.b16 %v990
      %v3807 = vunpack.c.l.b16 %v991
      %v3808 = vunpack.c.l.b16 %v992
      %v3809 = vunpack.c.l.b16 %v993
      %v3810 = vunpack.c.l.b16 %v994
      %v3811 = vunpack.c.l.b16 %v995
      %v3812 = vunpack.c.l.b16 %v996
      %v3813 = vunpack.c.l.b16 %v997
      %v3814 = vunpack.c.l.b16 %v998
      %v3815 = vunpack.c.l.b16 %v999
      %v3816 = vunpack.c.l.b16 %v1000
      %v3817 = vunpack.c.l.b16 %v1001
      %v3818 = vunpack.c.l.b16 %v1002
      %v3819 = vunpack.c.l.b16 %v1003
      %v3820 = vunpack.c.l.b16 %v1004
      %v3821 = vunpack.c.l.b16 %v1005
      %v3822 = vunpack.c.l.b16 %v1006
      %v3823 = vunpack.c.l.b16 %v1007
      %v3824 = vunpack.c.l.b16 %v1008
      %v3825 = vunpack.c.l.b16 %v1009
      %v3826 = vunpack.c.l.b16 %v1010
      %v3827 = vunpack.c.l.b16 %v1011
      %v3828 = vunpack.c.l.b16 %v1012
      %v3829 = vunpack.c.l.b16 %v1013
      %v3830 = vunpack.c.l.b16 %v1014
      %v3831 = vunpack.c.l.b16 %v1015
      %v3832 = vunpack.c.l.b16 %v1016
      %v3833 = vunpack.c.l.b16 %v1017
      %v3834 = vunpack.c.l.b16 %v1018
      %v3835 = vunpack.c.l.b16 %v1019
      %v3836 = vunpack.c.l.b16 %v1020
      %v3837 = vunpack.c.l.b16 %v1021
      %v3838 = vunpack.c.l.b16 %v1022
      %v3839 = vunpack.c.l.b16 %v1023
      %v3840 = vunpack.c.l.b16 %v1024
      %v3841 = vunpack.c.l.b16 %v1025
      %v3842 = vunpack.c.l.b16 %v1026
      %v3843 = vunpack.c.l.b16 %v1027
      %v3844 = vunpack.c.l.b16 %v1028
      %v3845 = vunpack.c.l.b16 %v1029
      %v3846 = vunpack.c.l.b16 %v1030
      %v3847 = vunpack.c.l.b16 %v1031
      %v3848 = vunpack.c.l.b16 %v1032
      %v3849 = vunpack.c.l.b16 %v1033
      %v3850 = vunpack.c.l.b16 %v1034
      %v3851 = vunpack.c.l.b16 %v1035
      %v3852 = vunpack.c.l.b16 %v1036
      %v3853 = vunpack.c.l.b16 %v1037
      %v3854 = vunpack.c.l.b16 %v1038
      %v3855 = vunpack.c.l.b16 %v1039
      %v3856 = vunpack.c.l.b16 %v1040
      %v3857 = vunpack.c.l.b16 %v1041
      %v3858 = vunpack.c.l.b16 %v1042
      %v3859 = vunpack.c.l.b16 %v1043
      %v3860 = vunpack.c.l.b16 %v1044
      %v3861 = vunpack.c.l.b16 %v1045
      %v3862 = vunpack.c.l.b16 %v1046
      %v3863 = vunpack.c.l.b16 %v1047
      %v3864 = vunpack.c.l.b16 %v1048
      %v3865 = vunpack.c.l.b16 %v1049
      %v3866 = vunpack.c.l.b16 %v1050
      %v3867 = vunpack.c.l.b16 %v1051
      %v3868 = vunpack.c.l.b16 %v1052
      %v3869 = vunpack.c.l.b16 %v1053
      %v3870 = vunpack.c.l.b16 %v1054
      %v3871 = vunpack.c.l.b16 %v1055
      %v3872 = vunpack.c.l.b16 %v1056
      %v3873 = vunpack.c.l.b16 %v1057
      %v3874 = vunpack.c.l.b16 %v1058
      %v3875 = vunpack.c.l.b16 %v1059
      %v3876 = vunpack.c.l.b16 %v1060
      %v3877 = vunpack.c.l.b16 %v1061
      %v3878 = vunpack.c.l.b16 %v1062
      %v3879 = vunpack.c.l.b16 %v1063
      %v3880 = vunpack.c.l.b16 %v1064
      %v3881 = vunpack.c.l.b16 %v1065
      %v3882 = vunpack.c.l.b16 %v1066
      %v3883 = vunpack.c.l.b16 %v1067
      %v3884 = vunpack.c.l.b16 %v1068
      %v3885 = vunpack.c.l.b16 %v1069
      %v3886 = vpack.c.b16 %v3487, %v3486
      %v3887 = vpack.c.b16 %v3489, %v3488
      %v3888 = vpack.c.b16 %v3491, %v3490
      %v3889 = vpack.c.b16 %v3493, %v3492
      %v3890 = vpack.c.b16 %v3495, %v3494
      %v3891 = vpack.c.b16 %v3497, %v3496
      %v3892 = vpack.c.b16 %v3499, %v3498
      %v3893 = vpack.c.b16 %v3501, %v3500
      %v3894 = vpack.c.b16 %v3503, %v3502
      %v3895 = vpack.c.b16 %v3505, %v3504
      %v3896 = vpack.c.b16 %v3507, %v3506
      %v3897 = vpack.c.b16 %v3509, %v3508
      %v3898 = vpack.c.b16 %v3511, %v3510
      %v3899 = vpack.c.b16 %v3513, %v3512
      %v3900 = vpack.c.b16 %v3515, %v3514
      %v3901 = vpack.c.b16 %v3517, %v3516
      %v3902 = vpack.c.b16 %v3519, %v3518
      %v3903 = vpack.c.b16 %v3521, %v3520
      %v3904 = vpack.c.b16 %v3523, %v3522
      %v3905 = vpack.c.b16 %v3525, %v3524
      %v3906 = vpack.c.b16 %v3527, %v3526
      %v3907 = vpack.c.b16 %v3529, %v3528
      %v3908 = vpack.c.b16 %v3531, %v3530
      %v3909 = vpack.c.b16 %v3533, %v3532
      %v3910 = vpack.c.b16 %v3535, %v3534
      %v3911 = vpack.c.b16 %v3537, %v3536
      %v3912 = vpack.c.b16 %v3539, %v3538
      %v3913 = vpack.c.b16 %v3541, %v3540
      %v3914 = vpack.c.b16 %v3543, %v3542
      %v3915 = vpack.c.b16 %v3545, %v3544
      %v3916 = vpack.c.b16 %v3547, %v3546
      %v3917 = vpack.c.b16 %v3549, %v3548
      %v3918 = vpack.c.b16 %v3551, %v3550
      %v3919 = vpack.c.b16 %v3553, %v3552
      %v3920 = vpack.c.b16 %v3555, %v3554
      %v3921 = vpack.c.b16 %v3557, %v3556
      %v3922 = vpack.c.b16 %v3559, %v3558
      %v3923 = vpack.c.b16 %v3561, %v3560
      %v3924 = vpack.c.b16 %v3563, %v3562
      %v3925 = vpack.c.b16 %v3565, %v3564
      %v3926 = vpack.c.b16 %v3567, %v3566
      %v3927 = vpack.c.b16 %v3569, %v3568
      %v3928 = vpack.c.b16 %v3571, %v3570
      %v3929 = vpack.c.b16 %v3573, %v3572
      %v3930 = vpack.c.b16 %v3575, %v3574
      %v3931 = vpack.c.b16 %v3577, %v3576
      %v3932 = vpack.c.b16 %v3579, %v3578
      %v3933 = vpack.c.b16 %v3581, %v3580
      %v3934 = vpack.c.b16 %v3583, %v3582
      %v3935 = vpack.c.b16 %v3585, %v3584
      %v3936 = vpack.c.b16 %v3587, %v3586
      %v3937 = vpack.c.b16 %v3589, %v3588
      %v3938 = vpack.c.b16 %v3591, %v3590
      %v3939 = vpack.c.b16 %v3593, %v3592
      %v3940 = vpack.c.b16 %v3595, %v3594
      %v3941 = vpack.c.b16 %v3597, %v3596
      %v3942 = vpack.c.b16 %v3599, %v3598
      %v3943 = vpack.c.b16 %v3601, %v3600
      %v3944 = vpack.c.b16 %v3603, %v3602
      %v3945 = vpack.c.b16 %v3605, %v3604
      %v3946 = vpack.c.b16 %v3607, %v3606
      %v3947 = vpack.c.b16 %v3609, %v3608
      %v3948 = vpack.c.b16 %v3611, %v3610
      %v3949 = vpack.c.b16 %v3613, %v3612
      %v3950 = vpack.c.b16 %v3615, %v3614
      %v3951 = vpack.c.b16 %v3617, %v3616
      %v3952 = vpack.c.b16 %v3619, %v3618
      %v3953 = vpack.c.b16 %v3621, %v3620
      %v3954 = vpack.c.b16 %v3623, %v3622
      %v3955 = vpack.c.b16 %v3625, %v3624
      %v3956 = vpack.c.b16 %v3627, %v3626
      %v3957 = vpack.c.b16 %v3629, %v3628
      %v3958 = vpack.c.b16 %v3631, %v3630
      %v3959 = vpack.c.b16 %v3633, %v3632
      %v3960 = vpack.c.b16 %v3635, %v3634
      %v3961 = vpack.c.b16 %v3637, %v3636
      %v3962 = vpack.c.b16 %v3639, %v3638
      %v3963 = vpack.c.b16 %v3641, %v3640
      %v3964 = vpack.c.b16 %v3643, %v3642
      %v3965 = vpack.c.b16 %v3645, %v3644
      %v3966 = vpack.c.b16 %v3647, %v3646
      %v3967 = vpack.c.b16 %v3649, %v3648
      %v3968 = vpack.c.b16 %v3651, %v3650
      %v3969 = vpack.c.b16 %v3653, %v3652
      %v3970 = vpack.c.b16 %v3655, %v3654
      %v3971 = vpack.c.b16 %v3657, %v3656
      %v3972 = vpack.c.b16 %v3659, %v3658
      %v3973 = vpack.c.b16 %v3661, %v3660
      %v3974 = vpack.c.b16 %v3663, %v3662
      %v3975 = vpack.c.b16 %v3665, %v3664
      %v3976 = vpack.c.b16 %v3667, %v3666
      %v3977 = vpack.c.b16 %v3669, %v3668
      %v3978 = vpack.c.b16 %v3671, %v3670
      %v3979 = vpack.c.b16 %v3673, %v3672
      %v3980 = vpack.c.b16 %v3675, %v3674
      %v3981 = vpack.c.b16 %v3677, %v3676
      %v3982 = vpack.c.b16 %v3679, %v3678
      %v3983 = vpack.c.b16 %v3681, %v3680
      %v3984 = vpack.c.b16 %v3683, %v3682
      %v3985 = vpack.c.b16 %v3685, %v3684
      %v3986 = vpack.c.b16 %v3687, %v3686
      %v3987 = vpack.c.b16 %v3689, %v3688
      %v3988 = vpack.c.b16 %v3691, %v3690
      %v3989 = vpack.c.b16 %v3693, %v3692
      %v3990 = vpack.c.b16 %v3695, %v3694
      %v3991 = vpack.c.b16 %v3697, %v3696
      %v3992 = vpack.c.b16 %v3699, %v3698
      %v3993 = vpack.c.b16 %v3701, %v3700
      %v3994 = vpack.c.b16 %v3703, %v3702
      %v3995 = vpack.c.b16 %v3705, %v3704
      %v3996 = vpack.c.b16 %v3707, %v3706
      %v3997 = vpack.c.b16 %v3709, %v3708
      %v3998 = vpack.c.b16 %v3711, %v3710
      %v3999 = vpack.c.b16 %v3713, %v3712
      %v4000 = vpack.c.b16 %v3715, %v3714
      %v4001 = vpack.c.b16 %v3717, %v3716
      %v4002 = vpack.c.b16 %v3719, %v3718
      %v4003 = vpack.c.b16 %v3721, %v3720
      %v4004 = vpack.c.b16 %v3723, %v3722
      %v4005 = vpack.c.b16 %v3725, %v3724
      %v4006 = vpack.c.b16 %v3727, %v3726
      %v4007 = vpack.c.b16 %v3729, %v3728
      %v4008 = vpack.c.b16 %v3731, %v3730
      %v4009 = vpack.c.b16 %v3733, %v3732
      %v4010 = vpack.c.b16 %v3735, %v3734
      %v4011 = vpack.c.b16 %v3737, %v3736
      %v4012 = vpack.c.b16 %v3739, %v3738
      %v4013 = vpack.c.b16 %v3741, %v3740
      %v4014 = vpack.c.b16 %v3743, %v3742
      %v4015 = vpack.c.b16 %v3745, %v3744
      %v4016 = vpack.c.b16 %v3747, %v3746
      %v4017 = vpack.c.b16 %v3749, %v3748
      %v4018 = vpack.c.b16 %v3751, %v3750
      %v4019 = vpack.c.b16 %v3753, %v3752
      %v4020 = vpack.c.b16 %v3755, %v3754
      %v4021 = vpack.c.b16 %v3757, %v3756
      %v4022 = vpack.c.b16 %v3759, %v3758
      %v4023 = vpack.c.b16 %v3761, %v3760
      %v4024 = vpack.c.b16 %v3763, %v3762
      %v4025 = vpack.c.b16 %v3765, %v3764
      %v4026 = vpack.c.b16 %v3767, %v3766
      %v4027 = vpack.c.b16 %v3769, %v3768
      %v4028 = vpack.c.b16 %v3771, %v3770
      %v4029 = vpack.c.b16 %v3773, %v3772
      %v4030 = vpack.c.b16 %v3775, %v3774
      %v4031 = vpack.c.b16 %v3777, %v3776
      %v4032 = vpack.c.b16 %v3779, %v3778
      %v4033 = vpack.c.b16 %v3781, %v3780
      %v4034 = vpack.c.b16 %v3783, %v3782
      %v4035 = vpack.c.b16 %v3785, %v3784
      %v4036 = vpack.c.b16 %v3787, %v3786
      %v4037 = vpack.c.b16 %v3789, %v3788
      %v4038 = vpack.c.b16 %v3791, %v3790
      %v4039 = vpack.c.b16 %v3793, %v3792
      %v4040 = vpack.c.b16 %v3795, %v3794
      %v4041 = vpack.c.b16 %v3797, %v3796
      %v4042 = vpack.c.b16 %v3799, %v3798
      %v4043 = vpack.c.b16 %v3801, %v3800
      %v4044 = vpack.c.b16 %v3803, %v3802
      %v4045 = vpack.c.b16 %v3805, %v3804
      %v4046 = vpack.c.b16 %v3807, %v3806
      %v4047 = vpack.c.b16 %v3809, %v3808
      %v4048 = vpack.c.b16 %v3811, %v3810
      %v4049 = vpack.c.b16 %v3813, %v3812
      %v4050 = vpack.c.b16 %v3815, %v3814
      %v4051 = vpack.c.b16 %v3817, %v3816
      %v4052 = vpack.c.b16 %v3819, %v3818
      %v4053 = vpack.c.b16 %v3821, %v3820
      %v4054 = vpack.c.b16 %v3823, %v3822
      %v4055 = vpack.c.b16 %v3825, %v3824
      %v4056 = vpack.c.b16 %v3827, %v3826
      %v4057 = vpack.c.b16 %v3829, %v3828
      %v4058 = vpack.c.b16 %v3831, %v3830
      %v4059 = vpack.c.b16 %v3833, %v3832
      %v4060 = vpack.c.b16 %v3835, %v3834
      %v4061 = vpack.c.b16 %v3837, %v3836
      %v4062 = vpack.c.b16 %v3839, %v3838
      %v4063 = vpack.c.b16 %v3841, %v3840
      %v4064 = vpack.c.b16 %v3843, %v3842
      %v4065 = vpack.c.b16 %v3845, %v3844
      %v4066 = vpack.c.b16 %v3847, %v3846
      %v4067 = vpack.c.b16 %v3849, %v3848
      %v4068 = vpack.c.b16 %v3851, %v3850
      %v4069 = vpack.c.b16 %v3853, %v3852
      %v4070 = vpack.c.b16 %v3855, %v3854
      %v4071 = vpack.c.b16 %v3857, %v3856
      %v4072 = vpack.c.b16 %v3859, %v3858
      %v4073 = vpack.c.b16 %v3861, %v3860
      %v4074 = vpack.c.b16 %v3863, %v3862
      %v4075 = vpack.c.b16 %v3865, %v3864
      %v4076 = vpack.c.b16 %v3867, %v3866
      %v4077 = vpack.c.b16 %v3869, %v3868
      %v4078 = vpack.c.b16 %v3871, %v3870
      %v4079 = vpack.c.b16 %v3873, %v3872
      %v4080 = vpack.c.b16 %v3875, %v3874
      %v4081 = vpack.c.b16 %v3877, %v3876
      %v4082 = vpack.c.b16 %v3879, %v3878
      %v4083 = vpack.c.b16 %v3881, %v3880
      %v4084 = vpack.c.b16 %v3883, %v3882
      %v4085 = vpack.c.b16 %v3885, %v3884
      %4286 = vmatpush.bf16.msra.mxu0 %v3893
      %4287 = vmatpush.bf16.msra.mxu0 %v3892
      %4288 = vmatpush.bf16.msra.mxu0 %v3891
      %4289 = vmatpush.bf16.msra.mxu0 %v3890
      %4290 = vmatpush.bf16.msra.mxu0 %v3889
      %4291 = vmatpush.bf16.msra.mxu0 %v3888
      %4292 = vmatpush.bf16.msra.mxu0 %v3887
      %4293 = vmatpush.bf16.msra.mxu0 %v3886
      %4294 = vmatmul.bf16.gmra.mxu0 %v2286
      %v4295 = vpop.f32.mrf.mxu0
      %v4296 = vadd.f32 0.0, %v4295
      %v4297 = vpop.f32.mrf.mxu0
      %v4298 = vadd.f32 0.0, %v4297
      %4299 = vmatmul.bf16.gmra.mxu0 %v2311
      %v4300 = vpop.f32.mrf.mxu0
      %v4301 = vadd.f32 0.0, %v4300
      %v4302 = vpop.f32.mrf.mxu0
      %v4303 = vadd.f32 0.0, %v4302
      %4304 = vmatmul.bf16.gmra.mxu0 %v2336
      %v4305 = vpop.f32.mrf.mxu0
      %v4306 = vadd.f32 0.0, %v4305
      %v4307 = vpop.f32.mrf.mxu0
      %v4308 = vadd.f32 0.0, %v4307
      %4309 = vmatmul.bf16.gmra.mxu0 %v2361
      %v4310 = vpop.f32.mrf.mxu0
      %v4311 = vadd.f32 0.0, %v4310
      %v4312 = vpop.f32.mrf.mxu0
      %v4313 = vadd.f32 0.0, %v4312
      %4314 = vmatmul.bf16.gmra.mxu0 %v2386
      %v4315 = vpop.f32.mrf.mxu0
      %v4316 = vadd.f32 0.0, %v4315
      %v4317 = vpop.f32.mrf.mxu0
      %v4318 = vadd.f32 0.0, %v4317
      %4319 = vmatmul.bf16.gmra.mxu0 %v2411
      %v4320 = vpop.f32.mrf.mxu0
      %v4321 = vadd.f32 0.0, %v4320
      %v4322 = vpop.f32.mrf.mxu0
      %v4323 = vadd.f32 0.0, %v4322
      %4324 = vmatmul.bf16.gmra.mxu0 %v2436
      %v4325 = vpop.f32.mrf.mxu0
      %v4326 = vadd.f32 0.0, %v4325
      %v4327 = vpop.f32.mrf.mxu0
      %v4328 = vadd.f32 0.0, %v4327
      %4329 = vmatmul.bf16.gmra.mxu0 %v2461
      %v4330 = vpop.f32.mrf.mxu0
      %v4331 = vadd.f32 0.0, %v4330
      %v4332 = vpop.f32.mrf.mxu0
      %v4333 = vadd.f32 0.0, %v4332
      %4334 = vmatmul.bf16.gmra.mxu0 %v2486
      %v4335 = vpop.f32.mrf.mxu0
      %v4336 = vadd.f32 0.0, %v4335
      %v4337 = vpop.f32.mrf.mxu0
      %v4338 = vadd.f32 0.0, %v4337
      %4339 = vmatmul.bf16.gmra.mxu0 %v2511
      %v4340 = vpop.f32.mrf.mxu0
      %v4341 = vadd.f32 0.0, %v4340
      %v4342 = vpop.f32.mrf.mxu0
      %v4343 = vadd.f32 0.0, %v4342
      %4344 = vmatmul.bf16.gmra.mxu0 %v2536
      %v4345 = vpop.f32.mrf.mxu0
      %v4346 = vadd.f32 0.0, %v4345
      %v4347 = vpop.f32.mrf.mxu0
      %v4348 = vadd.f32 0.0, %v4347
      %4349 = vmatmul.bf16.gmra.mxu0 %v2561
      %v4350 = vpop.f32.mrf.mxu0
      %v4351 = vadd.f32 0.0, %v4350
      %v4352 = vpop.f32.mrf.mxu0
      %v4353 = vadd.f32 0.0, %v4352
      %4354 = vmatmul.bf16.gmra.mxu0 %v2586
      %v4355 = vpop.f32.mrf.mxu0
      %v4356 = vadd.f32 0.0, %v4355
      %v4357 = vpop.f32.mrf.mxu0
      %v4358 = vadd.f32 0.0, %v4357
      %4359 = vmatmul.bf16.gmra.mxu0 %v2611
      %v4360 = vpop.f32.mrf.mxu0
      %v4361 = vadd.f32 0.0, %v4360
      %v4362 = vpop.f32.mrf.mxu0
      %v4363 = vadd.f32 0.0, %v4362
      %4364 = vmatmul.bf16.gmra.mxu0 %v2636
      %v4365 = vpop.f32.mrf.mxu0
      %v4366 = vadd.f32 0.0, %v4365
      %v4367 = vpop.f32.mrf.mxu0
      %v4368 = vadd.f32 0.0, %v4367
      %4369 = vmatmul.bf16.gmra.mxu0 %v2661
      %v4370 = vpop.f32.mrf.mxu0
      %v4371 = vadd.f32 0.0, %v4370
      %v4372 = vpop.f32.mrf.mxu0
      %v4373 = vadd.f32 0.0, %v4372
      %4374 = vdwg.mxu0
      %4375 = vmatpush.bf16.msra.mxu0 %v3901
      %4376 = vmatpush.bf16.msra.mxu0 %v3900
      %4377 = vmatpush.bf16.msra.mxu0 %v3899
      %4378 = vmatpush.bf16.msra.mxu0 %v3898
      %4379 = vmatpush.bf16.msra.mxu0 %v3897
      %4380 = vmatpush.bf16.msra.mxu0 %v3896
      %4381 = vmatpush.bf16.msra.mxu0 %v3895
      %4382 = vmatpush.bf16.msra.mxu0 %v3894
      %4383 = vmatmul.bf16.gmra.mxu0 %v2287
      %v4384 = vpop.f32.mrf.mxu0
      %v4385 = vadd.f32 %v4296, %v4384
      %v4386 = vpop.f32.mrf.mxu0
      %v4387 = vadd.f32 %v4298, %v4386
      %4388 = vmatmul.bf16.gmra.mxu0 %v2312
      %v4389 = vpop.f32.mrf.mxu0
      %v4390 = vadd.f32 %v4301, %v4389
      %v4391 = vpop.f32.mrf.mxu0
      %v4392 = vadd.f32 %v4303, %v4391
      %4393 = vmatmul.bf16.gmra.mxu0 %v2337
      %v4394 = vpop.f32.mrf.mxu0
      %v4395 = vadd.f32 %v4306, %v4394
      %v4396 = vpop.f32.mrf.mxu0
      %v4397 = vadd.f32 %v4308, %v4396
      %4398 = vmatmul.bf16.gmra.mxu0 %v2362
      %v4399 = vpop.f32.mrf.mxu0
      %v4400 = vadd.f32 %v4311, %v4399
      %v4401 = vpop.f32.mrf.mxu0
      %v4402 = vadd.f32 %v4313, %v4401
      %4403 = vmatmul.bf16.gmra.mxu0 %v2387
      %v4404 = vpop.f32.mrf.mxu0
      %v4405 = vadd.f32 %v4316, %v4404
      %v4406 = vpop.f32.mrf.mxu0
      %v4407 = vadd.f32 %v4318, %v4406
      %4408 = vmatmul.bf16.gmra.mxu0 %v2412
      %v4409 = vpop.f32.mrf.mxu0
      %v4410 = vadd.f32 %v4321, %v4409
      %v4411 = vpop.f32.mrf.mxu0
      %v4412 = vadd.f32 %v4323, %v4411
      %4413 = vmatmul.bf16.gmra.mxu0 %v2437
      %v4414 = vpop.f32.mrf.mxu0
      %v4415 = vadd.f32 %v4326, %v4414
      %v4416 = vpop.f32.mrf.mxu0
      %v4417 = vadd.f32 %v4328, %v4416
      %4418 = vmatmul.bf16.gmra.mxu0 %v2462
      %v4419 = vpop.f32.mrf.mxu0
      %v4420 = vadd.f32 %v4331, %v4419
      %v4421 = vpop.f32.mrf.mxu0
      %v4422 = vadd.f32 %v4333, %v4421
      %4423 = vmatmul.bf16.gmra.mxu0 %v2487
      %v4424 = vpop.f32.mrf.mxu0
      %v4425 = vadd.f32 %v4336, %v4424
      %v4426 = vpop.f32.mrf.mxu0
      %v4427 = vadd.f32 %v4338, %v4426
      %4428 = vmatmul.bf16.gmra.mxu0 %v2512
      %v4429 = vpop.f32.mrf.mxu0
      %v4430 = vadd.f32 %v4341, %v4429
      %v4431 = vpop.f32.mrf.mxu0
      %v4432 = vadd.f32 %v4343, %v4431
      %4433 = vmatmul.bf16.gmra.mxu0 %v2537
      %v4434 = vpop.f32.mrf.mxu0
      %v4435 = vadd.f32 %v4346, %v4434
      %v4436 = vpop.f32.mrf.mxu0
      %v4437 = vadd.f32 %v4348, %v4436
      %4438 = vmatmul.bf16.gmra.mxu0 %v2562
      %v4439 = vpop.f32.mrf.mxu0
      %v4440 = vadd.f32 %v4351, %v4439
      %v4441 = vpop.f32.mrf.mxu0
      %v4442 = vadd.f32 %v4353, %v4441
      %4443 = vmatmul.bf16.gmra.mxu0 %v2587
      %v4444 = vpop.f32.mrf.mxu0
      %v4445 = vadd.f32 %v4356, %v4444
      %v4446 = vpop.f32.mrf.mxu0
      %v4447 = vadd.f32 %v4358, %v4446
      %4448 = vmatmul.bf16.gmra.mxu0 %v2612
      %v4449 = vpop.f32.mrf.mxu0
      %v4450 = vadd.f32 %v4361, %v4449
      %v4451 = vpop.f32.mrf.mxu0
      %v4452 = vadd.f32 %v4363, %v4451
      %4453 = vmatmul.bf16.gmra.mxu0 %v2637
      %v4454 = vpop.f32.mrf.mxu0
      %v4455 = vadd.f32 %v4366, %v4454
      %v4456 = vpop.f32.mrf.mxu0
      %v4457 = vadd.f32 %v4368, %v4456
      %4458 = vmatmul.bf16.gmra.mxu0 %v2662
      %v4459 = vpop.f32.mrf.mxu0
      %v4460 = vadd.f32 %v4371, %v4459
      %v4461 = vpop.f32.mrf.mxu0
      %v4462 = vadd.f32 %v4373, %v4461
      %4463 = vdwg.mxu0
      %4464 = vmatpush.bf16.msra.mxu0 %v3909
      %4465 = vmatpush.bf16.msra.mxu0 %v3908
      %4466 = vmatpush.bf16.msra.mxu0 %v3907
      %4467 = vmatpush.bf16.msra.mxu0 %v3906
      %4468 = vmatpush.bf16.msra.mxu0 %v3905
      %4469 = vmatpush.bf16.msra.mxu0 %v3904
      %4470 = vmatpush.bf16.msra.mxu0 %v3903
      %4471 = vmatpush.bf16.msra.mxu0 %v3902
      %4472 = vmatmul.bf16.gmra.mxu0 %v2288
      %v4473 = vpop.f32.mrf.mxu0
      %v4474 = vadd.f32 %v4385, %v4473
      %v4475 = vpop.f32.mrf.mxu0
      %v4476 = vadd.f32 %v4387, %v4475
      %4477 = vmatmul.bf16.gmra.mxu0 %v2313
      %v4478 = vpop.f32.mrf.mxu0
      %v4479 = vadd.f32 %v4390, %v4478
      %v4480 = vpop.f32.mrf.mxu0
      %v4481 = vadd.f32 %v4392, %v4480
      %4482 = vmatmul.bf16.gmra.mxu0 %v2338
      %v4483 = vpop.f32.mrf.mxu0
      %v4484 = vadd.f32 %v4395, %v4483
      %v4485 = vpop.f32.mrf.mxu0
      %v4486 = vadd.f32 %v4397, %v4485
      %4487 = vmatmul.bf16.gmra.mxu0 %v2363
      %v4488 = vpop.f32.mrf.mxu0
      %v4489 = vadd.f32 %v4400, %v4488
      %v4490 = vpop.f32.mrf.mxu0
      %v4491 = vadd.f32 %v4402, %v4490
      %4492 = vmatmul.bf16.gmra.mxu0 %v2388
      %v4493 = vpop.f32.mrf.mxu0
      %v4494 = vadd.f32 %v4405, %v4493
      %v4495 = vpop.f32.mrf.mxu0
      %v4496 = vadd.f32 %v4407, %v4495
      %4497 = vmatmul.bf16.gmra.mxu0 %v2413
      %v4498 = vpop.f32.mrf.mxu0
      %v4499 = vadd.f32 %v4410, %v4498
      %v4500 = vpop.f32.mrf.mxu0
      %v4501 = vadd.f32 %v4412, %v4500
      %4502 = vmatmul.bf16.gmra.mxu0 %v2438
      %v4503 = vpop.f32.mrf.mxu0
      %v4504 = vadd.f32 %v4415, %v4503
      %v4505 = vpop.f32.mrf.mxu0
      %v4506 = vadd.f32 %v4417, %v4505
      %4507 = vmatmul.bf16.gmra.mxu0 %v2463
      %v4508 = vpop.f32.mrf.mxu0
      %v4509 = vadd.f32 %v4420, %v4508
      %v4510 = vpop.f32.mrf.mxu0
      %v4511 = vadd.f32 %v4422, %v4510
      %4512 = vmatmul.bf16.gmra.mxu0 %v2488
      %v4513 = vpop.f32.mrf.mxu0
      %v4514 = vadd.f32 %v4425, %v4513
      %v4515 = vpop.f32.mrf.mxu0
      %v4516 = vadd.f32 %v4427, %v4515
      %4517 = vmatmul.bf16.gmra.mxu0 %v2513
      %v4518 = vpop.f32.mrf.mxu0
      %v4519 = vadd.f32 %v4430, %v4518
      %v4520 = vpop.f32.mrf.mxu0
      %v4521 = vadd.f32 %v4432, %v4520
      %4522 = vmatmul.bf16.gmra.mxu0 %v2538
      %v4523 = vpop.f32.mrf.mxu0
      %v4524 = vadd.f32 %v4435, %v4523
      %v4525 = vpop.f32.mrf.mxu0
      %v4526 = vadd.f32 %v4437, %v4525
      %4527 = vmatmul.bf16.gmra.mxu0 %v2563
      %v4528 = vpop.f32.mrf.mxu0
      %v4529 = vadd.f32 %v4440, %v4528
      %v4530 = vpop.f32.mrf.mxu0
      %v4531 = vadd.f32 %v4442, %v4530
      %4532 = vmatmul.bf16.gmra.mxu0 %v2588
      %v4533 = vpop.f32.mrf.mxu0
      %v4534 = vadd.f32 %v4445, %v4533
      %v4535 = vpop.f32.mrf.mxu0
      %v4536 = vadd.f32 %v4447, %v4535
      %4537 = vmatmul.bf16.gmra.mxu0 %v2613
      %v4538 = vpop.f32.mrf.mxu0
      %v4539 = vadd.f32 %v4450, %v4538
      %v4540 = vpop.f32.mrf.mxu0
      %v4541 = vadd.f32 %v4452, %v4540
      %4542 = vmatmul.bf16.gmra.mxu0 %v2638
      %v4543 = vpop.f32.mrf.mxu0
      %v4544 = vadd.f32 %v4455, %v4543
      %v4545 = vpop.f32.mrf.mxu0
      %v4546 = vadd.f32 %v4457, %v4545
      %4547 = vmatmul.bf16.gmra.mxu0 %v2663
      %v4548 = vpop.f32.mrf.mxu0
      %v4549 = vadd.f32 %v4460, %v4548
      %v4550 = vpop.f32.mrf.mxu0
      %v4551 = vadd.f32 %v4462, %v4550
      %4552 = vdwg.mxu0
      %4553 = vmatpush.bf16.msra.mxu0 %v3917
      %4554 = vmatpush.bf16.msra.mxu0 %v3916
      %4555 = vmatpush.bf16.msra.mxu0 %v3915
      %4556 = vmatpush.bf16.msra.mxu0 %v3914
      %4557 = vmatpush.bf16.msra.mxu0 %v3913
      %4558 = vmatpush.bf16.msra.mxu0 %v3912
      %4559 = vmatpush.bf16.msra.mxu0 %v3911
      %4560 = vmatpush.bf16.msra.mxu0 %v3910
      %4561 = vmatmul.bf16.gmra.mxu0 %v2289
      %v4562 = vpop.f32.mrf.mxu0
      %v4563 = vadd.f32 %v4474, %v4562
      %v4564 = vpop.f32.mrf.mxu0
      %v4565 = vadd.f32 %v4476, %v4564
      %4566 = vmatmul.bf16.gmra.mxu0 %v2314
      %v4567 = vpop.f32.mrf.mxu0
      %v4568 = vadd.f32 %v4479, %v4567
      %v4569 = vpop.f32.mrf.mxu0
      %v4570 = vadd.f32 %v4481, %v4569
      %4571 = vmatmul.bf16.gmra.mxu0 %v2339
      %v4572 = vpop.f32.mrf.mxu0
      %v4573 = vadd.f32 %v4484, %v4572
      %v4574 = vpop.f32.mrf.mxu0
      %v4575 = vadd.f32 %v4486, %v4574
      %4576 = vmatmul.bf16.gmra.mxu0 %v2364
      %v4577 = vpop.f32.mrf.mxu0
      %v4578 = vadd.f32 %v4489, %v4577
      %v4579 = vpop.f32.mrf.mxu0
      %v4580 = vadd.f32 %v4491, %v4579
      %4581 = vmatmul.bf16.gmra.mxu0 %v2389
      %v4582 = vpop.f32.mrf.mxu0
      %v4583 = vadd.f32 %v4494, %v4582
      %v4584 = vpop.f32.mrf.mxu0
      %v4585 = vadd.f32 %v4496, %v4584
      %4586 = vmatmul.bf16.gmra.mxu0 %v2414
      %v4587 = vpop.f32.mrf.mxu0
      %v4588 = vadd.f32 %v4499, %v4587
      %v4589 = vpop.f32.mrf.mxu0
      %v4590 = vadd.f32 %v4501, %v4589
      %4591 = vmatmul.bf16.gmra.mxu0 %v2439
      %v4592 = vpop.f32.mrf.mxu0
      %v4593 = vadd.f32 %v4504, %v4592
      %v4594 = vpop.f32.mrf.mxu0
      %v4595 = vadd.f32 %v4506, %v4594
      %4596 = vmatmul.bf16.gmra.mxu0 %v2464
      %v4597 = vpop.f32.mrf.mxu0
      %v4598 = vadd.f32 %v4509, %v4597
      %v4599 = vpop.f32.mrf.mxu0
      %v4600 = vadd.f32 %v4511, %v4599
      %4601 = vmatmul.bf16.gmra.mxu0 %v2489
      %v4602 = vpop.f32.mrf.mxu0
      %v4603 = vadd.f32 %v4514, %v4602
      %v4604 = vpop.f32.mrf.mxu0
      %v4605 = vadd.f32 %v4516, %v4604
      %4606 = vmatmul.bf16.gmra.mxu0 %v2514
      %v4607 = vpop.f32.mrf.mxu0
      %v4608 = vadd.f32 %v4519, %v4607
      %v4609 = vpop.f32.mrf.mxu0
      %v4610 = vadd.f32 %v4521, %v4609
      %4611 = vmatmul.bf16.gmra.mxu0 %v2539
      %v4612 = vpop.f32.mrf.mxu0
      %v4613 = vadd.f32 %v4524, %v4612
      %v4614 = vpop.f32.mrf.mxu0
      %v4615 = vadd.f32 %v4526, %v4614
      %4616 = vmatmul.bf16.gmra.mxu0 %v2564
      %v4617 = vpop.f32.mrf.mxu0
      %v4618 = vadd.f32 %v4529, %v4617
      %v4619 = vpop.f32.mrf.mxu0
      %v4620 = vadd.f32 %v4531, %v4619
      %4621 = vmatmul.bf16.gmra.mxu0 %v2589
      %v4622 = vpop.f32.mrf.mxu0
      %v4623 = vadd.f32 %v4534, %v4622
      %v4624 = vpop.f32.mrf.mxu0
      %v4625 = vadd.f32 %v4536, %v4624
      %4626 = vmatmul.bf16.gmra.mxu0 %v2614
      %v4627 = vpop.f32.mrf.mxu0
      %v4628 = vadd.f32 %v4539, %v4627
      %v4629 = vpop.f32.mrf.mxu0
      %v4630 = vadd.f32 %v4541, %v4629
      %4631 = vmatmul.bf16.gmra.mxu0 %v2639
      %v4632 = vpop.f32.mrf.mxu0
      %v4633 = vadd.f32 %v4544, %v4632
      %v4634 = vpop.f32.mrf.mxu0
      %v4635 = vadd.f32 %v4546, %v4634
      %4636 = vmatmul.bf16.gmra.mxu0 %v2664
      %v4637 = vpop.f32.mrf.mxu0
      %v4638 = vadd.f32 %v4549, %v4637
      %v4639 = vpop.f32.mrf.mxu0
      %v4640 = vadd.f32 %v4551, %v4639
      %4641 = vdwg.mxu0
      %4642 = vmatpush.bf16.msra.mxu0 %v3925
      %4643 = vmatpush.bf16.msra.mxu0 %v3924
      %4644 = vmatpush.bf16.msra.mxu0 %v3923
      %4645 = vmatpush.bf16.msra.mxu0 %v3922
      %4646 = vmatpush.bf16.msra.mxu0 %v3921
      %4647 = vmatpush.bf16.msra.mxu0 %v3920
      %4648 = vmatpush.bf16.msra.mxu0 %v3919
      %4649 = vmatpush.bf16.msra.mxu0 %v3918
      %4650 = vmatmul.bf16.gmra.mxu0 %v2290
      %v4651 = vpop.f32.mrf.mxu0
      %v4652 = vadd.f32 %v4563, %v4651
      %v4653 = vpop.f32.mrf.mxu0
      %v4654 = vadd.f32 %v4565, %v4653
      %4655 = vmatmul.bf16.gmra.mxu0 %v2315
      %v4656 = vpop.f32.mrf.mxu0
      %v4657 = vadd.f32 %v4568, %v4656
      %v4658 = vpop.f32.mrf.mxu0
      %v4659 = vadd.f32 %v4570, %v4658
      %4660 = vmatmul.bf16.gmra.mxu0 %v2340
      %v4661 = vpop.f32.mrf.mxu0
      %v4662 = vadd.f32 %v4573, %v4661
      %v4663 = vpop.f32.mrf.mxu0
      %v4664 = vadd.f32 %v4575, %v4663
      %4665 = vmatmul.bf16.gmra.mxu0 %v2365
      %v4666 = vpop.f32.mrf.mxu0
      %v4667 = vadd.f32 %v4578, %v4666
      %v4668 = vpop.f32.mrf.mxu0
      %v4669 = vadd.f32 %v4580, %v4668
      %4670 = vmatmul.bf16.gmra.mxu0 %v2390
      %v4671 = vpop.f32.mrf.mxu0
      %v4672 = vadd.f32 %v4583, %v4671
      %v4673 = vpop.f32.mrf.mxu0
      %v4674 = vadd.f32 %v4585, %v4673
      %4675 = vmatmul.bf16.gmra.mxu0 %v2415
      %v4676 = vpop.f32.mrf.mxu0
      %v4677 = vadd.f32 %v4588, %v4676
      %v4678 = vpop.f32.mrf.mxu0
      %v4679 = vadd.f32 %v4590, %v4678
      %4680 = vmatmul.bf16.gmra.mxu0 %v2440
      %v4681 = vpop.f32.mrf.mxu0
      %v4682 = vadd.f32 %v4593, %v4681
      %v4683 = vpop.f32.mrf.mxu0
      %v4684 = vadd.f32 %v4595, %v4683
      %4685 = vmatmul.bf16.gmra.mxu0 %v2465
      %v4686 = vpop.f32.mrf.mxu0
      %v4687 = vadd.f32 %v4598, %v4686
      %v4688 = vpop.f32.mrf.mxu0
      %v4689 = vadd.f32 %v4600, %v4688
      %4690 = vmatmul.bf16.gmra.mxu0 %v2490
      %v4691 = vpop.f32.mrf.mxu0
      %v4692 = vadd.f32 %v4603, %v4691
      %v4693 = vpop.f32.mrf.mxu0
      %v4694 = vadd.f32 %v4605, %v4693
      %4695 = vmatmul.bf16.gmra.mxu0 %v2515
      %v4696 = vpop.f32.mrf.mxu0
      %v4697 = vadd.f32 %v4608, %v4696
      %v4698 = vpop.f32.mrf.mxu0
      %v4699 = vadd.f32 %v4610, %v4698
      %4700 = vmatmul.bf16.gmra.mxu0 %v2540
      %v4701 = vpop.f32.mrf.mxu0
      %v4702 = vadd.f32 %v4613, %v4701
      %v4703 = vpop.f32.mrf.mxu0
      %v4704 = vadd.f32 %v4615, %v4703
      %4705 = vmatmul.bf16.gmra.mxu0 %v2565
      %v4706 = vpop.f32.mrf.mxu0
      %v4707 = vadd.f32 %v4618, %v4706
      %v4708 = vpop.f32.mrf.mxu0
      %v4709 = vadd.f32 %v4620, %v4708
      %4710 = vmatmul.bf16.gmra.mxu0 %v2590
      %v4711 = vpop.f32.mrf.mxu0
      %v4712 = vadd.f32 %v4623, %v4711
      %v4713 = vpop.f32.mrf.mxu0
      %v4714 = vadd.f32 %v4625, %v4713
      %4715 = vmatmul.bf16.gmra.mxu0 %v2615
      %v4716 = vpop.f32.mrf.mxu0
      %v4717 = vadd.f32 %v4628, %v4716
      %v4718 = vpop.f32.mrf.mxu0
      %v4719 = vadd.f32 %v4630, %v4718
      %4720 = vmatmul.bf16.gmra.mxu0 %v2640
      %v4721 = vpop.f32.mrf.mxu0
      %v4722 = vadd.f32 %v4633, %v4721
      %v4723 = vpop.f32.mrf.mxu0
      %v4724 = vadd.f32 %v4635, %v4723
      %4725 = vmatmul.bf16.gmra.mxu0 %v2665
      %v4726 = vpop.f32.mrf.mxu0
      %v4727 = vadd.f32 %v4638, %v4726
      %v4728 = vpop.f32.mrf.mxu0
      %v4729 = vadd.f32 %v4640, %v4728
      %4730 = vdwg.mxu0
      %4731 = vmatpush.bf16.msra.mxu0 %v3933
      %4732 = vmatpush.bf16.msra.mxu0 %v3932
      %4733 = vmatpush.bf16.msra.mxu0 %v3931
      %4734 = vmatpush.bf16.msra.mxu0 %v3930
      %4735 = vmatpush.bf16.msra.mxu0 %v3929
      %4736 = vmatpush.bf16.msra.mxu0 %v3928
      %4737 = vmatpush.bf16.msra.mxu0 %v3927
      %4738 = vmatpush.bf16.msra.mxu0 %v3926
      %4739 = vmatmul.bf16.gmra.mxu0 %v2291
      %v4740 = vpop.f32.mrf.mxu0
      %v4741 = vadd.f32 %v4652, %v4740
      %v4742 = vpop.f32.mrf.mxu0
      %v4743 = vadd.f32 %v4654, %v4742
      %4744 = vmatmul.bf16.gmra.mxu0 %v2316
      %v4745 = vpop.f32.mrf.mxu0
      %v4746 = vadd.f32 %v4657, %v4745
      %v4747 = vpop.f32.mrf.mxu0
      %v4748 = vadd.f32 %v4659, %v4747
      %4749 = vmatmul.bf16.gmra.mxu0 %v2341
      %v4750 = vpop.f32.mrf.mxu0
      %v4751 = vadd.f32 %v4662, %v4750
      %v4752 = vpop.f32.mrf.mxu0
      %v4753 = vadd.f32 %v4664, %v4752
      %4754 = vmatmul.bf16.gmra.mxu0 %v2366
      %v4755 = vpop.f32.mrf.mxu0
      %v4756 = vadd.f32 %v4667, %v4755
      %v4757 = vpop.f32.mrf.mxu0
      %v4758 = vadd.f32 %v4669, %v4757
      %4759 = vmatmul.bf16.gmra.mxu0 %v2391
      %v4760 = vpop.f32.mrf.mxu0
      %v4761 = vadd.f32 %v4672, %v4760
      %v4762 = vpop.f32.mrf.mxu0
      %v4763 = vadd.f32 %v4674, %v4762
      %4764 = vmatmul.bf16.gmra.mxu0 %v2416
      %v4765 = vpop.f32.mrf.mxu0
      %v4766 = vadd.f32 %v4677, %v4765
      %v4767 = vpop.f32.mrf.mxu0
      %v4768 = vadd.f32 %v4679, %v4767
      %4769 = vmatmul.bf16.gmra.mxu0 %v2441
      %v4770 = vpop.f32.mrf.mxu0
      %v4771 = vadd.f32 %v4682, %v4770
      %v4772 = vpop.f32.mrf.mxu0
      %v4773 = vadd.f32 %v4684, %v4772
      %4774 = vmatmul.bf16.gmra.mxu0 %v2466
      %v4775 = vpop.f32.mrf.mxu0
      %v4776 = vadd.f32 %v4687, %v4775
      %v4777 = vpop.f32.mrf.mxu0
      %v4778 = vadd.f32 %v4689, %v4777
      %4779 = vmatmul.bf16.gmra.mxu0 %v2491
      %v4780 = vpop.f32.mrf.mxu0
      %v4781 = vadd.f32 %v4692, %v4780
      %v4782 = vpop.f32.mrf.mxu0
      %v4783 = vadd.f32 %v4694, %v4782
      %4784 = vmatmul.bf16.gmra.mxu0 %v2516
      %v4785 = vpop.f32.mrf.mxu0
      %v4786 = vadd.f32 %v4697, %v4785
      %v4787 = vpop.f32.mrf.mxu0
      %v4788 = vadd.f32 %v4699, %v4787
      %4789 = vmatmul.bf16.gmra.mxu0 %v2541
      %v4790 = vpop.f32.mrf.mxu0
      %v4791 = vadd.f32 %v4702, %v4790
      %v4792 = vpop.f32.mrf.mxu0
      %v4793 = vadd.f32 %v4704, %v4792
      %4794 = vmatmul.bf16.gmra.mxu0 %v2566
      %v4795 = vpop.f32.mrf.mxu0
      %v4796 = vadd.f32 %v4707, %v4795
      %v4797 = vpop.f32.mrf.mxu0
      %v4798 = vadd.f32 %v4709, %v4797
      %4799 = vmatmul.bf16.gmra.mxu0 %v2591
      %v4800 = vpop.f32.mrf.mxu0
      %v4801 = vadd.f32 %v4712, %v4800
      %v4802 = vpop.f32.mrf.mxu0
      %v4803 = vadd.f32 %v4714, %v4802
      %4804 = vmatmul.bf16.gmra.mxu0 %v2616
      %v4805 = vpop.f32.mrf.mxu0
      %v4806 = vadd.f32 %v4717, %v4805
      %v4807 = vpop.f32.mrf.mxu0
      %v4808 = vadd.f32 %v4719, %v4807
      %4809 = vmatmul.bf16.gmra.mxu0 %v2641
      %v4810 = vpop.f32.mrf.mxu0
      %v4811 = vadd.f32 %v4722, %v4810
      %v4812 = vpop.f32.mrf.mxu0
      %v4813 = vadd.f32 %v4724, %v4812
      %4814 = vmatmul.bf16.gmra.mxu0 %v2666
      %v4815 = vpop.f32.mrf.mxu0
      %v4816 = vadd.f32 %v4727, %v4815
      %v4817 = vpop.f32.mrf.mxu0
      %v4818 = vadd.f32 %v4729, %v4817
      %4819 = vdwg.mxu0
      %4820 = vmatpush.bf16.msra.mxu0 %v3941
      %4821 = vmatpush.bf16.msra.mxu0 %v3940
      %4822 = vmatpush.bf16.msra.mxu0 %v3939
      %4823 = vmatpush.bf16.msra.mxu0 %v3938
      %4824 = vmatpush.bf16.msra.mxu0 %v3937
      %4825 = vmatpush.bf16.msra.mxu0 %v3936
      %4826 = vmatpush.bf16.msra.mxu0 %v3935
      %4827 = vmatpush.bf16.msra.mxu0 %v3934
      %4828 = vmatmul.bf16.gmra.mxu0 %v2292
      %v4829 = vpop.f32.mrf.mxu0
      %v4830 = vadd.f32 %v4741, %v4829
      %v4831 = vpop.f32.mrf.mxu0
      %v4832 = vadd.f32 %v4743, %v4831
      %4833 = vmatmul.bf16.gmra.mxu0 %v2317
      %v4834 = vpop.f32.mrf.mxu0
      %v4835 = vadd.f32 %v4746, %v4834
      %v4836 = vpop.f32.mrf.mxu0
      %v4837 = vadd.f32 %v4748, %v4836
      %4838 = vmatmul.bf16.gmra.mxu0 %v2342
      %v4839 = vpop.f32.mrf.mxu0
      %v4840 = vadd.f32 %v4751, %v4839
      %v4841 = vpop.f32.mrf.mxu0
      %v4842 = vadd.f32 %v4753, %v4841
      %4843 = vmatmul.bf16.gmra.mxu0 %v2367
      %v4844 = vpop.f32.mrf.mxu0
      %v4845 = vadd.f32 %v4756, %v4844
      %v4846 = vpop.f32.mrf.mxu0
      %v4847 = vadd.f32 %v4758, %v4846
      %4848 = vmatmul.bf16.gmra.mxu0 %v2392
      %v4849 = vpop.f32.mrf.mxu0
      %v4850 = vadd.f32 %v4761, %v4849
      %v4851 = vpop.f32.mrf.mxu0
      %v4852 = vadd.f32 %v4763, %v4851
      %4853 = vmatmul.bf16.gmra.mxu0 %v2417
      %v4854 = vpop.f32.mrf.mxu0
      %v4855 = vadd.f32 %v4766, %v4854
      %v4856 = vpop.f32.mrf.mxu0
      %v4857 = vadd.f32 %v4768, %v4856
      %4858 = vmatmul.bf16.gmra.mxu0 %v2442
      %v4859 = vpop.f32.mrf.mxu0
      %v4860 = vadd.f32 %v4771, %v4859
      %v4861 = vpop.f32.mrf.mxu0
      %v4862 = vadd.f32 %v4773, %v4861
      %4863 = vmatmul.bf16.gmra.mxu0 %v2467
      %v4864 = vpop.f32.mrf.mxu0
      %v4865 = vadd.f32 %v4776, %v4864
      %v4866 = vpop.f32.mrf.mxu0
      %v4867 = vadd.f32 %v4778, %v4866
      %4868 = vmatmul.bf16.gmra.mxu0 %v2492
      %v4869 = vpop.f32.mrf.mxu0
      %v4870 = vadd.f32 %v4781, %v4869
      %v4871 = vpop.f32.mrf.mxu0
      %v4872 = vadd.f32 %v4783, %v4871
      %4873 = vmatmul.bf16.gmra.mxu0 %v2517
      %v4874 = vpop.f32.mrf.mxu0
      %v4875 = vadd.f32 %v4786, %v4874
      %v4876 = vpop.f32.mrf.mxu0
      %v4877 = vadd.f32 %v4788, %v4876
      %4878 = vmatmul.bf16.gmra.mxu0 %v2542
      %v4879 = vpop.f32.mrf.mxu0
      %v4880 = vadd.f32 %v4791, %v4879
      %v4881 = vpop.f32.mrf.mxu0
      %v4882 = vadd.f32 %v4793, %v4881
      %4883 = vmatmul.bf16.gmra.mxu0 %v2567
      %v4884 = vpop.f32.mrf.mxu0
      %v4885 = vadd.f32 %v4796, %v4884
      %v4886 = vpop.f32.mrf.mxu0
      %v4887 = vadd.f32 %v4798, %v4886
      %4888 = vmatmul.bf16.gmra.mxu0 %v2592
      %v4889 = vpop.f32.mrf.mxu0
      %v4890 = vadd.f32 %v4801, %v4889
      %v4891 = vpop.f32.mrf.mxu0
      %v4892 = vadd.f32 %v4803, %v4891
      %4893 = vmatmul.bf16.gmra.mxu0 %v2617
      %v4894 = vpop.f32.mrf.mxu0
      %v4895 = vadd.f32 %v4806, %v4894
      %v4896 = vpop.f32.mrf.mxu0
      %v4897 = vadd.f32 %v4808, %v4896
      %4898 = vmatmul.bf16.gmra.mxu0 %v2642
      %v4899 = vpop.f32.mrf.mxu0
      %v4900 = vadd.f32 %v4811, %v4899
      %v4901 = vpop.f32.mrf.mxu0
      %v4902 = vadd.f32 %v4813, %v4901
      %4903 = vmatmul.bf16.gmra.mxu0 %v2667
      %v4904 = vpop.f32.mrf.mxu0
      %v4905 = vadd.f32 %v4816, %v4904
      %v4906 = vpop.f32.mrf.mxu0
      %v4907 = vadd.f32 %v4818, %v4906
      %4908 = vdwg.mxu0
      %4909 = vmatpush.bf16.msra.mxu0 %v3949
      %4910 = vmatpush.bf16.msra.mxu0 %v3948
      %4911 = vmatpush.bf16.msra.mxu0 %v3947
      %4912 = vmatpush.bf16.msra.mxu0 %v3946
      %4913 = vmatpush.bf16.msra.mxu0 %v3945
      %4914 = vmatpush.bf16.msra.mxu0 %v3944
      %4915 = vmatpush.bf16.msra.mxu0 %v3943
      %4916 = vmatpush.bf16.msra.mxu0 %v3942
      %4917 = vmatmul.bf16.gmra.mxu0 %v2293
      %v4918 = vpop.f32.mrf.mxu0
      %v4919 = vadd.f32 %v4830, %v4918
      %v4920 = vpop.f32.mrf.mxu0
      %v4921 = vadd.f32 %v4832, %v4920
      %4922 = vmatmul.bf16.gmra.mxu0 %v2318
      %v4923 = vpop.f32.mrf.mxu0
      %v4924 = vadd.f32 %v4835, %v4923
      %v4925 = vpop.f32.mrf.mxu0
      %v4926 = vadd.f32 %v4837, %v4925
      %4927 = vmatmul.bf16.gmra.mxu0 %v2343
      %v4928 = vpop.f32.mrf.mxu0
      %v4929 = vadd.f32 %v4840, %v4928
      %v4930 = vpop.f32.mrf.mxu0
      %v4931 = vadd.f32 %v4842, %v4930
      %4932 = vmatmul.bf16.gmra.mxu0 %v2368
      %v4933 = vpop.f32.mrf.mxu0
      %v4934 = vadd.f32 %v4845, %v4933
      %v4935 = vpop.f32.mrf.mxu0
      %v4936 = vadd.f32 %v4847, %v4935
      %4937 = vmatmul.bf16.gmra.mxu0 %v2393
      %v4938 = vpop.f32.mrf.mxu0
      %v4939 = vadd.f32 %v4850, %v4938
      %v4940 = vpop.f32.mrf.mxu0
      %v4941 = vadd.f32 %v4852, %v4940
      %4942 = vmatmul.bf16.gmra.mxu0 %v2418
      %v4943 = vpop.f32.mrf.mxu0
      %v4944 = vadd.f32 %v4855, %v4943
      %v4945 = vpop.f32.mrf.mxu0
      %v4946 = vadd.f32 %v4857, %v4945
      %4947 = vmatmul.bf16.gmra.mxu0 %v2443
      %v4948 = vpop.f32.mrf.mxu0
      %v4949 = vadd.f32 %v4860, %v4948
      %v4950 = vpop.f32.mrf.mxu0
      %v4951 = vadd.f32 %v4862, %v4950
      %4952 = vmatmul.bf16.gmra.mxu0 %v2468
      %v4953 = vpop.f32.mrf.mxu0
      %v4954 = vadd.f32 %v4865, %v4953
      %v4955 = vpop.f32.mrf.mxu0
      %v4956 = vadd.f32 %v4867, %v4955
      %4957 = vmatmul.bf16.gmra.mxu0 %v2493
      %v4958 = vpop.f32.mrf.mxu0
      %v4959 = vadd.f32 %v4870, %v4958
      %v4960 = vpop.f32.mrf.mxu0
      %v4961 = vadd.f32 %v4872, %v4960
      %4962 = vmatmul.bf16.gmra.mxu0 %v2518
      %v4963 = vpop.f32.mrf.mxu0
      %v4964 = vadd.f32 %v4875, %v4963
      %v4965 = vpop.f32.mrf.mxu0
      %v4966 = vadd.f32 %v4877, %v4965
      %4967 = vmatmul.bf16.gmra.mxu0 %v2543
      %v4968 = vpop.f32.mrf.mxu0
      %v4969 = vadd.f32 %v4880, %v4968
      %v4970 = vpop.f32.mrf.mxu0
      %v4971 = vadd.f32 %v4882, %v4970
      %4972 = vmatmul.bf16.gmra.mxu0 %v2568
      %v4973 = vpop.f32.mrf.mxu0
      %v4974 = vadd.f32 %v4885, %v4973
      %v4975 = vpop.f32.mrf.mxu0
      %v4976 = vadd.f32 %v4887, %v4975
      %4977 = vmatmul.bf16.gmra.mxu0 %v2593
      %v4978 = vpop.f32.mrf.mxu0
      %v4979 = vadd.f32 %v4890, %v4978
      %v4980 = vpop.f32.mrf.mxu0
      %v4981 = vadd.f32 %v4892, %v4980
      %4982 = vmatmul.bf16.gmra.mxu0 %v2618
      %v4983 = vpop.f32.mrf.mxu0
      %v4984 = vadd.f32 %v4895, %v4983
      %v4985 = vpop.f32.mrf.mxu0
      %v4986 = vadd.f32 %v4897, %v4985
      %4987 = vmatmul.bf16.gmra.mxu0 %v2643
      %v4988 = vpop.f32.mrf.mxu0
      %v4989 = vadd.f32 %v4900, %v4988
      %v4990 = vpop.f32.mrf.mxu0
      %v4991 = vadd.f32 %v4902, %v4990
      %4992 = vmatmul.bf16.gmra.mxu0 %v2668
      %v4993 = vpop.f32.mrf.mxu0
      %v4994 = vadd.f32 %v4905, %v4993
      %v4995 = vpop.f32.mrf.mxu0
      %v4996 = vadd.f32 %v4907, %v4995
      %4997 = vdwg.mxu0
      %4998 = vmatpush.bf16.msra.mxu0 %v3957
      %4999 = vmatpush.bf16.msra.mxu0 %v3956
      %5000 = vmatpush.bf16.msra.mxu0 %v3955
      %5001 = vmatpush.bf16.msra.mxu0 %v3954
      %5002 = vmatpush.bf16.msra.mxu0 %v3953
      %5003 = vmatpush.bf16.msra.mxu0 %v3952
      %5004 = vmatpush.bf16.msra.mxu0 %v3951
      %5005 = vmatpush.bf16.msra.mxu0 %v3950
      %5006 = vmatmul.bf16.gmra.mxu0 %v2294
      %v5007 = vpop.f32.mrf.mxu0
      %v5008 = vadd.f32 %v4919, %v5007
      %v5009 = vpop.f32.mrf.mxu0
      %v5010 = vadd.f32 %v4921, %v5009
      %5011 = vmatmul.bf16.gmra.mxu0 %v2319
      %v5012 = vpop.f32.mrf.mxu0
      %v5013 = vadd.f32 %v4924, %v5012
      %v5014 = vpop.f32.mrf.mxu0
      %v5015 = vadd.f32 %v4926, %v5014
      %5016 = vmatmul.bf16.gmra.mxu0 %v2344
      %v5017 = vpop.f32.mrf.mxu0
      %v5018 = vadd.f32 %v4929, %v5017
      %v5019 = vpop.f32.mrf.mxu0
      %v5020 = vadd.f32 %v4931, %v5019
      %5021 = vmatmul.bf16.gmra.mxu0 %v2369
      %v5022 = vpop.f32.mrf.mxu0
      %v5023 = vadd.f32 %v4934, %v5022
      %v5024 = vpop.f32.mrf.mxu0
      %v5025 = vadd.f32 %v4936, %v5024
      %5026 = vmatmul.bf16.gmra.mxu0 %v2394
      %v5027 = vpop.f32.mrf.mxu0
      %v5028 = vadd.f32 %v4939, %v5027
      %v5029 = vpop.f32.mrf.mxu0
      %v5030 = vadd.f32 %v4941, %v5029
      %5031 = vmatmul.bf16.gmra.mxu0 %v2419
      %v5032 = vpop.f32.mrf.mxu0
      %v5033 = vadd.f32 %v4944, %v5032
      %v5034 = vpop.f32.mrf.mxu0
      %v5035 = vadd.f32 %v4946, %v5034
      %5036 = vmatmul.bf16.gmra.mxu0 %v2444
      %v5037 = vpop.f32.mrf.mxu0
      %v5038 = vadd.f32 %v4949, %v5037
      %v5039 = vpop.f32.mrf.mxu0
      %v5040 = vadd.f32 %v4951, %v5039
      %5041 = vmatmul.bf16.gmra.mxu0 %v2469
      %v5042 = vpop.f32.mrf.mxu0
      %v5043 = vadd.f32 %v4954, %v5042
      %v5044 = vpop.f32.mrf.mxu0
      %v5045 = vadd.f32 %v4956, %v5044
      %5046 = vmatmul.bf16.gmra.mxu0 %v2494
      %v5047 = vpop.f32.mrf.mxu0
      %v5048 = vadd.f32 %v4959, %v5047
      %v5049 = vpop.f32.mrf.mxu0
      %v5050 = vadd.f32 %v4961, %v5049
      %5051 = vmatmul.bf16.gmra.mxu0 %v2519
      %v5052 = vpop.f32.mrf.mxu0
      %v5053 = vadd.f32 %v4964, %v5052
      %v5054 = vpop.f32.mrf.mxu0
      %v5055 = vadd.f32 %v4966, %v5054
      %5056 = vmatmul.bf16.gmra.mxu0 %v2544
      %v5057 = vpop.f32.mrf.mxu0
      %v5058 = vadd.f32 %v4969, %v5057
      %v5059 = vpop.f32.mrf.mxu0
      %v5060 = vadd.f32 %v4971, %v5059
      %5061 = vmatmul.bf16.gmra.mxu0 %v2569
      %v5062 = vpop.f32.mrf.mxu0
      %v5063 = vadd.f32 %v4974, %v5062
      %v5064 = vpop.f32.mrf.mxu0
      %v5065 = vadd.f32 %v4976, %v5064
      %5066 = vmatmul.bf16.gmra.mxu0 %v2594
      %v5067 = vpop.f32.mrf.mxu0
      %v5068 = vadd.f32 %v4979, %v5067
      %v5069 = vpop.f32.mrf.mxu0
      %v5070 = vadd.f32 %v4981, %v5069
      %5071 = vmatmul.bf16.gmra.mxu0 %v2619
      %v5072 = vpop.f32.mrf.mxu0
      %v5073 = vadd.f32 %v4984, %v5072
      %v5074 = vpop.f32.mrf.mxu0
      %v5075 = vadd.f32 %v4986, %v5074
      %5076 = vmatmul.bf16.gmra.mxu0 %v2644
      %v5077 = vpop.f32.mrf.mxu0
      %v5078 = vadd.f32 %v4989, %v5077
      %v5079 = vpop.f32.mrf.mxu0
      %v5080 = vadd.f32 %v4991, %v5079
      %5081 = vmatmul.bf16.gmra.mxu0 %v2669
      %v5082 = vpop.f32.mrf.mxu0
      %v5083 = vadd.f32 %v4994, %v5082
      %v5084 = vpop.f32.mrf.mxu0
      %v5085 = vadd.f32 %v4996, %v5084
      %5086 = vdwg.mxu0
      %5087 = vmatpush.bf16.msra.mxu0 %v3965
      %5088 = vmatpush.bf16.msra.mxu0 %v3964
      %5089 = vmatpush.bf16.msra.mxu0 %v3963
      %5090 = vmatpush.bf16.msra.mxu0 %v3962
      %5091 = vmatpush.bf16.msra.mxu0 %v3961
      %5092 = vmatpush.bf16.msra.mxu0 %v3960
      %5093 = vmatpush.bf16.msra.mxu0 %v3959
      %5094 = vmatpush.bf16.msra.mxu0 %v3958
      %5095 = vmatmul.bf16.gmra.mxu0 %v2295
      %v5096 = vpop.f32.mrf.mxu0
      %v5097 = vadd.f32 %v5008, %v5096
      %v5098 = vpop.f32.mrf.mxu0
      %v5099 = vadd.f32 %v5010, %v5098
      %5100 = vmatmul.bf16.gmra.mxu0 %v2320
      %v5101 = vpop.f32.mrf.mxu0
      %v5102 = vadd.f32 %v5013, %v5101
      %v5103 = vpop.f32.mrf.mxu0
      %v5104 = vadd.f32 %v5015, %v5103
      %5105 = vmatmul.bf16.gmra.mxu0 %v2345
      %v5106 = vpop.f32.mrf.mxu0
      %v5107 = vadd.f32 %v5018, %v5106
      %v5108 = vpop.f32.mrf.mxu0
      %v5109 = vadd.f32 %v5020, %v5108
      %5110 = vmatmul.bf16.gmra.mxu0 %v2370
      %v5111 = vpop.f32.mrf.mxu0
      %v5112 = vadd.f32 %v5023, %v5111
      %v5113 = vpop.f32.mrf.mxu0
      %v5114 = vadd.f32 %v5025, %v5113
      %5115 = vmatmul.bf16.gmra.mxu0 %v2395
      %v5116 = vpop.f32.mrf.mxu0
      %v5117 = vadd.f32 %v5028, %v5116
      %v5118 = vpop.f32.mrf.mxu0
      %v5119 = vadd.f32 %v5030, %v5118
      %5120 = vmatmul.bf16.gmra.mxu0 %v2420
      %v5121 = vpop.f32.mrf.mxu0
      %v5122 = vadd.f32 %v5033, %v5121
      %v5123 = vpop.f32.mrf.mxu0
      %v5124 = vadd.f32 %v5035, %v5123
      %5125 = vmatmul.bf16.gmra.mxu0 %v2445
      %v5126 = vpop.f32.mrf.mxu0
      %v5127 = vadd.f32 %v5038, %v5126
      %v5128 = vpop.f32.mrf.mxu0
      %v5129 = vadd.f32 %v5040, %v5128
      %5130 = vmatmul.bf16.gmra.mxu0 %v2470
      %v5131 = vpop.f32.mrf.mxu0
      %v5132 = vadd.f32 %v5043, %v5131
      %v5133 = vpop.f32.mrf.mxu0
      %v5134 = vadd.f32 %v5045, %v5133
      %5135 = vmatmul.bf16.gmra.mxu0 %v2495
      %v5136 = vpop.f32.mrf.mxu0
      %v5137 = vadd.f32 %v5048, %v5136
      %v5138 = vpop.f32.mrf.mxu0
      %v5139 = vadd.f32 %v5050, %v5138
      %5140 = vmatmul.bf16.gmra.mxu0 %v2520
      %v5141 = vpop.f32.mrf.mxu0
      %v5142 = vadd.f32 %v5053, %v5141
      %v5143 = vpop.f32.mrf.mxu0
      %v5144 = vadd.f32 %v5055, %v5143
      %5145 = vmatmul.bf16.gmra.mxu0 %v2545
      %v5146 = vpop.f32.mrf.mxu0
      %v5147 = vadd.f32 %v5058, %v5146
      %v5148 = vpop.f32.mrf.mxu0
      %v5149 = vadd.f32 %v5060, %v5148
      %5150 = vmatmul.bf16.gmra.mxu0 %v2570
      %v5151 = vpop.f32.mrf.mxu0
      %v5152 = vadd.f32 %v5063, %v5151
      %v5153 = vpop.f32.mrf.mxu0
      %v5154 = vadd.f32 %v5065, %v5153
      %5155 = vmatmul.bf16.gmra.mxu0 %v2595
      %v5156 = vpop.f32.mrf.mxu0
      %v5157 = vadd.f32 %v5068, %v5156
      %v5158 = vpop.f32.mrf.mxu0
      %v5159 = vadd.f32 %v5070, %v5158
      %5160 = vmatmul.bf16.gmra.mxu0 %v2620
      %v5161 = vpop.f32.mrf.mxu0
      %v5162 = vadd.f32 %v5073, %v5161
      %v5163 = vpop.f32.mrf.mxu0
      %v5164 = vadd.f32 %v5075, %v5163
      %5165 = vmatmul.bf16.gmra.mxu0 %v2645
      %v5166 = vpop.f32.mrf.mxu0
      %v5167 = vadd.f32 %v5078, %v5166
      %v5168 = vpop.f32.mrf.mxu0
      %v5169 = vadd.f32 %v5080, %v5168
      %5170 = vmatmul.bf16.gmra.mxu0 %v2670
      %v5171 = vpop.f32.mrf.mxu0
      %v5172 = vadd.f32 %v5083, %v5171
      %v5173 = vpop.f32.mrf.mxu0
      %v5174 = vadd.f32 %v5085, %v5173
      %5175 = vdwg.mxu0
      %5176 = vmatpush.bf16.msra.mxu0 %v3973
      %5177 = vmatpush.bf16.msra.mxu0 %v3972
      %5178 = vmatpush.bf16.msra.mxu0 %v3971
      %5179 = vmatpush.bf16.msra.mxu0 %v3970
      %5180 = vmatpush.bf16.msra.mxu0 %v3969
      %5181 = vmatpush.bf16.msra.mxu0 %v3968
      %5182 = vmatpush.bf16.msra.mxu0 %v3967
      %5183 = vmatpush.bf16.msra.mxu0 %v3966
      %5184 = vmatmul.bf16.gmra.mxu0 %v2296
      %v5185 = vpop.f32.mrf.mxu0
      %v5186 = vadd.f32 %v5097, %v5185
      %v5187 = vpop.f32.mrf.mxu0
      %v5188 = vadd.f32 %v5099, %v5187
      %5189 = vmatmul.bf16.gmra.mxu0 %v2321
      %v5190 = vpop.f32.mrf.mxu0
      %v5191 = vadd.f32 %v5102, %v5190
      %v5192 = vpop.f32.mrf.mxu0
      %v5193 = vadd.f32 %v5104, %v5192
      %5194 = vmatmul.bf16.gmra.mxu0 %v2346
      %v5195 = vpop.f32.mrf.mxu0
      %v5196 = vadd.f32 %v5107, %v5195
      %v5197 = vpop.f32.mrf.mxu0
      %v5198 = vadd.f32 %v5109, %v5197
      %5199 = vmatmul.bf16.gmra.mxu0 %v2371
      %v5200 = vpop.f32.mrf.mxu0
      %v5201 = vadd.f32 %v5112, %v5200
      %v5202 = vpop.f32.mrf.mxu0
      %v5203 = vadd.f32 %v5114, %v5202
      %5204 = vmatmul.bf16.gmra.mxu0 %v2396
      %v5205 = vpop.f32.mrf.mxu0
      %v5206 = vadd.f32 %v5117, %v5205
      %v5207 = vpop.f32.mrf.mxu0
      %v5208 = vadd.f32 %v5119, %v5207
      %5209 = vmatmul.bf16.gmra.mxu0 %v2421
      %v5210 = vpop.f32.mrf.mxu0
      %v5211 = vadd.f32 %v5122, %v5210
      %v5212 = vpop.f32.mrf.mxu0
      %v5213 = vadd.f32 %v5124, %v5212
      %5214 = vmatmul.bf16.gmra.mxu0 %v2446
      %v5215 = vpop.f32.mrf.mxu0
      %v5216 = vadd.f32 %v5127, %v5215
      %v5217 = vpop.f32.mrf.mxu0
      %v5218 = vadd.f32 %v5129, %v5217
      %5219 = vmatmul.bf16.gmra.mxu0 %v2471
      %v5220 = vpop.f32.mrf.mxu0
      %v5221 = vadd.f32 %v5132, %v5220
      %v5222 = vpop.f32.mrf.mxu0
      %v5223 = vadd.f32 %v5134, %v5222
      %5224 = vmatmul.bf16.gmra.mxu0 %v2496
      %v5225 = vpop.f32.mrf.mxu0
      %v5226 = vadd.f32 %v5137, %v5225
      %v5227 = vpop.f32.mrf.mxu0
      %v5228 = vadd.f32 %v5139, %v5227
      %5229 = vmatmul.bf16.gmra.mxu0 %v2521
      %v5230 = vpop.f32.mrf.mxu0
      %v5231 = vadd.f32 %v5142, %v5230
      %v5232 = vpop.f32.mrf.mxu0
      %v5233 = vadd.f32 %v5144, %v5232
      %5234 = vmatmul.bf16.gmra.mxu0 %v2546
      %v5235 = vpop.f32.mrf.mxu0
      %v5236 = vadd.f32 %v5147, %v5235
      %v5237 = vpop.f32.mrf.mxu0
      %v5238 = vadd.f32 %v5149, %v5237
      %5239 = vmatmul.bf16.gmra.mxu0 %v2571
      %v5240 = vpop.f32.mrf.mxu0
      %v5241 = vadd.f32 %v5152, %v5240
      %v5242 = vpop.f32.mrf.mxu0
      %v5243 = vadd.f32 %v5154, %v5242
      %5244 = vmatmul.bf16.gmra.mxu0 %v2596
      %v5245 = vpop.f32.mrf.mxu0
      %v5246 = vadd.f32 %v5157, %v5245
      %v5247 = vpop.f32.mrf.mxu0
      %v5248 = vadd.f32 %v5159, %v5247
      %5249 = vmatmul.bf16.gmra.mxu0 %v2621
      %v5250 = vpop.f32.mrf.mxu0
      %v5251 = vadd.f32 %v5162, %v5250
      %v5252 = vpop.f32.mrf.mxu0
      %v5253 = vadd.f32 %v5164, %v5252
      %5254 = vmatmul.bf16.gmra.mxu0 %v2646
      %v5255 = vpop.f32.mrf.mxu0
      %v5256 = vadd.f32 %v5167, %v5255
      %v5257 = vpop.f32.mrf.mxu0
      %v5258 = vadd.f32 %v5169, %v5257
      %5259 = vmatmul.bf16.gmra.mxu0 %v2671
      %v5260 = vpop.f32.mrf.mxu0
      %v5261 = vadd.f32 %v5172, %v5260
      %v5262 = vpop.f32.mrf.mxu0
      %v5263 = vadd.f32 %v5174, %v5262
      %5264 = vdwg.mxu0
      %5265 = vmatpush.bf16.msra.mxu0 %v3981
      %5266 = vmatpush.bf16.msra.mxu0 %v3980
      %5267 = vmatpush.bf16.msra.mxu0 %v3979
      %5268 = vmatpush.bf16.msra.mxu0 %v3978
      %5269 = vmatpush.bf16.msra.mxu0 %v3977
      %5270 = vmatpush.bf16.msra.mxu0 %v3976
      %5271 = vmatpush.bf16.msra.mxu0 %v3975
      %5272 = vmatpush.bf16.msra.mxu0 %v3974
      %5273 = vmatmul.bf16.gmra.mxu0 %v2297
      %v5274 = vpop.f32.mrf.mxu0
      %v5275 = vadd.f32 %v5186, %v5274
      %v5276 = vpop.f32.mrf.mxu0
      %v5277 = vadd.f32 %v5188, %v5276
      %5278 = vmatmul.bf16.gmra.mxu0 %v2322
      %v5279 = vpop.f32.mrf.mxu0
      %v5280 = vadd.f32 %v5191, %v5279
      %v5281 = vpop.f32.mrf.mxu0
      %v5282 = vadd.f32 %v5193, %v5281
      %5283 = vmatmul.bf16.gmra.mxu0 %v2347
      %v5284 = vpop.f32.mrf.mxu0
      %v5285 = vadd.f32 %v5196, %v5284
      %v5286 = vpop.f32.mrf.mxu0
      %v5287 = vadd.f32 %v5198, %v5286
      %5288 = vmatmul.bf16.gmra.mxu0 %v2372
      %v5289 = vpop.f32.mrf.mxu0
      %v5290 = vadd.f32 %v5201, %v5289
      %v5291 = vpop.f32.mrf.mxu0
      %v5292 = vadd.f32 %v5203, %v5291
      %5293 = vmatmul.bf16.gmra.mxu0 %v2397
      %v5294 = vpop.f32.mrf.mxu0
      %v5295 = vadd.f32 %v5206, %v5294
      %v5296 = vpop.f32.mrf.mxu0
      %v5297 = vadd.f32 %v5208, %v5296
      %5298 = vmatmul.bf16.gmra.mxu0 %v2422
      %v5299 = vpop.f32.mrf.mxu0
      %v5300 = vadd.f32 %v5211, %v5299
      %v5301 = vpop.f32.mrf.mxu0
      %v5302 = vadd.f32 %v5213, %v5301
      %5303 = vmatmul.bf16.gmra.mxu0 %v2447
      %v5304 = vpop.f32.mrf.mxu0
      %v5305 = vadd.f32 %v5216, %v5304
      %v5306 = vpop.f32.mrf.mxu0
      %v5307 = vadd.f32 %v5218, %v5306
      %5308 = vmatmul.bf16.gmra.mxu0 %v2472
      %v5309 = vpop.f32.mrf.mxu0
      %v5310 = vadd.f32 %v5221, %v5309
      %v5311 = vpop.f32.mrf.mxu0
      %v5312 = vadd.f32 %v5223, %v5311
      %5313 = vmatmul.bf16.gmra.mxu0 %v2497
      %v5314 = vpop.f32.mrf.mxu0
      %v5315 = vadd.f32 %v5226, %v5314
      %v5316 = vpop.f32.mrf.mxu0
      %v5317 = vadd.f32 %v5228, %v5316
      %5318 = vmatmul.bf16.gmra.mxu0 %v2522
      %v5319 = vpop.f32.mrf.mxu0
      %v5320 = vadd.f32 %v5231, %v5319
      %v5321 = vpop.f32.mrf.mxu0
      %v5322 = vadd.f32 %v5233, %v5321
      %5323 = vmatmul.bf16.gmra.mxu0 %v2547
      %v5324 = vpop.f32.mrf.mxu0
      %v5325 = vadd.f32 %v5236, %v5324
      %v5326 = vpop.f32.mrf.mxu0
      %v5327 = vadd.f32 %v5238, %v5326
      %5328 = vmatmul.bf16.gmra.mxu0 %v2572
      %v5329 = vpop.f32.mrf.mxu0
      %v5330 = vadd.f32 %v5241, %v5329
      %v5331 = vpop.f32.mrf.mxu0
      %v5332 = vadd.f32 %v5243, %v5331
      %5333 = vmatmul.bf16.gmra.mxu0 %v2597
      %v5334 = vpop.f32.mrf.mxu0
      %v5335 = vadd.f32 %v5246, %v5334
      %v5336 = vpop.f32.mrf.mxu0
      %v5337 = vadd.f32 %v5248, %v5336
      %5338 = vmatmul.bf16.gmra.mxu0 %v2622
      %v5339 = vpop.f32.mrf.mxu0
      %v5340 = vadd.f32 %v5251, %v5339
      %v5341 = vpop.f32.mrf.mxu0
      %v5342 = vadd.f32 %v5253, %v5341
      %5343 = vmatmul.bf16.gmra.mxu0 %v2647
      %v5344 = vpop.f32.mrf.mxu0
      %v5345 = vadd.f32 %v5256, %v5344
      %v5346 = vpop.f32.mrf.mxu0
      %v5347 = vadd.f32 %v5258, %v5346
      %5348 = vmatmul.bf16.gmra.mxu0 %v2672
      %v5349 = vpop.f32.mrf.mxu0
      %v5350 = vadd.f32 %v5261, %v5349
      %v5351 = vpop.f32.mrf.mxu0
      %v5352 = vadd.f32 %v5263, %v5351
      %5353 = vdwg.mxu0
      %5354 = vmatpush.bf16.msra.mxu0 %v3989
      %5355 = vmatpush.bf16.msra.mxu0 %v3988
      %5356 = vmatpush.bf16.msra.mxu0 %v3987
      %5357 = vmatpush.bf16.msra.mxu0 %v3986
      %5358 = vmatpush.bf16.msra.mxu0 %v3985
      %5359 = vmatpush.bf16.msra.mxu0 %v3984
      %5360 = vmatpush.bf16.msra.mxu0 %v3983
      %5361 = vmatpush.bf16.msra.mxu0 %v3982
      %5362 = vmatmul.bf16.gmra.mxu0 %v2298
      %v5363 = vpop.f32.mrf.mxu0
      %v5364 = vadd.f32 %v5275, %v5363
      %v5365 = vpop.f32.mrf.mxu0
      %v5366 = vadd.f32 %v5277, %v5365
      %5367 = vmatmul.bf16.gmra.mxu0 %v2323
      %v5368 = vpop.f32.mrf.mxu0
      %v5369 = vadd.f32 %v5280, %v5368
      %v5370 = vpop.f32.mrf.mxu0
      %v5371 = vadd.f32 %v5282, %v5370
      %5372 = vmatmul.bf16.gmra.mxu0 %v2348
      %v5373 = vpop.f32.mrf.mxu0
      %v5374 = vadd.f32 %v5285, %v5373
      %v5375 = vpop.f32.mrf.mxu0
      %v5376 = vadd.f32 %v5287, %v5375
      %5377 = vmatmul.bf16.gmra.mxu0 %v2373
      %v5378 = vpop.f32.mrf.mxu0
      %v5379 = vadd.f32 %v5290, %v5378
      %v5380 = vpop.f32.mrf.mxu0
      %v5381 = vadd.f32 %v5292, %v5380
      %5382 = vmatmul.bf16.gmra.mxu0 %v2398
      %v5383 = vpop.f32.mrf.mxu0
      %v5384 = vadd.f32 %v5295, %v5383
      %v5385 = vpop.f32.mrf.mxu0
      %v5386 = vadd.f32 %v5297, %v5385
      %5387 = vmatmul.bf16.gmra.mxu0 %v2423
      %v5388 = vpop.f32.mrf.mxu0
      %v5389 = vadd.f32 %v5300, %v5388
      %v5390 = vpop.f32.mrf.mxu0
      %v5391 = vadd.f32 %v5302, %v5390
      %5392 = vmatmul.bf16.gmra.mxu0 %v2448
      %v5393 = vpop.f32.mrf.mxu0
      %v5394 = vadd.f32 %v5305, %v5393
      %v5395 = vpop.f32.mrf.mxu0
      %v5396 = vadd.f32 %v5307, %v5395
      %5397 = vmatmul.bf16.gmra.mxu0 %v2473
      %v5398 = vpop.f32.mrf.mxu0
      %v5399 = vadd.f32 %v5310, %v5398
      %v5400 = vpop.f32.mrf.mxu0
      %v5401 = vadd.f32 %v5312, %v5400
      %5402 = vmatmul.bf16.gmra.mxu0 %v2498
      %v5403 = vpop.f32.mrf.mxu0
      %v5404 = vadd.f32 %v5315, %v5403
      %v5405 = vpop.f32.mrf.mxu0
      %v5406 = vadd.f32 %v5317, %v5405
      %5407 = vmatmul.bf16.gmra.mxu0 %v2523
      %v5408 = vpop.f32.mrf.mxu0
      %v5409 = vadd.f32 %v5320, %v5408
      %v5410 = vpop.f32.mrf.mxu0
      %v5411 = vadd.f32 %v5322, %v5410
      %5412 = vmatmul.bf16.gmra.mxu0 %v2548
      %v5413 = vpop.f32.mrf.mxu0
      %v5414 = vadd.f32 %v5325, %v5413
      %v5415 = vpop.f32.mrf.mxu0
      %v5416 = vadd.f32 %v5327, %v5415
      %5417 = vmatmul.bf16.gmra.mxu0 %v2573
      %v5418 = vpop.f32.mrf.mxu0
      %v5419 = vadd.f32 %v5330, %v5418
      %v5420 = vpop.f32.mrf.mxu0
      %v5421 = vadd.f32 %v5332, %v5420
      %5422 = vmatmul.bf16.gmra.mxu0 %v2598
      %v5423 = vpop.f32.mrf.mxu0
      %v5424 = vadd.f32 %v5335, %v5423
      %v5425 = vpop.f32.mrf.mxu0
      %v5426 = vadd.f32 %v5337, %v5425
      %5427 = vmatmul.bf16.gmra.mxu0 %v2623
      %v5428 = vpop.f32.mrf.mxu0
      %v5429 = vadd.f32 %v5340, %v5428
      %v5430 = vpop.f32.mrf.mxu0
      %v5431 = vadd.f32 %v5342, %v5430
      %5432 = vmatmul.bf16.gmra.mxu0 %v2648
      %v5433 = vpop.f32.mrf.mxu0
      %v5434 = vadd.f32 %v5345, %v5433
      %v5435 = vpop.f32.mrf.mxu0
      %v5436 = vadd.f32 %v5347, %v5435
      %5437 = vmatmul.bf16.gmra.mxu0 %v2673
      %v5438 = vpop.f32.mrf.mxu0
      %v5439 = vadd.f32 %v5350, %v5438
      %v5440 = vpop.f32.mrf.mxu0
      %v5441 = vadd.f32 %v5352, %v5440
      %5442 = vdwg.mxu0
      %5443 = vmatpush.bf16.msra.mxu0 %v3997
      %5444 = vmatpush.bf16.msra.mxu0 %v3996
      %5445 = vmatpush.bf16.msra.mxu0 %v3995
      %5446 = vmatpush.bf16.msra.mxu0 %v3994
      %5447 = vmatpush.bf16.msra.mxu0 %v3993
      %5448 = vmatpush.bf16.msra.mxu0 %v3992
      %5449 = vmatpush.bf16.msra.mxu0 %v3991
      %5450 = vmatpush.bf16.msra.mxu0 %v3990
      %5451 = vmatmul.bf16.gmra.mxu0 %v2299
      %v5452 = vpop.f32.mrf.mxu0
      %v5453 = vadd.f32 %v5364, %v5452
      %v5454 = vpop.f32.mrf.mxu0
      %v5455 = vadd.f32 %v5366, %v5454
      %5456 = vmatmul.bf16.gmra.mxu0 %v2324
      %v5457 = vpop.f32.mrf.mxu0
      %v5458 = vadd.f32 %v5369, %v5457
      %v5459 = vpop.f32.mrf.mxu0
      %v5460 = vadd.f32 %v5371, %v5459
      %5461 = vmatmul.bf16.gmra.mxu0 %v2349
      %v5462 = vpop.f32.mrf.mxu0
      %v5463 = vadd.f32 %v5374, %v5462
      %v5464 = vpop.f32.mrf.mxu0
      %v5465 = vadd.f32 %v5376, %v5464
      %5466 = vmatmul.bf16.gmra.mxu0 %v2374
      %v5467 = vpop.f32.mrf.mxu0
      %v5468 = vadd.f32 %v5379, %v5467
      %v5469 = vpop.f32.mrf.mxu0
      %v5470 = vadd.f32 %v5381, %v5469
      %5471 = vmatmul.bf16.gmra.mxu0 %v2399
      %v5472 = vpop.f32.mrf.mxu0
      %v5473 = vadd.f32 %v5384, %v5472
      %v5474 = vpop.f32.mrf.mxu0
      %v5475 = vadd.f32 %v5386, %v5474
      %5476 = vmatmul.bf16.gmra.mxu0 %v2424
      %v5477 = vpop.f32.mrf.mxu0
      %v5478 = vadd.f32 %v5389, %v5477
      %v5479 = vpop.f32.mrf.mxu0
      %v5480 = vadd.f32 %v5391, %v5479
      %5481 = vmatmul.bf16.gmra.mxu0 %v2449
      %v5482 = vpop.f32.mrf.mxu0
      %v5483 = vadd.f32 %v5394, %v5482
      %v5484 = vpop.f32.mrf.mxu0
      %v5485 = vadd.f32 %v5396, %v5484
      %5486 = vmatmul.bf16.gmra.mxu0 %v2474
      %v5487 = vpop.f32.mrf.mxu0
      %v5488 = vadd.f32 %v5399, %v5487
      %v5489 = vpop.f32.mrf.mxu0
      %v5490 = vadd.f32 %v5401, %v5489
      %5491 = vmatmul.bf16.gmra.mxu0 %v2499
      %v5492 = vpop.f32.mrf.mxu0
      %v5493 = vadd.f32 %v5404, %v5492
      %v5494 = vpop.f32.mrf.mxu0
      %v5495 = vadd.f32 %v5406, %v5494
      %5496 = vmatmul.bf16.gmra.mxu0 %v2524
      %v5497 = vpop.f32.mrf.mxu0
      %v5498 = vadd.f32 %v5409, %v5497
      %v5499 = vpop.f32.mrf.mxu0
      %v5500 = vadd.f32 %v5411, %v5499
      %5501 = vmatmul.bf16.gmra.mxu0 %v2549
      %v5502 = vpop.f32.mrf.mxu0
      %v5503 = vadd.f32 %v5414, %v5502
      %v5504 = vpop.f32.mrf.mxu0
      %v5505 = vadd.f32 %v5416, %v5504
      %5506 = vmatmul.bf16.gmra.mxu0 %v2574
      %v5507 = vpop.f32.mrf.mxu0
      %v5508 = vadd.f32 %v5419, %v5507
      %v5509 = vpop.f32.mrf.mxu0
      %v5510 = vadd.f32 %v5421, %v5509
      %5511 = vmatmul.bf16.gmra.mxu0 %v2599
      %v5512 = vpop.f32.mrf.mxu0
      %v5513 = vadd.f32 %v5424, %v5512
      %v5514 = vpop.f32.mrf.mxu0
      %v5515 = vadd.f32 %v5426, %v5514
      %5516 = vmatmul.bf16.gmra.mxu0 %v2624
      %v5517 = vpop.f32.mrf.mxu0
      %v5518 = vadd.f32 %v5429, %v5517
      %v5519 = vpop.f32.mrf.mxu0
      %v5520 = vadd.f32 %v5431, %v5519
      %5521 = vmatmul.bf16.gmra.mxu0 %v2649
      %v5522 = vpop.f32.mrf.mxu0
      %v5523 = vadd.f32 %v5434, %v5522
      %v5524 = vpop.f32.mrf.mxu0
      %v5525 = vadd.f32 %v5436, %v5524
      %5526 = vmatmul.bf16.gmra.mxu0 %v2674
      %v5527 = vpop.f32.mrf.mxu0
      %v5528 = vadd.f32 %v5439, %v5527
      %v5529 = vpop.f32.mrf.mxu0
      %v5530 = vadd.f32 %v5441, %v5529
      %5531 = vdwg.mxu0
      %5532 = vmatpush.bf16.msra.mxu0 %v4005
      %5533 = vmatpush.bf16.msra.mxu0 %v4004
      %5534 = vmatpush.bf16.msra.mxu0 %v4003
      %5535 = vmatpush.bf16.msra.mxu0 %v4002
      %5536 = vmatpush.bf16.msra.mxu0 %v4001
      %5537 = vmatpush.bf16.msra.mxu0 %v4000
      %5538 = vmatpush.bf16.msra.mxu0 %v3999
      %5539 = vmatpush.bf16.msra.mxu0 %v3998
      %5540 = vmatmul.bf16.gmra.mxu0 %v2300
      %v5541 = vpop.f32.mrf.mxu0
      %v5542 = vadd.f32 %v5453, %v5541
      %v5543 = vpop.f32.mrf.mxu0
      %v5544 = vadd.f32 %v5455, %v5543
      %5545 = vmatmul.bf16.gmra.mxu0 %v2325
      %v5546 = vpop.f32.mrf.mxu0
      %v5547 = vadd.f32 %v5458, %v5546
      %v5548 = vpop.f32.mrf.mxu0
      %v5549 = vadd.f32 %v5460, %v5548
      %5550 = vmatmul.bf16.gmra.mxu0 %v2350
      %v5551 = vpop.f32.mrf.mxu0
      %v5552 = vadd.f32 %v5463, %v5551
      %v5553 = vpop.f32.mrf.mxu0
      %v5554 = vadd.f32 %v5465, %v5553
      %5555 = vmatmul.bf16.gmra.mxu0 %v2375
      %v5556 = vpop.f32.mrf.mxu0
      %v5557 = vadd.f32 %v5468, %v5556
      %v5558 = vpop.f32.mrf.mxu0
      %v5559 = vadd.f32 %v5470, %v5558
      %5560 = vmatmul.bf16.gmra.mxu0 %v2400
      %v5561 = vpop.f32.mrf.mxu0
      %v5562 = vadd.f32 %v5473, %v5561
      %v5563 = vpop.f32.mrf.mxu0
      %v5564 = vadd.f32 %v5475, %v5563
      %5565 = vmatmul.bf16.gmra.mxu0 %v2425
      %v5566 = vpop.f32.mrf.mxu0
      %v5567 = vadd.f32 %v5478, %v5566
      %v5568 = vpop.f32.mrf.mxu0
      %v5569 = vadd.f32 %v5480, %v5568
      %5570 = vmatmul.bf16.gmra.mxu0 %v2450
      %v5571 = vpop.f32.mrf.mxu0
      %v5572 = vadd.f32 %v5483, %v5571
      %v5573 = vpop.f32.mrf.mxu0
      %v5574 = vadd.f32 %v5485, %v5573
      %5575 = vmatmul.bf16.gmra.mxu0 %v2475
      %v5576 = vpop.f32.mrf.mxu0
      %v5577 = vadd.f32 %v5488, %v5576
      %v5578 = vpop.f32.mrf.mxu0
      %v5579 = vadd.f32 %v5490, %v5578
      %5580 = vmatmul.bf16.gmra.mxu0 %v2500
      %v5581 = vpop.f32.mrf.mxu0
      %v5582 = vadd.f32 %v5493, %v5581
      %v5583 = vpop.f32.mrf.mxu0
      %v5584 = vadd.f32 %v5495, %v5583
      %5585 = vmatmul.bf16.gmra.mxu0 %v2525
      %v5586 = vpop.f32.mrf.mxu0
      %v5587 = vadd.f32 %v5498, %v5586
      %v5588 = vpop.f32.mrf.mxu0
      %v5589 = vadd.f32 %v5500, %v5588
      %5590 = vmatmul.bf16.gmra.mxu0 %v2550
      %v5591 = vpop.f32.mrf.mxu0
      %v5592 = vadd.f32 %v5503, %v5591
      %v5593 = vpop.f32.mrf.mxu0
      %v5594 = vadd.f32 %v5505, %v5593
      %5595 = vmatmul.bf16.gmra.mxu0 %v2575
      %v5596 = vpop.f32.mrf.mxu0
      %v5597 = vadd.f32 %v5508, %v5596
      %v5598 = vpop.f32.mrf.mxu0
      %v5599 = vadd.f32 %v5510, %v5598
      %5600 = vmatmul.bf16.gmra.mxu0 %v2600
      %v5601 = vpop.f32.mrf.mxu0
      %v5602 = vadd.f32 %v5513, %v5601
      %v5603 = vpop.f32.mrf.mxu0
      %v5604 = vadd.f32 %v5515, %v5603
      %5605 = vmatmul.bf16.gmra.mxu0 %v2625
      %v5606 = vpop.f32.mrf.mxu0
      %v5607 = vadd.f32 %v5518, %v5606
      %v5608 = vpop.f32.mrf.mxu0
      %v5609 = vadd.f32 %v5520, %v5608
      %5610 = vmatmul.bf16.gmra.mxu0 %v2650
      %v5611 = vpop.f32.mrf.mxu0
      %v5612 = vadd.f32 %v5523, %v5611
      %v5613 = vpop.f32.mrf.mxu0
      %v5614 = vadd.f32 %v5525, %v5613
      %5615 = vmatmul.bf16.gmra.mxu0 %v2675
      %v5616 = vpop.f32.mrf.mxu0
      %v5617 = vadd.f32 %v5528, %v5616
      %v5618 = vpop.f32.mrf.mxu0
      %v5619 = vadd.f32 %v5530, %v5618
      %5620 = vdwg.mxu0
      %5621 = vmatpush.bf16.msra.mxu0 %v4013
      %5622 = vmatpush.bf16.msra.mxu0 %v4012
      %5623 = vmatpush.bf16.msra.mxu0 %v4011
      %5624 = vmatpush.bf16.msra.mxu0 %v4010
      %5625 = vmatpush.bf16.msra.mxu0 %v4009
      %5626 = vmatpush.bf16.msra.mxu0 %v4008
      %5627 = vmatpush.bf16.msra.mxu0 %v4007
      %5628 = vmatpush.bf16.msra.mxu0 %v4006
      %5629 = vmatmul.bf16.gmra.mxu0 %v2301
      %v5630 = vpop.f32.mrf.mxu0
      %v5631 = vadd.f32 %v5542, %v5630
      %v5632 = vpop.f32.mrf.mxu0
      %v5633 = vadd.f32 %v5544, %v5632
      %5634 = vmatmul.bf16.gmra.mxu0 %v2326
      %v5635 = vpop.f32.mrf.mxu0
      %v5636 = vadd.f32 %v5547, %v5635
      %v5637 = vpop.f32.mrf.mxu0
      %v5638 = vadd.f32 %v5549, %v5637
      %5639 = vmatmul.bf16.gmra.mxu0 %v2351
      %v5640 = vpop.f32.mrf.mxu0
      %v5641 = vadd.f32 %v5552, %v5640
      %v5642 = vpop.f32.mrf.mxu0
      %v5643 = vadd.f32 %v5554, %v5642
      %5644 = vmatmul.bf16.gmra.mxu0 %v2376
      %v5645 = vpop.f32.mrf.mxu0
      %v5646 = vadd.f32 %v5557, %v5645
      %v5647 = vpop.f32.mrf.mxu0
      %v5648 = vadd.f32 %v5559, %v5647
      %5649 = vmatmul.bf16.gmra.mxu0 %v2401
      %v5650 = vpop.f32.mrf.mxu0
      %v5651 = vadd.f32 %v5562, %v5650
      %v5652 = vpop.f32.mrf.mxu0
      %v5653 = vadd.f32 %v5564, %v5652
      %5654 = vmatmul.bf16.gmra.mxu0 %v2426
      %v5655 = vpop.f32.mrf.mxu0
      %v5656 = vadd.f32 %v5567, %v5655
      %v5657 = vpop.f32.mrf.mxu0
      %v5658 = vadd.f32 %v5569, %v5657
      %5659 = vmatmul.bf16.gmra.mxu0 %v2451
      %v5660 = vpop.f32.mrf.mxu0
      %v5661 = vadd.f32 %v5572, %v5660
      %v5662 = vpop.f32.mrf.mxu0
      %v5663 = vadd.f32 %v5574, %v5662
      %5664 = vmatmul.bf16.gmra.mxu0 %v2476
      %v5665 = vpop.f32.mrf.mxu0
      %v5666 = vadd.f32 %v5577, %v5665
      %v5667 = vpop.f32.mrf.mxu0
      %v5668 = vadd.f32 %v5579, %v5667
      %5669 = vmatmul.bf16.gmra.mxu0 %v2501
      %v5670 = vpop.f32.mrf.mxu0
      %v5671 = vadd.f32 %v5582, %v5670
      %v5672 = vpop.f32.mrf.mxu0
      %v5673 = vadd.f32 %v5584, %v5672
      %5674 = vmatmul.bf16.gmra.mxu0 %v2526
      %v5675 = vpop.f32.mrf.mxu0
      %v5676 = vadd.f32 %v5587, %v5675
      %v5677 = vpop.f32.mrf.mxu0
      %v5678 = vadd.f32 %v5589, %v5677
      %5679 = vmatmul.bf16.gmra.mxu0 %v2551
      %v5680 = vpop.f32.mrf.mxu0
      %v5681 = vadd.f32 %v5592, %v5680
      %v5682 = vpop.f32.mrf.mxu0
      %v5683 = vadd.f32 %v5594, %v5682
      %5684 = vmatmul.bf16.gmra.mxu0 %v2576
      %v5685 = vpop.f32.mrf.mxu0
      %v5686 = vadd.f32 %v5597, %v5685
      %v5687 = vpop.f32.mrf.mxu0
      %v5688 = vadd.f32 %v5599, %v5687
      %5689 = vmatmul.bf16.gmra.mxu0 %v2601
      %v5690 = vpop.f32.mrf.mxu0
      %v5691 = vadd.f32 %v5602, %v5690
      %v5692 = vpop.f32.mrf.mxu0
      %v5693 = vadd.f32 %v5604, %v5692
      %5694 = vmatmul.bf16.gmra.mxu0 %v2626
      %v5695 = vpop.f32.mrf.mxu0
      %v5696 = vadd.f32 %v5607, %v5695
      %v5697 = vpop.f32.mrf.mxu0
      %v5698 = vadd.f32 %v5609, %v5697
      %5699 = vmatmul.bf16.gmra.mxu0 %v2651
      %v5700 = vpop.f32.mrf.mxu0
      %v5701 = vadd.f32 %v5612, %v5700
      %v5702 = vpop.f32.mrf.mxu0
      %v5703 = vadd.f32 %v5614, %v5702
      %5704 = vmatmul.bf16.gmra.mxu0 %v2676
      %v5705 = vpop.f32.mrf.mxu0
      %v5706 = vadd.f32 %v5617, %v5705
      %v5707 = vpop.f32.mrf.mxu0
      %v5708 = vadd.f32 %v5619, %v5707
      %5709 = vdwg.mxu0
      %5710 = vmatpush.bf16.msra.mxu0 %v4021
      %5711 = vmatpush.bf16.msra.mxu0 %v4020
      %5712 = vmatpush.bf16.msra.mxu0 %v4019
      %5713 = vmatpush.bf16.msra.mxu0 %v4018
      %5714 = vmatpush.bf16.msra.mxu0 %v4017
      %5715 = vmatpush.bf16.msra.mxu0 %v4016
      %5716 = vmatpush.bf16.msra.mxu0 %v4015
      %5717 = vmatpush.bf16.msra.mxu0 %v4014
      %5718 = vmatmul.bf16.gmra.mxu0 %v2302
      %v5719 = vpop.f32.mrf.mxu0
      %v5720 = vadd.f32 %v5631, %v5719
      %v5721 = vpop.f32.mrf.mxu0
      %v5722 = vadd.f32 %v5633, %v5721
      %5723 = vmatmul.bf16.gmra.mxu0 %v2327
      %v5724 = vpop.f32.mrf.mxu0
      %v5725 = vadd.f32 %v5636, %v5724
      %v5726 = vpop.f32.mrf.mxu0
      %v5727 = vadd.f32 %v5638, %v5726
      %5728 = vmatmul.bf16.gmra.mxu0 %v2352
      %v5729 = vpop.f32.mrf.mxu0
      %v5730 = vadd.f32 %v5641, %v5729
      %v5731 = vpop.f32.mrf.mxu0
      %v5732 = vadd.f32 %v5643, %v5731
      %5733 = vmatmul.bf16.gmra.mxu0 %v2377
      %v5734 = vpop.f32.mrf.mxu0
      %v5735 = vadd.f32 %v5646, %v5734
      %v5736 = vpop.f32.mrf.mxu0
      %v5737 = vadd.f32 %v5648, %v5736
      %5738 = vmatmul.bf16.gmra.mxu0 %v2402
      %v5739 = vpop.f32.mrf.mxu0
      %v5740 = vadd.f32 %v5651, %v5739
      %v5741 = vpop.f32.mrf.mxu0
      %v5742 = vadd.f32 %v5653, %v5741
      %5743 = vmatmul.bf16.gmra.mxu0 %v2427
      %v5744 = vpop.f32.mrf.mxu0
      %v5745 = vadd.f32 %v5656, %v5744
      %v5746 = vpop.f32.mrf.mxu0
      %v5747 = vadd.f32 %v5658, %v5746
      %5748 = vmatmul.bf16.gmra.mxu0 %v2452
      %v5749 = vpop.f32.mrf.mxu0
      %v5750 = vadd.f32 %v5661, %v5749
      %v5751 = vpop.f32.mrf.mxu0
      %v5752 = vadd.f32 %v5663, %v5751
      %5753 = vmatmul.bf16.gmra.mxu0 %v2477
      %v5754 = vpop.f32.mrf.mxu0
      %v5755 = vadd.f32 %v5666, %v5754
      %v5756 = vpop.f32.mrf.mxu0
      %v5757 = vadd.f32 %v5668, %v5756
      %5758 = vmatmul.bf16.gmra.mxu0 %v2502
      %v5759 = vpop.f32.mrf.mxu0
      %v5760 = vadd.f32 %v5671, %v5759
      %v5761 = vpop.f32.mrf.mxu0
      %v5762 = vadd.f32 %v5673, %v5761
      %5763 = vmatmul.bf16.gmra.mxu0 %v2527
      %v5764 = vpop.f32.mrf.mxu0
      %v5765 = vadd.f32 %v5676, %v5764
      %v5766 = vpop.f32.mrf.mxu0
      %v5767 = vadd.f32 %v5678, %v5766
      %5768 = vmatmul.bf16.gmra.mxu0 %v2552
      %v5769 = vpop.f32.mrf.mxu0
      %v5770 = vadd.f32 %v5681, %v5769
      %v5771 = vpop.f32.mrf.mxu0
      %v5772 = vadd.f32 %v5683, %v5771
      %5773 = vmatmul.bf16.gmra.mxu0 %v2577
      %v5774 = vpop.f32.mrf.mxu0
      %v5775 = vadd.f32 %v5686, %v5774
      %v5776 = vpop.f32.mrf.mxu0
      %v5777 = vadd.f32 %v5688, %v5776
      %5778 = vmatmul.bf16.gmra.mxu0 %v2602
      %v5779 = vpop.f32.mrf.mxu0
      %v5780 = vadd.f32 %v5691, %v5779
      %v5781 = vpop.f32.mrf.mxu0
      %v5782 = vadd.f32 %v5693, %v5781
      %5783 = vmatmul.bf16.gmra.mxu0 %v2627
      %v5784 = vpop.f32.mrf.mxu0
      %v5785 = vadd.f32 %v5696, %v5784
      %v5786 = vpop.f32.mrf.mxu0
      %v5787 = vadd.f32 %v5698, %v5786
      %5788 = vmatmul.bf16.gmra.mxu0 %v2652
      %v5789 = vpop.f32.mrf.mxu0
      %v5790 = vadd.f32 %v5701, %v5789
      %v5791 = vpop.f32.mrf.mxu0
      %v5792 = vadd.f32 %v5703, %v5791
      %5793 = vmatmul.bf16.gmra.mxu0 %v2677
      %v5794 = vpop.f32.mrf.mxu0
      %v5795 = vadd.f32 %v5706, %v5794
      %v5796 = vpop.f32.mrf.mxu0
      %v5797 = vadd.f32 %v5708, %v5796
      %5798 = vdwg.mxu0
      %5799 = vmatpush.bf16.msra.mxu0 %v4029
      %5800 = vmatpush.bf16.msra.mxu0 %v4028
      %5801 = vmatpush.bf16.msra.mxu0 %v4027
      %5802 = vmatpush.bf16.msra.mxu0 %v4026
      %5803 = vmatpush.bf16.msra.mxu0 %v4025
      %5804 = vmatpush.bf16.msra.mxu0 %v4024
      %5805 = vmatpush.bf16.msra.mxu0 %v4023
      %5806 = vmatpush.bf16.msra.mxu0 %v4022
      %5807 = vmatmul.bf16.gmra.mxu0 %v2303
      %v5808 = vpop.f32.mrf.mxu0
      %v5809 = vadd.f32 %v5720, %v5808
      %v5810 = vpop.f32.mrf.mxu0
      %v5811 = vadd.f32 %v5722, %v5810
      %5812 = vmatmul.bf16.gmra.mxu0 %v2328
      %v5813 = vpop.f32.mrf.mxu0
      %v5814 = vadd.f32 %v5725, %v5813
      %v5815 = vpop.f32.mrf.mxu0
      %v5816 = vadd.f32 %v5727, %v5815
      %5817 = vmatmul.bf16.gmra.mxu0 %v2353
      %v5818 = vpop.f32.mrf.mxu0
      %v5819 = vadd.f32 %v5730, %v5818
      %v5820 = vpop.f32.mrf.mxu0
      %v5821 = vadd.f32 %v5732, %v5820
      %5822 = vmatmul.bf16.gmra.mxu0 %v2378
      %v5823 = vpop.f32.mrf.mxu0
      %v5824 = vadd.f32 %v5735, %v5823
      %v5825 = vpop.f32.mrf.mxu0
      %v5826 = vadd.f32 %v5737, %v5825
      %5827 = vmatmul.bf16.gmra.mxu0 %v2403
      %v5828 = vpop.f32.mrf.mxu0
      %v5829 = vadd.f32 %v5740, %v5828
      %v5830 = vpop.f32.mrf.mxu0
      %v5831 = vadd.f32 %v5742, %v5830
      %5832 = vmatmul.bf16.gmra.mxu0 %v2428
      %v5833 = vpop.f32.mrf.mxu0
      %v5834 = vadd.f32 %v5745, %v5833
      %v5835 = vpop.f32.mrf.mxu0
      %v5836 = vadd.f32 %v5747, %v5835
      %5837 = vmatmul.bf16.gmra.mxu0 %v2453
      %v5838 = vpop.f32.mrf.mxu0
      %v5839 = vadd.f32 %v5750, %v5838
      %v5840 = vpop.f32.mrf.mxu0
      %v5841 = vadd.f32 %v5752, %v5840
      %5842 = vmatmul.bf16.gmra.mxu0 %v2478
      %v5843 = vpop.f32.mrf.mxu0
      %v5844 = vadd.f32 %v5755, %v5843
      %v5845 = vpop.f32.mrf.mxu0
      %v5846 = vadd.f32 %v5757, %v5845
      %5847 = vmatmul.bf16.gmra.mxu0 %v2503
      %v5848 = vpop.f32.mrf.mxu0
      %v5849 = vadd.f32 %v5760, %v5848
      %v5850 = vpop.f32.mrf.mxu0
      %v5851 = vadd.f32 %v5762, %v5850
      %5852 = vmatmul.bf16.gmra.mxu0 %v2528
      %v5853 = vpop.f32.mrf.mxu0
      %v5854 = vadd.f32 %v5765, %v5853
      %v5855 = vpop.f32.mrf.mxu0
      %v5856 = vadd.f32 %v5767, %v5855
      %5857 = vmatmul.bf16.gmra.mxu0 %v2553
      %v5858 = vpop.f32.mrf.mxu0
      %v5859 = vadd.f32 %v5770, %v5858
      %v5860 = vpop.f32.mrf.mxu0
      %v5861 = vadd.f32 %v5772, %v5860
      %5862 = vmatmul.bf16.gmra.mxu0 %v2578
      %v5863 = vpop.f32.mrf.mxu0
      %v5864 = vadd.f32 %v5775, %v5863
      %v5865 = vpop.f32.mrf.mxu0
      %v5866 = vadd.f32 %v5777, %v5865
      %5867 = vmatmul.bf16.gmra.mxu0 %v2603
      %v5868 = vpop.f32.mrf.mxu0
      %v5869 = vadd.f32 %v5780, %v5868
      %v5870 = vpop.f32.mrf.mxu0
      %v5871 = vadd.f32 %v5782, %v5870
      %5872 = vmatmul.bf16.gmra.mxu0 %v2628
      %v5873 = vpop.f32.mrf.mxu0
      %v5874 = vadd.f32 %v5785, %v5873
      %v5875 = vpop.f32.mrf.mxu0
      %v5876 = vadd.f32 %v5787, %v5875
      %5877 = vmatmul.bf16.gmra.mxu0 %v2653
      %v5878 = vpop.f32.mrf.mxu0
      %v5879 = vadd.f32 %v5790, %v5878
      %v5880 = vpop.f32.mrf.mxu0
      %v5881 = vadd.f32 %v5792, %v5880
      %5882 = vmatmul.bf16.gmra.mxu0 %v2678
      %v5883 = vpop.f32.mrf.mxu0
      %v5884 = vadd.f32 %v5795, %v5883
      %v5885 = vpop.f32.mrf.mxu0
      %v5886 = vadd.f32 %v5797, %v5885
      %5887 = vdwg.mxu0
      %5888 = vmatpush.bf16.msra.mxu0 %v4037
      %5889 = vmatpush.bf16.msra.mxu0 %v4036
      %5890 = vmatpush.bf16.msra.mxu0 %v4035
      %5891 = vmatpush.bf16.msra.mxu0 %v4034
      %5892 = vmatpush.bf16.msra.mxu0 %v4033
      %5893 = vmatpush.bf16.msra.mxu0 %v4032
      %5894 = vmatpush.bf16.msra.mxu0 %v4031
      %5895 = vmatpush.bf16.msra.mxu0 %v4030
      %5896 = vmatmul.bf16.gmra.mxu0 %v2304
      %v5897 = vpop.f32.mrf.mxu0
      %v5898 = vadd.f32 %v5809, %v5897
      %v5899 = vpop.f32.mrf.mxu0
      %v5900 = vadd.f32 %v5811, %v5899
      %5901 = vmatmul.bf16.gmra.mxu0 %v2329
      %v5902 = vpop.f32.mrf.mxu0
      %v5903 = vadd.f32 %v5814, %v5902
      %v5904 = vpop.f32.mrf.mxu0
      %v5905 = vadd.f32 %v5816, %v5904
      %5906 = vmatmul.bf16.gmra.mxu0 %v2354
      %v5907 = vpop.f32.mrf.mxu0
      %v5908 = vadd.f32 %v5819, %v5907
      %v5909 = vpop.f32.mrf.mxu0
      %v5910 = vadd.f32 %v5821, %v5909
      %5911 = vmatmul.bf16.gmra.mxu0 %v2379
      %v5912 = vpop.f32.mrf.mxu0
      %v5913 = vadd.f32 %v5824, %v5912
      %v5914 = vpop.f32.mrf.mxu0
      %v5915 = vadd.f32 %v5826, %v5914
      %5916 = vmatmul.bf16.gmra.mxu0 %v2404
      %v5917 = vpop.f32.mrf.mxu0
      %v5918 = vadd.f32 %v5829, %v5917
      %v5919 = vpop.f32.mrf.mxu0
      %v5920 = vadd.f32 %v5831, %v5919
      %5921 = vmatmul.bf16.gmra.mxu0 %v2429
      %v5922 = vpop.f32.mrf.mxu0
      %v5923 = vadd.f32 %v5834, %v5922
      %v5924 = vpop.f32.mrf.mxu0
      %v5925 = vadd.f32 %v5836, %v5924
      %5926 = vmatmul.bf16.gmra.mxu0 %v2454
      %v5927 = vpop.f32.mrf.mxu0
      %v5928 = vadd.f32 %v5839, %v5927
      %v5929 = vpop.f32.mrf.mxu0
      %v5930 = vadd.f32 %v5841, %v5929
      %5931 = vmatmul.bf16.gmra.mxu0 %v2479
      %v5932 = vpop.f32.mrf.mxu0
      %v5933 = vadd.f32 %v5844, %v5932
      %v5934 = vpop.f32.mrf.mxu0
      %v5935 = vadd.f32 %v5846, %v5934
      %5936 = vmatmul.bf16.gmra.mxu0 %v2504
      %v5937 = vpop.f32.mrf.mxu0
      %v5938 = vadd.f32 %v5849, %v5937
      %v5939 = vpop.f32.mrf.mxu0
      %v5940 = vadd.f32 %v5851, %v5939
      %5941 = vmatmul.bf16.gmra.mxu0 %v2529
      %v5942 = vpop.f32.mrf.mxu0
      %v5943 = vadd.f32 %v5854, %v5942
      %v5944 = vpop.f32.mrf.mxu0
      %v5945 = vadd.f32 %v5856, %v5944
      %5946 = vmatmul.bf16.gmra.mxu0 %v2554
      %v5947 = vpop.f32.mrf.mxu0
      %v5948 = vadd.f32 %v5859, %v5947
      %v5949 = vpop.f32.mrf.mxu0
      %v5950 = vadd.f32 %v5861, %v5949
      %5951 = vmatmul.bf16.gmra.mxu0 %v2579
      %v5952 = vpop.f32.mrf.mxu0
      %v5953 = vadd.f32 %v5864, %v5952
      %v5954 = vpop.f32.mrf.mxu0
      %v5955 = vadd.f32 %v5866, %v5954
      %5956 = vmatmul.bf16.gmra.mxu0 %v2604
      %v5957 = vpop.f32.mrf.mxu0
      %v5958 = vadd.f32 %v5869, %v5957
      %v5959 = vpop.f32.mrf.mxu0
      %v5960 = vadd.f32 %v5871, %v5959
      %5961 = vmatmul.bf16.gmra.mxu0 %v2629
      %v5962 = vpop.f32.mrf.mxu0
      %v5963 = vadd.f32 %v5874, %v5962
      %v5964 = vpop.f32.mrf.mxu0
      %v5965 = vadd.f32 %v5876, %v5964
      %5966 = vmatmul.bf16.gmra.mxu0 %v2654
      %v5967 = vpop.f32.mrf.mxu0
      %v5968 = vadd.f32 %v5879, %v5967
      %v5969 = vpop.f32.mrf.mxu0
      %v5970 = vadd.f32 %v5881, %v5969
      %5971 = vmatmul.bf16.gmra.mxu0 %v2679
      %v5972 = vpop.f32.mrf.mxu0
      %v5973 = vadd.f32 %v5884, %v5972
      %v5974 = vpop.f32.mrf.mxu0
      %v5975 = vadd.f32 %v5886, %v5974
      %5976 = vdwg.mxu0
      %5977 = vmatpush.bf16.msra.mxu0 %v4045
      %5978 = vmatpush.bf16.msra.mxu0 %v4044
      %5979 = vmatpush.bf16.msra.mxu0 %v4043
      %5980 = vmatpush.bf16.msra.mxu0 %v4042
      %5981 = vmatpush.bf16.msra.mxu0 %v4041
      %5982 = vmatpush.bf16.msra.mxu0 %v4040
      %5983 = vmatpush.bf16.msra.mxu0 %v4039
      %5984 = vmatpush.bf16.msra.mxu0 %v4038
      %5985 = vmatmul.bf16.gmra.mxu0 %v2305
      %v5986 = vpop.f32.mrf.mxu0
      %v5987 = vadd.f32 %v5898, %v5986
      %v5988 = vpop.f32.mrf.mxu0
      %v5989 = vadd.f32 %v5900, %v5988
      %5990 = vmatmul.bf16.gmra.mxu0 %v2330
      %v5991 = vpop.f32.mrf.mxu0
      %v5992 = vadd.f32 %v5903, %v5991
      %v5993 = vpop.f32.mrf.mxu0
      %v5994 = vadd.f32 %v5905, %v5993
      %5995 = vmatmul.bf16.gmra.mxu0 %v2355
      %v5996 = vpop.f32.mrf.mxu0
      %v5997 = vadd.f32 %v5908, %v5996
      %v5998 = vpop.f32.mrf.mxu0
      %v5999 = vadd.f32 %v5910, %v5998
      %6000 = vmatmul.bf16.gmra.mxu0 %v2380
      %v6001 = vpop.f32.mrf.mxu0
      %v6002 = vadd.f32 %v5913, %v6001
      %v6003 = vpop.f32.mrf.mxu0
      %v6004 = vadd.f32 %v5915, %v6003
      %6005 = vmatmul.bf16.gmra.mxu0 %v2405
      %v6006 = vpop.f32.mrf.mxu0
      %v6007 = vadd.f32 %v5918, %v6006
      %v6008 = vpop.f32.mrf.mxu0
      %v6009 = vadd.f32 %v5920, %v6008
      %6010 = vmatmul.bf16.gmra.mxu0 %v2430
      %v6011 = vpop.f32.mrf.mxu0
      %v6012 = vadd.f32 %v5923, %v6011
      %v6013 = vpop.f32.mrf.mxu0
      %v6014 = vadd.f32 %v5925, %v6013
      %6015 = vmatmul.bf16.gmra.mxu0 %v2455
      %v6016 = vpop.f32.mrf.mxu0
      %v6017 = vadd.f32 %v5928, %v6016
      %v6018 = vpop.f32.mrf.mxu0
      %v6019 = vadd.f32 %v5930, %v6018
      %6020 = vmatmul.bf16.gmra.mxu0 %v2480
      %v6021 = vpop.f32.mrf.mxu0
      %v6022 = vadd.f32 %v5933, %v6021
      %v6023 = vpop.f32.mrf.mxu0
      %v6024 = vadd.f32 %v5935, %v6023
      %6025 = vmatmul.bf16.gmra.mxu0 %v2505
      %v6026 = vpop.f32.mrf.mxu0
      %v6027 = vadd.f32 %v5938, %v6026
      %v6028 = vpop.f32.mrf.mxu0
      %v6029 = vadd.f32 %v5940, %v6028
      %6030 = vmatmul.bf16.gmra.mxu0 %v2530
      %v6031 = vpop.f32.mrf.mxu0
      %v6032 = vadd.f32 %v5943, %v6031
      %v6033 = vpop.f32.mrf.mxu0
      %v6034 = vadd.f32 %v5945, %v6033
      %6035 = vmatmul.bf16.gmra.mxu0 %v2555
      %v6036 = vpop.f32.mrf.mxu0
      %v6037 = vadd.f32 %v5948, %v6036
      %v6038 = vpop.f32.mrf.mxu0
      %v6039 = vadd.f32 %v5950, %v6038
      %6040 = vmatmul.bf16.gmra.mxu0 %v2580
      %v6041 = vpop.f32.mrf.mxu0
      %v6042 = vadd.f32 %v5953, %v6041
      %v6043 = vpop.f32.mrf.mxu0
      %v6044 = vadd.f32 %v5955, %v6043
      %6045 = vmatmul.bf16.gmra.mxu0 %v2605
      %v6046 = vpop.f32.mrf.mxu0
      %v6047 = vadd.f32 %v5958, %v6046
      %v6048 = vpop.f32.mrf.mxu0
      %v6049 = vadd.f32 %v5960, %v6048
      %6050 = vmatmul.bf16.gmra.mxu0 %v2630
      %v6051 = vpop.f32.mrf.mxu0
      %v6052 = vadd.f32 %v5963, %v6051
      %v6053 = vpop.f32.mrf.mxu0
      %v6054 = vadd.f32 %v5965, %v6053
      %6055 = vmatmul.bf16.gmra.mxu0 %v2655
      %v6056 = vpop.f32.mrf.mxu0
      %v6057 = vadd.f32 %v5968, %v6056
      %v6058 = vpop.f32.mrf.mxu0
      %v6059 = vadd.f32 %v5970, %v6058
      %6060 = vmatmul.bf16.gmra.mxu0 %v2680
      %v6061 = vpop.f32.mrf.mxu0
      %v6062 = vadd.f32 %v5973, %v6061
      %v6063 = vpop.f32.mrf.mxu0
      %v6064 = vadd.f32 %v5975, %v6063
      %6065 = vdwg.mxu0
      %6066 = vmatpush.bf16.msra.mxu0 %v4053
      %6067 = vmatpush.bf16.msra.mxu0 %v4052
      %6068 = vmatpush.bf16.msra.mxu0 %v4051
      %6069 = vmatpush.bf16.msra.mxu0 %v4050
      %6070 = vmatpush.bf16.msra.mxu0 %v4049
      %6071 = vmatpush.bf16.msra.mxu0 %v4048
      %6072 = vmatpush.bf16.msra.mxu0 %v4047
      %6073 = vmatpush.bf16.msra.mxu0 %v4046
      %6074 = vmatmul.bf16.gmra.mxu0 %v2306
      %v6075 = vpop.f32.mrf.mxu0
      %v6076 = vadd.f32 %v5987, %v6075
      %v6077 = vpop.f32.mrf.mxu0
      %v6078 = vadd.f32 %v5989, %v6077
      %6079 = vmatmul.bf16.gmra.mxu0 %v2331
      %v6080 = vpop.f32.mrf.mxu0
      %v6081 = vadd.f32 %v5992, %v6080
      %v6082 = vpop.f32.mrf.mxu0
      %v6083 = vadd.f32 %v5994, %v6082
      %6084 = vmatmul.bf16.gmra.mxu0 %v2356
      %v6085 = vpop.f32.mrf.mxu0
      %v6086 = vadd.f32 %v5997, %v6085
      %v6087 = vpop.f32.mrf.mxu0
      %v6088 = vadd.f32 %v5999, %v6087
      %6089 = vmatmul.bf16.gmra.mxu0 %v2381
      %v6090 = vpop.f32.mrf.mxu0
      %v6091 = vadd.f32 %v6002, %v6090
      %v6092 = vpop.f32.mrf.mxu0
      %v6093 = vadd.f32 %v6004, %v6092
      %6094 = vmatmul.bf16.gmra.mxu0 %v2406
      %v6095 = vpop.f32.mrf.mxu0
      %v6096 = vadd.f32 %v6007, %v6095
      %v6097 = vpop.f32.mrf.mxu0
      %v6098 = vadd.f32 %v6009, %v6097
      %6099 = vmatmul.bf16.gmra.mxu0 %v2431
      %v6100 = vpop.f32.mrf.mxu0
      %v6101 = vadd.f32 %v6012, %v6100
      %v6102 = vpop.f32.mrf.mxu0
      %v6103 = vadd.f32 %v6014, %v6102
      %6104 = vmatmul.bf16.gmra.mxu0 %v2456
      %v6105 = vpop.f32.mrf.mxu0
      %v6106 = vadd.f32 %v6017, %v6105
      %v6107 = vpop.f32.mrf.mxu0
      %v6108 = vadd.f32 %v6019, %v6107
      %6109 = vmatmul.bf16.gmra.mxu0 %v2481
      %v6110 = vpop.f32.mrf.mxu0
      %v6111 = vadd.f32 %v6022, %v6110
      %v6112 = vpop.f32.mrf.mxu0
      %v6113 = vadd.f32 %v6024, %v6112
      %6114 = vmatmul.bf16.gmra.mxu0 %v2506
      %v6115 = vpop.f32.mrf.mxu0
      %v6116 = vadd.f32 %v6027, %v6115
      %v6117 = vpop.f32.mrf.mxu0
      %v6118 = vadd.f32 %v6029, %v6117
      %6119 = vmatmul.bf16.gmra.mxu0 %v2531
      %v6120 = vpop.f32.mrf.mxu0
      %v6121 = vadd.f32 %v6032, %v6120
      %v6122 = vpop.f32.mrf.mxu0
      %v6123 = vadd.f32 %v6034, %v6122
      %6124 = vmatmul.bf16.gmra.mxu0 %v2556
      %v6125 = vpop.f32.mrf.mxu0
      %v6126 = vadd.f32 %v6037, %v6125
      %v6127 = vpop.f32.mrf.mxu0
      %v6128 = vadd.f32 %v6039, %v6127
      %6129 = vmatmul.bf16.gmra.mxu0 %v2581
      %v6130 = vpop.f32.mrf.mxu0
      %v6131 = vadd.f32 %v6042, %v6130
      %v6132 = vpop.f32.mrf.mxu0
      %v6133 = vadd.f32 %v6044, %v6132
      %6134 = vmatmul.bf16.gmra.mxu0 %v2606
      %v6135 = vpop.f32.mrf.mxu0
      %v6136 = vadd.f32 %v6047, %v6135
      %v6137 = vpop.f32.mrf.mxu0
      %v6138 = vadd.f32 %v6049, %v6137
      %6139 = vmatmul.bf16.gmra.mxu0 %v2631
      %v6140 = vpop.f32.mrf.mxu0
      %v6141 = vadd.f32 %v6052, %v6140
      %v6142 = vpop.f32.mrf.mxu0
      %v6143 = vadd.f32 %v6054, %v6142
      %6144 = vmatmul.bf16.gmra.mxu0 %v2656
      %v6145 = vpop.f32.mrf.mxu0
      %v6146 = vadd.f32 %v6057, %v6145
      %v6147 = vpop.f32.mrf.mxu0
      %v6148 = vadd.f32 %v6059, %v6147
      %6149 = vmatmul.bf16.gmra.mxu0 %v2681
      %v6150 = vpop.f32.mrf.mxu0
      %v6151 = vadd.f32 %v6062, %v6150
      %v6152 = vpop.f32.mrf.mxu0
      %v6153 = vadd.f32 %v6064, %v6152
      %6154 = vdwg.mxu0
      %6155 = vmatpush.bf16.msra.mxu0 %v4061
      %6156 = vmatpush.bf16.msra.mxu0 %v4060
      %6157 = vmatpush.bf16.msra.mxu0 %v4059
      %6158 = vmatpush.bf16.msra.mxu0 %v4058
      %6159 = vmatpush.bf16.msra.mxu0 %v4057
      %6160 = vmatpush.bf16.msra.mxu0 %v4056
      %6161 = vmatpush.bf16.msra.mxu0 %v4055
      %6162 = vmatpush.bf16.msra.mxu0 %v4054
      %6163 = vmatmul.bf16.gmra.mxu0 %v2307
      %v6164 = vpop.f32.mrf.mxu0
      %v6165 = vadd.f32 %v6076, %v6164
      %v6166 = vpop.f32.mrf.mxu0
      %v6167 = vadd.f32 %v6078, %v6166
      %6168 = vmatmul.bf16.gmra.mxu0 %v2332
      %v6169 = vpop.f32.mrf.mxu0
      %v6170 = vadd.f32 %v6081, %v6169
      %v6171 = vpop.f32.mrf.mxu0
      %v6172 = vadd.f32 %v6083, %v6171
      %6173 = vmatmul.bf16.gmra.mxu0 %v2357
      %v6174 = vpop.f32.mrf.mxu0
      %v6175 = vadd.f32 %v6086, %v6174
      %v6176 = vpop.f32.mrf.mxu0
      %v6177 = vadd.f32 %v6088, %v6176
      %6178 = vmatmul.bf16.gmra.mxu0 %v2382
      %v6179 = vpop.f32.mrf.mxu0
      %v6180 = vadd.f32 %v6091, %v6179
      %v6181 = vpop.f32.mrf.mxu0
      %v6182 = vadd.f32 %v6093, %v6181
      %6183 = vmatmul.bf16.gmra.mxu0 %v2407
      %v6184 = vpop.f32.mrf.mxu0
      %v6185 = vadd.f32 %v6096, %v6184
      %v6186 = vpop.f32.mrf.mxu0
      %v6187 = vadd.f32 %v6098, %v6186
      %6188 = vmatmul.bf16.gmra.mxu0 %v2432
      %v6189 = vpop.f32.mrf.mxu0
      %v6190 = vadd.f32 %v6101, %v6189
      %v6191 = vpop.f32.mrf.mxu0
      %v6192 = vadd.f32 %v6103, %v6191
      %6193 = vmatmul.bf16.gmra.mxu0 %v2457
      %v6194 = vpop.f32.mrf.mxu0
      %v6195 = vadd.f32 %v6106, %v6194
      %v6196 = vpop.f32.mrf.mxu0
      %v6197 = vadd.f32 %v6108, %v6196
      %6198 = vmatmul.bf16.gmra.mxu0 %v2482
      %v6199 = vpop.f32.mrf.mxu0
      %v6200 = vadd.f32 %v6111, %v6199
      %v6201 = vpop.f32.mrf.mxu0
      %v6202 = vadd.f32 %v6113, %v6201
      %6203 = vmatmul.bf16.gmra.mxu0 %v2507
      %v6204 = vpop.f32.mrf.mxu0
      %v6205 = vadd.f32 %v6116, %v6204
      %v6206 = vpop.f32.mrf.mxu0
      %v6207 = vadd.f32 %v6118, %v6206
      %6208 = vmatmul.bf16.gmra.mxu0 %v2532
      %v6209 = vpop.f32.mrf.mxu0
      %v6210 = vadd.f32 %v6121, %v6209
      %v6211 = vpop.f32.mrf.mxu0
      %v6212 = vadd.f32 %v6123, %v6211
      %6213 = vmatmul.bf16.gmra.mxu0 %v2557
      %v6214 = vpop.f32.mrf.mxu0
      %v6215 = vadd.f32 %v6126, %v6214
      %v6216 = vpop.f32.mrf.mxu0
      %v6217 = vadd.f32 %v6128, %v6216
      %6218 = vmatmul.bf16.gmra.mxu0 %v2582
      %v6219 = vpop.f32.mrf.mxu0
      %v6220 = vadd.f32 %v6131, %v6219
      %v6221 = vpop.f32.mrf.mxu0
      %v6222 = vadd.f32 %v6133, %v6221
      %6223 = vmatmul.bf16.gmra.mxu0 %v2607
      %v6224 = vpop.f32.mrf.mxu0
      %v6225 = vadd.f32 %v6136, %v6224
      %v6226 = vpop.f32.mrf.mxu0
      %v6227 = vadd.f32 %v6138, %v6226
      %6228 = vmatmul.bf16.gmra.mxu0 %v2632
      %v6229 = vpop.f32.mrf.mxu0
      %v6230 = vadd.f32 %v6141, %v6229
      %v6231 = vpop.f32.mrf.mxu0
      %v6232 = vadd.f32 %v6143, %v6231
      %6233 = vmatmul.bf16.gmra.mxu0 %v2657
      %v6234 = vpop.f32.mrf.mxu0
      %v6235 = vadd.f32 %v6146, %v6234
      %v6236 = vpop.f32.mrf.mxu0
      %v6237 = vadd.f32 %v6148, %v6236
      %6238 = vmatmul.bf16.gmra.mxu0 %v2682
      %v6239 = vpop.f32.mrf.mxu0
      %v6240 = vadd.f32 %v6151, %v6239
      %v6241 = vpop.f32.mrf.mxu0
      %v6242 = vadd.f32 %v6153, %v6241
      %6243 = vdwg.mxu0
      %6244 = vmatpush.bf16.msra.mxu0 %v4069
      %6245 = vmatpush.bf16.msra.mxu0 %v4068
      %6246 = vmatpush.bf16.msra.mxu0 %v4067
      %6247 = vmatpush.bf16.msra.mxu0 %v4066
      %6248 = vmatpush.bf16.msra.mxu0 %v4065
      %6249 = vmatpush.bf16.msra.mxu0 %v4064
      %6250 = vmatpush.bf16.msra.mxu0 %v4063
      %6251 = vmatpush.bf16.msra.mxu0 %v4062
      %6252 = vmatmul.bf16.gmra.mxu0 %v2308
      %v6253 = vpop.f32.mrf.mxu0
      %v6254 = vadd.f32 %v6165, %v6253
      %v6255 = vpop.f32.mrf.mxu0
      %v6256 = vadd.f32 %v6167, %v6255
      %6257 = vmatmul.bf16.gmra.mxu0 %v2333
      %v6258 = vpop.f32.mrf.mxu0
      %v6259 = vadd.f32 %v6170, %v6258
      %v6260 = vpop.f32.mrf.mxu0
      %v6261 = vadd.f32 %v6172, %v6260
      %6262 = vmatmul.bf16.gmra.mxu0 %v2358
      %v6263 = vpop.f32.mrf.mxu0
      %v6264 = vadd.f32 %v6175, %v6263
      %v6265 = vpop.f32.mrf.mxu0
      %v6266 = vadd.f32 %v6177, %v6265
      %6267 = vmatmul.bf16.gmra.mxu0 %v2383
      %v6268 = vpop.f32.mrf.mxu0
      %v6269 = vadd.f32 %v6180, %v6268
      %v6270 = vpop.f32.mrf.mxu0
      %v6271 = vadd.f32 %v6182, %v6270
      %6272 = vmatmul.bf16.gmra.mxu0 %v2408
      %v6273 = vpop.f32.mrf.mxu0
      %v6274 = vadd.f32 %v6185, %v6273
      %v6275 = vpop.f32.mrf.mxu0
      %v6276 = vadd.f32 %v6187, %v6275
      %6277 = vmatmul.bf16.gmra.mxu0 %v2433
      %v6278 = vpop.f32.mrf.mxu0
      %v6279 = vadd.f32 %v6190, %v6278
      %v6280 = vpop.f32.mrf.mxu0
      %v6281 = vadd.f32 %v6192, %v6280
      %6282 = vmatmul.bf16.gmra.mxu0 %v2458
      %v6283 = vpop.f32.mrf.mxu0
      %v6284 = vadd.f32 %v6195, %v6283
      %v6285 = vpop.f32.mrf.mxu0
      %v6286 = vadd.f32 %v6197, %v6285
      %6287 = vmatmul.bf16.gmra.mxu0 %v2483
      %v6288 = vpop.f32.mrf.mxu0
      %v6289 = vadd.f32 %v6200, %v6288
      %v6290 = vpop.f32.mrf.mxu0
      %v6291 = vadd.f32 %v6202, %v6290
      %6292 = vmatmul.bf16.gmra.mxu0 %v2508
      %v6293 = vpop.f32.mrf.mxu0
      %v6294 = vadd.f32 %v6205, %v6293
      %v6295 = vpop.f32.mrf.mxu0
      %v6296 = vadd.f32 %v6207, %v6295
      %6297 = vmatmul.bf16.gmra.mxu0 %v2533
      %v6298 = vpop.f32.mrf.mxu0
      %v6299 = vadd.f32 %v6210, %v6298
      %v6300 = vpop.f32.mrf.mxu0
      %v6301 = vadd.f32 %v6212, %v6300
      %6302 = vmatmul.bf16.gmra.mxu0 %v2558
      %v6303 = vpop.f32.mrf.mxu0
      %v6304 = vadd.f32 %v6215, %v6303
      %v6305 = vpop.f32.mrf.mxu0
      %v6306 = vadd.f32 %v6217, %v6305
      %6307 = vmatmul.bf16.gmra.mxu0 %v2583
      %v6308 = vpop.f32.mrf.mxu0
      %v6309 = vadd.f32 %v6220, %v6308
      %v6310 = vpop.f32.mrf.mxu0
      %v6311 = vadd.f32 %v6222, %v6310
      %6312 = vmatmul.bf16.gmra.mxu0 %v2608
      %v6313 = vpop.f32.mrf.mxu0
      %v6314 = vadd.f32 %v6225, %v6313
      %v6315 = vpop.f32.mrf.mxu0
      %v6316 = vadd.f32 %v6227, %v6315
      %6317 = vmatmul.bf16.gmra.mxu0 %v2633
      %v6318 = vpop.f32.mrf.mxu0
      %v6319 = vadd.f32 %v6230, %v6318
      %v6320 = vpop.f32.mrf.mxu0
      %v6321 = vadd.f32 %v6232, %v6320
      %6322 = vmatmul.bf16.gmra.mxu0 %v2658
      %v6323 = vpop.f32.mrf.mxu0
      %v6324 = vadd.f32 %v6235, %v6323
      %v6325 = vpop.f32.mrf.mxu0
      %v6326 = vadd.f32 %v6237, %v6325
      %6327 = vmatmul.bf16.gmra.mxu0 %v2683
      %v6328 = vpop.f32.mrf.mxu0
      %v6329 = vadd.f32 %v6240, %v6328
      %v6330 = vpop.f32.mrf.mxu0
      %v6331 = vadd.f32 %v6242, %v6330
      %6332 = vdwg.mxu0
      %6333 = vmatpush.bf16.msra.mxu0 %v4077
      %6334 = vmatpush.bf16.msra.mxu0 %v4076
      %6335 = vmatpush.bf16.msra.mxu0 %v4075
      %6336 = vmatpush.bf16.msra.mxu0 %v4074
      %6337 = vmatpush.bf16.msra.mxu0 %v4073
      %6338 = vmatpush.bf16.msra.mxu0 %v4072
      %6339 = vmatpush.bf16.msra.mxu0 %v4071
      %6340 = vmatpush.bf16.msra.mxu0 %v4070
      %6341 = vmatmul.bf16.gmra.mxu0 %v2309
      %v6342 = vpop.f32.mrf.mxu0
      %v6343 = vadd.f32 %v6254, %v6342
      %v6344 = vpop.f32.mrf.mxu0
      %v6345 = vadd.f32 %v6256, %v6344
      %6346 = vmatmul.bf16.gmra.mxu0 %v2334
      %v6347 = vpop.f32.mrf.mxu0
      %v6348 = vadd.f32 %v6259, %v6347
      %v6349 = vpop.f32.mrf.mxu0
      %v6350 = vadd.f32 %v6261, %v6349
      %6351 = vmatmul.bf16.gmra.mxu0 %v2359
      %v6352 = vpop.f32.mrf.mxu0
      %v6353 = vadd.f32 %v6264, %v6352
      %v6354 = vpop.f32.mrf.mxu0
      %v6355 = vadd.f32 %v6266, %v6354
      %6356 = vmatmul.bf16.gmra.mxu0 %v2384
      %v6357 = vpop.f32.mrf.mxu0
      %v6358 = vadd.f32 %v6269, %v6357
      %v6359 = vpop.f32.mrf.mxu0
      %v6360 = vadd.f32 %v6271, %v6359
      %6361 = vmatmul.bf16.gmra.mxu0 %v2409
      %v6362 = vpop.f32.mrf.mxu0
      %v6363 = vadd.f32 %v6274, %v6362
      %v6364 = vpop.f32.mrf.mxu0
      %v6365 = vadd.f32 %v6276, %v6364
      %6366 = vmatmul.bf16.gmra.mxu0 %v2434
      %v6367 = vpop.f32.mrf.mxu0
      %v6368 = vadd.f32 %v6279, %v6367
      %v6369 = vpop.f32.mrf.mxu0
      %v6370 = vadd.f32 %v6281, %v6369
      %6371 = vmatmul.bf16.gmra.mxu0 %v2459
      %v6372 = vpop.f32.mrf.mxu0
      %v6373 = vadd.f32 %v6284, %v6372
      %v6374 = vpop.f32.mrf.mxu0
      %v6375 = vadd.f32 %v6286, %v6374
      %6376 = vmatmul.bf16.gmra.mxu0 %v2484
      %v6377 = vpop.f32.mrf.mxu0
      %v6378 = vadd.f32 %v6289, %v6377
      %v6379 = vpop.f32.mrf.mxu0
      %v6380 = vadd.f32 %v6291, %v6379
      %6381 = vmatmul.bf16.gmra.mxu0 %v2509
      %v6382 = vpop.f32.mrf.mxu0
      %v6383 = vadd.f32 %v6294, %v6382
      %v6384 = vpop.f32.mrf.mxu0
      %v6385 = vadd.f32 %v6296, %v6384
      %6386 = vmatmul.bf16.gmra.mxu0 %v2534
      %v6387 = vpop.f32.mrf.mxu0
      %v6388 = vadd.f32 %v6299, %v6387
      %v6389 = vpop.f32.mrf.mxu0
      %v6390 = vadd.f32 %v6301, %v6389
      %6391 = vmatmul.bf16.gmra.mxu0 %v2559
      %v6392 = vpop.f32.mrf.mxu0
      %v6393 = vadd.f32 %v6304, %v6392
      %v6394 = vpop.f32.mrf.mxu0
      %v6395 = vadd.f32 %v6306, %v6394
      %6396 = vmatmul.bf16.gmra.mxu0 %v2584
      %v6397 = vpop.f32.mrf.mxu0
      %v6398 = vadd.f32 %v6309, %v6397
      %v6399 = vpop.f32.mrf.mxu0
      %v6400 = vadd.f32 %v6311, %v6399
      %6401 = vmatmul.bf16.gmra.mxu0 %v2609
      %v6402 = vpop.f32.mrf.mxu0
      %v6403 = vadd.f32 %v6314, %v6402
      %v6404 = vpop.f32.mrf.mxu0
      %v6405 = vadd.f32 %v6316, %v6404
      %6406 = vmatmul.bf16.gmra.mxu0 %v2634
      %v6407 = vpop.f32.mrf.mxu0
      %v6408 = vadd.f32 %v6319, %v6407
      %v6409 = vpop.f32.mrf.mxu0
      %v6410 = vadd.f32 %v6321, %v6409
      %6411 = vmatmul.bf16.gmra.mxu0 %v2659
      %v6412 = vpop.f32.mrf.mxu0
      %v6413 = vadd.f32 %v6324, %v6412
      %v6414 = vpop.f32.mrf.mxu0
      %v6415 = vadd.f32 %v6326, %v6414
      %6416 = vmatmul.bf16.gmra.mxu0 %v2684
      %v6417 = vpop.f32.mrf.mxu0
      %v6418 = vadd.f32 %v6329, %v6417
      %v6419 = vpop.f32.mrf.mxu0
      %v6420 = vadd.f32 %v6331, %v6419
      %6421 = vdwg.mxu0
      %6422 = vmatpush.bf16.msra.mxu0 %v4085
      %6423 = vmatpush.bf16.msra.mxu0 %v4084
      %6424 = vmatpush.bf16.msra.mxu0 %v4083
      %6425 = vmatpush.bf16.msra.mxu0 %v4082
      %6426 = vmatpush.bf16.msra.mxu0 %v4081
      %6427 = vmatpush.bf16.msra.mxu0 %v4080
      %6428 = vmatpush.bf16.msra.mxu0 %v4079
      %6429 = vmatpush.bf16.msra.mxu0 %v4078
      %6430 = vmatmul.bf16.gmra.mxu0 %v2310
      %v6431 = vpop.f32.mrf.mxu0
      %v6432 = vadd.f32 %v6343, %v6431
      %v6433 = vpop.f32.mrf.mxu0
      %v6434 = vadd.f32 %v6345, %v6433
      %6435 = vmatmul.bf16.gmra.mxu0 %v2335
      %v6436 = vpop.f32.mrf.mxu0
      %v6437 = vadd.f32 %v6348, %v6436
      %v6438 = vpop.f32.mrf.mxu0
      %v6439 = vadd.f32 %v6350, %v6438
      %6440 = vmatmul.bf16.gmra.mxu0 %v2360
      %v6441 = vpop.f32.mrf.mxu0
      %v6442 = vadd.f32 %v6353, %v6441
      %v6443 = vpop.f32.mrf.mxu0
      %v6444 = vadd.f32 %v6355, %v6443
      %6445 = vmatmul.bf16.gmra.mxu0 %v2385
      %v6446 = vpop.f32.mrf.mxu0
      %v6447 = vadd.f32 %v6358, %v6446
      %v6448 = vpop.f32.mrf.mxu0
      %v6449 = vadd.f32 %v6360, %v6448
      %6450 = vmatmul.bf16.gmra.mxu0 %v2410
      %v6451 = vpop.f32.mrf.mxu0
      %v6452 = vadd.f32 %v6363, %v6451
      %v6453 = vpop.f32.mrf.mxu0
      %v6454 = vadd.f32 %v6365, %v6453
      %6455 = vmatmul.bf16.gmra.mxu0 %v2435
      %v6456 = vpop.f32.mrf.mxu0
      %v6457 = vadd.f32 %v6368, %v6456
      %v6458 = vpop.f32.mrf.mxu0
      %v6459 = vadd.f32 %v6370, %v6458
      %6460 = vmatmul.bf16.gmra.mxu0 %v2460
      %v6461 = vpop.f32.mrf.mxu0
      %v6462 = vadd.f32 %v6373, %v6461
      %v6463 = vpop.f32.mrf.mxu0
      %v6464 = vadd.f32 %v6375, %v6463
      %6465 = vmatmul.bf16.gmra.mxu0 %v2485
      %v6466 = vpop.f32.mrf.mxu0
      %v6467 = vadd.f32 %v6378, %v6466
      %v6468 = vpop.f32.mrf.mxu0
      %v6469 = vadd.f32 %v6380, %v6468
      %6470 = vmatmul.bf16.gmra.mxu0 %v2510
      %v6471 = vpop.f32.mrf.mxu0
      %v6472 = vadd.f32 %v6383, %v6471
      %v6473 = vpop.f32.mrf.mxu0
      %v6474 = vadd.f32 %v6385, %v6473
      %6475 = vmatmul.bf16.gmra.mxu0 %v2535
      %v6476 = vpop.f32.mrf.mxu0
      %v6477 = vadd.f32 %v6388, %v6476
      %v6478 = vpop.f32.mrf.mxu0
      %v6479 = vadd.f32 %v6390, %v6478
      %6480 = vmatmul.bf16.gmra.mxu0 %v2560
      %v6481 = vpop.f32.mrf.mxu0
      %v6482 = vadd.f32 %v6393, %v6481
      %v6483 = vpop.f32.mrf.mxu0
      %v6484 = vadd.f32 %v6395, %v6483
      %6485 = vmatmul.bf16.gmra.mxu0 %v2585
      %v6486 = vpop.f32.mrf.mxu0
      %v6487 = vadd.f32 %v6398, %v6486
      %v6488 = vpop.f32.mrf.mxu0
      %v6489 = vadd.f32 %v6400, %v6488
      %6490 = vmatmul.bf16.gmra.mxu0 %v2610
      %v6491 = vpop.f32.mrf.mxu0
      %v6492 = vadd.f32 %v6403, %v6491
      %v6493 = vpop.f32.mrf.mxu0
      %v6494 = vadd.f32 %v6405, %v6493
      %6495 = vmatmul.bf16.gmra.mxu0 %v2635
      %v6496 = vpop.f32.mrf.mxu0
      %v6497 = vadd.f32 %v6408, %v6496
      %v6498 = vpop.f32.mrf.mxu0
      %v6499 = vadd.f32 %v6410, %v6498
      %6500 = vmatmul.bf16.gmra.mxu0 %v2660
      %v6501 = vpop.f32.mrf.mxu0
      %v6502 = vadd.f32 %v6413, %v6501
      %v6503 = vpop.f32.mrf.mxu0
      %v6504 = vadd.f32 %v6415, %v6503
      %6505 = vmatmul.bf16.gmra.mxu0 %v2685
      %v6506 = vpop.f32.mrf.mxu0
      %v6507 = vadd.f32 %v6418, %v6506
      %v6508 = vpop.f32.mrf.mxu0
      %v6509 = vadd.f32 %v6420, %v6508
      %6510 = vdwg.mxu0
      %p6511 = scmp.eq.s32.totalorder %s20, 0
      // Predicated region
      $region37: #{salience_forward.6} parent=35 // pred_check
        %p6512 = pneg %p6511
      $region38: #{salience_forward.6} parent=35 // pred_check_branch
        %6514 = sbr.rel (%p6512) target = $region40
      $region39: #{salience_forward.6} parent=35 // pred_region
        %6515 = vst [vmem:[#allocation2] sm:$0xff] %v6432
        %6516 = vst [vmem:[#allocation2 + $0x8] sm:$0xff] %v6434
        %6517 = vst [vmem:[#allocation2 + $0x10] sm:$0xff] %v6437
        %6518 = vst [vmem:[#allocation2 + $0x18] sm:$0xff] %v6439
        %6519 = vst [vmem:[#allocation2 + $0x20] sm:$0xff] %v6442
        %6520 = vst [vmem:[#allocation2 + $0x28] sm:$0xff] %v6444
        %6521 = vst [vmem:[#allocation2 + $0x30] sm:$0xff] %v6447
        %6522 = vst [vmem:[#allocation2 + $0x38] sm:$0xff] %v6449
        %6523 = vst [vmem:[#allocation2 + $0x40] sm:$0xff] %v6452
        %6524 = vst [vmem:[#allocation2 + $0x48] sm:$0xff] %v6454
        %6525 = vst [vmem:[#allocation2 + $0x50] sm:$0xff] %v6457
        %6526 = vst [vmem:[#allocation2 + $0x58] sm:$0xff] %v6459
        %6527 = vst [vmem:[#allocation2 + $0x60] sm:$0xff] %v6462
        %6528 = vst [vmem:[#allocation2 + $0x68] sm:$0xff] %v6464
        %6529 = vst [vmem:[#allocation2 + $0x70] sm:$0xff] %v6467
        %6530 = vst [vmem:[#allocation2 + $0x78] sm:$0xff] %v6469
        %6531 = vst [vmem:[#allocation2 + $0x80] sm:$0xff] %v6472
        %6532 = vst [vmem:[#allocation2 + $0x88] sm:$0xff] %v6474
        %6533 = vst [vmem:[#allocation2 + $0x90] sm:$0xff] %v6477
        %6534 = vst [vmem:[#allocation2 + $0x98] sm:$0xff] %v6479
        %6535 = vst [vmem:[#allocation2 + $0xa0] sm:$0xff] %v6482
        %6536 = vst [vmem:[#allocation2 + $0xa8] sm:$0xff] %v6484
        %6537 = vst [vmem:[#allocation2 + $0xb0] sm:$0xff] %v6487
        %6538 = vst [vmem:[#allocation2 + $0xb8] sm:$0xff] %v6489
        %6539 = vst [vmem:[#allocation2 + $0xc0] sm:$0xff] %v6492
        %6540 = vst [vmem:[#allocation2 + $0xc8] sm:$0xff] %v6494
        %6541 = vst [vmem:[#allocation2 + $0xd0] sm:$0xff] %v6497
        %6542 = vst [vmem:[#allocation2 + $0xd8] sm:$0xff] %v6499
        %6543 = vst [vmem:[#allocation2 + $0xe0] sm:$0xff] %v6502
        %6544 = vst [vmem:[#allocation2 + $0xe8] sm:$0xff] %v6504
        %6545 = vst [vmem:[#allocation2 + $0xf0] sm:$0xff] %v6507
        %6546 = vst [vmem:[#allocation2 + $0xf8] sm:$0xff] %v6509
      $region40: #{salience_forward.6} parent=35 // pred_fallthru
        _
      %p6547 = scmp.gt.s32.totalorder %s20, 0
      // Predicated region
      $region41: #{salience_forward.6} parent=35 // pred_check
        %p6548 = pneg %p6547
      $region42: #{salience_forward.6} parent=35 // pred_check_branch
        %6550 = sbr.rel (%p6548) target = $region44
      $region43: #{salience_forward.6} parent=35 // pred_region
        %v6551 = vld [vmem:[#allocation2] sm:$0xff]
        %v6552 = vld [vmem:[#allocation2 + $0x8] sm:$0xff]
        %v6553 = vld [vmem:[#allocation2 + $0x10] sm:$0xff]
        %v6554 = vld [vmem:[#allocation2 + $0x18] sm:$0xff]
        %v6555 = vld [vmem:[#allocation2 + $0x20] sm:$0xff]
        %v6556 = vld [vmem:[#allocation2 + $0x28] sm:$0xff]
        %v6557 = vld [vmem:[#allocation2 + $0x30] sm:$0xff]
        %v6558 = vld [vmem:[#allocation2 + $0x38] sm:$0xff]
        %v6559 = vld [vmem:[#allocation2 + $0x40] sm:$0xff]
        %v6560 = vld [vmem:[#allocation2 + $0x48] sm:$0xff]
        %v6561 = vld [vmem:[#allocation2 + $0x50] sm:$0xff]
        %v6562 = vld [vmem:[#allocation2 + $0x58] sm:$0xff]
        %v6563 = vld [vmem:[#allocation2 + $0x60] sm:$0xff]
        %v6564 = vld [vmem:[#allocation2 + $0x68] sm:$0xff]
        %v6565 = vld [vmem:[#allocation2 + $0x70] sm:$0xff]
        %v6566 = vld [vmem:[#allocation2 + $0x78] sm:$0xff]
        %v6567 = vld [vmem:[#allocation2 + $0x80] sm:$0xff]
        %v6568 = vld [vmem:[#allocation2 + $0x88] sm:$0xff]
        %v6569 = vld [vmem:[#allocation2 + $0x90] sm:$0xff]
        %v6570 = vld [vmem:[#allocation2 + $0x98] sm:$0xff]
        %v6571 = vld [vmem:[#allocation2 + $0xa0] sm:$0xff]
        %v6572 = vld [vmem:[#allocation2 + $0xa8] sm:$0xff]
        %v6573 = vld [vmem:[#allocation2 + $0xb0] sm:$0xff]
        %v6574 = vld [vmem:[#allocation2 + $0xb8] sm:$0xff]
        %v6575 = vld [vmem:[#allocation2 + $0xc0] sm:$0xff]
        %v6576 = vld [vmem:[#allocation2 + $0xc8] sm:$0xff]
        %v6577 = vld [vmem:[#allocation2 + $0xd0] sm:$0xff]
        %v6578 = vld [vmem:[#allocation2 + $0xd8] sm:$0xff]
        %v6579 = vld [vmem:[#allocation2 + $0xe0] sm:$0xff]
        %v6580 = vld [vmem:[#allocation2 + $0xe8] sm:$0xff]
        %v6581 = vld [vmem:[#allocation2 + $0xf0] sm:$0xff]
        %v6582 = vld [vmem:[#allocation2 + $0xf8] sm:$0xff]
        %v6583 = vadd.f32 %v6551, %v6432
        %v6584 = vadd.f32 %v6552, %v6434
        %v6585 = vadd.f32 %v6553, %v6437
        %v6586 = vadd.f32 %v6554, %v6439
        %v6587 = vadd.f32 %v6555, %v6442
        %v6588 = vadd.f32 %v6556, %v6444
        %v6589 = vadd.f32 %v6557, %v6447
        %v6590 = vadd.f32 %v6558, %v6449
        %v6591 = vadd.f32 %v6559, %v6452
        %v6592 = vadd.f32 %v6560, %v6454
        %v6593 = vadd.f32 %v6561, %v6457
        %v6594 = vadd.f32 %v6562, %v6459
        %v6595 = vadd.f32 %v6563, %v6462
        %v6596 = vadd.f32 %v6564, %v6464
        %v6597 = vadd.f32 %v6565, %v6467
        %v6598 = vadd.f32 %v6566, %v6469
        %v6599 = vadd.f32 %v6567, %v6472
        %v6600 = vadd.f32 %v6568, %v6474
        %v6601 = vadd.f32 %v6569, %v6477
        %v6602 = vadd.f32 %v6570, %v6479
        %v6603 = vadd.f32 %v6571, %v6482
        %v6604 = vadd.f32 %v6572, %v6484
        %v6605 = vadd.f32 %v6573, %v6487
        %v6606 = vadd.f32 %v6574, %v6489
        %v6607 = vadd.f32 %v6575, %v6492
        %v6608 = vadd.f32 %v6576, %v6494
        %v6609 = vadd.f32 %v6577, %v6497
        %v6610 = vadd.f32 %v6578, %v6499
        %v6611 = vadd.f32 %v6579, %v6502
        %v6612 = vadd.f32 %v6580, %v6504
        %v6613 = vadd.f32 %v6581, %v6507
        %v6614 = vadd.f32 %v6582, %v6509
        %6615 = vst [vmem:[#allocation2] sm:$0xff] %v6583
        %6616 = vst [vmem:[#allocation2 + $0x8] sm:$0xff] %v6584
        %6617 = vst [vmem:[#allocation2 + $0x10] sm:$0xff] %v6585
        %6618 = vst [vmem:[#allocation2 + $0x18] sm:$0xff] %v6586
        %6619 = vst [vmem:[#allocation2 + $0x20] sm:$0xff] %v6587
        %6620 = vst [vmem:[#allocation2 + $0x28] sm:$0xff] %v6588
        %6621 = vst [vmem:[#allocation2 + $0x30] sm:$0xff] %v6589
        %6622 = vst [vmem:[#allocation2 + $0x38] sm:$0xff] %v6590
        %6623 = vst [vmem:[#allocation2 + $0x40] sm:$0xff] %v6591
        %6624 = vst [vmem:[#allocation2 + $0x48] sm:$0xff] %v6592
        %6625 = vst [vmem:[#allocation2 + $0x50] sm:$0xff] %v6593
        %6626 = vst [vmem:[#allocation2 + $0x58] sm:$0xff] %v6594
        %6627 = vst [vmem:[#allocation2 + $0x60] sm:$0xff] %v6595
        %6628 = vst [vmem:[#allocation2 + $0x68] sm:$0xff] %v6596
        %6629 = vst [vmem:[#allocation2 + $0x70] sm:$0xff] %v6597
        %6630 = vst [vmem:[#allocation2 + $0x78] sm:$0xff] %v6598
        %6631 = vst [vmem:[#allocation2 + $0x80] sm:$0xff] %v6599
        %6632 = vst [vmem:[#allocation2 + $0x88] sm:$0xff] %v6600
        %6633 = vst [vmem:[#allocation2 + $0x90] sm:$0xff] %v6601
        %6634 = vst [vmem:[#allocation2 + $0x98] sm:$0xff] %v6602
        %6635 = vst [vmem:[#allocation2 + $0xa0] sm:$0xff] %v6603
        %6636 = vst [vmem:[#allocation2 + $0xa8] sm:$0xff] %v6604
        %6637 = vst [vmem:[#allocation2 + $0xb0] sm:$0xff] %v6605
        %6638 = vst [vmem:[#allocation2 + $0xb8] sm:$0xff] %v6606
        %6639 = vst [vmem:[#allocation2 + $0xc0] sm:$0xff] %v6607
        %6640 = vst [vmem:[#allocation2 + $0xc8] sm:$0xff] %v6608
        %6641 = vst [vmem:[#allocation2 + $0xd0] sm:$0xff] %v6609
        %6642 = vst [vmem:[#allocation2 + $0xd8] sm:$0xff] %v6610
        %6643 = vst [vmem:[#allocation2 + $0xe0] sm:$0xff] %v6611
        %6644 = vst [vmem:[#allocation2 + $0xe8] sm:$0xff] %v6612
        %6645 = vst [vmem:[#allocation2 + $0xf0] sm:$0xff] %v6613
        %6646 = vst [vmem:[#allocation2 + $0xf8] sm:$0xff] %v6614
      $region44: #{salience_forward.6} parent=35 // pred_fallthru
        _
      // Predicated region
      $region45: #{salience_forward.6} parent=35 // pred_check
        %p6647 = pneg %p6511
      $region46: #{salience_forward.6} parent=35 // pred_check_branch
        %6649 = sbr.rel (%p6647) target = $region48
      $region47: #{salience_forward.6} parent=35 // pred_region
        %v6650 = vld [vmem:[#allocation2] sm:$0xff]
        %v6651 = vld [vmem:[#allocation2 + $0x8] sm:$0xff]
        %v6652 = vld [vmem:[#allocation2 + $0x10] sm:$0xff]
        %v6653 = vld [vmem:[#allocation2 + $0x18] sm:$0xff]
        %v6654 = vld [vmem:[#allocation2 + $0x20] sm:$0xff]
        %v6655 = vld [vmem:[#allocation2 + $0x28] sm:$0xff]
        %v6656 = vld [vmem:[#allocation2 + $0x30] sm:$0xff]
        %v6657 = vld [vmem:[#allocation2 + $0x38] sm:$0xff]
        %v6658 = vld [vmem:[#allocation2 + $0x40] sm:$0xff]
        %v6659 = vld [vmem:[#allocation2 + $0x48] sm:$0xff]
        %v6660 = vld [vmem:[#allocation2 + $0x50] sm:$0xff]
        %v6661 = vld [vmem:[#allocation2 + $0x58] sm:$0xff]
        %v6662 = vld [vmem:[#allocation2 + $0x60] sm:$0xff]
        %v6663 = vld [vmem:[#allocation2 + $0x68] sm:$0xff]
        %v6664 = vld [vmem:[#allocation2 + $0x70] sm:$0xff]
        %v6665 = vld [vmem:[#allocation2 + $0x78] sm:$0xff]
        %v6666 = vld [vmem:[#allocation2 + $0x80] sm:$0xff]
        %v6667 = vld [vmem:[#allocation2 + $0x88] sm:$0xff]
        %v6668 = vld [vmem:[#allocation2 + $0x90] sm:$0xff]
        %v6669 = vld [vmem:[#allocation2 + $0x98] sm:$0xff]
        %v6670 = vld [vmem:[#allocation2 + $0xa0] sm:$0xff]
        %v6671 = vld [vmem:[#allocation2 + $0xa8] sm:$0xff]
        %v6672 = vld [vmem:[#allocation2 + $0xb0] sm:$0xff]
        %v6673 = vld [vmem:[#allocation2 + $0xb8] sm:$0xff]
        %v6674 = vld [vmem:[#allocation2 + $0xc0] sm:$0xff]
        %v6675 = vld [vmem:[#allocation2 + $0xc8] sm:$0xff]
        %v6676 = vld [vmem:[#allocation2 + $0xd0] sm:$0xff]
        %v6677 = vld [vmem:[#allocation2 + $0xd8] sm:$0xff]
        %v6678 = vld [vmem:[#allocation2 + $0xe0] sm:$0xff]
        %v6679 = vld [vmem:[#allocation2 + $0xe8] sm:$0xff]
        %v6680 = vld [vmem:[#allocation2 + $0xf0] sm:$0xff]
        %v6681 = vld [vmem:[#allocation2 + $0xf8] sm:$0xff]
        %v6682 = vld [vmem:[%s2] sm:$0x1]
        %v6684 = vperm.slane %v6682, 0
        %v6686 = vmul.f32 %v6650, %v6684
        %v6687 = vmul.f32 %v6651, %v6684
        %v6688 = vmul.f32 %v6652, %v6684
        %v6689 = vmul.f32 %v6653, %v6684
        %v6690 = vmul.f32 %v6654, %v6684
        %v6691 = vmul.f32 %v6655, %v6684
        %v6692 = vmul.f32 %v6656, %v6684
        %v6693 = vmul.f32 %v6657, %v6684
        %v6694 = vmul.f32 %v6658, %v6684
        %v6695 = vmul.f32 %v6659, %v6684
        %v6696 = vmul.f32 %v6660, %v6684
        %v6697 = vmul.f32 %v6661, %v6684
        %v6698 = vmul.f32 %v6662, %v6684
        %v6699 = vmul.f32 %v6663, %v6684
        %v6700 = vmul.f32 %v6664, %v6684
        %v6701 = vmul.f32 %v6665, %v6684
        %v6702 = vmul.f32 %v6666, %v6684
        %v6703 = vmul.f32 %v6667, %v6684
        %v6704 = vmul.f32 %v6668, %v6684
        %v6705 = vmul.f32 %v6669, %v6684
        %v6706 = vmul.f32 %v6670, %v6684
        %v6707 = vmul.f32 %v6671, %v6684
        %v6708 = vmul.f32 %v6672, %v6684
        %v6709 = vmul.f32 %v6673, %v6684
        %v6710 = vmul.f32 %v6674, %v6684
        %v6711 = vmul.f32 %v6675, %v6684
        %v6712 = vmul.f32 %v6676, %v6684
        %v6713 = vmul.f32 %v6677, %v6684
        %v6714 = vmul.f32 %v6678, %v6684
        %v6715 = vmul.f32 %v6679, %v6684
        %v6716 = vmul.f32 %v6680, %v6684
        %v6717 = vmul.f32 %v6681, %v6684
        %v6718 = vld [vmem:[%s3] sm:$0x1]
        %v6720 = vperm.slane %v6718, 0
        %v6722 = vadd.f32 %v6686, %v6720
        %v6723 = vadd.f32 %v6687, %v6720
        %v6724 = vadd.f32 %v6688, %v6720
        %v6725 = vadd.f32 %v6689, %v6720
        %v6726 = vadd.f32 %v6690, %v6720
        %v6727 = vadd.f32 %v6691, %v6720
        %v6728 = vadd.f32 %v6692, %v6720
        %v6729 = vadd.f32 %v6693, %v6720
        %v6730 = vadd.f32 %v6694, %v6720
        %v6731 = vadd.f32 %v6695, %v6720
        %v6732 = vadd.f32 %v6696, %v6720
        %v6733 = vadd.f32 %v6697, %v6720
        %v6734 = vadd.f32 %v6698, %v6720
        %v6735 = vadd.f32 %v6699, %v6720
        %v6736 = vadd.f32 %v6700, %v6720
        %v6737 = vadd.f32 %v6701, %v6720
        %v6738 = vadd.f32 %v6702, %v6720
        %v6739 = vadd.f32 %v6703, %v6720
        %v6740 = vadd.f32 %v6704, %v6720
        %v6741 = vadd.f32 %v6705, %v6720
        %v6742 = vadd.f32 %v6706, %v6720
        %v6743 = vadd.f32 %v6707, %v6720
        %v6744 = vadd.f32 %v6708, %v6720
        %v6745 = vadd.f32 %v6709, %v6720
        %v6746 = vadd.f32 %v6710, %v6720
        %v6747 = vadd.f32 %v6711, %v6720
        %v6748 = vadd.f32 %v6712, %v6720
        %v6749 = vadd.f32 %v6713, %v6720
        %v6750 = vadd.f32 %v6714, %v6720
        %v6751 = vadd.f32 %v6715, %v6720
        %v6752 = vadd.f32 %v6716, %v6720
        %v6753 = vadd.f32 %v6717, %v6720
        %v6754 = vmax.f32 %v6722, 0.0
        %v6755 = vmax.f32 %v6723, 0.0
        %v6756 = vmax.f32 %v6724, 0.0
        %v6757 = vmax.f32 %v6725, 0.0
        %v6758 = vmax.f32 %v6726, 0.0
        %v6759 = vmax.f32 %v6727, 0.0
        %v6760 = vmax.f32 %v6728, 0.0
        %v6761 = vmax.f32 %v6729, 0.0
        %v6762 = vmax.f32 %v6730, 0.0
        %v6763 = vmax.f32 %v6731, 0.0
        %v6764 = vmax.f32 %v6732, 0.0
        %v6765 = vmax.f32 %v6733, 0.0
        %v6766 = vmax.f32 %v6734, 0.0
        %v6767 = vmax.f32 %v6735, 0.0
        %v6768 = vmax.f32 %v6736, 0.0
        %v6769 = vmax.f32 %v6737, 0.0
        %v6770 = vmax.f32 %v6738, 0.0
        %v6771 = vmax.f32 %v6739, 0.0
        %v6772 = vmax.f32 %v6740, 0.0
        %v6773 = vmax.f32 %v6741, 0.0
        %v6774 = vmax.f32 %v6742, 0.0
        %v6775 = vmax.f32 %v6743, 0.0
        %v6776 = vmax.f32 %v6744, 0.0
        %v6777 = vmax.f32 %v6745, 0.0
        %v6778 = vmax.f32 %v6746, 0.0
        %v6779 = vmax.f32 %v6747, 0.0
        %v6780 = vmax.f32 %v6748, 0.0
        %v6781 = vmax.f32 %v6749, 0.0
        %v6782 = vmax.f32 %v6750, 0.0
        %v6783 = vmax.f32 %v6751, 0.0
        %v6784 = vmax.f32 %v6752, 0.0
        %v6785 = vmax.f32 %v6753, 0.0
        %v6786 = vpack.c.bf16 %v6754, %v6754
        %v6787 = vpack.c.bf16 %v6755, %v6755
        %v6788 = vpack.c.bf16 %v6756, %v6756
        %v6789 = vpack.c.bf16 %v6757, %v6757
        %v6790 = vpack.c.bf16 %v6758, %v6758
        %v6791 = vpack.c.bf16 %v6759, %v6759
        %v6792 = vpack.c.bf16 %v6760, %v6760
        %v6793 = vpack.c.bf16 %v6761, %v6761
        %v6794 = vpack.c.bf16 %v6762, %v6762
        %v6795 = vpack.c.bf16 %v6763, %v6763
        %v6796 = vpack.c.bf16 %v6764, %v6764
        %v6797 = vpack.c.bf16 %v6765, %v6765
        %v6798 = vpack.c.bf16 %v6766, %v6766
        %v6799 = vpack.c.bf16 %v6767, %v6767
        %v6800 = vpack.c.bf16 %v6768, %v6768
        %v6801 = vpack.c.bf16 %v6769, %v6769
        %v6802 = vpack.c.bf16 %v6770, %v6770
        %v6803 = vpack.c.bf16 %v6771, %v6771
        %v6804 = vpack.c.bf16 %v6772, %v6772
        %v6805 = vpack.c.bf16 %v6773, %v6773
        %v6806 = vpack.c.bf16 %v6774, %v6774
        %v6807 = vpack.c.bf16 %v6775, %v6775
        %v6808 = vpack.c.bf16 %v6776, %v6776
        %v6809 = vpack.c.bf16 %v6777, %v6777
        %v6810 = vpack.c.bf16 %v6778, %v6778
        %v6811 = vpack.c.bf16 %v6779, %v6779
        %v6812 = vpack.c.bf16 %v6780, %v6780
        %v6813 = vpack.c.bf16 %v6781, %v6781
        %v6814 = vpack.c.bf16 %v6782, %v6782
        %v6815 = vpack.c.bf16 %v6783, %v6783
        %v6816 = vpack.c.bf16 %v6784, %v6784
        %v6817 = vpack.c.bf16 %v6785, %v6785
        %6818 = vst [vmem:[%s252] sm:$0xf] %v6786
        %6819 = vst [vmem:[%s252 + $0x4] sm:$0xf] %v6787
        %6820 = vst [vmem:[%s252 + $0x8] sm:$0xf] %v6788
        %6821 = vst [vmem:[%s252 + $0xc] sm:$0xf] %v6789
        %6822 = vst [vmem:[%s252 + $0x10] sm:$0xf] %v6790
        %6823 = vst [vmem:[%s252 + $0x14] sm:$0xf] %v6791
        %6824 = vst [vmem:[%s252 + $0x18] sm:$0xf] %v6792
        %6825 = vst [vmem:[%s252 + $0x1c] sm:$0xf] %v6793
        %6826 = vst [vmem:[%s252 + $0x20] sm:$0xf] %v6794
        %6827 = vst [vmem:[%s252 + $0x24] sm:$0xf] %v6795
        %6828 = vst [vmem:[%s252 + $0x28] sm:$0xf] %v6796
        %6829 = vst [vmem:[%s252 + $0x2c] sm:$0xf] %v6797
        %6830 = vst [vmem:[%s252 + $0x30] sm:$0xf] %v6798
        %6831 = vst [vmem:[%s252 + $0x34] sm:$0xf] %v6799
        %6832 = vst [vmem:[%s252 + $0x38] sm:$0xf] %v6800
        %6833 = vst [vmem:[%s252 + $0x3c] sm:$0xf] %v6801
        %6834 = vst [vmem:[%s252 + $0x40] sm:$0xf] %v6802
        %6835 = vst [vmem:[%s252 + $0x44] sm:$0xf] %v6803
        %6836 = vst [vmem:[%s252 + $0x48] sm:$0xf] %v6804
        %6837 = vst [vmem:[%s252 + $0x4c] sm:$0xf] %v6805
        %6838 = vst [vmem:[%s252 + $0x50] sm:$0xf] %v6806
        %6839 = vst [vmem:[%s252 + $0x54] sm:$0xf] %v6807
        %6840 = vst [vmem:[%s252 + $0x58] sm:$0xf] %v6808
        %6841 = vst [vmem:[%s252 + $0x5c] sm:$0xf] %v6809
        %6842 = vst [vmem:[%s252 + $0x60] sm:$0xf] %v6810
        %6843 = vst [vmem:[%s252 + $0x64] sm:$0xf] %v6811
        %6844 = vst [vmem:[%s252 + $0x68] sm:$0xf] %v6812
        %6845 = vst [vmem:[%s252 + $0x6c] sm:$0xf] %v6813
        %6846 = vst [vmem:[%s252 + $0x70] sm:$0xf] %v6814
        %6847 = vst [vmem:[%s252 + $0x74] sm:$0xf] %v6815
        %6848 = vst [vmem:[%s252 + $0x78] sm:$0xf] %v6816
        %6849 = vst [vmem:[%s252 + $0x7c] sm:$0xf] %v6817
      $region48: #{salience_forward.6} parent=35 // pred_fallthru
        _
      %s6850 = smul.u32 32, %s19
      %p6851 = scmp.lt.s32.totalorder %s6850, 63
      %s6852 = scalar_select %p6851, %s6850, 63
      %s6853 = smul.addr %s6852, 4
      %s6854 = scalar_lea.vmem %s4, %s6853
      // Predicated region
      $region49: #{salience_forward.6} parent=35 // pred_check
        %p6855 = pneg %p141
      $region50: #{salience_forward.6} parent=35 // pred_check_branch
        %6857 = sbr.rel (%p6855) target = $region52
      $region51: #{salience_forward.6} parent=35 // pred_region
        %s6858 = smul.u32 32, %s19
      $region52: #{salience_forward.6} parent=35 // pred_fallthru
        _
    $region36: #{salience_forward.6} parent=5 // pred_fallthru
      _
    %p6859 = scmp.le.s32.totalorder 2, %s10
    // Predicated region
    $region53: #{salience_forward.6} parent=5 // pred_check
      %p6860 = pneg %p6859
    $region54: #{salience_forward.6} parent=5 // pred_check_branch
      %6862 = sbr.rel (%p6860) target = $region56
    $region55: #{salience_forward.6} parent=5 // pred_region
      %s6863 = ssub.s32 %s10, 2
      // Predicated region
      $region57: #{salience_forward.6} parent=55 // pred_check
        %p6864 = pneg %p147
      $region58: #{salience_forward.6} parent=55 // pred_check_branch
        %6866 = sbr.rel (%p6864) target = $region60
      $region59: #{salience_forward.6} parent=55 // pred_region
        %s6867 = smul.u32 32, %s21
        %p6868 = scmp.lt.s32.totalorder %s6867, 63
        %s6869 = scalar_select %p6868, %s6867, 63
        %s6870 = smul.addr %s6869, 4
        %s6871 = scalar_lea.vmem %s4, %s6870
      $region60: #{salience_forward.6} parent=55 // pred_fallthru
        _
    $region56: #{salience_forward.6} parent=5 // pred_fallthru
      _
  $region6: #{salience_forward.6} parent=0 // loop_footer
    %s14 = sadd.s32 1, %s10
  $region7: #{salience_forward.6} parent=0 // loop_footer_branch
    %9 = sbr.rel target = $region3
  $region8: #{salience_forward.6} parent=0 // loop_exit
    _

// kernel: salience_forward.9
$region0: #{salience_forward.9}
  #allocation0 [shape = 'u32[]', space=smem, size = 0x4, offset = 0x4, fixed_abs, tag = 'smem constant byte address 0x4 - core index']
  #allocation1 [shape = 'u32[72,128]{1,0:T(1,128)}', space=vmem, size = 0x9000, scoped, tag = 'internal scratch']
  #allocation2 [shape = 'f32[32,128]{1,0:T(8,128)}', space=vmem, size = 0x4000, scoped, tag = 'scratch operand']
  %s0 = inlined_call_operand.vmem [shape: bf16[32,3072], index: 0, kind: input, shape index: {}]
  %s1 = inlined_call_operand.vmem [shape: bf16[3072,128], index: 1, kind: input, shape index: {}]
  %s2 = inlined_call_operand.vmem [shape: f32[1,128], index: 2, kind: input, shape index: {}]
  %s3 = inlined_call_operand.vmem [shape: f32[1,128], index: 3, kind: input, shape index: {}]
  %s4 = inlined_call_operand.vmem [shape: bf16[128,128], index: 4, kind: input, shape index: {}]
  %s5 = inlined_call_operand.vmem [shape: f32[1,128], index: 5, kind: input, shape index: {}]
  %s6 = inlined_call_operand.hbm [shape: f32[32,128], index: 6, kind: output, shape index: {}]
  %s7 = sld [smem:[#allocation0]]
  $region46: #{salience_forward.9} parent=0
    _
  %s9 = ssub.s32 1, %s7
  %s10 = scalar_select 0, %s9, %s7
  $region1: #{salience_forward.9} parent=0
    #allocation3 [shape = 'u8[16384]{0}', space=vmem, size = 0x4000, scoped, tag = 'output window, operand 0, single buffered']
    #allocation4 [shape = 's32[1]{0}', space=sflag, size = 0x4, scoped, tag = 'scoped memory for salience_forward.9']
    %11 = vsyncpa [#allocation4], 0
    // Predicated region
    $region2: #{salience_forward.9} parent=1 // pred_check
      _
    $region3: #{salience_forward.9} parent=1 // pred_check_branch
      %13 = sbr.rel (0) target = $region5
    $region4: #{salience_forward.9} parent=1 // pred_region
      _
    $region5: #{salience_forward.9} parent=1 // pred_fallthru
      _
    // Predicated region
    $region6: #{salience_forward.9} parent=1 // pred_check
      _
    $region7: #{salience_forward.9} parent=1 // pred_check_branch
      %15 = sbr.rel (0) target = $region9
    $region8: #{salience_forward.9} parent=1 // pred_region
      _
    $region9: #{salience_forward.9} parent=1 // pred_fallthru
      _
    // Predicated region
    $region10: #{salience_forward.9} parent=1 // pred_check
      _
    $region11: #{salience_forward.9} parent=1 // pred_check_branch
      %17 = sbr.rel (0) target = $region13
    $region12: #{salience_forward.9} parent=1 // pred_region
      _
    $region13: #{salience_forward.9} parent=1 // pred_fallthru
      _
    // Predicated region
    $region14: #{salience_forward.9} parent=1 // pred_check
      _
    $region15: #{salience_forward.9} parent=1 // pred_check_branch
      %19 = sbr.rel (0) target = $region17
    $region16: #{salience_forward.9} parent=1 // pred_region
      _
    $region17: #{salience_forward.9} parent=1 // pred_fallthru
      _
    // Predicated region
    $region18: #{salience_forward.9} parent=1 // pred_check
      _
    $region19: #{salience_forward.9} parent=1 // pred_check_branch
      %21 = sbr.rel (0) target = $region21
    $region20: #{salience_forward.9} parent=1 // pred_region
      _
    $region21: #{salience_forward.9} parent=1 // pred_fallthru
      _
    // Predicated region
    $region22: #{salience_forward.9} parent=1 // pred_check
      _
    $region23: #{salience_forward.9} parent=1 // pred_check_branch
      %23 = sbr.rel (0) target = $region25
    $region24: #{salience_forward.9} parent=1 // pred_region
      _
    $region25: #{salience_forward.9} parent=1 // pred_fallthru
      _
    %v24 = vld [vmem:[%s0] sm:$0xff]
    %v25 = vld [vmem:[%s0 + $0x8] sm:$0xff]
    %v26 = vld [vmem:[%s0 + $0x10] sm:$0xff]
    %v27 = vld [vmem:[%s0 + $0x18] sm:$0xff]
    %v28 = vld [vmem:[%s0 + $0x20] sm:$0xff]
    %v29 = vld [vmem:[%s0 + $0x28] sm:$0xff]
    %v30 = vld [vmem:[%s0 + $0x30] sm:$0xff]
    %v31 = vld [vmem:[%s0 + $0x38] sm:$0xff]
    %v32 = vld [vmem:[%s0 + $0x40] sm:$0xff]
    %v33 = vld [vmem:[%s0 + $0x48] sm:$0xff]
    %v34 = vld [vmem:[%s0 + $0x50] sm:$0xff]
    %v35 = vld [vmem:[%s0 + $0x58] sm:$0xff]
    %v36 = vld [vmem:[%s0 + $0x60] sm:$0xff]
    %v37 = vld [vmem:[%s0 + $0x68] sm:$0xff]
    %v38 = vld [vmem:[%s0 + $0x70] sm:$0xff]
    %v39 = vld [vmem:[%s0 + $0x78] sm:$0xff]
    %v40 = vld [vmem:[%s0 + $0x80] sm:$0xff]
    %v41 = vld [vmem:[%s0 + $0x88] sm:$0xff]
    %v42 = vld [vmem:[%s0 + $0x90] sm:$0xff]
    %v43 = vld [vmem:[%s0 + $0x98] sm:$0xff]
    %v44 = vld [vmem:[%s0 + $0xa0] sm:$0xff]
    %v45 = vld [vmem:[%s0 + $0xa8] sm:$0xff]
    %v46 = vld [vmem:[%s0 + $0xb0] sm:$0xff]
    %v47 = vld [vmem:[%s0 + $0xb8] sm:$0xff]
    %v48 = vld [vmem:[%s0 + $0xc0] sm:$0xff]
    %v49 = vld [vmem:[%s0 + $0xc8] sm:$0xff]
    %v50 = vld [vmem:[%s0 + $0xd0] sm:$0xff]
    %v51 = vld [vmem:[%s0 + $0xd8] sm:$0xff]
    %v52 = vld [vmem:[%s0 + $0xe0] sm:$0xff]
    %v53 = vld [vmem:[%s0 + $0xe8] sm:$0xff]
    %v54 = vld [vmem:[%s0 + $0xf0] sm:$0xff]
    %v55 = vld [vmem:[%s0 + $0xf8] sm:$0xff]
    %v56 = vld [vmem:[%s0 + $0x100] sm:$0xff]
    %v57 = vld [vmem:[%s0 + $0x108] sm:$0xff]
    %v58 = vld [vmem:[%s0 + $0x110] sm:$0xff]
    %v59 = vld [vmem:[%s0 + $0x118] sm:$0xff]
    %v60 = vld [vmem:[%s0 + $0x120] sm:$0xff]
    %v61 = vld [vmem:[%s0 + $0x128] sm:$0xff]
    %v62 = vld [vmem:[%s0 + $0x130] sm:$0xff]
    %v63 = vld [vmem:[%s0 + $0x138] sm:$0xff]
    %v64 = vld [vmem:[%s0 + $0x140] sm:$0xff]
    %v65 = vld [vmem:[%s0 + $0x148] sm:$0xff]
    %v66 = vld [vmem:[%s0 + $0x150] sm:$0xff]
    %v67 = vld [vmem:[%s0 + $0x158] sm:$0xff]
    %v68 = vld [vmem:[%s0 + $0x160] sm:$0xff]
    %v69 = vld [vmem:[%s0 + $0x168] sm:$0xff]
    %v70 = vld [vmem:[%s0 + $0x170] sm:$0xff]
    %v71 = vld [vmem:[%s0 + $0x178] sm:$0xff]
    %v72 = vld [vmem:[%s1] sm:$0xf]
    %v73 = vld [vmem:[%s1 + $0x4] sm:$0xf]
    %v74 = vld [vmem:[%s1 + $0x8] sm:$0xf]
    %v75 = vld [vmem:[%s1 + $0xc] sm:$0xf]
    %v76 = vld [vmem:[%s1 + $0x10] sm:$0xf]
    %v77 = vld [vmem:[%s1 + $0x14] sm:$0xf]
    %v78 = vld [vmem:[%s1 + $0x18] sm:$0xf]
    %v79 = vld [vmem:[%s1 + $0x1c] sm:$0xf]
    %v80 = vld [vmem:[%s1 + $0x20] sm:$0xf]
    %v81 = vld [vmem:[%s1 + $0x24] sm:$0xf]
    %v82 = vld [vmem:[%s1 + $0x28] sm:$0xf]
    %v83 = vld [vmem:[%s1 + $0x2c] sm:$0xf]
    %v84 = vld [vmem:[%s1 + $0x30] sm:$0xf]
    %v85 = vld [vmem:[%s1 + $0x34] sm:$0xf]
    %v86 = vld [vmem:[%s1 + $0x38] sm:$0xf]
    %v87 = vld [vmem:[%s1 + $0x3c] sm:$0xf]
    %v88 = vld [vmem:[%s1 + $0x40] sm:$0xf]
    %v89 = vld [vmem:[%s1 + $0x44] sm:$0xf]
    %v90 = vld [vmem:[%s1 + $0x48] sm:$0xf]
    %v91 = vld [vmem:[%s1 + $0x4c] sm:$0xf]
    %v92 = vld [vmem:[%s1 + $0x50] sm:$0xf]
    %v93 = vld [vmem:[%s1 + $0x54] sm:$0xf]
    %v94 = vld [vmem:[%s1 + $0x58] sm:$0xf]
    %v95 = vld [vmem:[%s1 + $0x5c] sm:$0xf]
    %v96 = vld [vmem:[%s1 + $0x60] sm:$0xf]
    %v97 = vld [vmem:[%s1 + $0x64] sm:$0xf]
    %v98 = vld [vmem:[%s1 + $0x68] sm:$0xf]
    %v99 = vld [vmem:[%s1 + $0x6c] sm:$0xf]
    %v100 = vld [vmem:[%s1 + $0x70] sm:$0xf]
    %v101 = vld [vmem:[%s1 + $0x74] sm:$0xf]
    %v102 = vld [vmem:[%s1 + $0x78] sm:$0xf]
    %v103 = vld [vmem:[%s1 + $0x7c] sm:$0xf]
    %v104 = vld [vmem:[%s1 + $0x80] sm:$0xf]
    %v105 = vld [vmem:[%s1 + $0x84] sm:$0xf]
    %v106 = vld [vmem:[%s1 + $0x88] sm:$0xf]
    %v107 = vld [vmem:[%s1 + $0x8c] sm:$0xf]
    %v108 = vld [vmem:[%s1 + $0x90] sm:$0xf]
    %v109 = vld [vmem:[%s1 + $0x94] sm:$0xf]
    %v110 = vld [vmem:[%s1 + $0x98] sm:$0xf]
    %v111 = vld [vmem:[%s1 + $0x9c] sm:$0xf]
    %v112 = vld [vmem:[%s1 + $0xa0] sm:$0xf]
    %v113 = vld [vmem:[%s1 + $0xa4] sm:$0xf]
    %v114 = vld [vmem:[%s1 + $0xa8] sm:$0xf]
    %v115 = vld [vmem:[%s1 + $0xac] sm:$0xf]
    %v116 = vld [vmem:[%s1 + $0xb0] sm:$0xf]
    %v117 = vld [vmem:[%s1 + $0xb4] sm:$0xf]
    %v118 = vld [vmem:[%s1 + $0xb8] sm:$0xf]
    %v119 = vld [vmem:[%s1 + $0xbc] sm:$0xf]
    %v120 = vld [vmem:[%s1 + $0xc0] sm:$0xf]
    %v121 = vld [vmem:[%s1 + $0xc4] sm:$0xf]
    %v122 = vld [vmem:[%s1 + $0xc8] sm:$0xf]
    %v123 = vld [vmem:[%s1 + $0xcc] sm:$0xf]
    %v124 = vld [vmem:[%s1 + $0xd0] sm:$0xf]
    %v125 = vld [vmem:[%s1 + $0xd4] sm:$0xf]
    %v126 = vld [vmem:[%s1 + $0xd8] sm:$0xf]
    %v127 = vld [vmem:[%s1 + $0xdc] sm:$0xf]
    %v128 = vld [vmem:[%s1 + $0xe0] sm:$0xf]
    %v129 = vld [vmem:[%s1 + $0xe4] sm:$0xf]
    %v130 = vld [vmem:[%s1 + $0xe8] sm:$0xf]
    %v131 = vld [vmem:[%s1 + $0xec] sm:$0xf]
    %v132 = vld [vmem:[%s1 + $0xf0] sm:$0xf]
    %v133 = vld [vmem:[%s1 + $0xf4] sm:$0xf]
    %v134 = vld [vmem:[%s1 + $0xf8] sm:$0xf]
    %v135 = vld [vmem:[%s1 + $0xfc] sm:$0xf]
    %v136 = vld [vmem:[%s1 + $0x100] sm:$0xf]
    %v137 = vld [vmem:[%s1 + $0x104] sm:$0xf]
    %v138 = vld [vmem:[%s1 + $0x108] sm:$0xf]
    %v139 = vld [vmem:[%s1 + $0x10c] sm:$0xf]
    %v140 = vld [vmem:[%s1 + $0x110] sm:$0xf]
    %v141 = vld [vmem:[%s1 + $0x114] sm:$0xf]
    %v142 = vld [vmem:[%s1 + $0x118] sm:$0xf]
    %v143 = vld [vmem:[%s1 + $0x11c] sm:$0xf]
    %v144 = vld [vmem:[%s1 + $0x120] sm:$0xf]
    %v145 = vld [vmem:[%s1 + $0x124] sm:$0xf]
    %v146 = vld [vmem:[%s1 + $0x128] sm:$0xf]
    %v147 = vld [vmem:[%s1 + $0x12c] sm:$0xf]
    %v148 = vld [vmem:[%s1 + $0x130] sm:$0xf]
    %v149 = vld [vmem:[%s1 + $0x134] sm:$0xf]
    %v150 = vld [vmem:[%s1 + $0x138] sm:$0xf]
    %v151 = vld [vmem:[%s1 + $0x13c] sm:$0xf]
    %v152 = vld [vmem:[%s1 + $0x140] sm:$0xf]
    %v153 = vld [vmem:[%s1 + $0x144] sm:$0xf]
    %v154 = vld [vmem:[%s1 + $0x148] sm:$0xf]
    %v155 = vld [vmem:[%s1 + $0x14c] sm:$0xf]
    %v156 = vld [vmem:[%s1 + $0x150] sm:$0xf]
    %v157 = vld [vmem:[%s1 + $0x154] sm:$0xf]
    %v158 = vld [vmem:[%s1 + $0x158] sm:$0xf]
    %v159 = vld [vmem:[%s1 + $0x15c] sm:$0xf]
    %v160 = vld [vmem:[%s1 + $0x160] sm:$0xf]
    %v161 = vld [vmem:[%s1 + $0x164] sm:$0xf]
    %v162 = vld [vmem:[%s1 + $0x168] sm:$0xf]
    %v163 = vld [vmem:[%s1 + $0x16c] sm:$0xf]
    %v164 = vld [vmem:[%s1 + $0x170] sm:$0xf]
    %v165 = vld [vmem:[%s1 + $0x174] sm:$0xf]
    %v166 = vld [vmem:[%s1 + $0x178] sm:$0xf]
    %v167 = vld [vmem:[%s1 + $0x17c] sm:$0xf]
    %v168 = vld [vmem:[%s1 + $0x180] sm:$0xf]
    %v169 = vld [vmem:[%s1 + $0x184] sm:$0xf]
    %v170 = vld [vmem:[%s1 + $0x188] sm:$0xf]
    %v171 = vld [vmem:[%s1 + $0x18c] sm:$0xf]
    %v172 = vld [vmem:[%s1 + $0x190] sm:$0xf]
    %v173 = vld [vmem:[%s1 + $0x194] sm:$0xf]
    %v174 = vld [vmem:[%s1 + $0x198] sm:$0xf]
    %v175 = vld [vmem:[%s1 + $0x19c] sm:$0xf]
    %v176 = vld [vmem:[%s1 + $0x1a0] sm:$0xf]
    %v177 = vld [vmem:[%s1 + $0x1a4] sm:$0xf]
    %v178 = vld [vmem:[%s1 + $0x1a8] sm:$0xf]
    %v179 = vld [vmem:[%s1 + $0x1ac] sm:$0xf]
    %v180 = vld [vmem:[%s1 + $0x1b0] sm:$0xf]
    %v181 = vld [vmem:[%s1 + $0x1b4] sm:$0xf]
    %v182 = vld [vmem:[%s1 + $0x1b8] sm:$0xf]
    %v183 = vld [vmem:[%s1 + $0x1bc] sm:$0xf]
    %v184 = vld [vmem:[%s1 + $0x1c0] sm:$0xf]
    %v185 = vld [vmem:[%s1 + $0x1c4] sm:$0xf]
    %v186 = vld [vmem:[%s1 + $0x1c8] sm:$0xf]
    %v187 = vld [vmem:[%s1 + $0x1cc] sm:$0xf]
    %v188 = vld [vmem:[%s1 + $0x1d0] sm:$0xf]
    %v189 = vld [vmem:[%s1 + $0x1d4] sm:$0xf]
    %v190 = vld [vmem:[%s1 + $0x1d8] sm:$0xf]
    %v191 = vld [vmem:[%s1 + $0x1dc] sm:$0xf]
    %v192 = vld [vmem:[%s1 + $0x1e0] sm:$0xf]
    %v193 = vld [vmem:[%s1 + $0x1e4] sm:$0xf]
    %v194 = vld [vmem:[%s1 + $0x1e8] sm:$0xf]
    %v195 = vld [vmem:[%s1 + $0x1ec] sm:$0xf]
    %v196 = vld [vmem:[%s1 + $0x1f0] sm:$0xf]
    %v197 = vld [vmem:[%s1 + $0x1f4] sm:$0xf]
    %v198 = vld [vmem:[%s1 + $0x1f8] sm:$0xf]
    %v199 = vld [vmem:[%s1 + $0x1fc] sm:$0xf]
    %v200 = vld [vmem:[%s1 + $0x200] sm:$0xf]
    %v201 = vld [vmem:[%s1 + $0x204] sm:$0xf]
    %v202 = vld [vmem:[%s1 + $0x208] sm:$0xf]
    %v203 = vld [vmem:[%s1 + $0x20c] sm:$0xf]
    %v204 = vld [vmem:[%s1 + $0x210] sm:$0xf]
    %v205 = vld [vmem:[%s1 + $0x214] sm:$0xf]
    %v206 = vld [vmem:[%s1 + $0x218] sm:$0xf]
    %v207 = vld [vmem:[%s1 + $0x21c] sm:$0xf]
    %v208 = vld [vmem:[%s1 + $0x220] sm:$0xf]
    %v209 = vld [vmem:[%s1 + $0x224] sm:$0xf]
    %v210 = vld [vmem:[%s1 + $0x228] sm:$0xf]
    %v211 = vld [vmem:[%s1 + $0x22c] sm:$0xf]
    %v212 = vld [vmem:[%s1 + $0x230] sm:$0xf]
    %v213 = vld [vmem:[%s1 + $0x234] sm:$0xf]
    %v214 = vld [vmem:[%s1 + $0x238] sm:$0xf]
    %v215 = vld [vmem:[%s1 + $0x23c] sm:$0xf]
    %v216 = vld [vmem:[%s1 + $0x240] sm:$0xf]
    %v217 = vld [vmem:[%s1 + $0x244] sm:$0xf]
    %v218 = vld [vmem:[%s1 + $0x248] sm:$0xf]
    %v219 = vld [vmem:[%s1 + $0x24c] sm:$0xf]
    %v220 = vld [vmem:[%s1 + $0x250] sm:$0xf]
    %v221 = vld [vmem:[%s1 + $0x254] sm:$0xf]
    %v222 = vld [vmem:[%s1 + $0x258] sm:$0xf]
    %v223 = vld [vmem:[%s1 + $0x25c] sm:$0xf]
    %v224 = vld [vmem:[%s1 + $0x260] sm:$0xf]
    %v225 = vld [vmem:[%s1 + $0x264] sm:$0xf]
    %v226 = vld [vmem:[%s1 + $0x268] sm:$0xf]
    %v227 = vld [vmem:[%s1 + $0x26c] sm:$0xf]
    %v228 = vld [vmem:[%s1 + $0x270] sm:$0xf]
    %v229 = vld [vmem:[%s1 + $0x274] sm:$0xf]
    %v230 = vld [vmem:[%s1 + $0x278] sm:$0xf]
    %v231 = vld [vmem:[%s1 + $0x27c] sm:$0xf]
    %v232 = vld [vmem:[%s1 + $0x280] sm:$0xf]
    %v233 = vld [vmem:[%s1 + $0x284] sm:$0xf]
    %v234 = vld [vmem:[%s1 + $0x288] sm:$0xf]
    %v235 = vld [vmem:[%s1 + $0x28c] sm:$0xf]
    %v236 = vld [vmem:[%s1 + $0x290] sm:$0xf]
    %v237 = vld [vmem:[%s1 + $0x294] sm:$0xf]
    %v238 = vld [vmem:[%s1 + $0x298] sm:$0xf]
    %v239 = vld [vmem:[%s1 + $0x29c] sm:$0xf]
    %v240 = vld [vmem:[%s1 + $0x2a0] sm:$0xf]
    %v241 = vld [vmem:[%s1 + $0x2a4] sm:$0xf]
    %v242 = vld [vmem:[%s1 + $0x2a8] sm:$0xf]
    %v243 = vld [vmem:[%s1 + $0x2ac] sm:$0xf]
    %v244 = vld [vmem:[%s1 + $0x2b0] sm:$0xf]
    %v245 = vld [vmem:[%s1 + $0x2b4] sm:$0xf]
    %v246 = vld [vmem:[%s1 + $0x2b8] sm:$0xf]
    %v247 = vld [vmem:[%s1 + $0x2bc] sm:$0xf]
    %v248 = vld [vmem:[%s1 + $0x2c0] sm:$0xf]
    %v249 = vld [vmem:[%s1 + $0x2c4] sm:$0xf]
    %v250 = vld [vmem:[%s1 + $0x2c8] sm:$0xf]
    %v251 = vld [vmem:[%s1 + $0x2cc] sm:$0xf]
    %v252 = vld [vmem:[%s1 + $0x2d0] sm:$0xf]
    %v253 = vld [vmem:[%s1 + $0x2d4] sm:$0xf]
    %v254 = vld [vmem:[%s1 + $0x2d8] sm:$0xf]
    %v255 = vld [vmem:[%s1 + $0x2dc] sm:$0xf]
    %v256 = vld [vmem:[%s1 + $0x2e0] sm:$0xf]
    %v257 = vld [vmem:[%s1 + $0x2e4] sm:$0xf]
    %v258 = vld [vmem:[%s1 + $0x2e8] sm:$0xf]
    %v259 = vld [vmem:[%s1 + $0x2ec] sm:$0xf]
    %v260 = vld [vmem:[%s1 + $0x2f0] sm:$0xf]
    %v261 = vld [vmem:[%s1 + $0x2f4] sm:$0xf]
    %v262 = vld [vmem:[%s1 + $0x2f8] sm:$0xf]
    %v263 = vld [vmem:[%s1 + $0x2fc] sm:$0xf]
    %v264 = vld [vmem:[%s1 + $0x300] sm:$0xf]
    %v265 = vld [vmem:[%s1 + $0x304] sm:$0xf]
    %v266 = vld [vmem:[%s1 + $0x308] sm:$0xf]
    %v267 = vld [vmem:[%s1 + $0x30c] sm:$0xf]
    %v268 = vld [vmem:[%s1 + $0x310] sm:$0xf]
    %v269 = vld [vmem:[%s1 + $0x314] sm:$0xf]
    %v270 = vld [vmem:[%s1 + $0x318] sm:$0xf]
    %v271 = vld [vmem:[%s1 + $0x31c] sm:$0xf]
    %v272 = vld [vmem:[%s1 + $0x320] sm:$0xf]
    %v273 = vld [vmem:[%s1 + $0x324] sm:$0xf]
    %v274 = vld [vmem:[%s1 + $0x328] sm:$0xf]
    %v275 = vld [vmem:[%s1 + $0x32c] sm:$0xf]
    %v276 = vld [vmem:[%s1 + $0x330] sm:$0xf]
    %v277 = vld [vmem:[%s1 + $0x334] sm:$0xf]
    %v278 = vld [vmem:[%s1 + $0x338] sm:$0xf]
    %v279 = vld [vmem:[%s1 + $0x33c] sm:$0xf]
    %v280 = vld [vmem:[%s1 + $0x340] sm:$0xf]
    %v281 = vld [vmem:[%s1 + $0x344] sm:$0xf]
    %v282 = vld [vmem:[%s1 + $0x348] sm:$0xf]
    %v283 = vld [vmem:[%s1 + $0x34c] sm:$0xf]
    %v284 = vld [vmem:[%s1 + $0x350] sm:$0xf]
    %v285 = vld [vmem:[%s1 + $0x354] sm:$0xf]
    %v286 = vld [vmem:[%s1 + $0x358] sm:$0xf]
    %v287 = vld [vmem:[%s1 + $0x35c] sm:$0xf]
    %v288 = vld [vmem:[%s1 + $0x360] sm:$0xf]
    %v289 = vld [vmem:[%s1 + $0x364] sm:$0xf]
    %v290 = vld [vmem:[%s1 + $0x368] sm:$0xf]
    %v291 = vld [vmem:[%s1 + $0x36c] sm:$0xf]
    %v292 = vld [vmem:[%s1 + $0x370] sm:$0xf]
    %v293 = vld [vmem:[%s1 + $0x374] sm:$0xf]
    %v294 = vld [vmem:[%s1 + $0x378] sm:$0xf]
    %v295 = vld [vmem:[%s1 + $0x37c] sm:$0xf]
    %v296 = vld [vmem:[%s1 + $0x380] sm:$0xf]
    %v297 = vld [vmem:[%s1 + $0x384] sm:$0xf]
    %v298 = vld [vmem:[%s1 + $0x388] sm:$0xf]
    %v299 = vld [vmem:[%s1 + $0x38c] sm:$0xf]
    %v300 = vld [vmem:[%s1 + $0x390] sm:$0xf]
    %v301 = vld [vmem:[%s1 + $0x394] sm:$0xf]
    %v302 = vld [vmem:[%s1 + $0x398] sm:$0xf]
    %v303 = vld [vmem:[%s1 + $0x39c] sm:$0xf]
    %v304 = vld [vmem:[%s1 + $0x3a0] sm:$0xf]
    %v305 = vld [vmem:[%s1 + $0x3a4] sm:$0xf]
    %v306 = vld [vmem:[%s1 + $0x3a8] sm:$0xf]
    %v307 = vld [vmem:[%s1 + $0x3ac] sm:$0xf]
    %v308 = vld [vmem:[%s1 + $0x3b0] sm:$0xf]
    %v309 = vld [vmem:[%s1 + $0x3b4] sm:$0xf]
    %v310 = vld [vmem:[%s1 + $0x3b8] sm:$0xf]
    %v311 = vld [vmem:[%s1 + $0x3bc] sm:$0xf]
    %v312 = vld [vmem:[%s1 + $0x3c0] sm:$0xf]
    %v313 = vld [vmem:[%s1 + $0x3c4] sm:$0xf]
    %v314 = vld [vmem:[%s1 + $0x3c8] sm:$0xf]
    %v315 = vld [vmem:[%s1 + $0x3cc] sm:$0xf]
    %v316 = vld [vmem:[%s1 + $0x3d0] sm:$0xf]
    %v317 = vld [vmem:[%s1 + $0x3d4] sm:$0xf]
    %v318 = vld [vmem:[%s1 + $0x3d8] sm:$0xf]
    %v319 = vld [vmem:[%s1 + $0x3dc] sm:$0xf]
    %v320 = vld [vmem:[%s1 + $0x3e0] sm:$0xf]
    %v321 = vld [vmem:[%s1 + $0x3e4] sm:$0xf]
    %v322 = vld [vmem:[%s1 + $0x3e8] sm:$0xf]
    %v323 = vld [vmem:[%s1 + $0x3ec] sm:$0xf]
    %v324 = vld [vmem:[%s1 + $0x3f0] sm:$0xf]
    %v325 = vld [vmem:[%s1 + $0x3f4] sm:$0xf]
    %v326 = vld [vmem:[%s1 + $0x3f8] sm:$0xf]
    %v327 = vld [vmem:[%s1 + $0x3fc] sm:$0xf]
    %v328 = vld [vmem:[%s1 + $0x400] sm:$0xf]
    %v329 = vld [vmem:[%s1 + $0x404] sm:$0xf]
    %v330 = vld [vmem:[%s1 + $0x408] sm:$0xf]
    %v331 = vld [vmem:[%s1 + $0x40c] sm:$0xf]
    %v332 = vld [vmem:[%s1 + $0x410] sm:$0xf]
    %v333 = vld [vmem:[%s1 + $0x414] sm:$0xf]
    %v334 = vld [vmem:[%s1 + $0x418] sm:$0xf]
    %v335 = vld [vmem:[%s1 + $0x41c] sm:$0xf]
    %v336 = vld [vmem:[%s1 + $0x420] sm:$0xf]
    %v337 = vld [vmem:[%s1 + $0x424] sm:$0xf]
    %v338 = vld [vmem:[%s1 + $0x428] sm:$0xf]
    %v339 = vld [vmem:[%s1 + $0x42c] sm:$0xf]
    %v340 = vld [vmem:[%s1 + $0x430] sm:$0xf]
    %v341 = vld [vmem:[%s1 + $0x434] sm:$0xf]
    %v342 = vld [vmem:[%s1 + $0x438] sm:$0xf]
    %v343 = vld [vmem:[%s1 + $0x43c] sm:$0xf]
    %v344 = vld [vmem:[%s1 + $0x440] sm:$0xf]
    %v345 = vld [vmem:[%s1 + $0x444] sm:$0xf]
    %v346 = vld [vmem:[%s1 + $0x448] sm:$0xf]
    %v347 = vld [vmem:[%s1 + $0x44c] sm:$0xf]
    %v348 = vld [vmem:[%s1 + $0x450] sm:$0xf]
    %v349 = vld [vmem:[%s1 + $0x454] sm:$0xf]
    %v350 = vld [vmem:[%s1 + $0x458] sm:$0xf]
    %v351 = vld [vmem:[%s1 + $0x45c] sm:$0xf]
    %v352 = vld [vmem:[%s1 + $0x460] sm:$0xf]
    %v353 = vld [vmem:[%s1 + $0x464] sm:$0xf]
    %v354 = vld [vmem:[%s1 + $0x468] sm:$0xf]
    %v355 = vld [vmem:[%s1 + $0x46c] sm:$0xf]
    %v356 = vld [vmem:[%s1 + $0x470] sm:$0xf]
    %v357 = vld [vmem:[%s1 + $0x474] sm:$0xf]
    %v358 = vld [vmem:[%s1 + $0x478] sm:$0xf]
    %v359 = vld [vmem:[%s1 + $0x47c] sm:$0xf]
    %v360 = vld [vmem:[%s1 + $0x480] sm:$0xf]
    %v361 = vld [vmem:[%s1 + $0x484] sm:$0xf]
    %v362 = vld [vmem:[%s1 + $0x488] sm:$0xf]
    %v363 = vld [vmem:[%s1 + $0x48c] sm:$0xf]
    %v364 = vld [vmem:[%s1 + $0x490] sm:$0xf]
    %v365 = vld [vmem:[%s1 + $0x494] sm:$0xf]
    %v366 = vld [vmem:[%s1 + $0x498] sm:$0xf]
    %v367 = vld [vmem:[%s1 + $0x49c] sm:$0xf]
    %v368 = vld [vmem:[%s1 + $0x4a0] sm:$0xf]
    %v369 = vld [vmem:[%s1 + $0x4a4] sm:$0xf]
    %v370 = vld [vmem:[%s1 + $0x4a8] sm:$0xf]
    %v371 = vld [vmem:[%s1 + $0x4ac] sm:$0xf]
    %v372 = vld [vmem:[%s1 + $0x4b0] sm:$0xf]
    %v373 = vld [vmem:[%s1 + $0x4b4] sm:$0xf]
    %v374 = vld [vmem:[%s1 + $0x4b8] sm:$0xf]
    %v375 = vld [vmem:[%s1 + $0x4bc] sm:$0xf]
    %v376 = vld [vmem:[%s1 + $0x4c0] sm:$0xf]
    %v377 = vld [vmem:[%s1 + $0x4c4] sm:$0xf]
    %v378 = vld [vmem:[%s1 + $0x4c8] sm:$0xf]
    %v379 = vld [vmem:[%s1 + $0x4cc] sm:$0xf]
    %v380 = vld [vmem:[%s1 + $0x4d0] sm:$0xf]
    %v381 = vld [vmem:[%s1 + $0x4d4] sm:$0xf]
    %v382 = vld [vmem:[%s1 + $0x4d8] sm:$0xf]
    %v383 = vld [vmem:[%s1 + $0x4dc] sm:$0xf]
    %v384 = vld [vmem:[%s1 + $0x4e0] sm:$0xf]
    %v385 = vld [vmem:[%s1 + $0x4e4] sm:$0xf]
    %v386 = vld [vmem:[%s1 + $0x4e8] sm:$0xf]
    %v387 = vld [vmem:[%s1 + $0x4ec] sm:$0xf]
    %v388 = vld [vmem:[%s1 + $0x4f0] sm:$0xf]
    %v389 = vld [vmem:[%s1 + $0x4f4] sm:$0xf]
    %v390 = vld [vmem:[%s1 + $0x4f8] sm:$0xf]
    %v391 = vld [vmem:[%s1 + $0x4fc] sm:$0xf]
    %v392 = vld [vmem:[%s1 + $0x500] sm:$0xf]
    %v393 = vld [vmem:[%s1 + $0x504] sm:$0xf]
    %v394 = vld [vmem:[%s1 + $0x508] sm:$0xf]
    %v395 = vld [vmem:[%s1 + $0x50c] sm:$0xf]
    %v396 = vld [vmem:[%s1 + $0x510] sm:$0xf]
    %v397 = vld [vmem:[%s1 + $0x514] sm:$0xf]
    %v398 = vld [vmem:[%s1 + $0x518] sm:$0xf]
    %v399 = vld [vmem:[%s1 + $0x51c] sm:$0xf]
    %v400 = vld [vmem:[%s1 + $0x520] sm:$0xf]
    %v401 = vld [vmem:[%s1 + $0x524] sm:$0xf]
    %v402 = vld [vmem:[%s1 + $0x528] sm:$0xf]
    %v403 = vld [vmem:[%s1 + $0x52c] sm:$0xf]
    %v404 = vld [vmem:[%s1 + $0x530] sm:$0xf]
    %v405 = vld [vmem:[%s1 + $0x534] sm:$0xf]
    %v406 = vld [vmem:[%s1 + $0x538] sm:$0xf]
    %v407 = vld [vmem:[%s1 + $0x53c] sm:$0xf]
    %v408 = vld [vmem:[%s1 + $0x540] sm:$0xf]
    %v409 = vld [vmem:[%s1 + $0x544] sm:$0xf]
    %v410 = vld [vmem:[%s1 + $0x548] sm:$0xf]
    %v411 = vld [vmem:[%s1 + $0x54c] sm:$0xf]
    %v412 = vld [vmem:[%s1 + $0x550] sm:$0xf]
    %v413 = vld [vmem:[%s1 + $0x554] sm:$0xf]
    %v414 = vld [vmem:[%s1 + $0x558] sm:$0xf]
    %v415 = vld [vmem:[%s1 + $0x55c] sm:$0xf]
    %v416 = vld [vmem:[%s1 + $0x560] sm:$0xf]
    %v417 = vld [vmem:[%s1 + $0x564] sm:$0xf]
    %v418 = vld [vmem:[%s1 + $0x568] sm:$0xf]
    %v419 = vld [vmem:[%s1 + $0x56c] sm:$0xf]
    %v420 = vld [vmem:[%s1 + $0x570] sm:$0xf]
    %v421 = vld [vmem:[%s1 + $0x574] sm:$0xf]
    %v422 = vld [vmem:[%s1 + $0x578] sm:$0xf]
    %v423 = vld [vmem:[%s1 + $0x57c] sm:$0xf]
    %v424 = vld [vmem:[%s1 + $0x580] sm:$0xf]
    %v425 = vld [vmem:[%s1 + $0x584] sm:$0xf]
    %v426 = vld [vmem:[%s1 + $0x588] sm:$0xf]
    %v427 = vld [vmem:[%s1 + $0x58c] sm:$0xf]
    %v428 = vld [vmem:[%s1 + $0x590] sm:$0xf]
    %v429 = vld [vmem:[%s1 + $0x594] sm:$0xf]
    %v430 = vld [vmem:[%s1 + $0x598] sm:$0xf]
    %v431 = vld [vmem:[%s1 + $0x59c] sm:$0xf]
    %v432 = vld [vmem:[%s1 + $0x5a0] sm:$0xf]
    %v433 = vld [vmem:[%s1 + $0x5a4] sm:$0xf]
    %v434 = vld [vmem:[%s1 + $0x5a8] sm:$0xf]
    %v435 = vld [vmem:[%s1 + $0x5ac] sm:$0xf]
    %v436 = vld [vmem:[%s1 + $0x5b0] sm:$0xf]
    %v437 = vld [vmem:[%s1 + $0x5b4] sm:$0xf]
    %v438 = vld [vmem:[%s1 + $0x5b8] sm:$0xf]
    %v439 = vld [vmem:[%s1 + $0x5bc] sm:$0xf]
    %v440 = vld [vmem:[%s1 + $0x5c0] sm:$0xf]
    %v441 = vld [vmem:[%s1 + $0x5c4] sm:$0xf]
    %v442 = vld [vmem:[%s1 + $0x5c8] sm:$0xf]
    %v443 = vld [vmem:[%s1 + $0x5cc] sm:$0xf]
    %v444 = vld [vmem:[%s1 + $0x5d0] sm:$0xf]
    %v445 = vld [vmem:[%s1 + $0x5d4] sm:$0xf]
    %v446 = vld [vmem:[%s1 + $0x5d8] sm:$0xf]
    %v447 = vld [vmem:[%s1 + $0x5dc] sm:$0xf]
    %v448 = vld [vmem:[%s1 + $0x5e0] sm:$0xf]
    %v449 = vld [vmem:[%s1 + $0x5e4] sm:$0xf]
    %v450 = vld [vmem:[%s1 + $0x5e8] sm:$0xf]
    %v451 = vld [vmem:[%s1 + $0x5ec] sm:$0xf]
    %v452 = vld [vmem:[%s1 + $0x5f0] sm:$0xf]
    %v453 = vld [vmem:[%s1 + $0x5f4] sm:$0xf]
    %v454 = vld [vmem:[%s1 + $0x5f8] sm:$0xf]
    %v455 = vld [vmem:[%s1 + $0x5fc] sm:$0xf]
    %v504 = vunpack.c.l.b16 %v24
    %v505 = vunpack.c.h.b16 %v24
    %v506 = vunpack.c.l.b16 %v25
    %v507 = vunpack.c.h.b16 %v25
    %v508 = vunpack.c.l.b16 %v26
    %v509 = vunpack.c.h.b16 %v26
    %v510 = vunpack.c.l.b16 %v27
    %v511 = vunpack.c.h.b16 %v27
    %v512 = vunpack.c.l.b16 %v28
    %v513 = vunpack.c.h.b16 %v28
    %v514 = vunpack.c.l.b16 %v29
    %v515 = vunpack.c.h.b16 %v29
    %v516 = vunpack.c.l.b16 %v30
    %v517 = vunpack.c.h.b16 %v30
    %v518 = vunpack.c.l.b16 %v31
    %v519 = vunpack.c.h.b16 %v31
    %v520 = vunpack.c.l.b16 %v32
    %v521 = vunpack.c.h.b16 %v32
    %v522 = vunpack.c.l.b16 %v33
    %v523 = vunpack.c.h.b16 %v33
    %v524 = vunpack.c.l.b16 %v34
    %v525 = vunpack.c.h.b16 %v34
    %v526 = vunpack.c.l.b16 %v35
    %v527 = vunpack.c.h.b16 %v35
    %v528 = vunpack.c.l.b16 %v36
    %v529 = vunpack.c.h.b16 %v36
    %v530 = vunpack.c.l.b16 %v37
    %v531 = vunpack.c.h.b16 %v37
    %v532 = vunpack.c.l.b16 %v38
    %v533 = vunpack.c.h.b16 %v38
    %v534 = vunpack.c.l.b16 %v39
    %v535 = vunpack.c.h.b16 %v39
    %v536 = vunpack.c.l.b16 %v40
    %v537 = vunpack.c.h.b16 %v40
    %v538 = vunpack.c.l.b16 %v41
    %v539 = vunpack.c.h.b16 %v41
    %v540 = vunpack.c.l.b16 %v42
    %v541 = vunpack.c.h.b16 %v42
    %v542 = vunpack.c.l.b16 %v43
    %v543 = vunpack.c.h.b16 %v43
    %v544 = vunpack.c.l.b16 %v44
    %v545 = vunpack.c.h.b16 %v44
    %v546 = vunpack.c.l.b16 %v45
    %v547 = vunpack.c.h.b16 %v45
    %v548 = vunpack.c.l.b16 %v46
    %v549 = vunpack.c.h.b16 %v46
    %v550 = vunpack.c.l.b16 %v47
    %v551 = vunpack.c.h.b16 %v47
    %v552 = vunpack.c.l.b16 %v48
    %v553 = vunpack.c.h.b16 %v48
    %v554 = vunpack.c.l.b16 %v49
    %v555 = vunpack.c.h.b16 %v49
    %v556 = vunpack.c.l.b16 %v50
    %v557 = vunpack.c.h.b16 %v50
    %v558 = vunpack.c.l.b16 %v51
    %v559 = vunpack.c.h.b16 %v51
    %v560 = vunpack.c.l.b16 %v52
    %v561 = vunpack.c.h.b16 %v52
    %v562 = vunpack.c.l.b16 %v53
    %v563 = vunpack.c.h.b16 %v53
    %v564 = vunpack.c.l.b16 %v54
    %v565 = vunpack.c.h.b16 %v54
    %v566 = vunpack.c.l.b16 %v55
    %v567 = vunpack.c.h.b16 %v55
    %v568 = vunpack.c.l.b16 %v56
    %v569 = vunpack.c.h.b16 %v56
    %v570 = vunpack.c.l.b16 %v57
    %v571 = vunpack.c.h.b16 %v57
    %v572 = vunpack.c.l.b16 %v58
    %v573 = vunpack.c.h.b16 %v58
    %v574 = vunpack.c.l.b16 %v59
    %v575 = vunpack.c.h.b16 %v59
    %v576 = vunpack.c.l.b16 %v60
    %v577 = vunpack.c.h.b16 %v60
    %v578 = vunpack.c.l.b16 %v61
    %v579 = vunpack.c.h.b16 %v61
    %v580 = vunpack.c.l.b16 %v62
    %v581 = vunpack.c.h.b16 %v62
    %v582 = vunpack.c.l.b16 %v63
    %v583 = vunpack.c.h.b16 %v63
    %v584 = vunpack.c.l.b16 %v64
    %v585 = vunpack.c.h.b16 %v64
    %v586 = vunpack.c.l.b16 %v65
    %v587 = vunpack.c.h.b16 %v65
    %v588 = vunpack.c.l.b16 %v66
    %v589 = vunpack.c.h.b16 %v66
    %v590 = vunpack.c.l.b16 %v67
    %v591 = vunpack.c.h.b16 %v67
    %v592 = vunpack.c.l.b16 %v68
    %v593 = vunpack.c.h.b16 %v68
    %v594 = vunpack.c.l.b16 %v69
    %v595 = vunpack.c.h.b16 %v69
    %v596 = vunpack.c.l.b16 %v70
    %v597 = vunpack.c.h.b16 %v70
    %v598 = vunpack.c.l.b16 %v71
    %v599 = vunpack.c.h.b16 %v71
    %v600 = vpack.c.b16 %v528, %v504
    %v601 = vpack.c.b16 %v529, %v505
    %v602 = vpack.c.b16 %v530, %v506
    %v603 = vpack.c.b16 %v531, %v507
    %v604 = vpack.c.b16 %v532, %v508
    %v605 = vpack.c.b16 %v533, %v509
    %v606 = vpack.c.b16 %v534, %v510
    %v607 = vpack.c.b16 %v535, %v511
    %v608 = vpack.c.b16 %v536, %v512
    %v609 = vpack.c.b16 %v537, %v513
    %v610 = vpack.c.b16 %v538, %v514
    %v611 = vpack.c.b16 %v539, %v515
    %v612 = vpack.c.b16 %v540, %v516
    %v613 = vpack.c.b16 %v541, %v517
    %v614 = vpack.c.b16 %v542, %v518
    %v615 = vpack.c.b16 %v543, %v519
    %v616 = vpack.c.b16 %v544, %v520
    %v617 = vpack.c.b16 %v545, %v521
    %v618 = vpack.c.b16 %v546, %v522
    %v619 = vpack.c.b16 %v547, %v523
    %v620 = vpack.c.b16 %v548, %v524
    %v621 = vpack.c.b16 %v549, %v525
    %v622 = vpack.c.b16 %v550, %v526
    %v623 = vpack.c.b16 %v551, %v527
    %v624 = vpack.c.b16 %v576, %v552
    %v625 = vpack.c.b16 %v577, %v553
    %v626 = vpack.c.b16 %v578, %v554
    %v627 = vpack.c.b16 %v579, %v555
    %v628 = vpack.c.b16 %v580, %v556
    %v629 = vpack.c.b16 %v581, %v557
    %v630 = vpack.c.b16 %v582, %v558
    %v631 = vpack.c.b16 %v583, %v559
    %v632 = vpack.c.b16 %v584, %v560
    %v633 = vpack.c.b16 %v585, %v561
    %v634 = vpack.c.b16 %v586, %v562
    %v635 = vpack.c.b16 %v587, %v563
    %v636 = vpack.c.b16 %v588, %v564
    %v637 = vpack.c.b16 %v589, %v565
    %v638 = vpack.c.b16 %v590, %v566
    %v639 = vpack.c.b16 %v591, %v567
    %v640 = vpack.c.b16 %v592, %v568
    %v641 = vpack.c.b16 %v593, %v569
    %v642 = vpack.c.b16 %v594, %v570
    %v643 = vpack.c.b16 %v595, %v571
    %v644 = vpack.c.b16 %v596, %v572
    %v645 = vpack.c.b16 %v597, %v573
    %v646 = vpack.c.b16 %v598, %v574
    %v647 = vpack.c.b16 %v599, %v575
    %v1080 = vunpack.c.l.b16 %v72
    %v1081 = vunpack.c.l.b16 %v73
    %v1082 = vunpack.c.l.b16 %v74
    %v1083 = vunpack.c.l.b16 %v75
    %v1084 = vunpack.c.l.b16 %v76
    %v1085 = vunpack.c.l.b16 %v77
    %v1086 = vunpack.c.l.b16 %v78
    %v1087 = vunpack.c.l.b16 %v79
    %v1088 = vunpack.c.l.b16 %v80
    %v1089 = vunpack.c.l.b16 %v81
    %v1090 = vunpack.c.l.b16 %v82
    %v1091 = vunpack.c.l.b16 %v83
    %v1092 = vunpack.c.l.b16 %v84
    %v1093 = vunpack.c.l.b16 %v85
    %v1094 = vunpack.c.l.b16 %v86
    %v1095 = vunpack.c.l.b16 %v87
    %v1096 = vunpack.c.l.b16 %v88
    %v1097 = vunpack.c.l.b16 %v89
    %v1098 = vunpack.c.l.b16 %v90
    %v1099 = vunpack.c.l.b16 %v91
    %v1100 = vunpack.c.l.b16 %v92
    %v1101 = vunpack.c.l.b16 %v93
    %v1102 = vunpack.c.l.b16 %v94
    %v1103 = vunpack.c.l.b16 %v95
    %v1104 = vunpack.c.l.b16 %v96
    %v1105 = vunpack.c.l.b16 %v97
    %v1106 = vunpack.c.l.b16 %v98
    %v1107 = vunpack.c.l.b16 %v99
    %v1108 = vunpack.c.l.b16 %v100
    %v1109 = vunpack.c.l.b16 %v101
    %v1110 = vunpack.c.l.b16 %v102
    %v1111 = vunpack.c.l.b16 %v103
    %v1112 = vunpack.c.l.b16 %v104
    %v1113 = vunpack.c.l.b16 %v105
    %v1114 = vunpack.c.l.b16 %v106
    %v1115 = vunpack.c.l.b16 %v107
    %v1116 = vunpack.c.l.b16 %v108
    %v1117 = vunpack.c.l.b16 %v109
    %v1118 = vunpack.c.l.b16 %v110
    %v1119 = vunpack.c.l.b16 %v111
    %v1120 = vunpack.c.l.b16 %v112
    %v1121 = vunpack.c.l.b16 %v113
    %v1122 = vunpack.c.l.b16 %v114
    %v1123 = vunpack.c.l.b16 %v115
    %v1124 = vunpack.c.l.b16 %v116
    %v1125 = vunpack.c.l.b16 %v117
    %v1126 = vunpack.c.l.b16 %v118
    %v1127 = vunpack.c.l.b16 %v119
    %v1128 = vunpack.c.l.b16 %v120
    %v1129 = vunpack.c.l.b16 %v121
    %v1130 = vunpack.c.l.b16 %v122
    %v1131 = vunpack.c.l.b16 %v123
    %v1132 = vunpack.c.l.b16 %v124
    %v1133 = vunpack.c.l.b16 %v125
    %v1134 = vunpack.c.l.b16 %v126
    %v1135 = vunpack.c.l.b16 %v127
    %v1136 = vunpack.c.l.b16 %v128
    %v1137 = vunpack.c.l.b16 %v129
    %v1138 = vunpack.c.l.b16 %v130
    %v1139 = vunpack.c.l.b16 %v131
    %v1140 = vunpack.c.l.b16 %v132
    %v1141 = vunpack.c.l.b16 %v133
    %v1142 = vunpack.c.l.b16 %v134
    %v1143 = vunpack.c.l.b16 %v135
    %v1144 = vunpack.c.l.b16 %v136
    %v1145 = vunpack.c.l.b16 %v137
    %v1146 = vunpack.c.l.b16 %v138
    %v1147 = vunpack.c.l.b16 %v139
    %v1148 = vunpack.c.l.b16 %v140
    %v1149 = vunpack.c.l.b16 %v141
    %v1150 = vunpack.c.l.b16 %v142
    %v1151 = vunpack.c.l.b16 %v143
    %v1152 = vunpack.c.l.b16 %v144
    %v1153 = vunpack.c.l.b16 %v145
    %v1154 = vunpack.c.l.b16 %v146
    %v1155 = vunpack.c.l.b16 %v147
    %v1156 = vunpack.c.l.b16 %v148
    %v1157 = vunpack.c.l.b16 %v149
    %v1158 = vunpack.c.l.b16 %v150
    %v1159 = vunpack.c.l.b16 %v151
    %v1160 = vunpack.c.l.b16 %v152
    %v1161 = vunpack.c.l.b16 %v153
    %v1162 = vunpack.c.l.b16 %v154
    %v1163 = vunpack.c.l.b16 %v155
    %v1164 = vunpack.c.l.b16 %v156
    %v1165 = vunpack.c.l.b16 %v157
    %v1166 = vunpack.c.l.b16 %v158
    %v1167 = vunpack.c.l.b16 %v159
    %v1168 = vunpack.c.l.b16 %v160
    %v1169 = vunpack.c.l.b16 %v161
    %v1170 = vunpack.c.l.b16 %v162
    %v1171 = vunpack.c.l.b16 %v163
    %v1172 = vunpack.c.l.b16 %v164
    %v1173 = vunpack.c.l.b16 %v165
    %v1174 = vunpack.c.l.b16 %v166
    %v1175 = vunpack.c.l.b16 %v167
    %v1176 = vunpack.c.l.b16 %v168
    %v1177 = vunpack.c.l.b16 %v169
    %v1178 = vunpack.c.l.b16 %v170
    %v1179 = vunpack.c.l.b16 %v171
    %v1180 = vunpack.c.l.b16 %v172
    %v1181 = vunpack.c.l.b16 %v173
    %v1182 = vunpack.c.l.b16 %v174
    %v1183 = vunpack.c.l.b16 %v175
    %v1184 = vunpack.c.l.b16 %v176
    %v1185 = vunpack.c.l.b16 %v177
    %v1186 = vunpack.c.l.b16 %v178
    %v1187 = vunpack.c.l.b16 %v179
    %v1188 = vunpack.c.l.b16 %v180
    %v1189 = vunpack.c.l.b16 %v181
    %v1190 = vunpack.c.l.b16 %v182
    %v1191 = vunpack.c.l.b16 %v183
    %v1192 = vunpack.c.l.b16 %v184
    %v1193 = vunpack.c.l.b16 %v185
    %v1194 = vunpack.c.l.b16 %v186
    %v1195 = vunpack.c.l.b16 %v187
    %v1196 = vunpack.c.l.b16 %v188
    %v1197 = vunpack.c.l.b16 %v189
    %v1198 = vunpack.c.l.b16 %v190
    %v1199 = vunpack.c.l.b16 %v191
    %v1200 = vunpack.c.l.b16 %v192
    %v1201 = vunpack.c.l.b16 %v193
    %v1202 = vunpack.c.l.b16 %v194
    %v1203 = vunpack.c.l.b16 %v195
    %v1204 = vunpack.c.l.b16 %v196
    %v1205 = vunpack.c.l.b16 %v197
    %v1206 = vunpack.c.l.b16 %v198
    %v1207 = vunpack.c.l.b16 %v199
    %v1208 = vunpack.c.l.b16 %v200
    %v1209 = vunpack.c.l.b16 %v201
    %v1210 = vunpack.c.l.b16 %v202
    %v1211 = vunpack.c.l.b16 %v203
    %v1212 = vunpack.c.l.b16 %v204
    %v1213 = vunpack.c.l.b16 %v205
    %v1214 = vunpack.c.l.b16 %v206
    %v1215 = vunpack.c.l.b16 %v207
    %v1216 = vunpack.c.l.b16 %v208
    %v1217 = vunpack.c.l.b16 %v209
    %v1218 = vunpack.c.l.b16 %v210
    %v1219 = vunpack.c.l.b16 %v211
    %v1220 = vunpack.c.l.b16 %v212
    %v1221 = vunpack.c.l.b16 %v213
    %v1222 = vunpack.c.l.b16 %v214
    %v1223 = vunpack.c.l.b16 %v215
    %v1224 = vunpack.c.l.b16 %v216
    %v1225 = vunpack.c.l.b16 %v217
    %v1226 = vunpack.c.l.b16 %v218
    %v1227 = vunpack.c.l.b16 %v219
    %v1228 = vunpack.c.l.b16 %v220
    %v1229 = vunpack.c.l.b16 %v221
    %v1230 = vunpack.c.l.b16 %v222
    %v1231 = vunpack.c.l.b16 %v223
    %v1232 = vunpack.c.l.b16 %v224
    %v1233 = vunpack.c.l.b16 %v225
    %v1234 = vunpack.c.l.b16 %v226
    %v1235 = vunpack.c.l.b16 %v227
    %v1236 = vunpack.c.l.b16 %v228
    %v1237 = vunpack.c.l.b16 %v229
    %v1238 = vunpack.c.l.b16 %v230
    %v1239 = vunpack.c.l.b16 %v231
    %v1240 = vunpack.c.l.b16 %v232
    %v1241 = vunpack.c.l.b16 %v233
    %v1242 = vunpack.c.l.b16 %v234
    %v1243 = vunpack.c.l.b16 %v235
    %v1244 = vunpack.c.l.b16 %v236
    %v1245 = vunpack.c.l.b16 %v237
    %v1246 = vunpack.c.l.b16 %v238
    %v1247 = vunpack.c.l.b16 %v239
    %v1248 = vunpack.c.l.b16 %v240
    %v1249 = vunpack.c.l.b16 %v241
    %v1250 = vunpack.c.l.b16 %v242
    %v1251 = vunpack.c.l.b16 %v243
    %v1252 = vunpack.c.l.b16 %v244
    %v1253 = vunpack.c.l.b16 %v245
    %v1254 = vunpack.c.l.b16 %v246
    %v1255 = vunpack.c.l.b16 %v247
    %v1256 = vunpack.c.l.b16 %v248
    %v1257 = vunpack.c.l.b16 %v249
    %v1258 = vunpack.c.l.b16 %v250
    %v1259 = vunpack.c.l.b16 %v251
    %v1260 = vunpack.c.l.b16 %v252
    %v1261 = vunpack.c.l.b16 %v253
    %v1262 = vunpack.c.l.b16 %v254
    %v1263 = vunpack.c.l.b16 %v255
    %v1264 = vunpack.c.l.b16 %v256
    %v1265 = vunpack.c.l.b16 %v257
    %v1266 = vunpack.c.l.b16 %v258
    %v1267 = vunpack.c.l.b16 %v259
    %v1268 = vunpack.c.l.b16 %v260
    %v1269 = vunpack.c.l.b16 %v261
    %v1270 = vunpack.c.l.b16 %v262
    %v1271 = vunpack.c.l.b16 %v263
    %v1272 = vunpack.c.l.b16 %v264
    %v1273 = vunpack.c.l.b16 %v265
    %v1274 = vunpack.c.l.b16 %v266
    %v1275 = vunpack.c.l.b16 %v267
    %v1276 = vunpack.c.l.b16 %v268
    %v1277 = vunpack.c.l.b16 %v269
    %v1278 = vunpack.c.l.b16 %v270
    %v1279 = vunpack.c.l.b16 %v271
    %v1280 = vunpack.c.l.b16 %v272
    %v1281 = vunpack.c.l.b16 %v273
    %v1282 = vunpack.c.l.b16 %v274
    %v1283 = vunpack.c.l.b16 %v275
    %v1284 = vunpack.c.l.b16 %v276
    %v1285 = vunpack.c.l.b16 %v277
    %v1286 = vunpack.c.l.b16 %v278
    %v1287 = vunpack.c.l.b16 %v279
    %v1288 = vunpack.c.l.b16 %v280
    %v1289 = vunpack.c.l.b16 %v281
    %v1290 = vunpack.c.l.b16 %v282
    %v1291 = vunpack.c.l.b16 %v283
    %v1292 = vunpack.c.l.b16 %v284
    %v1293 = vunpack.c.l.b16 %v285
    %v1294 = vunpack.c.l.b16 %v286
    %v1295 = vunpack.c.l.b16 %v287
    %v1296 = vunpack.c.l.b16 %v288
    %v1297 = vunpack.c.l.b16 %v289
    %v1298 = vunpack.c.l.b16 %v290
    %v1299 = vunpack.c.l.b16 %v291
    %v1300 = vunpack.c.l.b16 %v292
    %v1301 = vunpack.c.l.b16 %v293
    %v1302 = vunpack.c.l.b16 %v294
    %v1303 = vunpack.c.l.b16 %v295
    %v1304 = vunpack.c.l.b16 %v296
    %v1305 = vunpack.c.l.b16 %v297
    %v1306 = vunpack.c.l.b16 %v298
    %v1307 = vunpack.c.l.b16 %v299
    %v1308 = vunpack.c.l.b16 %v300
    %v1309 = vunpack.c.l.b16 %v301
    %v1310 = vunpack.c.l.b16 %v302
    %v1311 = vunpack.c.l.b16 %v303
    %v1312 = vunpack.c.l.b16 %v304
    %v1313 = vunpack.c.l.b16 %v305
    %v1314 = vunpack.c.l.b16 %v306
    %v1315 = vunpack.c.l.b16 %v307
    %v1316 = vunpack.c.l.b16 %v308
    %v1317 = vunpack.c.l.b16 %v309
    %v1318 = vunpack.c.l.b16 %v310
    %v1319 = vunpack.c.l.b16 %v311
    %v1320 = vunpack.c.l.b16 %v312
    %v1321 = vunpack.c.l.b16 %v313
    %v1322 = vunpack.c.l.b16 %v314
    %v1323 = vunpack.c.l.b16 %v315
    %v1324 = vunpack.c.l.b16 %v316
    %v1325 = vunpack.c.l.b16 %v317
    %v1326 = vunpack.c.l.b16 %v318
    %v1327 = vunpack.c.l.b16 %v319
    %v1328 = vunpack.c.l.b16 %v320
    %v1329 = vunpack.c.l.b16 %v321
    %v1330 = vunpack.c.l.b16 %v322
    %v1331 = vunpack.c.l.b16 %v323
    %v1332 = vunpack.c.l.b16 %v324
    %v1333 = vunpack.c.l.b16 %v325
    %v1334 = vunpack.c.l.b16 %v326
    %v1335 = vunpack.c.l.b16 %v327
    %v1336 = vunpack.c.l.b16 %v328
    %v1337 = vunpack.c.l.b16 %v329
    %v1338 = vunpack.c.l.b16 %v330
    %v1339 = vunpack.c.l.b16 %v331
    %v1340 = vunpack.c.l.b16 %v332
    %v1341 = vunpack.c.l.b16 %v333
    %v1342 = vunpack.c.l.b16 %v334
    %v1343 = vunpack.c.l.b16 %v335
    %v1344 = vunpack.c.l.b16 %v336
    %v1345 = vunpack.c.l.b16 %v337
    %v1346 = vunpack.c.l.b16 %v338
    %v1347 = vunpack.c.l.b16 %v339
    %v1348 = vunpack.c.l.b16 %v340
    %v1349 = vunpack.c.l.b16 %v341
    %v1350 = vunpack.c.l.b16 %v342
    %v1351 = vunpack.c.l.b16 %v343
    %v1352 = vunpack.c.l.b16 %v344
    %v1353 = vunpack.c.l.b16 %v345
    %v1354 = vunpack.c.l.b16 %v346
    %v1355 = vunpack.c.l.b16 %v347
    %v1356 = vunpack.c.l.b16 %v348
    %v1357 = vunpack.c.l.b16 %v349
    %v1358 = vunpack.c.l.b16 %v350
    %v1359 = vunpack.c.l.b16 %v351
    %v1360 = vunpack.c.l.b16 %v352
    %v1361 = vunpack.c.l.b16 %v353
    %v1362 = vunpack.c.l.b16 %v354
    %v1363 = vunpack.c.l.b16 %v355
    %v1364 = vunpack.c.l.b16 %v356
    %v1365 = vunpack.c.l.b16 %v357
    %v1366 = vunpack.c.l.b16 %v358
    %v1367 = vunpack.c.l.b16 %v359
    %v1368 = vunpack.c.l.b16 %v360
    %v1369 = vunpack.c.l.b16 %v361
    %v1370 = vunpack.c.l.b16 %v362
    %v1371 = vunpack.c.l.b16 %v363
    %v1372 = vunpack.c.l.b16 %v364
    %v1373 = vunpack.c.l.b16 %v365
    %v1374 = vunpack.c.l.b16 %v366
    %v1375 = vunpack.c.l.b16 %v367
    %v1376 = vunpack.c.l.b16 %v368
    %v1377 = vunpack.c.l.b16 %v369
    %v1378 = vunpack.c.l.b16 %v370
    %v1379 = vunpack.c.l.b16 %v371
    %v1380 = vunpack.c.l.b16 %v372
    %v1381 = vunpack.c.l.b16 %v373
    %v1382 = vunpack.c.l.b16 %v374
    %v1383 = vunpack.c.l.b16 %v375
    %v1384 = vunpack.c.l.b16 %v376
    %v1385 = vunpack.c.l.b16 %v377
    %v1386 = vunpack.c.l.b16 %v378
    %v1387 = vunpack.c.l.b16 %v379
    %v1388 = vunpack.c.l.b16 %v380
    %v1389 = vunpack.c.l.b16 %v381
    %v1390 = vunpack.c.l.b16 %v382
    %v1391 = vunpack.c.l.b16 %v383
    %v1392 = vunpack.c.l.b16 %v384
    %v1393 = vunpack.c.l.b16 %v385
    %v1394 = vunpack.c.l.b16 %v386
    %v1395 = vunpack.c.l.b16 %v387
    %v1396 = vunpack.c.l.b16 %v388
    %v1397 = vunpack.c.l.b16 %v389
    %v1398 = vunpack.c.l.b16 %v390
    %v1399 = vunpack.c.l.b16 %v391
    %v1400 = vunpack.c.l.b16 %v392
    %v1401 = vunpack.c.l.b16 %v393
    %v1402 = vunpack.c.l.b16 %v394
    %v1403 = vunpack.c.l.b16 %v395
    %v1404 = vunpack.c.l.b16 %v396
    %v1405 = vunpack.c.l.b16 %v397
    %v1406 = vunpack.c.l.b16 %v398
    %v1407 = vunpack.c.l.b16 %v399
    %v1408 = vunpack.c.l.b16 %v400
    %v1409 = vunpack.c.l.b16 %v401
    %v1410 = vunpack.c.l.b16 %v402
    %v1411 = vunpack.c.l.b16 %v403
    %v1412 = vunpack.c.l.b16 %v404
    %v1413 = vunpack.c.l.b16 %v405
    %v1414 = vunpack.c.l.b16 %v406
    %v1415 = vunpack.c.l.b16 %v407
    %v1416 = vunpack.c.l.b16 %v408
    %v1417 = vunpack.c.l.b16 %v409
    %v1418 = vunpack.c.l.b16 %v410
    %v1419 = vunpack.c.l.b16 %v411
    %v1420 = vunpack.c.l.b16 %v412
    %v1421 = vunpack.c.l.b16 %v413
    %v1422 = vunpack.c.l.b16 %v414
    %v1423 = vunpack.c.l.b16 %v415
    %v1424 = vunpack.c.l.b16 %v416
    %v1425 = vunpack.c.l.b16 %v417
    %v1426 = vunpack.c.l.b16 %v418
    %v1427 = vunpack.c.l.b16 %v419
    %v1428 = vunpack.c.l.b16 %v420
    %v1429 = vunpack.c.l.b16 %v421
    %v1430 = vunpack.c.l.b16 %v422
    %v1431 = vunpack.c.l.b16 %v423
    %v1432 = vunpack.c.l.b16 %v424
    %v1433 = vunpack.c.l.b16 %v425
    %v1434 = vunpack.c.l.b16 %v426
    %v1435 = vunpack.c.l.b16 %v427
    %v1436 = vunpack.c.l.b16 %v428
    %v1437 = vunpack.c.l.b16 %v429
    %v1438 = vunpack.c.l.b16 %v430
    %v1439 = vunpack.c.l.b16 %v431
    %v1440 = vunpack.c.l.b16 %v432
    %v1441 = vunpack.c.l.b16 %v433
    %v1442 = vunpack.c.l.b16 %v434
    %v1443 = vunpack.c.l.b16 %v435
    %v1444 = vunpack.c.l.b16 %v436
    %v1445 = vunpack.c.l.b16 %v437
    %v1446 = vunpack.c.l.b16 %v438
    %v1447 = vunpack.c.l.b16 %v439
    %v1448 = vunpack.c.l.b16 %v440
    %v1449 = vunpack.c.l.b16 %v441
    %v1450 = vunpack.c.l.b16 %v442
    %v1451 = vunpack.c.l.b16 %v443
    %v1452 = vunpack.c.l.b16 %v444
    %v1453 = vunpack.c.l.b16 %v445
    %v1454 = vunpack.c.l.b16 %v446
    %v1455 = vunpack.c.l.b16 %v447
    %v1456 = vunpack.c.l.b16 %v448
    %v1457 = vunpack.c.l.b16 %v449
    %v1458 = vunpack.c.l.b16 %v450
    %v1459 = vunpack.c.l.b16 %v451
    %v1460 = vunpack.c.l.b16 %v452
    %v1461 = vunpack.c.l.b16 %v453
    %v1462 = vunpack.c.l.b16 %v454
    %v1463 = vunpack.c.l.b16 %v455
    %v1464 = vpack.c.b16 %v1081, %v1080
    %v1465 = vpack.c.b16 %v1083, %v1082
    %v1466 = vpack.c.b16 %v1085, %v1084
    %v1467 = vpack.c.b16 %v1087, %v1086
    %v1468 = vpack.c.b16 %v1089, %v1088
    %v1469 = vpack.c.b16 %v1091, %v1090
    %v1470 = vpack.c.b16 %v1093, %v1092
    %v1471 = vpack.c.b16 %v1095, %v1094
    %v1472 = vpack.c.b16 %v1097, %v1096
    %v1473 = vpack.c.b16 %v1099, %v1098
    %v1474 = vpack.c.b16 %v1101, %v1100
    %v1475 = vpack.c.b16 %v1103, %v1102
    %v1476 = vpack.c.b16 %v1105, %v1104
    %v1477 = vpack.c.b16 %v1107, %v1106
    %v1478 = vpack.c.b16 %v1109, %v1108
    %v1479 = vpack.c.b16 %v1111, %v1110
    %v1480 = vpack.c.b16 %v1113, %v1112
    %v1481 = vpack.c.b16 %v1115, %v1114
    %v1482 = vpack.c.b16 %v1117, %v1116
    %v1483 = vpack.c.b16 %v1119, %v1118
    %v1484 = vpack.c.b16 %v1121, %v1120
    %v1485 = vpack.c.b16 %v1123, %v1122
    %v1486 = vpack.c.b16 %v1125, %v1124
    %v1487 = vpack.c.b16 %v1127, %v1126
    %v1488 = vpack.c.b16 %v1129, %v1128
    %v1489 = vpack.c.b16 %v1131, %v1130
    %v1490 = vpack.c.b16 %v1133, %v1132
    %v1491 = vpack.c.b16 %v1135, %v1134
    %v1492 = vpack.c.b16 %v1137, %v1136
    %v1493 = vpack.c.b16 %v1139, %v1138
    %v1494 = vpack.c.b16 %v1141, %v1140
    %v1495 = vpack.c.b16 %v1143, %v1142
    %v1496 = vpack.c.b16 %v1145, %v1144
    %v1497 = vpack.c.b16 %v1147, %v1146
    %v1498 = vpack.c.b16 %v1149, %v1148
    %v1499 = vpack.c.b16 %v1151, %v1150
    %v1500 = vpack.c.b16 %v1153, %v1152
    %v1501 = vpack.c.b16 %v1155, %v1154
    %v1502 = vpack.c.b16 %v1157, %v1156
    %v1503 = vpack.c.b16 %v1159, %v1158
    %v1504 = vpack.c.b16 %v1161, %v1160
    %v1505 = vpack.c.b16 %v1163, %v1162
    %v1506 = vpack.c.b16 %v1165, %v1164
    %v1507 = vpack.c.b16 %v1167, %v1166
    %v1508 = vpack.c.b16 %v1169, %v1168
    %v1509 = vpack.c.b16 %v1171, %v1170
    %v1510 = vpack.c.b16 %v1173, %v1172
    %v1511 = vpack.c.b16 %v1175, %v1174
    %v1512 = vpack.c.b16 %v1177, %v1176
    %v1513 = vpack.c.b16 %v1179, %v1178
    %v1514 = vpack.c.b16 %v1181, %v1180
    %v1515 = vpack.c.b16 %v1183, %v1182
    %v1516 = vpack.c.b16 %v1185, %v1184
    %v1517 = vpack.c.b16 %v1187, %v1186
    %v1518 = vpack.c.b16 %v1189, %v1188
    %v1519 = vpack.c.b16 %v1191, %v1190
    %v1520 = vpack.c.b16 %v1193, %v1192
    %v1521 = vpack.c.b16 %v1195, %v1194
    %v1522 = vpack.c.b16 %v1197, %v1196
    %v1523 = vpack.c.b16 %v1199, %v1198
    %v1524 = vpack.c.b16 %v1201, %v1200
    %v1525 = vpack.c.b16 %v1203, %v1202
    %v1526 = vpack.c.b16 %v1205, %v1204
    %v1527 = vpack.c.b16 %v1207, %v1206
    %v1528 = vpack.c.b16 %v1209, %v1208
    %v1529 = vpack.c.b16 %v1211, %v1210
    %v1530 = vpack.c.b16 %v1213, %v1212
    %v1531 = vpack.c.b16 %v1215, %v1214
    %v1532 = vpack.c.b16 %v1217, %v1216
    %v1533 = vpack.c.b16 %v1219, %v1218
    %v1534 = vpack.c.b16 %v1221, %v1220
    %v1535 = vpack.c.b16 %v1223, %v1222
    %v1536 = vpack.c.b16 %v1225, %v1224
    %v1537 = vpack.c.b16 %v1227, %v1226
    %v1538 = vpack.c.b16 %v1229, %v1228
    %v1539 = vpack.c.b16 %v1231, %v1230
    %v1540 = vpack.c.b16 %v1233, %v1232
    %v1541 = vpack.c.b16 %v1235, %v1234
    %v1542 = vpack.c.b16 %v1237, %v1236
    %v1543 = vpack.c.b16 %v1239, %v1238
    %v1544 = vpack.c.b16 %v1241, %v1240
    %v1545 = vpack.c.b16 %v1243, %v1242
    %v1546 = vpack.c.b16 %v1245, %v1244
    %v1547 = vpack.c.b16 %v1247, %v1246
    %v1548 = vpack.c.b16 %v1249, %v1248
    %v1549 = vpack.c.b16 %v1251, %v1250
    %v1550 = vpack.c.b16 %v1253, %v1252
    %v1551 = vpack.c.b16 %v1255, %v1254
    %v1552 = vpack.c.b16 %v1257, %v1256
    %v1553 = vpack.c.b16 %v1259, %v1258
    %v1554 = vpack.c.b16 %v1261, %v1260
    %v1555 = vpack.c.b16 %v1263, %v1262
    %v1556 = vpack.c.b16 %v1265, %v1264
    %v1557 = vpack.c.b16 %v1267, %v1266
    %v1558 = vpack.c.b16 %v1269, %v1268
    %v1559 = vpack.c.b16 %v1271, %v1270
    %v1560 = vpack.c.b16 %v1273, %v1272
    %v1561 = vpack.c.b16 %v1275, %v1274
    %v1562 = vpack.c.b16 %v1277, %v1276
    %v1563 = vpack.c.b16 %v1279, %v1278
    %v1564 = vpack.c.b16 %v1281, %v1280
    %v1565 = vpack.c.b16 %v1283, %v1282
    %v1566 = vpack.c.b16 %v1285, %v1284
    %v1567 = vpack.c.b16 %v1287, %v1286
    %v1568 = vpack.c.b16 %v1289, %v1288
    %v1569 = vpack.c.b16 %v1291, %v1290
    %v1570 = vpack.c.b16 %v1293, %v1292
    %v1571 = vpack.c.b16 %v1295, %v1294
    %v1572 = vpack.c.b16 %v1297, %v1296
    %v1573 = vpack.c.b16 %v1299, %v1298
    %v1574 = vpack.c.b16 %v1301, %v1300
    %v1575 = vpack.c.b16 %v1303, %v1302
    %v1576 = vpack.c.b16 %v1305, %v1304
    %v1577 = vpack.c.b16 %v1307, %v1306
    %v1578 = vpack.c.b16 %v1309, %v1308
    %v1579 = vpack.c.b16 %v1311, %v1310
    %v1580 = vpack.c.b16 %v1313, %v1312
    %v1581 = vpack.c.b16 %v1315, %v1314
    %v1582 = vpack.c.b16 %v1317, %v1316
    %v1583 = vpack.c.b16 %v1319, %v1318
    %v1584 = vpack.c.b16 %v1321, %v1320
    %v1585 = vpack.c.b16 %v1323, %v1322
    %v1586 = vpack.c.b16 %v1325, %v1324
    %v1587 = vpack.c.b16 %v1327, %v1326
    %v1588 = vpack.c.b16 %v1329, %v1328
    %v1589 = vpack.c.b16 %v1331, %v1330
    %v1590 = vpack.c.b16 %v1333, %v1332
    %v1591 = vpack.c.b16 %v1335, %v1334
    %v1592 = vpack.c.b16 %v1337, %v1336
    %v1593 = vpack.c.b16 %v1339, %v1338
    %v1594 = vpack.c.b16 %v1341, %v1340
    %v1595 = vpack.c.b16 %v1343, %v1342
    %v1596 = vpack.c.b16 %v1345, %v1344
    %v1597 = vpack.c.b16 %v1347, %v1346
    %v1598 = vpack.c.b16 %v1349, %v1348
    %v1599 = vpack.c.b16 %v1351, %v1350
    %v1600 = vpack.c.b16 %v1353, %v1352
    %v1601 = vpack.c.b16 %v1355, %v1354
    %v1602 = vpack.c.b16 %v1357, %v1356
    %v1603 = vpack.c.b16 %v1359, %v1358
    %v1604 = vpack.c.b16 %v1361, %v1360
    %v1605 = vpack.c.b16 %v1363, %v1362
    %v1606 = vpack.c.b16 %v1365, %v1364
    %v1607 = vpack.c.b16 %v1367, %v1366
    %v1608 = vpack.c.b16 %v1369, %v1368
    %v1609 = vpack.c.b16 %v1371, %v1370
    %v1610 = vpack.c.b16 %v1373, %v1372
    %v1611 = vpack.c.b16 %v1375, %v1374
    %v1612 = vpack.c.b16 %v1377, %v1376
    %v1613 = vpack.c.b16 %v1379, %v1378
    %v1614 = vpack.c.b16 %v1381, %v1380
    %v1615 = vpack.c.b16 %v1383, %v1382
    %v1616 = vpack.c.b16 %v1385, %v1384
    %v1617 = vpack.c.b16 %v1387, %v1386
    %v1618 = vpack.c.b16 %v1389, %v1388
    %v1619 = vpack.c.b16 %v1391, %v1390
    %v1620 = vpack.c.b16 %v1393, %v1392
    %v1621 = vpack.c.b16 %v1395, %v1394
    %v1622 = vpack.c.b16 %v1397, %v1396
    %v1623 = vpack.c.b16 %v1399, %v1398
    %v1624 = vpack.c.b16 %v1401, %v1400
    %v1625 = vpack.c.b16 %v1403, %v1402
    %v1626 = vpack.c.b16 %v1405, %v1404
    %v1627 = vpack.c.b16 %v1407, %v1406
    %v1628 = vpack.c.b16 %v1409, %v1408
    %v1629 = vpack.c.b16 %v1411, %v1410
    %v1630 = vpack.c.b16 %v1413, %v1412
    %v1631 = vpack.c.b16 %v1415, %v1414
    %v1632 = vpack.c.b16 %v1417, %v1416
    %v1633 = vpack.c.b16 %v1419, %v1418
    %v1634 = vpack.c.b16 %v1421, %v1420
    %v1635 = vpack.c.b16 %v1423, %v1422
    %v1636 = vpack.c.b16 %v1425, %v1424
    %v1637 = vpack.c.b16 %v1427, %v1426
    %v1638 = vpack.c.b16 %v1429, %v1428
    %v1639 = vpack.c.b16 %v1431, %v1430
    %v1640 = vpack.c.b16 %v1433, %v1432
    %v1641 = vpack.c.b16 %v1435, %v1434
    %v1642 = vpack.c.b16 %v1437, %v1436
    %v1643 = vpack.c.b16 %v1439, %v1438
    %v1644 = vpack.c.b16 %v1441, %v1440
    %v1645 = vpack.c.b16 %v1443, %v1442
    %v1646 = vpack.c.b16 %v1445, %v1444
    %v1647 = vpack.c.b16 %v1447, %v1446
    %v1648 = vpack.c.b16 %v1449, %v1448
    %v1649 = vpack.c.b16 %v1451, %v1450
    %v1650 = vpack.c.b16 %v1453, %v1452
    %v1651 = vpack.c.b16 %v1455, %v1454
    %v1652 = vpack.c.b16 %v1457, %v1456
    %v1653 = vpack.c.b16 %v1459, %v1458
    %v1654 = vpack.c.b16 %v1461, %v1460
    %v1655 = vpack.c.b16 %v1463, %v1462
    %1848 = vmatpush.bf16.msra.mxu0 %v1471
    %1849 = vmatpush.bf16.msra.mxu0 %v1470
    %1850 = vmatpush.bf16.msra.mxu0 %v1469
    %1851 = vmatpush.bf16.msra.mxu0 %v1468
    %1852 = vmatpush.bf16.msra.mxu0 %v1467
    %1853 = vmatpush.bf16.msra.mxu0 %v1466
    %1854 = vmatpush.bf16.msra.mxu0 %v1465
    %1855 = vmatpush.bf16.msra.mxu0 %v1464
    %1856 = vmatmul.bf16.gmra.mxu0 %v600
    %v1857 = vpop.f32.mrf.mxu0
    %v1858 = vadd.f32 0.0, %v1857
    %v1859 = vpop.f32.mrf.mxu0
    %v1860 = vadd.f32 0.0, %v1859
    %1861 = vmatmul.bf16.gmra.mxu0 %v624
    %v1862 = vpop.f32.mrf.mxu0
    %v1863 = vadd.f32 0.0, %v1862
    %v1864 = vpop.f32.mrf.mxu0
    %v1865 = vadd.f32 0.0, %v1864
    %1866 = vdwg.mxu0
    %1867 = vmatpush.bf16.msra.mxu0 %v1479
    %1868 = vmatpush.bf16.msra.mxu0 %v1478
    %1869 = vmatpush.bf16.msra.mxu0 %v1477
    %1870 = vmatpush.bf16.msra.mxu0 %v1476
    %1871 = vmatpush.bf16.msra.mxu0 %v1475
    %1872 = vmatpush.bf16.msra.mxu0 %v1474
    %1873 = vmatpush.bf16.msra.mxu0 %v1473
    %1874 = vmatpush.bf16.msra.mxu0 %v1472
    %1875 = vmatmul.bf16.gmra.mxu0 %v601
    %v1876 = vpop.f32.mrf.mxu0
    %v1877 = vadd.f32 %v1858, %v1876
    %v1878 = vpop.f32.mrf.mxu0
    %v1879 = vadd.f32 %v1860, %v1878
    %1880 = vmatmul.bf16.gmra.mxu0 %v625
    %v1881 = vpop.f32.mrf.mxu0
    %v1882 = vadd.f32 %v1863, %v1881
    %v1883 = vpop.f32.mrf.mxu0
    %v1884 = vadd.f32 %v1865, %v1883
    %1885 = vdwg.mxu0
    %1886 = vmatpush.bf16.msra.mxu0 %v1487
    %1887 = vmatpush.bf16.msra.mxu0 %v1486
    %1888 = vmatpush.bf16.msra.mxu0 %v1485
    %1889 = vmatpush.bf16.msra.mxu0 %v1484
    %1890 = vmatpush.bf16.msra.mxu0 %v1483
    %1891 = vmatpush.bf16.msra.mxu0 %v1482
    %1892 = vmatpush.bf16.msra.mxu0 %v1481
    %1893 = vmatpush.bf16.msra.mxu0 %v1480
    %1894 = vmatmul.bf16.gmra.mxu0 %v602
    %v1895 = vpop.f32.mrf.mxu0
    %v1896 = vadd.f32 %v1877, %v1895
    %v1897 = vpop.f32.mrf.mxu0
    %v1898 = vadd.f32 %v1879, %v1897
    %1899 = vmatmul.bf16.gmra.mxu0 %v626
    %v1900 = vpop.f32.mrf.mxu0
    %v1901 = vadd.f32 %v1882, %v1900
    %v1902 = vpop.f32.mrf.mxu0
    %v1903 = vadd.f32 %v1884, %v1902
    %1904 = vdwg.mxu0
    %1905 = vmatpush.bf16.msra.mxu0 %v1495
    %1906 = vmatpush.bf16.msra.mxu0 %v1494
    %1907 = vmatpush.bf16.msra.mxu0 %v1493
    %1908 = vmatpush.bf16.msra.mxu0 %v1492
    %1909 = vmatpush.bf16.msra.mxu0 %v1491
    %1910 = vmatpush.bf16.msra.mxu0 %v1490
    %1911 = vmatpush.bf16.msra.mxu0 %v1489
    %1912 = vmatpush.bf16.msra.mxu0 %v1488
    %1913 = vmatmul.bf16.gmra.mxu0 %v603
    %v1914 = vpop.f32.mrf.mxu0
    %v1915 = vadd.f32 %v1896, %v1914
    %v1916 = vpop.f32.mrf.mxu0
    %v1917 = vadd.f32 %v1898, %v1916
    %1918 = vmatmul.bf16.gmra.mxu0 %v627
    %v1919 = vpop.f32.mrf.mxu0
    %v1920 = vadd.f32 %v1901, %v1919
    %v1921 = vpop.f32.mrf.mxu0
    %v1922 = vadd.f32 %v1903, %v1921
    %1923 = vdwg.mxu0
    %1924 = vmatpush.bf16.msra.mxu0 %v1503
    %1925 = vmatpush.bf16.msra.mxu0 %v1502
    %1926 = vmatpush.bf16.msra.mxu0 %v1501
    %1927 = vmatpush.bf16.msra.mxu0 %v1500
    %1928 = vmatpush.bf16.msra.mxu0 %v1499
    %1929 = vmatpush.bf16.msra.mxu0 %v1498
    %1930 = vmatpush.bf16.msra.mxu0 %v1497
    %1931 = vmatpush.bf16.msra.mxu0 %v1496
    %1932 = vmatmul.bf16.gmra.mxu0 %v604
    %v1933 = vpop.f32.mrf.mxu0
    %v1934 = vadd.f32 %v1915, %v1933
    %v1935 = vpop.f32.mrf.mxu0
    %v1936 = vadd.f32 %v1917, %v1935
    %1937 = vmatmul.bf16.gmra.mxu0 %v628
    %v1938 = vpop.f32.mrf.mxu0
    %v1939 = vadd.f32 %v1920, %v1938
    %v1940 = vpop.f32.mrf.mxu0
    %v1941 = vadd.f32 %v1922, %v1940
    %1942 = vdwg.mxu0
    %1943 = vmatpush.bf16.msra.mxu0 %v1511
    %1944 = vmatpush.bf16.msra.mxu0 %v1510
    %1945 = vmatpush.bf16.msra.mxu0 %v1509
    %1946 = vmatpush.bf16.msra.mxu0 %v1508
    %1947 = vmatpush.bf16.msra.mxu0 %v1507
    %1948 = vmatpush.bf16.msra.mxu0 %v1506
    %1949 = vmatpush.bf16.msra.mxu0 %v1505
    %1950 = vmatpush.bf16.msra.mxu0 %v1504
    %1951 = vmatmul.bf16.gmra.mxu0 %v605
    %v1952 = vpop.f32.mrf.mxu0
    %v1953 = vadd.f32 %v1934, %v1952
    %v1954 = vpop.f32.mrf.mxu0
    %v1955 = vadd.f32 %v1936, %v1954
    %1956 = vmatmul.bf16.gmra.mxu0 %v629
    %v1957 = vpop.f32.mrf.mxu0
    %v1958 = vadd.f32 %v1939, %v1957
    %v1959 = vpop.f32.mrf.mxu0
    %v1960 = vadd.f32 %v1941, %v1959
    %1961 = vdwg.mxu0
    %1962 = vmatpush.bf16.msra.mxu0 %v1519
    %1963 = vmatpush.bf16.msra.mxu0 %v1518
    %1964 = vmatpush.bf16.msra.mxu0 %v1517
    %1965 = vmatpush.bf16.msra.mxu0 %v1516
    %1966 = vmatpush.bf16.msra.mxu0 %v1515
    %1967 = vmatpush.bf16.msra.mxu0 %v1514
    %1968 = vmatpush.bf16.msra.mxu0 %v1513
    %1969 = vmatpush.bf16.msra.mxu0 %v1512
    %1970 = vmatmul.bf16.gmra.mxu0 %v606
    %v1971 = vpop.f32.mrf.mxu0
    %v1972 = vadd.f32 %v1953, %v1971
    %v1973 = vpop.f32.mrf.mxu0
    %v1974 = vadd.f32 %v1955, %v1973
    %1975 = vmatmul.bf16.gmra.mxu0 %v630
    %v1976 = vpop.f32.mrf.mxu0
    %v1977 = vadd.f32 %v1958, %v1976
    %v1978 = vpop.f32.mrf.mxu0
    %v1979 = vadd.f32 %v1960, %v1978
    %1980 = vdwg.mxu0
    %1981 = vmatpush.bf16.msra.mxu0 %v1527
    %1982 = vmatpush.bf16.msra.mxu0 %v1526
    %1983 = vmatpush.bf16.msra.mxu0 %v1525
    %1984 = vmatpush.bf16.msra.mxu0 %v1524
    %1985 = vmatpush.bf16.msra.mxu0 %v1523
    %1986 = vmatpush.bf16.msra.mxu0 %v1522
    %1987 = vmatpush.bf16.msra.mxu0 %v1521
    %1988 = vmatpush.bf16.msra.mxu0 %v1520
    %1989 = vmatmul.bf16.gmra.mxu0 %v607
    %v1990 = vpop.f32.mrf.mxu0
    %v1991 = vadd.f32 %v1972, %v1990
    %v1992 = vpop.f32.mrf.mxu0
    %v1993 = vadd.f32 %v1974, %v1992
    %1994 = vmatmul.bf16.gmra.mxu0 %v631
    %v1995 = vpop.f32.mrf.mxu0
    %v1996 = vadd.f32 %v1977, %v1995
    %v1997 = vpop.f32.mrf.mxu0
    %v1998 = vadd.f32 %v1979, %v1997
    %1999 = vdwg.mxu0
    %2000 = vmatpush.bf16.msra.mxu0 %v1535
    %2001 = vmatpush.bf16.msra.mxu0 %v1534
    %2002 = vmatpush.bf16.msra.mxu0 %v1533
    %2003 = vmatpush.bf16.msra.mxu0 %v1532
    %2004 = vmatpush.bf16.msra.mxu0 %v1531
    %2005 = vmatpush.bf16.msra.mxu0 %v1530
    %2006 = vmatpush.bf16.msra.mxu0 %v1529
    %2007 = vmatpush.bf16.msra.mxu0 %v1528
    %2008 = vmatmul.bf16.gmra.mxu0 %v608
    %v2009 = vpop.f32.mrf.mxu0
    %v2010 = vadd.f32 %v1991, %v2009
    %v2011 = vpop.f32.mrf.mxu0
    %v2012 = vadd.f32 %v1993, %v2011
    %2013 = vmatmul.bf16.gmra.mxu0 %v632
    %v2014 = vpop.f32.mrf.mxu0
    %v2015 = vadd.f32 %v1996, %v2014
    %v2016 = vpop.f32.mrf.mxu0
    %v2017 = vadd.f32 %v1998, %v2016
    %2018 = vdwg.mxu0
    %2019 = vmatpush.bf16.msra.mxu0 %v1543
    %2020 = vmatpush.bf16.msra.mxu0 %v1542
    %2021 = vmatpush.bf16.msra.mxu0 %v1541
    %2022 = vmatpush.bf16.msra.mxu0 %v1540
    %2023 = vmatpush.bf16.msra.mxu0 %v1539
    %2024 = vmatpush.bf16.msra.mxu0 %v1538
    %2025 = vmatpush.bf16.msra.mxu0 %v1537
    %2026 = vmatpush.bf16.msra.mxu0 %v1536
    %2027 = vmatmul.bf16.gmra.mxu0 %v609
    %v2028 = vpop.f32.mrf.mxu0
    %v2029 = vadd.f32 %v2010, %v2028
    %v2030 = vpop.f32.mrf.mxu0
    %v2031 = vadd.f32 %v2012, %v2030
    %2032 = vmatmul.bf16.gmra.mxu0 %v633
    %v2033 = vpop.f32.mrf.mxu0
    %v2034 = vadd.f32 %v2015, %v2033
    %v2035 = vpop.f32.mrf.mxu0
    %v2036 = vadd.f32 %v2017, %v2035
    %2037 = vdwg.mxu0
    %2038 = vmatpush.bf16.msra.mxu0 %v1551
    %2039 = vmatpush.bf16.msra.mxu0 %v1550
    %2040 = vmatpush.bf16.msra.mxu0 %v1549
    %2041 = vmatpush.bf16.msra.mxu0 %v1548
    %2042 = vmatpush.bf16.msra.mxu0 %v1547
    %2043 = vmatpush.bf16.msra.mxu0 %v1546
    %2044 = vmatpush.bf16.msra.mxu0 %v1545
    %2045 = vmatpush.bf16.msra.mxu0 %v1544
    %2046 = vmatmul.bf16.gmra.mxu0 %v610
    %v2047 = vpop.f32.mrf.mxu0
    %v2048 = vadd.f32 %v2029, %v2047
    %v2049 = vpop.f32.mrf.mxu0
    %v2050 = vadd.f32 %v2031, %v2049
    %2051 = vmatmul.bf16.gmra.mxu0 %v634
    %v2052 = vpop.f32.mrf.mxu0
    %v2053 = vadd.f32 %v2034, %v2052
    %v2054 = vpop.f32.mrf.mxu0
    %v2055 = vadd.f32 %v2036, %v2054
    %2056 = vdwg.mxu0
    %2057 = vmatpush.bf16.msra.mxu0 %v1559
    %2058 = vmatpush.bf16.msra.mxu0 %v1558
    %2059 = vmatpush.bf16.msra.mxu0 %v1557
    %2060 = vmatpush.bf16.msra.mxu0 %v1556
    %2061 = vmatpush.bf16.msra.mxu0 %v1555
    %2062 = vmatpush.bf16.msra.mxu0 %v1554
    %2063 = vmatpush.bf16.msra.mxu0 %v1553
    %2064 = vmatpush.bf16.msra.mxu0 %v1552
    %2065 = vmatmul.bf16.gmra.mxu0 %v611
    %v2066 = vpop.f32.mrf.mxu0
    %v2067 = vadd.f32 %v2048, %v2066
    %v2068 = vpop.f32.mrf.mxu0
    %v2069 = vadd.f32 %v2050, %v2068
    %2070 = vmatmul.bf16.gmra.mxu0 %v635
    %v2071 = vpop.f32.mrf.mxu0
    %v2072 = vadd.f32 %v2053, %v2071
    %v2073 = vpop.f32.mrf.mxu0
    %v2074 = vadd.f32 %v2055, %v2073
    %2075 = vdwg.mxu0
    %2076 = vmatpush.bf16.msra.mxu0 %v1567
    %2077 = vmatpush.bf16.msra.mxu0 %v1566
    %2078 = vmatpush.bf16.msra.mxu0 %v1565
    %2079 = vmatpush.bf16.msra.mxu0 %v1564
    %2080 = vmatpush.bf16.msra.mxu0 %v1563
    %2081 = vmatpush.bf16.msra.mxu0 %v1562
    %2082 = vmatpush.bf16.msra.mxu0 %v1561
    %2083 = vmatpush.bf16.msra.mxu0 %v1560
    %2084 = vmatmul.bf16.gmra.mxu0 %v612
    %v2085 = vpop.f32.mrf.mxu0
    %v2086 = vadd.f32 %v2067, %v2085
    %v2087 = vpop.f32.mrf.mxu0
    %v2088 = vadd.f32 %v2069, %v2087
    %2089 = vmatmul.bf16.gmra.mxu0 %v636
    %v2090 = vpop.f32.mrf.mxu0
    %v2091 = vadd.f32 %v2072, %v2090
    %v2092 = vpop.f32.mrf.mxu0
    %v2093 = vadd.f32 %v2074, %v2092
    %2094 = vdwg.mxu0
    %2095 = vmatpush.bf16.msra.mxu0 %v1575
    %2096 = vmatpush.bf16.msra.mxu0 %v1574
    %2097 = vmatpush.bf16.msra.mxu0 %v1573
    %2098 = vmatpush.bf16.msra.mxu0 %v1572
    %2099 = vmatpush.bf16.msra.mxu0 %v1571
    %2100 = vmatpush.bf16.msra.mxu0 %v1570
    %2101 = vmatpush.bf16.msra.mxu0 %v1569
    %2102 = vmatpush.bf16.msra.mxu0 %v1568
    %2103 = vmatmul.bf16.gmra.mxu0 %v613
    %v2104 = vpop.f32.mrf.mxu0
    %v2105 = vadd.f32 %v2086, %v2104
    %v2106 = vpop.f32.mrf.mxu0
    %v2107 = vadd.f32 %v2088, %v2106
    %2108 = vmatmul.bf16.gmra.mxu0 %v637
    %v2109 = vpop.f32.mrf.mxu0
    %v2110 = vadd.f32 %v2091, %v2109
    %v2111 = vpop.f32.mrf.mxu0
    %v2112 = vadd.f32 %v2093, %v2111
    %2113 = vdwg.mxu0
    %2114 = vmatpush.bf16.msra.mxu0 %v1583
    %2115 = vmatpush.bf16.msra.mxu0 %v1582
    %2116 = vmatpush.bf16.msra.mxu0 %v1581
    %2117 = vmatpush.bf16.msra.mxu0 %v1580
    %2118 = vmatpush.bf16.msra.mxu0 %v1579
    %2119 = vmatpush.bf16.msra.mxu0 %v1578
    %2120 = vmatpush.bf16.msra.mxu0 %v1577
    %2121 = vmatpush.bf16.msra.mxu0 %v1576
    %2122 = vmatmul.bf16.gmra.mxu0 %v614
    %v2123 = vpop.f32.mrf.mxu0
    %v2124 = vadd.f32 %v2105, %v2123
    %v2125 = vpop.f32.mrf.mxu0
    %v2126 = vadd.f32 %v2107, %v2125
    %2127 = vmatmul.bf16.gmra.mxu0 %v638
    %v2128 = vpop.f32.mrf.mxu0
    %v2129 = vadd.f32 %v2110, %v2128
    %v2130 = vpop.f32.mrf.mxu0
    %v2131 = vadd.f32 %v2112, %v2130
    %2132 = vdwg.mxu0
    %2133 = vmatpush.bf16.msra.mxu0 %v1591
    %2134 = vmatpush.bf16.msra.mxu0 %v1590
    %2135 = vmatpush.bf16.msra.mxu0 %v1589
    %2136 = vmatpush.bf16.msra.mxu0 %v1588
    %2137 = vmatpush.bf16.msra.mxu0 %v1587
    %2138 = vmatpush.bf16.msra.mxu0 %v1586
    %2139 = vmatpush.bf16.msra.mxu0 %v1585
    %2140 = vmatpush.bf16.msra.mxu0 %v1584
    %2141 = vmatmul.bf16.gmra.mxu0 %v615
    %v2142 = vpop.f32.mrf.mxu0
    %v2143 = vadd.f32 %v2124, %v2142
    %v2144 = vpop.f32.mrf.mxu0
    %v2145 = vadd.f32 %v2126, %v2144
    %2146 = vmatmul.bf16.gmra.mxu0 %v639
    %v2147 = vpop.f32.mrf.mxu0
    %v2148 = vadd.f32 %v2129, %v2147
    %v2149 = vpop.f32.mrf.mxu0
    %v2150 = vadd.f32 %v2131, %v2149
    %2151 = vdwg.mxu0
    %2152 = vmatpush.bf16.msra.mxu0 %v1599
    %2153 = vmatpush.bf16.msra.mxu0 %v1598
    %2154 = vmatpush.bf16.msra.mxu0 %v1597
    %2155 = vmatpush.bf16.msra.mxu0 %v1596
    %2156 = vmatpush.bf16.msra.mxu0 %v1595
    %2157 = vmatpush.bf16.msra.mxu0 %v1594
    %2158 = vmatpush.bf16.msra.mxu0 %v1593
    %2159 = vmatpush.bf16.msra.mxu0 %v1592
    %2160 = vmatmul.bf16.gmra.mxu0 %v616
    %v2161 = vpop.f32.mrf.mxu0
    %v2162 = vadd.f32 %v2143, %v2161
    %v2163 = vpop.f32.mrf.mxu0
    %v2164 = vadd.f32 %v2145, %v2163
    %2165 = vmatmul.bf16.gmra.mxu0 %v640
    %v2166 = vpop.f32.mrf.mxu0
    %v2167 = vadd.f32 %v2148, %v2166
    %v2168 = vpop.f32.mrf.mxu0
    %v2169 = vadd.f32 %v2150, %v2168
    %2170 = vdwg.mxu0
    %2171 = vmatpush.bf16.msra.mxu0 %v1607
    %2172 = vmatpush.bf16.msra.mxu0 %v1606
    %2173 = vmatpush.bf16.msra.mxu0 %v1605
    %2174 = vmatpush.bf16.msra.mxu0 %v1604
    %2175 = vmatpush.bf16.msra.mxu0 %v1603
    %2176 = vmatpush.bf16.msra.mxu0 %v1602
    %2177 = vmatpush.bf16.msra.mxu0 %v1601
    %2178 = vmatpush.bf16.msra.mxu0 %v1600
    %2179 = vmatmul.bf16.gmra.mxu0 %v617
    %v2180 = vpop.f32.mrf.mxu0
    %v2181 = vadd.f32 %v2162, %v2180
    %v2182 = vpop.f32.mrf.mxu0
    %v2183 = vadd.f32 %v2164, %v2182
    %2184 = vmatmul.bf16.gmra.mxu0 %v641
    %v2185 = vpop.f32.mrf.mxu0
    %v2186 = vadd.f32 %v2167, %v2185
    %v2187 = vpop.f32.mrf.mxu0
    %v2188 = vadd.f32 %v2169, %v2187
    %2189 = vdwg.mxu0
    %2190 = vmatpush.bf16.msra.mxu0 %v1615
    %2191 = vmatpush.bf16.msra.mxu0 %v1614
    %2192 = vmatpush.bf16.msra.mxu0 %v1613
    %2193 = vmatpush.bf16.msra.mxu0 %v1612
    %2194 = vmatpush.bf16.msra.mxu0 %v1611
    %2195 = vmatpush.bf16.msra.mxu0 %v1610
    %2196 = vmatpush.bf16.msra.mxu0 %v1609
    %2197 = vmatpush.bf16.msra.mxu0 %v1608
    %2198 = vmatmul.bf16.gmra.mxu0 %v618
    %v2199 = vpop.f32.mrf.mxu0
    %v2200 = vadd.f32 %v2181, %v2199
    %v2201 = vpop.f32.mrf.mxu0
    %v2202 = vadd.f32 %v2183, %v2201
    %2203 = vmatmul.bf16.gmra.mxu0 %v642
    %v2204 = vpop.f32.mrf.mxu0
    %v2205 = vadd.f32 %v2186, %v2204
    %v2206 = vpop.f32.mrf.mxu0
    %v2207 = vadd.f32 %v2188, %v2206
    %2208 = vdwg.mxu0
    %2209 = vmatpush.bf16.msra.mxu0 %v1623
    %2210 = vmatpush.bf16.msra.mxu0 %v1622
    %2211 = vmatpush.bf16.msra.mxu0 %v1621
    %2212 = vmatpush.bf16.msra.mxu0 %v1620
    %2213 = vmatpush.bf16.msra.mxu0 %v1619
    %2214 = vmatpush.bf16.msra.mxu0 %v1618
    %2215 = vmatpush.bf16.msra.mxu0 %v1617
    %2216 = vmatpush.bf16.msra.mxu0 %v1616
    %2217 = vmatmul.bf16.gmra.mxu0 %v619
    %v2218 = vpop.f32.mrf.mxu0
    %v2219 = vadd.f32 %v2200, %v2218
    %v2220 = vpop.f32.mrf.mxu0
    %v2221 = vadd.f32 %v2202, %v2220
    %2222 = vmatmul.bf16.gmra.mxu0 %v643
    %v2223 = vpop.f32.mrf.mxu0
    %v2224 = vadd.f32 %v2205, %v2223
    %v2225 = vpop.f32.mrf.mxu0
    %v2226 = vadd.f32 %v2207, %v2225
    %2227 = vdwg.mxu0
    %2228 = vmatpush.bf16.msra.mxu0 %v1631
    %2229 = vmatpush.bf16.msra.mxu0 %v1630
    %2230 = vmatpush.bf16.msra.mxu0 %v1629
    %2231 = vmatpush.bf16.msra.mxu0 %v1628
    %2232 = vmatpush.bf16.msra.mxu0 %v1627
    %2233 = vmatpush.bf16.msra.mxu0 %v1626
    %2234 = vmatpush.bf16.msra.mxu0 %v1625
    %2235 = vmatpush.bf16.msra.mxu0 %v1624
    %2236 = vmatmul.bf16.gmra.mxu0 %v620
    %v2237 = vpop.f32.mrf.mxu0
    %v2238 = vadd.f32 %v2219, %v2237
    %v2239 = vpop.f32.mrf.mxu0
    %v2240 = vadd.f32 %v2221, %v2239
    %2241 = vmatmul.bf16.gmra.mxu0 %v644
    %v2242 = vpop.f32.mrf.mxu0
    %v2243 = vadd.f32 %v2224, %v2242
    %v2244 = vpop.f32.mrf.mxu0
    %v2245 = vadd.f32 %v2226, %v2244
    %2246 = vdwg.mxu0
    %2247 = vmatpush.bf16.msra.mxu0 %v1639
    %2248 = vmatpush.bf16.msra.mxu0 %v1638
    %2249 = vmatpush.bf16.msra.mxu0 %v1637
    %2250 = vmatpush.bf16.msra.mxu0 %v1636
    %2251 = vmatpush.bf16.msra.mxu0 %v1635
    %2252 = vmatpush.bf16.msra.mxu0 %v1634
    %2253 = vmatpush.bf16.msra.mxu0 %v1633
    %2254 = vmatpush.bf16.msra.mxu0 %v1632
    %2255 = vmatmul.bf16.gmra.mxu0 %v621
    %v2256 = vpop.f32.mrf.mxu0
    %v2257 = vadd.f32 %v2238, %v2256
    %v2258 = vpop.f32.mrf.mxu0
    %v2259 = vadd.f32 %v2240, %v2258
    %2260 = vmatmul.bf16.gmra.mxu0 %v645
    %v2261 = vpop.f32.mrf.mxu0
    %v2262 = vadd.f32 %v2243, %v2261
    %v2263 = vpop.f32.mrf.mxu0
    %v2264 = vadd.f32 %v2245, %v2263
    %2265 = vdwg.mxu0
    %2266 = vmatpush.bf16.msra.mxu0 %v1647
    %2267 = vmatpush.bf16.msra.mxu0 %v1646
    %2268 = vmatpush.bf16.msra.mxu0 %v1645
    %2269 = vmatpush.bf16.msra.mxu0 %v1644
    %2270 = vmatpush.bf16.msra.mxu0 %v1643
    %2271 = vmatpush.bf16.msra.mxu0 %v1642
    %2272 = vmatpush.bf16.msra.mxu0 %v1641
    %2273 = vmatpush.bf16.msra.mxu0 %v1640
    %2274 = vmatmul.bf16.gmra.mxu0 %v622
    %v2275 = vpop.f32.mrf.mxu0
    %v2276 = vadd.f32 %v2257, %v2275
    %v2277 = vpop.f32.mrf.mxu0
    %v2278 = vadd.f32 %v2259, %v2277
    %2279 = vmatmul.bf16.gmra.mxu0 %v646
    %v2280 = vpop.f32.mrf.mxu0
    %v2281 = vadd.f32 %v2262, %v2280
    %v2282 = vpop.f32.mrf.mxu0
    %v2283 = vadd.f32 %v2264, %v2282
    %2284 = vdwg.mxu0
    %2285 = vmatpush.bf16.msra.mxu0 %v1655
    %2286 = vmatpush.bf16.msra.mxu0 %v1654
    %2287 = vmatpush.bf16.msra.mxu0 %v1653
    %2288 = vmatpush.bf16.msra.mxu0 %v1652
    %2289 = vmatpush.bf16.msra.mxu0 %v1651
    %2290 = vmatpush.bf16.msra.mxu0 %v1650
    %2291 = vmatpush.bf16.msra.mxu0 %v1649
    %2292 = vmatpush.bf16.msra.mxu0 %v1648
    %2293 = vmatmul.bf16.gmra.mxu0 %v623
    %v2294 = vpop.f32.mrf.mxu0
    %v2295 = vadd.f32 %v2276, %v2294
    %v2296 = vpop.f32.mrf.mxu0
    %v2297 = vadd.f32 %v2278, %v2296
    %2298 = vmatmul.bf16.gmra.mxu0 %v647
    %v2299 = vpop.f32.mrf.mxu0
    %v2300 = vadd.f32 %v2281, %v2299
    %v2301 = vpop.f32.mrf.mxu0
    %v2302 = vadd.f32 %v2283, %v2301
    %2303 = vdwg.mxu0
    %p2304 = scmp.eq.s32.totalorder 0, 0
    // Predicated region
    $region26: #{salience_forward.9} parent=1 // pred_check
      %p2305 = pneg %p2304
    $region27: #{salience_forward.9} parent=1 // pred_check_branch
      %2307 = sbr.rel (%p2305) target = $region29
    $region28: #{salience_forward.9} parent=1 // pred_region
      %2308 = vst [vmem:[#allocation2] sm:$0xff] %v2295
      %2309 = vst [vmem:[#allocation2 + $0x8] sm:$0xff] %v2297
      %2310 = vst [vmem:[#allocation2 + $0x10] sm:$0xff] %v2300
      %2311 = vst [vmem:[#allocation2 + $0x18] sm:$0xff] %v2302
    $region29: #{salience_forward.9} parent=1 // pred_fallthru
      _
    %p2312 = scmp.gt.s32.totalorder 0, 0
    // Predicated region
    $region30: #{salience_forward.9} parent=1 // pred_check
      %p2313 = pneg %p2312
    $region31: #{salience_forward.9} parent=1 // pred_check_branch
      %2315 = sbr.rel (%p2313) target = $region33
    $region32: #{salience_forward.9} parent=1 // pred_region
      %v2316 = vld [vmem:[#allocation2] sm:$0xff]
      %v2317 = vld [vmem:[#allocation2 + $0x8] sm:$0xff]
      %v2318 = vld [vmem:[#allocation2 + $0x10] sm:$0xff]
      %v2319 = vld [vmem:[#allocation2 + $0x18] sm:$0xff]
      %v2320 = vadd.f32 %v2316, %v2295
      %v2321 = vadd.f32 %v2317, %v2297
      %v2322 = vadd.f32 %v2318, %v2300
      %v2323 = vadd.f32 %v2319, %v2302
      %2324 = vst [vmem:[#allocation2] sm:$0xff] %v2320
      %2325 = vst [vmem:[#allocation2 + $0x8] sm:$0xff] %v2321
      %2326 = vst [vmem:[#allocation2 + $0x10] sm:$0xff] %v2322
      %2327 = vst [vmem:[#allocation2 + $0x18] sm:$0xff] %v2323
    $region33: #{salience_forward.9} parent=1 // pred_fallthru
      _
    // Predicated region
    $region34: #{salience_forward.9} parent=1 // pred_check
      %p2328 = pneg %p2304
    $region35: #{salience_forward.9} parent=1 // pred_check_branch
      %2330 = sbr.rel (%p2328) target = $region37
    $region36: #{salience_forward.9} parent=1 // pred_region
      %v2331 = vld [vmem:[#allocation2] sm:$0xff]
      %v2332 = vld [vmem:[#allocation2 + $0x8] sm:$0xff]
      %v2333 = vld [vmem:[#allocation2 + $0x10] sm:$0xff]
      %v2334 = vld [vmem:[#allocation2 + $0x18] sm:$0xff]
      %v2335 = vld [vmem:[%s2] sm:$0x1]
      %v2337 = vperm.slane %v2335, 0
      %v2339 = vmul.f32 %v2331, %v2337
      %v2340 = vmul.f32 %v2332, %v2337
      %v2341 = vmul.f32 %v2333, %v2337
      %v2342 = vmul.f32 %v2334, %v2337
      %v2343 = vld [vmem:[%s3] sm:$0x1]
      %v2345 = vperm.slane %v2343, 0
      %v2347 = vadd.f32 %v2339, %v2345
      %v2348 = vadd.f32 %v2340, %v2345
      %v2349 = vadd.f32 %v2341, %v2345
      %v2350 = vadd.f32 %v2342, %v2345
      %v2351 = vmax.f32 %v2347, 0.0
      %v2352 = vmax.f32 %v2348, 0.0
      %v2353 = vmax.f32 %v2349, 0.0
      %v2354 = vmax.f32 %v2350, 0.0
      %v2355 = vpack.c.bf16 %v2352, %v2351
      %v2356 = vpack.c.bf16 %v2354, %v2353
      %v2357 = vld [vmem:[%s4] sm:$0xf]
      %v2358 = vld [vmem:[%s4 + $0x4] sm:$0xf]
      %v2359 = vld [vmem:[%s4 + $0x8] sm:$0xf]
      %v2360 = vld [vmem:[%s4 + $0xc] sm:$0xf]
      %v2361 = vld [vmem:[%s4 + $0x10] sm:$0xf]
      %v2362 = vld [vmem:[%s4 + $0x14] sm:$0xf]
      %v2363 = vld [vmem:[%s4 + $0x18] sm:$0xf]
      %v2364 = vld [vmem:[%s4 + $0x1c] sm:$0xf]
      %v2365 = vld [vmem:[%s4 + $0x20] sm:$0xf]
      %v2366 = vld [vmem:[%s4 + $0x24] sm:$0xf]
      %v2367 = vld [vmem:[%s4 + $0x28] sm:$0xf]
      %v2368 = vld [vmem:[%s4 + $0x2c] sm:$0xf]
      %v2369 = vld [vmem:[%s4 + $0x30] sm:$0xf]
      %v2370 = vld [vmem:[%s4 + $0x34] sm:$0xf]
      %v2371 = vld [vmem:[%s4 + $0x38] sm:$0xf]
      %v2372 = vld [vmem:[%s4 + $0x3c] sm:$0xf]
      %v2373 = vld [vmem:[%s5] sm:$0x1]
      %v2375 = vperm.slane %v2373, 0
      %v2393 = vunpack.c.l.b16 %v2357
      %v2394 = vunpack.c.l.b16 %v2358
      %v2395 = vunpack.c.l.b16 %v2359
      %v2396 = vunpack.c.l.b16 %v2360
      %v2397 = vunpack.c.l.b16 %v2361
      %v2398 = vunpack.c.l.b16 %v2362
      %v2399 = vunpack.c.l.b16 %v2363
      %v2400 = vunpack.c.l.b16 %v2364
      %v2401 = vunpack.c.l.b16 %v2365
      %v2402 = vunpack.c.l.b16 %v2366
      %v2403 = vunpack.c.l.b16 %v2367
      %v2404 = vunpack.c.l.b16 %v2368
      %v2405 = vunpack.c.l.b16 %v2369
      %v2406 = vunpack.c.l.b16 %v2370
      %v2407 = vunpack.c.l.b16 %v2371
      %v2408 = vunpack.c.l.b16 %v2372
      %v2409 = vpack.c.b16 %v2394, %v2393
      %v2410 = vpack.c.b16 %v2396, %v2395
      %v2411 = vpack.c.b16 %v2398, %v2397
      %v2412 = vpack.c.b16 %v2400, %v2399
      %v2413 = vpack.c.b16 %v2402, %v2401
      %v2414 = vpack.c.b16 %v2404, %v2403
      %v2415 = vpack.c.b16 %v2406, %v2405
      %v2416 = vpack.c.b16 %v2408, %v2407
      %2425 = vmatpush.bf16.msra.mxu0 %v2416
      %2426 = vmatpush.bf16.msra.mxu0 %v2415
      %2427 = vmatpush.bf16.msra.mxu0 %v2414
      %2428 = vmatpush.bf16.msra.mxu0 %v2413
      %2429 = vmatpush.bf16.msra.mxu0 %v2412
      %2430 = vmatpush.bf16.msra.mxu0 %v2411
      %2431 = vmatpush.bf16.msra.mxu0 %v2410
      %2432 = vmatpush.bf16.msra.mxu0 %v2409
      %2433 = vmatmul.bf16.gmra.mxu0 %v2355
      %v2434 = vpop.f32.mrf.mxu0
      %v2435 = vadd.f32 %v2375, %v2434
      %v2436 = vpop.f32.mrf.mxu0
      %v2437 = vadd.f32 %v2375, %v2436
      %2438 = vmatmul.bf16.gmra.mxu0 %v2356
      %v2439 = vpop.f32.mrf.mxu0
      %v2440 = vadd.f32 %v2375, %v2439
      %v2441 = vpop.f32.mrf.mxu0
      %v2442 = vadd.f32 %v2375, %v2441
      %2443 = vdwg.mxu0
      %2444 = vst [vmem:[#allocation3] sm:$0xff] %v2435
      %2445 = vst [vmem:[#allocation3 + $0x8] sm:$0xff] %v2437
      %2446 = vst [vmem:[#allocation3 + $0x10] sm:$0xff] %v2440
      %2447 = vst [vmem:[#allocation3 + $0x18] sm:$0xff] %v2442
    $region37: #{salience_forward.9} parent=1 // pred_fallthru
      _
    // Predicated region
    $region38: #{salience_forward.9} parent=1 // pred_check
      _
    $region39: #{salience_forward.9} parent=1 // pred_check_branch
      %2449 = sbr.rel (0) target = $region41
    $region40: #{salience_forward.9} parent=1 // pred_region
      %2451 = vsyncadd [#allocation4], 0
      %s2452 = sshll.u32 [#allocation3], 4
      %s2453 = int_to_ptr.vmem [resolvable:$true] %s2452
      %s2454 = sshll.u32 %s6, 4
      %s2455 = int_to_ptr.hbm [resolvable:$true] %s2454
      %2460 = dma.vmem_to_hbm [thread:$0]  %s2453, 512, %s2455, [#allocation4], 128, 128, 8
    $region41: #{salience_forward.9} parent=1 // pred_fallthru
      _
    // Predicated region
    $region42: #{salience_forward.9} parent=1 // pred_check
      _
    $region43: #{salience_forward.9} parent=1 // pred_check_branch
      %2462 = sbr.rel (0) target = $region45
    $region44: #{salience_forward.9} parent=1 // pred_region
      %2464 = dma.done [#allocation4], 512
    $region45: #{salience_forward.9} parent=1 // pred_fallthru
      _
    %2465 = vsyncpa [#allocation4], 1

</llo_original>
